<compile_context>
chip_gen: v6e
topology: v6e:2x2x1
jax: 0.10.0
libtpu: 0.0.40
codegen_flags: <defaults>
</compile_context>

<pallas_src>
import functools

import jax
import jax.numpy as jnp
from jax.experimental import pallas as pl
from jax.experimental.pallas import tpu as pltpu


def _encoder_gru_kernel(x0_ref, h0_ref, wih_ref, whh_ref, bx_ref, bhn_ref,
                        out_ref, hN_ref, gx0_ref,
                        *, seq_len, batch, hidden, num_layers):
    """All GRU layers over the full sequence, wavefront-interleaved.

    x0_ref : (S*B, H)     layer-0 input (embedded tokens, time-major, flattened)
    h0_ref : (L, B, H)    initial hidden state per layer
    wih_ref: (L, H, 3H)   input->gates weights (pre-transposed)
    whh_ref: (L, H, 3H)   hidden->gates weights (pre-transposed)
    bx_ref : (L, 1, 3H)   [b_ir+b_hr, b_iz+b_hz, b_in]  (folded into gx)
    bhn_ref: (L, 1, H)    b_hn (must stay inside r * (...))
    out_ref: (S*B, H)     last layer's outputs, time-major, flattened
    hN_ref : (L, B, H)    final hidden state per layer
    gx0_ref: (S*B, 3H)    VMEM scratch: hoisted layer-0 input projection
    """
    S, B, H, L = seq_len, batch, hidden, num_layers

    # --- hoisted layer-0 input projection over the whole sequence (one big MXU op)
    gx0_ref[...] = (
        jnp.dot(x0_ref[...], wih_ref[0], preferred_element_type=jnp.float32)
        + bx_ref[0])

    # --- loop-invariant bias broadcasts hoisted off the serial path
    bhn_b = [jnp.broadcast_to(bhn_ref[l], (B, H)) for l in range(L)]
    bx_b = [None] + [jnp.broadcast_to(bx_ref[l], (B, 3 * H)) for l in range(1, L)]

    def row_of(t):
        row = t * B
        if not isinstance(row, int) and B % 8 == 0:
            row = pl.multiple_of(row, 8)     # sublane-aligned dynamic slice hint
        return row

    def wave_step(w, layers, hs, diag):
        """One wavefront step: layer l processes timestep t = w - l.

        hs   : list of L    (B, H) hidden-state values (carried in registers)
        diag : list of L-1  (B, H) values; diag[l] = layer l's output at its
               most recent timestep (= layer l+1's input next wavefront step)
        """
        hs = list(hs)
        diag = list(diag)

        # Phase 1: each active layer's gate pre-activation from its input
        # (independent across layers; layer 0 reuses the hoisted projection).
        gxs = {}
        for l in layers:
            if l == 0:
                gxs[l] = gx0_ref[pl.ds(row_of(w), B), :]
            else:
                gxs[l] = (jnp.dot(diag[l - 1], wih_ref[l],
                                  preferred_element_type=jnp.float32)
                          + bx_b[l])

        # Phase 2: L independent recurrent matmuls + gate math.
        for l in layers:
            h = hs[l]
            gx = gxs[l]
            gh = jnp.dot(h, whh_ref[l], preferred_element_type=jnp.float32)
            r = jax.nn.sigmoid(gx[:, 0 * H:1 * H] + gh[:, 0 * H:1 * H])
            z = jax.nn.sigmoid(gx[:, 1 * H:2 * H] + gh[:, 1 * H:2 * H])
            n = jnp.tanh(gx[:, 2 * H:3 * H] + r * (gh[:, 2 * H:3 * H] + bhn_b[l]))
            h_new = n + z * (h - n)                  # == (1 - z) * n + z * h
            hs[l] = h_new
            if l == L - 1:
                out_ref[pl.ds(row_of(w - l), B), :] = h_new   # direct output store
            else:
                diag[l] = h_new
        return hs, diag

    def active(w):
        return [l for l in range(L) if 0 <= w - l < S]

    hs = [h0_ref[l] for l in range(L)]
    diag = [jnp.zeros((B, H), jnp.float32) for _ in range(max(L - 1, 0))]

    total = S + L - 1
    lo, hi = L - 1, S            # wavefront steps where all L layers are active
    if hi > lo:
        # prologue (static): layers fill in one by one
        for w in range(lo):
            hs, diag = wave_step(w, active(w), hs, diag)

        # steady state: unrolled fori_loop so the scheduler overlaps the L chains
        n_steady = hi - lo
        unroll = True if n_steady <= 8 else 4

        def body(w, carry):
            hs_c, diag_c = carry
            hs_n, diag_n = wave_step(w, list(range(L)), list(hs_c), list(diag_c))
            return (tuple(hs_n), tuple(diag_n))

        hs_t, diag_t = jax.lax.fori_loop(lo, hi, body,
                                         (tuple(hs), tuple(diag)), unroll=unroll)
        hs, diag = list(hs_t), list(diag_t)

        # epilogue (static): layers drain one by one
        for w in range(hi, total):
            hs, diag = wave_step(w, active(w), hs, diag)
    else:
        # short sequences (S < L): fully static wavefront
        for w in range(total):
            hs, diag = wave_step(w, active(w), hs, diag)

    for l in range(L):
        hN_ref[l] = hs[l]


def encoder_rnn_forward(params, tokens, hidden):
    """EncoderRNN.forward.

    tokens: (B, S) int32 token ids          (batch_first, like the PyTorch module)
    hidden: (num_layers, B, H) float32
    returns (output: (B, S, H), hidden: (num_layers, B, H))
    """
    B0, S = tokens.shape
    H = params["embedding"].shape[1]
    L = params["w_ih_t"].shape[0]

    # Pad batch to a sublane multiple so every per-step (B, .) access is aligned.
    B = ((B0 + 7) // 8) * 8
    if B != B0:
        tokens = jnp.pad(tokens, ((0, B - B0), (0, 0)))
        hidden = jnp.pad(hidden, ((0, 0), (0, B - B0), (0, 0)))

    # Embedding gather directly into time-major (S, B, H), flattened to (S*B, H).
    emb_tm = jnp.take(params["embedding"], tokens.T, axis=0)          # (S, B, H)
    x0 = emb_tm.reshape(S * B, H).astype(jnp.float32)

    kernel = functools.partial(_encoder_gru_kernel, seq_len=S, batch=B,
                               hidden=H, num_layers=L)

    # Explicit scoped-VMEM budget (defaults: 16 MiB v5e / 32 MiB v6e-v7x).
    f32 = 4
    need = f32 * (2 * S * B * H                         # x0 blocks
                  + 2 * S * B * H                       # out blocks
                  + S * B * 3 * H                       # gx0 scratch
                  + 2 * (2 * L * H * 3 * H + 4 * L * H + L * B * H)  # weights/bias/h0
                  + 2 * L * B * H)                      # hN blocks
    vmem_limit = int(min(64 * 1024 * 1024,
                         max(16 * 1024 * 1024, 2 * need + (4 << 20))))

    out_flat, hN = pl.pallas_call(
        kernel,
        out_shape=(
            jax.ShapeDtypeStruct((S * B, H), jnp.float32),
            jax.ShapeDtypeStruct((L, B, H), jnp.float32),
        ),
        grid=(1,),
        in_specs=[
            pl.BlockSpec((S * B, H), lambda i: (0, 0)),          # x0
            pl.BlockSpec((L, B, H), lambda i: (0, 0, 0)),        # h0
            pl.BlockSpec((L, H, 3 * H), lambda i: (0, 0, 0)),    # W_ih^T (stacked)
            pl.BlockSpec((L, H, 3 * H), lambda i: (0, 0, 0)),    # W_hh^T (stacked)
            pl.BlockSpec((L, 1, 3 * H), lambda i: (0, 0, 0)),    # folded input bias
            pl.BlockSpec((L, 1, H), lambda i: (0, 0, 0)),        # b_hn
        ],
        out_specs=(
            pl.BlockSpec((S * B, H), lambda i: (0, 0)),          # sequence output
            pl.BlockSpec((L, B, H), lambda i: (0, 0, 0)),        # final hidden
        ),
        scratch_shapes=[
            pltpu.VMEM((S * B, 3 * H), jnp.float32),             # hoisted layer-0 gx
        ],
        compiler_params=pltpu.CompilerParams(
            dimension_semantics=("arbitrary",),
            vmem_limit_bytes=vmem_limit),
    )(x0, hidden.astype(jnp.float32), params["w_ih_t"], params["w_hh_t"],
      params["b_x"], params["b_hn"])

    output = jnp.transpose(out_flat.reshape(S, B, H), (1, 0, 2))  # (B, S, H)
    return output[:B0], hN[:, :B0]


def init_params(key, input_size, hidden_size, num_layers):
    H = hidden_size
    keys = jax.random.split(key, 1 + 4 * num_layers)
    emb = 0.1 * jax.random.normal(keys[0], (input_size, H), jnp.float32)
    w_ih_t, w_hh_t, b_ih, b_hh = [], [], [], []
    for l in range(num_layers):
        k1, k2, k3, k4 = keys[1 + 4 * l: 1 + 4 * (l + 1)]
        # every layer's input size is hidden_size here; stored pre-transposed
        w_ih_t.append(0.1 * jax.random.normal(k1, (H, 3 * H), jnp.float32))
        w_hh_t.append(0.1 * jax.random.normal(k2, (H, 3 * H), jnp.float32))
        b_ih.append(0.1 * jax.random.normal(k3, (3 * H,), jnp.float32))
        b_hh.append(0.1 * jax.random.normal(k4, (3 * H,), jnp.float32))
    w_ih_t = jnp.stack(w_ih_t)            # (L, H, 3H)
    w_hh_t = jnp.stack(w_hh_t)            # (L, H, 3H)
    b_ih = jnp.stack(b_ih)                # (L, 3H)
    b_hh = jnp.stack(b_hh)                # (L, 3H)
    # Pre-fold: r/z gates get b_ih + b_hh; n gate keeps only b_in here
    # (b_hn must stay inside r * (h·W_hn + b_hn) and is passed separately).
    b_x = (b_ih.at[:, :2 * H].add(b_hh[:, :2 * H]))[:, None, :]   # (L, 1, 3H)
    b_hn = b_hh[:, 2 * H:][:, None, :]                            # (L, 1, H)
    return {"embedding": emb, "w_ih_t": w_ih_t, "w_hh_t": w_hh_t,
            "b_x": b_x, "b_hn": b_hn,
            # raw biases kept only for the independent pure-JAX reference
            "b_ih": b_ih, "b_hh": b_hh}


def _reference_forward(params, tokens, hidden):
    """Pure-JAX reference (PyTorch GRU math, un-folded biases)."""
    emb = jnp.take(params["embedding"], tokens, axis=0)           # (B, S, H)
    x_tm = jnp.transpose(emb, (1, 0, 2)).astype(jnp.float32)      # (S, B, H)
    H = hidden.shape[-1]
    new_hidden = []
    layer_in = x_tm
    for l in range(params["w_ih_t"].shape[0]):
        w_ih = params["w_ih_t"][l]
        w_hh = params["w_hh_t"][l]
        b_ih = params["b_ih"][l]
        b_hh = params["b_hh"][l]

        def step(h, x_t, w_ih=w_ih, w_hh=w_hh, b_ih=b_ih, b_hh=b_hh):
            gx = x_t @ w_ih + b_ih
            gh = h @ w_hh + b_hh
            r = jax.nn.sigmoid(gx[:, :H] + gh[:, :H])
            z = jax.nn.sigmoid(gx[:, H:2 * H] + gh[:, H:2 * H])
            n = jnp.tanh(gx[:, 2 * H:] + r * gh[:, 2 * H:])
            h_new = (1.0 - z) * n + z * h
            return h_new, h_new

        hN, outs = jax.lax.scan(step, hidden[l], layer_in)
        new_hidden.append(hN)
        layer_in = outs
    return jnp.transpose(layer_in, (1, 0, 2)), jnp.stack(new_hidden, axis=0)


if __name__ == "__main__":
    input_size = 50      # vocab size
    hidden_size = 32
    num_layers = 5
    batch = 8
    seq = 8

    key = jax.random.PRNGKey(0)
    k_params, k_tok, k_hid = jax.random.split(key, 3)

    params = init_params(k_params, input_size, hidden_size, num_layers)
    tokens = jax.random.randint(k_tok, (batch, seq), 0, input_size, dtype=jnp.int32)
    hidden0 = 0.1 * jax.random.normal(k_hid, (num_layers, batch, hidden_size),
                                      jnp.float32)

    fwd = jax.jit(encoder_rnn_forward)
    output, hidden_out = fwd(params, tokens, hidden0)
    jax.block_until_ready((output, hidden_out))

    # sanity check against a pure-JAX reference
    ref_out, ref_hid = _reference_forward(params, tokens, hidden0)
    assert output.shape == (batch, seq, hidden_size)
    assert hidden_out.shape == (num_layers, batch, hidden_size)
    assert jnp.allclose(output, ref_out, atol=1e-4), "output mismatch"
    assert jnp.allclose(hidden_out, ref_hid, atol=1e-4), "hidden mismatch"

    print("KERNEL_OK")
</pallas_src>

<mosaic_0001>
module attributes {stable_mosaic.version = 11 : i64} {
  func.func @_encoder_gru_kernel(%arg0: i32, %arg1: memref<64x32xf32, #tpu.memory_space<vmem>>, %arg2: memref<5x8x32xf32, #tpu.memory_space<vmem>>, %arg3: memref<5x32x96xf32, #tpu.memory_space<vmem>>, %arg4: memref<5x32x96xf32, #tpu.memory_space<vmem>>, %arg5: memref<5x1x96xf32, #tpu.memory_space<vmem>>, %arg6: memref<5x1x32xf32, #tpu.memory_space<vmem>>, %arg7: memref<64x32xf32, #tpu.memory_space<vmem>>, %arg8: memref<5x8x32xf32, #tpu.memory_space<vmem>>, %arg9: memref<64x96xf32, #tpu.memory_space<vmem>>) attributes {dimension_semantics = [#tpu.dimension_semantics<arbitrary>], iteration_bounds = array<i64: 1>, scalar_prefetch = 0 : i64, scratch_operands = 1 : i64, tpu.core_type = #tpu.core_type<tc>, window_params = [{pipeline_mode = #tpu.pipeline_mode<synchronous>, transform_indices = @transform_0, window_bounds = array<i64: 64, 32>}, {pipeline_mode = #tpu.pipeline_mode<synchronous>, transform_indices = @transform_1, window_bounds = array<i64: 5, 8, 32>}, {pipeline_mode = #tpu.pipeline_mode<synchronous>, transform_indices = @transform_2, window_bounds = array<i64: 5, 32, 96>}, {pipeline_mode = #tpu.pipeline_mode<synchronous>, transform_indices = @transform_3, window_bounds = array<i64: 5, 32, 96>}, {pipeline_mode = #tpu.pipeline_mode<synchronous>, transform_indices = @transform_4, window_bounds = array<i64: 5, 1, 96>}, {pipeline_mode = #tpu.pipeline_mode<synchronous>, transform_indices = @transform_5, window_bounds = array<i64: 5, 1, 32>}, {pipeline_mode = #tpu.pipeline_mode<synchronous>, transform_indices = @transform_6, window_bounds = array<i64: 64, 32>}, {pipeline_mode = #tpu.pipeline_mode<synchronous>, transform_indices = @transform_7, window_bounds = array<i64: 5, 8, 32>}]} {
    %c0 = arith.constant 0 : index
    %c0_0 = arith.constant 0 : index
    %0 = vector.load %arg1[%c0, %c0_0] : memref<64x32xf32, #tpu.memory_space<vmem>>, vector<64x32xf32>
    %c0_1 = arith.constant 0 : index
    %c0_2 = arith.constant 0 : index
    %c0_3 = arith.constant 0 : index
    %1 = vector.load %arg3[%c0_1, %c0_2, %c0_3] : memref<5x32x96xf32, #tpu.memory_space<vmem>>, vector<1x32x96xf32>
    %2 = vector.shape_cast %1 : vector<1x32x96xf32> to vector<32x96xf32>
    %cst = arith.constant dense<0.000000e+00> : vector<64x96xf32>
    %3 = tpu.matmul %0, %2, %cst {dimension_numbers = #tpu.dot_dimension_numbers<[1], [0], [0], [1], [0, 0, 1, 1], [], []>} : vector<64x32xf32>, vector<32x96xf32>, vector<64x96xf32> -> vector<64x96xf32>
    %c0_4 = arith.constant 0 : index
    %c0_5 = arith.constant 0 : index
    %c0_6 = arith.constant 0 : index
    %4 = vector.load %arg5[%c0_4, %c0_5, %c0_6] : memref<5x1x96xf32, #tpu.memory_space<vmem>>, vector<1x1x96xf32>
    %5 = vector.shape_cast %4 : vector<1x1x96xf32> to vector<1x96xf32>
    %6 = vector.broadcast %5 : vector<1x96xf32> to vector<64x96xf32>
    %7 = arith.addf %3, %6 : vector<64x96xf32>
    %c0_7 = arith.constant 0 : index
    %c0_8 = arith.constant 0 : index
    %8 = vector.load %arg9[%c0_7, %c0_8] : memref<64x96xf32, #tpu.memory_space<vmem>>, vector<64x96xf32>
    tpu.vector_store %arg9[%c0_7, %c0_8], %7 {strides = array<i32>} : memref<64x96xf32, #tpu.memory_space<vmem>>, vector<64x96xf32>,
    %c0_9 = arith.constant 0 : index
    %c0_10 = arith.constant 0 : index
    %c0_11 = arith.constant 0 : index
    %9 = vector.load %arg6[%c0_9, %c0_10, %c0_11] : memref<5x1x32xf32, #tpu.memory_space<vmem>>, vector<1x1x32xf32>
    %10 = vector.shape_cast %9 : vector<1x1x32xf32> to vector<1x32xf32>
    %11 = vector.shape_cast %10 : vector<1x32xf32> to vector<1x32xf32>
    %12 = vector.broadcast %11 : vector<1x32xf32> to vector<8x32xf32>
    %c1 = arith.constant 1 : index
    %c0_12 = arith.constant 0 : index
    %c0_13 = arith.constant 0 : index
    %13 = vector.load %arg6[%c1, %c0_12, %c0_13] : memref<5x1x32xf32, #tpu.memory_space<vmem>>, vector<1x1x32xf32>
    %14 = vector.shape_cast %13 : vector<1x1x32xf32> to vector<1x32xf32>
    %15 = vector.shape_cast %14 : vector<1x32xf32> to vector<1x32xf32>
    %16 = vector.broadcast %15 : vector<1x32xf32> to vector<8x32xf32>
    %c2 = arith.constant 2 : index
    %c0_14 = arith.constant 0 : index
    %c0_15 = arith.constant 0 : index
    %17 = vector.load %arg6[%c2, %c0_14, %c0_15] : memref<5x1x32xf32, #tpu.memory_space<vmem>>, vector<1x1x32xf32>
    %18 = vector.shape_cast %17 : vector<1x1x32xf32> to vector<1x32xf32>
    %19 = vector.shape_cast %18 : vector<1x32xf32> to vector<1x32xf32>
    %20 = vector.broadcast %19 : vector<1x32xf32> to vector<8x32xf32>
    %c3 = arith.constant 3 : index
    %c0_16 = arith.constant 0 : index
    %c0_17 = arith.constant 0 : index
    %21 = vector.load %arg6[%c3, %c0_16, %c0_17] : memref<5x1x32xf32, #tpu.memory_space<vmem>>, vector<1x1x32xf32>
    %22 = vector.shape_cast %21 : vector<1x1x32xf32> to vector<1x32xf32>
    %23 = vector.shape_cast %22 : vector<1x32xf32> to vector<1x32xf32>
    %24 = vector.broadcast %23 : vector<1x32xf32> to vector<8x32xf32>
    %c4 = arith.constant 4 : index
    %c0_18 = arith.constant 0 : index
    %c0_19 = arith.constant 0 : index
    %25 = vector.load %arg6[%c4, %c0_18, %c0_19] : memref<5x1x32xf32, #tpu.memory_space<vmem>>, vector<1x1x32xf32>
    %26 = vector.shape_cast %25 : vector<1x1x32xf32> to vector<1x32xf32>
    %27 = vector.shape_cast %26 : vector<1x32xf32> to vector<1x32xf32>
    %28 = vector.broadcast %27 : vector<1x32xf32> to vector<8x32xf32>
    %c1_20 = arith.constant 1 : index
    %c0_21 = arith.constant 0 : index
    %c0_22 = arith.constant 0 : index
    %29 = vector.load %arg5[%c1_20, %c0_21, %c0_22] : memref<5x1x96xf32, #tpu.memory_space<vmem>>, vector<1x1x96xf32>
    %30 = vector.shape_cast %29 : vector<1x1x96xf32> to vector<1x96xf32>
    %31 = vector.shape_cast %30 : vector<1x96xf32> to vector<1x96xf32>
    %32 = vector.broadcast %31 : vector<1x96xf32> to vector<8x96xf32>
    %c2_23 = arith.constant 2 : index
    %c0_24 = arith.constant 0 : index
    %c0_25 = arith.constant 0 : index
    %33 = vector.load %arg5[%c2_23, %c0_24, %c0_25] : memref<5x1x96xf32, #tpu.memory_space<vmem>>, vector<1x1x96xf32>
    %34 = vector.shape_cast %33 : vector<1x1x96xf32> to vector<1x96xf32>
    %35 = vector.shape_cast %34 : vector<1x96xf32> to vector<1x96xf32>
    %36 = vector.broadcast %35 : vector<1x96xf32> to vector<8x96xf32>
    %c3_26 = arith.constant 3 : index
    %c0_27 = arith.constant 0 : index
    %c0_28 = arith.constant 0 : index
    %37 = vector.load %arg5[%c3_26, %c0_27, %c0_28] : memref<5x1x96xf32, #tpu.memory_space<vmem>>, vector<1x1x96xf32>
    %38 = vector.shape_cast %37 : vector<1x1x96xf32> to vector<1x96xf32>
    %39 = vector.shape_cast %38 : vector<1x96xf32> to vector<1x96xf32>
    %40 = vector.broadcast %39 : vector<1x96xf32> to vector<8x96xf32>
    %c4_29 = arith.constant 4 : index
    %c0_30 = arith.constant 0 : index
    %c0_31 = arith.constant 0 : index
    %41 = vector.load %arg5[%c4_29, %c0_30, %c0_31] : memref<5x1x96xf32, #tpu.memory_space<vmem>>, vector<1x1x96xf32>
    %42 = vector.shape_cast %41 : vector<1x1x96xf32> to vector<1x96xf32>
    %43 = vector.shape_cast %42 : vector<1x96xf32> to vector<1x96xf32>
    %44 = vector.broadcast %43 : vector<1x96xf32> to vector<8x96xf32>
    %c0_32 = arith.constant 0 : index
    %c0_33 = arith.constant 0 : index
    %c0_34 = arith.constant 0 : index
    %45 = vector.load %arg2[%c0_32, %c0_33, %c0_34] : memref<5x8x32xf32, #tpu.memory_space<vmem>>, vector<1x8x32xf32>
    %46 = vector.shape_cast %45 : vector<1x8x32xf32> to vector<8x32xf32>
    %c1_35 = arith.constant 1 : index
    %c0_36 = arith.constant 0 : index
    %c0_37 = arith.constant 0 : index
    %47 = vector.load %arg2[%c1_35, %c0_36, %c0_37] : memref<5x8x32xf32, #tpu.memory_space<vmem>>, vector<1x8x32xf32>
    %48 = vector.shape_cast %47 : vector<1x8x32xf32> to vector<8x32xf32>
    %c2_38 = arith.constant 2 : index
    %c0_39 = arith.constant 0 : index
    %c0_40 = arith.constant 0 : index
    %49 = vector.load %arg2[%c2_38, %c0_39, %c0_40] : memref<5x8x32xf32, #tpu.memory_space<vmem>>, vector<1x8x32xf32>
    %50 = vector.shape_cast %49 : vector<1x8x32xf32> to vector<8x32xf32>
    %c3_41 = arith.constant 3 : index
    %c0_42 = arith.constant 0 : index
    %c0_43 = arith.constant 0 : index
    %51 = vector.load %arg2[%c3_41, %c0_42, %c0_43] : memref<5x8x32xf32, #tpu.memory_space<vmem>>, vector<1x8x32xf32>
    %52 = vector.shape_cast %51 : vector<1x8x32xf32> to vector<8x32xf32>
    %c4_44 = arith.constant 4 : index
    %c0_45 = arith.constant 0 : index
    %c0_46 = arith.constant 0 : index
    %53 = vector.load %arg2[%c4_44, %c0_45, %c0_46] : memref<5x8x32xf32, #tpu.memory_space<vmem>>, vector<1x8x32xf32>
    %54 = vector.shape_cast %53 : vector<1x8x32xf32> to vector<8x32xf32>
    %c0_47 = arith.constant 0 : index
    %c0_48 = arith.constant 0 : index
    %55 = vector.load %arg9[%c0_47, %c0_48] : memref<64x96xf32, #tpu.memory_space<vmem>>, vector<8x96xf32>
    %c0_49 = arith.constant 0 : index
    %c0_50 = arith.constant 0 : index
    %c0_51 = arith.constant 0 : index
    %56 = vector.load %arg4[%c0_49, %c0_50, %c0_51] : memref<5x32x96xf32, #tpu.memory_space<vmem>>, vector<1x32x96xf32>
    %57 = vector.shape_cast %56 : vector<1x32x96xf32> to vector<32x96xf32>
    %cst_52 = arith.constant dense<0.000000e+00> : vector<8x96xf32>
    %58 = tpu.matmul %46, %57, %cst_52 {dimension_numbers = #tpu.dot_dimension_numbers<[1], [0], [0], [1], [0, 0, 1, 1], [], []>} : vector<8x32xf32>, vector<32x96xf32>, vector<8x96xf32> -> vector<8x96xf32>
    %59 = vector.extract_strided_slice %55 {offsets = [0, 0], sizes = [8, 32], strides = [1, 1]} : vector<8x96xf32> to vector<8x32xf32>
    %60 = vector.extract_strided_slice %58 {offsets = [0, 0], sizes = [8, 32], strides = [1, 1]} : vector<8x96xf32> to vector<8x32xf32>
    %61 = arith.addf %59, %60 : vector<8x32xf32>
    %62 = arith.negf %61 : vector<8x32xf32>
    %63 = math.exp %62 : vector<8x32xf32>
    %cst_53 = arith.constant 1.000000e+00 : f32
    %64 = vector.broadcast %cst_53 : f32 to vector<8x32xf32>
    %65 = arith.addf %64, %63 : vector<8x32xf32>
    %66 = arith.divf %64, %65 : vector<8x32xf32>
    %67 = vector.extract_strided_slice %55 {offsets = [0, 32], sizes = [8, 32], strides = [1, 1]} : vector<8x96xf32> to vector<8x32xf32>
    %68 = vector.extract_strided_slice %58 {offsets = [0, 32], sizes = [8, 32], strides = [1, 1]} : vector<8x96xf32> to vector<8x32xf32>
    %69 = arith.addf %67, %68 : vector<8x32xf32>
    %70 = arith.negf %69 : vector<8x32xf32>
    %71 = math.exp %70 : vector<8x32xf32>
    %cst_54 = arith.constant 1.000000e+00 : f32
    %72 = vector.broadcast %cst_54 : f32 to vector<8x32xf32>
    %73 = arith.addf %72, %71 : vector<8x32xf32>
    %74 = arith.divf %72, %73 : vector<8x32xf32>
    %75 = vector.extract_strided_slice %55 {offsets = [0, 64], sizes = [8, 32], strides = [1, 1]} : vector<8x96xf32> to vector<8x32xf32>
    %76 = vector.extract_strided_slice %58 {offsets = [0, 64], sizes = [8, 32], strides = [1, 1]} : vector<8x96xf32> to vector<8x32xf32>
    %77 = arith.addf %76, %12 : vector<8x32xf32>
    %78 = arith.mulf %66, %77 : vector<8x32xf32>
    %79 = arith.addf %75, %78 : vector<8x32xf32>
    %80 = math.tanh %79 : vector<8x32xf32>
    %81 = arith.subf %46, %80 : vector<8x32xf32>
    %82 = arith.mulf %74, %81 : vector<8x32xf32>
    %83 = arith.addf %80, %82 : vector<8x32xf32>
    %c8 = arith.constant 8 : index
    %c0_55 = arith.constant 0 : index
    %84 = vector.load %arg9[%c8, %c0_55] : memref<64x96xf32, #tpu.memory_space<vmem>>, vector<8x96xf32>
    %c1_56 = arith.constant 1 : index
    %c0_57 = arith.constant 0 : index
    %c0_58 = arith.constant 0 : index
    %85 = vector.load %arg3[%c1_56, %c0_57, %c0_58] : memref<5x32x96xf32, #tpu.memory_space<vmem>>, vector<1x32x96xf32>
    %86 = vector.shape_cast %85 : vector<1x32x96xf32> to vector<32x96xf32>
    %cst_59 = arith.constant dense<0.000000e+00> : vector<8x96xf32>
    %87 = tpu.matmul %83, %86, %cst_59 {dimension_numbers = #tpu.dot_dimension_numbers<[1], [0], [0], [1], [0, 0, 1, 1], [], []>} : vector<8x32xf32>, vector<32x96xf32>, vector<8x96xf32> -> vector<8x96xf32>
    %88 = arith.addf %87, %32 : vector<8x96xf32>
    %c0_60 = arith.constant 0 : index
    %c0_61 = arith.constant 0 : index
    %c0_62 = arith.constant 0 : index
    %89 = vector.load %arg4[%c0_60, %c0_61, %c0_62] : memref<5x32x96xf32, #tpu.memory_space<vmem>>, vector<1x32x96xf32>
    %90 = vector.shape_cast %89 : vector<1x32x96xf32> to vector<32x96xf32>
    %cst_63 = arith.constant dense<0.000000e+00> : vector<8x96xf32>
    %91 = tpu.matmul %83, %90, %cst_63 {dimension_numbers = #tpu.dot_dimension_numbers<[1], [0], [0], [1], [0, 0, 1, 1], [], []>} : vector<8x32xf32>, vector<32x96xf32>, vector<8x96xf32> -> vector<8x96xf32>
    %92 = vector.extract_strided_slice %84 {offsets = [0, 0], sizes = [8, 32], strides = [1, 1]} : vector<8x96xf32> to vector<8x32xf32>
    %93 = vector.extract_strided_slice %91 {offsets = [0, 0], sizes = [8, 32], strides = [1, 1]} : vector<8x96xf32> to vector<8x32xf32>
    %94 = arith.addf %92, %93 : vector<8x32xf32>
    %95 = arith.negf %94 : vector<8x32xf32>
    %96 = math.exp %95 : vector<8x32xf32>
    %cst_64 = arith.constant 1.000000e+00 : f32
    %97 = vector.broadcast %cst_64 : f32 to vector<8x32xf32>
    %98 = arith.addf %97, %96 : vector<8x32xf32>
    %99 = arith.divf %97, %98 : vector<8x32xf32>
    %100 = vector.extract_strided_slice %84 {offsets = [0, 32], sizes = [8, 32], strides = [1, 1]} : vector<8x96xf32> to vector<8x32xf32>
    %101 = vector.extract_strided_slice %91 {offsets = [0, 32], sizes = [8, 32], strides = [1, 1]} : vector<8x96xf32> to vector<8x32xf32>
    %102 = arith.addf %100, %101 : vector<8x32xf32>
    %103 = arith.negf %102 : vector<8x32xf32>
    %104 = math.exp %103 : vector<8x32xf32>
    %cst_65 = arith.constant 1.000000e+00 : f32
    %105 = vector.broadcast %cst_65 : f32 to vector<8x32xf32>
    %106 = arith.addf %105, %104 : vector<8x32xf32>
    %107 = arith.divf %105, %106 : vector<8x32xf32>
    %108 = vector.extract_strided_slice %84 {offsets = [0, 64], sizes = [8, 32], strides = [1, 1]} : vector<8x96xf32> to vector<8x32xf32>
    %109 = vector.extract_strided_slice %91 {offsets = [0, 64], sizes = [8, 32], strides = [1, 1]} : vector<8x96xf32> to vector<8x32xf32>
    %110 = arith.addf %109, %12 : vector<8x32xf32>
    %111 = arith.mulf %99, %110 : vector<8x32xf32>
    %112 = arith.addf %108, %111 : vector<8x32xf32>
    %113 = math.tanh %112 : vector<8x32xf32>
    %114 = arith.subf %83, %113 : vector<8x32xf32>
    %115 = arith.mulf %107, %114 : vector<8x32xf32>
    %116 = arith.addf %113, %115 : vector<8x32xf32>
    %c1_66 = arith.constant 1 : index
    %c0_67 = arith.constant 0 : index
    %c0_68 = arith.constant 0 : index
    %117 = vector.load %arg4[%c1_66, %c0_67, %c0_68] : memref<5x32x96xf32, #tpu.memory_space<vmem>>, vector<1x32x96xf32>
    %118 = vector.shape_cast %117 : vector<1x32x96xf32> to vector<32x96xf32>
    %cst_69 = arith.constant dense<0.000000e+00> : vector<8x96xf32>
    %119 = tpu.matmul %48, %118, %cst_69 {dimension_numbers = #tpu.dot_dimension_numbers<[1], [0], [0], [1], [0, 0, 1, 1], [], []>} : vector<8x32xf32>, vector<32x96xf32>, vector<8x96xf32> -> vector<8x96xf32>
    %120 = vector.extract_strided_slice %88 {offsets = [0, 0], sizes = [8, 32], strides = [1, 1]} : vector<8x96xf32> to vector<8x32xf32>
    %121 = vector.extract_strided_slice %119 {offsets = [0, 0], sizes = [8, 32], strides = [1, 1]} : vector<8x96xf32> to vector<8x32xf32>
    %122 = arith.addf %120, %121 : vector<8x32xf32>
    %123 = arith.negf %122 : vector<8x32xf32>
    %124 = math.exp %123 : vector<8x32xf32>
    %cst_70 = arith.constant 1.000000e+00 : f32
    %125 = vector.broadcast %cst_70 : f32 to vector<8x32xf32>
    %126 = arith.addf %125, %124 : vector<8x32xf32>
    %127 = arith.divf %125, %126 : vector<8x32xf32>
    %128 = vector.extract_strided_slice %88 {offsets = [0, 32], sizes = [8, 32], strides = [1, 1]} : vector<8x96xf32> to vector<8x32xf32>
    %129 = vector.extract_strided_slice %119 {offsets = [0, 32], sizes = [8, 32], strides = [1, 1]} : vector<8x96xf32> to vector<8x32xf32>
    %130 = arith.addf %128, %129 : vector<8x32xf32>
    %131 = arith.negf %130 : vector<8x32xf32>
    %132 = math.exp %131 : vector<8x32xf32>
    %cst_71 = arith.constant 1.000000e+00 : f32
    %133 = vector.broadcast %cst_71 : f32 to vector<8x32xf32>
    %134 = arith.addf %133, %132 : vector<8x32xf32>
    %135 = arith.divf %133, %134 : vector<8x32xf32>
    %136 = vector.extract_strided_slice %88 {offsets = [0, 64], sizes = [8, 32], strides = [1, 1]} : vector<8x96xf32> to vector<8x32xf32>
    %137 = vector.extract_strided_slice %119 {offsets = [0, 64], sizes = [8, 32], strides = [1, 1]} : vector<8x96xf32> to vector<8x32xf32>
    %138 = arith.addf %137, %16 : vector<8x32xf32>
    %139 = arith.mulf %127, %138 : vector<8x32xf32>
    %140 = arith.addf %136, %139 : vector<8x32xf32>
    %141 = math.tanh %140 : vector<8x32xf32>
    %142 = arith.subf %48, %141 : vector<8x32xf32>
    %143 = arith.mulf %135, %142 : vector<8x32xf32>
    %144 = arith.addf %141, %143 : vector<8x32xf32>
    %c16 = arith.constant 16 : index
    %c0_72 = arith.constant 0 : index
    %145 = vector.load %arg9[%c16, %c0_72] : memref<64x96xf32, #tpu.memory_space<vmem>>, vector<8x96xf32>
    %c1_73 = arith.constant 1 : index
    %c0_74 = arith.constant 0 : index
    %c0_75 = arith.constant 0 : index
    %146 = vector.load %arg3[%c1_73, %c0_74, %c0_75] : memref<5x32x96xf32, #tpu.memory_space<vmem>>, vector<1x32x96xf32>
    %147 = vector.shape_cast %146 : vector<1x32x96xf32> to vector<32x96xf32>
    %cst_76 = arith.constant dense<0.000000e+00> : vector<8x96xf32>
    %148 = tpu.matmul %116, %147, %cst_76 {dimension_numbers = #tpu.dot_dimension_numbers<[1], [0], [0], [1], [0, 0, 1, 1], [], []>} : vector<8x32xf32>, vector<32x96xf32>, vector<8x96xf32> -> vector<8x96xf32>
    %149 = arith.addf %148, %32 : vector<8x96xf32>
    %c2_77 = arith.constant 2 : index
    %c0_78 = arith.constant 0 : index
    %c0_79 = arith.constant 0 : index
    %150 = vector.load %arg3[%c2_77, %c0_78, %c0_79] : memref<5x32x96xf32, #tpu.memory_space<vmem>>, vector<1x32x96xf32>
    %151 = vector.shape_cast %150 : vector<1x32x96xf32> to vector<32x96xf32>
    %cst_80 = arith.constant dense<0.000000e+00> : vector<8x96xf32>
    %152 = tpu.matmul %144, %151, %cst_80 {dimension_numbers = #tpu.dot_dimension_numbers<[1], [0], [0], [1], [0, 0, 1, 1], [], []>} : vector<8x32xf32>, vector<32x96xf32>, vector<8x96xf32> -> vector<8x96xf32>
    %153 = arith.addf %152, %36 : vector<8x96xf32>
    %c0_81 = arith.constant 0 : index
    %c0_82 = arith.constant 0 : index
    %c0_83 = arith.constant 0 : index
    %154 = vector.load %arg4[%c0_81, %c0_82, %c0_83] : memref<5x32x96xf32, #tpu.memory_space<vmem>>, vector<1x32x96xf32>
    %155 = vector.shape_cast %154 : vector<1x32x96xf32> to vector<32x96xf32>
    %cst_84 = arith.constant dense<0.000000e+00> : vector<8x96xf32>
    %156 = tpu.matmul %116, %155, %cst_84 {dimension_numbers = #tpu.dot_dimension_numbers<[1], [0], [0], [1], [0, 0, 1, 1], [], []>} : vector<8x32xf32>, vector<32x96xf32>, vector<8x96xf32> -> vector<8x96xf32>
    %157 = vector.extract_strided_slice %145 {offsets = [0, 0], sizes = [8, 32], strides = [1, 1]} : vector<8x96xf32> to vector<8x32xf32>
    %158 = vector.extract_strided_slice %156 {offsets = [0, 0], sizes = [8, 32], strides = [1, 1]} : vector<8x96xf32> to vector<8x32xf32>
    %159 = arith.addf %157, %158 : vector<8x32xf32>
    %160 = arith.negf %159 : vector<8x32xf32>
    %161 = math.exp %160 : vector<8x32xf32>
    %cst_85 = arith.constant 1.000000e+00 : f32
    %162 = vector.broadcast %cst_85 : f32 to vector<8x32xf32>
    %163 = arith.addf %162, %161 : vector<8x32xf32>
    %164 = arith.divf %162, %163 : vector<8x32xf32>
    %165 = vector.extract_strided_slice %145 {offsets = [0, 32], sizes = [8, 32], strides = [1, 1]} : vector<8x96xf32> to vector<8x32xf32>
    %166 = vector.extract_strided_slice %156 {offsets = [0, 32], sizes = [8, 32], strides = [1, 1]} : vector<8x96xf32> to vector<8x32xf32>
    %167 = arith.addf %165, %166 : vector<8x32xf32>
    %168 = arith.negf %167 : vector<8x32xf32>
    %169 = math.exp %168 : vector<8x32xf32>
    %cst_86 = arith.constant 1.000000e+00 : f32
    %170 = vector.broadcast %cst_86 : f32 to vector<8x32xf32>
    %171 = arith.addf %170, %169 : vector<8x32xf32>
    %172 = arith.divf %170, %171 : vector<8x32xf32>
    %173 = vector.extract_strided_slice %145 {offsets = [0, 64], sizes = [8, 32], strides = [1, 1]} : vector<8x96xf32> to vector<8x32xf32>
    %174 = vector.extract_strided_slice %156 {offsets = [0, 64], sizes = [8, 32], strides = [1, 1]} : vector<8x96xf32> to vector<8x32xf32>
    %175 = arith.addf %174, %12 : vector<8x32xf32>
    %176 = arith.mulf %164, %175 : vector<8x32xf32>
    %177 = arith.addf %173, %176 : vector<8x32xf32>
    %178 = math.tanh %177 : vector<8x32xf32>
    %179 = arith.subf %116, %178 : vector<8x32xf32>
    %180 = arith.mulf %172, %179 : vector<8x32xf32>
    %181 = arith.addf %178, %180 : vector<8x32xf32>
    %c1_87 = arith.constant 1 : index
    %c0_88 = arith.constant 0 : index
    %c0_89 = arith.constant 0 : index
    %182 = vector.load %arg4[%c1_87, %c0_88, %c0_89] : memref<5x32x96xf32, #tpu.memory_space<vmem>>, vector<1x32x96xf32>
    %183 = vector.shape_cast %182 : vector<1x32x96xf32> to vector<32x96xf32>
    %cst_90 = arith.constant dense<0.000000e+00> : vector<8x96xf32>
    %184 = tpu.matmul %144, %183, %cst_90 {dimension_numbers = #tpu.dot_dimension_numbers<[1], [0], [0], [1], [0, 0, 1, 1], [], []>} : vector<8x32xf32>, vector<32x96xf32>, vector<8x96xf32> -> vector<8x96xf32>
    %185 = vector.extract_strided_slice %149 {offsets = [0, 0], sizes = [8, 32], strides = [1, 1]} : vector<8x96xf32> to vector<8x32xf32>
    %186 = vector.extract_strided_slice %184 {offsets = [0, 0], sizes = [8, 32], strides = [1, 1]} : vector<8x96xf32> to vector<8x32xf32>
    %187 = arith.addf %185, %186 : vector<8x32xf32>
    %188 = arith.negf %187 : vector<8x32xf32>
    %189 = math.exp %188 : vector<8x32xf32>
    %cst_91 = arith.constant 1.000000e+00 : f32
    %190 = vector.broadcast %cst_91 : f32 to vector<8x32xf32>
    %191 = arith.addf %190, %189 : vector<8x32xf32>
    %192 = arith.divf %190, %191 : vector<8x32xf32>
    %193 = vector.extract_strided_slice %149 {offsets = [0, 32], sizes = [8, 32], strides = [1, 1]} : vector<8x96xf32> to vector<8x32xf32>
    %194 = vector.extract_strided_slice %184 {offsets = [0, 32], sizes = [8, 32], strides = [1, 1]} : vector<8x96xf32> to vector<8x32xf32>
    %195 = arith.addf %193, %194 : vector<8x32xf32>
    %196 = arith.negf %195 : vector<8x32xf32>
    %197 = math.exp %196 : vector<8x32xf32>
    %cst_92 = arith.constant 1.000000e+00 : f32
    %198 = vector.broadcast %cst_92 : f32 to vector<8x32xf32>
    %199 = arith.addf %198, %197 : vector<8x32xf32>
    %200 = arith.divf %198, %199 : vector<8x32xf32>
    %201 = vector.extract_strided_slice %149 {offsets = [0, 64], sizes = [8, 32], strides = [1, 1]} : vector<8x96xf32> to vector<8x32xf32>
    %202 = vector.extract_strided_slice %184 {offsets = [0, 64], sizes = [8, 32], strides = [1, 1]} : vector<8x96xf32> to vector<8x32xf32>
    %203 = arith.addf %202, %16 : vector<8x32xf32>
    %204 = arith.mulf %192, %203 : vector<8x32xf32>
    %205 = arith.addf %201, %204 : vector<8x32xf32>
    %206 = math.tanh %205 : vector<8x32xf32>
    %207 = arith.subf %144, %206 : vector<8x32xf32>
    %208 = arith.mulf %200, %207 : vector<8x32xf32>
    %209 = arith.addf %206, %208 : vector<8x32xf32>
    %c2_93 = arith.constant 2 : index
    %c0_94 = arith.constant 0 : index
    %c0_95 = arith.constant 0 : index
    %210 = vector.load %arg4[%c2_93, %c0_94, %c0_95] : memref<5x32x96xf32, #tpu.memory_space<vmem>>, vector<1x32x96xf32>
    %211 = vector.shape_cast %210 : vector<1x32x96xf32> to vector<32x96xf32>
    %cst_96 = arith.constant dense<0.000000e+00> : vector<8x96xf32>
    %212 = tpu.matmul %50, %211, %cst_96 {dimension_numbers = #tpu.dot_dimension_numbers<[1], [0], [0], [1], [0, 0, 1, 1], [], []>} : vector<8x32xf32>, vector<32x96xf32>, vector<8x96xf32> -> vector<8x96xf32>
    %213 = vector.extract_strided_slice %153 {offsets = [0, 0], sizes = [8, 32], strides = [1, 1]} : vector<8x96xf32> to vector<8x32xf32>
    %214 = vector.extract_strided_slice %212 {offsets = [0, 0], sizes = [8, 32], strides = [1, 1]} : vector<8x96xf32> to vector<8x32xf32>
    %215 = arith.addf %213, %214 : vector<8x32xf32>
    %216 = arith.negf %215 : vector<8x32xf32>
    %217 = math.exp %216 : vector<8x32xf32>
    %cst_97 = arith.constant 1.000000e+00 : f32
    %218 = vector.broadcast %cst_97 : f32 to vector<8x32xf32>
    %219 = arith.addf %218, %217 : vector<8x32xf32>
    %220 = arith.divf %218, %219 : vector<8x32xf32>
    %221 = vector.extract_strided_slice %153 {offsets = [0, 32], sizes = [8, 32], strides = [1, 1]} : vector<8x96xf32> to vector<8x32xf32>
    %222 = vector.extract_strided_slice %212 {offsets = [0, 32], sizes = [8, 32], strides = [1, 1]} : vector<8x96xf32> to vector<8x32xf32>
    %223 = arith.addf %221, %222 : vector<8x32xf32>
    %224 = arith.negf %223 : vector<8x32xf32>
    %225 = math.exp %224 : vector<8x32xf32>
    %cst_98 = arith.constant 1.000000e+00 : f32
    %226 = vector.broadcast %cst_98 : f32 to vector<8x32xf32>
    %227 = arith.addf %226, %225 : vector<8x32xf32>
    %228 = arith.divf %226, %227 : vector<8x32xf32>
    %229 = vector.extract_strided_slice %153 {offsets = [0, 64], sizes = [8, 32], strides = [1, 1]} : vector<8x96xf32> to vector<8x32xf32>
    %230 = vector.extract_strided_slice %212 {offsets = [0, 64], sizes = [8, 32], strides = [1, 1]} : vector<8x96xf32> to vector<8x32xf32>
    %231 = arith.addf %230, %20 : vector<8x32xf32>
    %232 = arith.mulf %220, %231 : vector<8x32xf32>
    %233 = arith.addf %229, %232 : vector<8x32xf32>
    %234 = math.tanh %233 : vector<8x32xf32>
    %235 = arith.subf %50, %234 : vector<8x32xf32>
    %236 = arith.mulf %228, %235 : vector<8x32xf32>
    %237 = arith.addf %234, %236 : vector<8x32xf32>
    %c24 = arith.constant 24 : index
    %c0_99 = arith.constant 0 : index
    %238 = vector.load %arg9[%c24, %c0_99] : memref<64x96xf32, #tpu.memory_space<vmem>>, vector<8x96xf32>
    %c1_100 = arith.constant 1 : index
    %c0_101 = arith.constant 0 : index
    %c0_102 = arith.constant 0 : index
    %239 = vector.load %arg3[%c1_100, %c0_101, %c0_102] : memref<5x32x96xf32, #tpu.memory_space<vmem>>, vector<1x32x96xf32>
    %240 = vector.shape_cast %239 : vector<1x32x96xf32> to vector<32x96xf32>
    %cst_103 = arith.constant dense<0.000000e+00> : vector<8x96xf32>
    %241 = tpu.matmul %181, %240, %cst_103 {dimension_numbers = #tpu.dot_dimension_numbers<[1], [0], [0], [1], [0, 0, 1, 1], [], []>} : vector<8x32xf32>, vector<32x96xf32>, vector<8x96xf32> -> vector<8x96xf32>
    %242 = arith.addf %241, %32 : vector<8x96xf32>
    %c2_104 = arith.constant 2 : index
    %c0_105 = arith.constant 0 : index
    %c0_106 = arith.constant 0 : index
    %243 = vector.load %arg3[%c2_104, %c0_105, %c0_106] : memref<5x32x96xf32, #tpu.memory_space<vmem>>, vector<1x32x96xf32>
    %244 = vector.shape_cast %243 : vector<1x32x96xf32> to vector<32x96xf32>
    %cst_107 = arith.constant dense<0.000000e+00> : vector<8x96xf32>
    %245 = tpu.matmul %209, %244, %cst_107 {dimension_numbers = #tpu.dot_dimension_numbers<[1], [0], [0], [1], [0, 0, 1, 1], [], []>} : vector<8x32xf32>, vector<32x96xf32>, vector<8x96xf32> -> vector<8x96xf32>
    %246 = arith.addf %245, %36 : vector<8x96xf32>
    %c3_108 = arith.constant 3 : index
    %c0_109 = arith.constant 0 : index
    %c0_110 = arith.constant 0 : index
    %247 = vector.load %arg3[%c3_108, %c0_109, %c0_110] : memref<5x32x96xf32, #tpu.memory_space<vmem>>, vector<1x32x96xf32>
    %248 = vector.shape_cast %247 : vector<1x32x96xf32> to vector<32x96xf32>
    %cst_111 = arith.constant dense<0.000000e+00> : vector<8x96xf32>
    %249 = tpu.matmul %237, %248, %cst_111 {dimension_numbers = #tpu.dot_dimension_numbers<[1], [0], [0], [1], [0, 0, 1, 1], [], []>} : vector<8x32xf32>, vector<32x96xf32>, vector<8x96xf32> -> vector<8x96xf32>
    %250 = arith.addf %249, %40 : vector<8x96xf32>
    %c0_112 = arith.constant 0 : index
    %c0_113 = arith.constant 0 : index
    %c0_114 = arith.constant 0 : index
    %251 = vector.load %arg4[%c0_112, %c0_113, %c0_114] : memref<5x32x96xf32, #tpu.memory_space<vmem>>, vector<1x32x96xf32>
    %252 = vector.shape_cast %251 : vector<1x32x96xf32> to vector<32x96xf32>
    %cst_115 = arith.constant dense<0.000000e+00> : vector<8x96xf32>
    %253 = tpu.matmul %181, %252, %cst_115 {dimension_numbers = #tpu.dot_dimension_numbers<[1], [0], [0], [1], [0, 0, 1, 1], [], []>} : vector<8x32xf32>, vector<32x96xf32>, vector<8x96xf32> -> vector<8x96xf32>
    %254 = vector.extract_strided_slice %238 {offsets = [0, 0], sizes = [8, 32], strides = [1, 1]} : vector<8x96xf32> to vector<8x32xf32>
    %255 = vector.extract_strided_slice %253 {offsets = [0, 0], sizes = [8, 32], strides = [1, 1]} : vector<8x96xf32> to vector<8x32xf32>
    %256 = arith.addf %254, %255 : vector<8x32xf32>
    %257 = arith.negf %256 : vector<8x32xf32>
    %258 = math.exp %257 : vector<8x32xf32>
    %cst_116 = arith.constant 1.000000e+00 : f32
    %259 = vector.broadcast %cst_116 : f32 to vector<8x32xf32>
    %260 = arith.addf %259, %258 : vector<8x32xf32>
    %261 = arith.divf %259, %260 : vector<8x32xf32>
    %262 = vector.extract_strided_slice %238 {offsets = [0, 32], sizes = [8, 32], strides = [1, 1]} : vector<8x96xf32> to vector<8x32xf32>
    %263 = vector.extract_strided_slice %253 {offsets = [0, 32], sizes = [8, 32], strides = [1, 1]} : vector<8x96xf32> to vector<8x32xf32>
    %264 = arith.addf %262, %263 : vector<8x32xf32>
    %265 = arith.negf %264 : vector<8x32xf32>
    %266 = math.exp %265 : vector<8x32xf32>
    %cst_117 = arith.constant 1.000000e+00 : f32
    %267 = vector.broadcast %cst_117 : f32 to vector<8x32xf32>
    %268 = arith.addf %267, %266 : vector<8x32xf32>
    %269 = arith.divf %267, %268 : vector<8x32xf32>
    %270 = vector.extract_strided_slice %238 {offsets = [0, 64], sizes = [8, 32], strides = [1, 1]} : vector<8x96xf32> to vector<8x32xf32>
    %271 = vector.extract_strided_slice %253 {offsets = [0, 64], sizes = [8, 32], strides = [1, 1]} : vector<8x96xf32> to vector<8x32xf32>
    %272 = arith.addf %271, %12 : vector<8x32xf32>
    %273 = arith.mulf %261, %272 : vector<8x32xf32>
    %274 = arith.addf %270, %273 : vector<8x32xf32>
    %275 = math.tanh %274 : vector<8x32xf32>
    %276 = arith.subf %181, %275 : vector<8x32xf32>
    %277 = arith.mulf %269, %276 : vector<8x32xf32>
    %278 = arith.addf %275, %277 : vector<8x32xf32>
    %c1_118 = arith.constant 1 : index
    %c0_119 = arith.constant 0 : index
    %c0_120 = arith.constant 0 : index
    %279 = vector.load %arg4[%c1_118, %c0_119, %c0_120] : memref<5x32x96xf32, #tpu.memory_space<vmem>>, vector<1x32x96xf32>
    %280 = vector.shape_cast %279 : vector<1x32x96xf32> to vector<32x96xf32>
    %cst_121 = arith.constant dense<0.000000e+00> : vector<8x96xf32>
    %281 = tpu.matmul %209, %280, %cst_121 {dimension_numbers = #tpu.dot_dimension_numbers<[1], [0], [0], [1], [0, 0, 1, 1], [], []>} : vector<8x32xf32>, vector<32x96xf32>, vector<8x96xf32> -> vector<8x96xf32>
    %282 = vector.extract_strided_slice %242 {offsets = [0, 0], sizes = [8, 32], strides = [1, 1]} : vector<8x96xf32> to vector<8x32xf32>
    %283 = vector.extract_strided_slice %281 {offsets = [0, 0], sizes = [8, 32], strides = [1, 1]} : vector<8x96xf32> to vector<8x32xf32>
    %284 = arith.addf %282, %283 : vector<8x32xf32>
    %285 = arith.negf %284 : vector<8x32xf32>
    %286 = math.exp %285 : vector<8x32xf32>
    %cst_122 = arith.constant 1.000000e+00 : f32
    %287 = vector.broadcast %cst_122 : f32 to vector<8x32xf32>
    %288 = arith.addf %287, %286 : vector<8x32xf32>
    %289 = arith.divf %287, %288 : vector<8x32xf32>
    %290 = vector.extract_strided_slice %242 {offsets = [0, 32], sizes = [8, 32], strides = [1, 1]} : vector<8x96xf32> to vector<8x32xf32>
    %291 = vector.extract_strided_slice %281 {offsets = [0, 32], sizes = [8, 32], strides = [1, 1]} : vector<8x96xf32> to vector<8x32xf32>
    %292 = arith.addf %290, %291 : vector<8x32xf32>
    %293 = arith.negf %292 : vector<8x32xf32>
    %294 = math.exp %293 : vector<8x32xf32>
    %cst_123 = arith.constant 1.000000e+00 : f32
    %295 = vector.broadcast %cst_123 : f32 to vector<8x32xf32>
    %296 = arith.addf %295, %294 : vector<8x32xf32>
    %297 = arith.divf %295, %296 : vector<8x32xf32>
    %298 = vector.extract_strided_slice %242 {offsets = [0, 64], sizes = [8, 32], strides = [1, 1]} : vector<8x96xf32> to vector<8x32xf32>
    %299 = vector.extract_strided_slice %281 {offsets = [0, 64], sizes = [8, 32], strides = [1, 1]} : vector<8x96xf32> to vector<8x32xf32>
    %300 = arith.addf %299, %16 : vector<8x32xf32>
    %301 = arith.mulf %289, %300 : vector<8x32xf32>
    %302 = arith.addf %298, %301 : vector<8x32xf32>
    %303 = math.tanh %302 : vector<8x32xf32>
    %304 = arith.subf %209, %303 : vector<8x32xf32>
    %305 = arith.mulf %297, %304 : vector<8x32xf32>
    %306 = arith.addf %303, %305 : vector<8x32xf32>
    %c2_124 = arith.constant 2 : index
    %c0_125 = arith.constant 0 : index
    %c0_126 = arith.constant 0 : index
    %307 = vector.load %arg4[%c2_124, %c0_125, %c0_126] : memref<5x32x96xf32, #tpu.memory_space<vmem>>, vector<1x32x96xf32>
    %308 = vector.shape_cast %307 : vector<1x32x96xf32> to vector<32x96xf32>
    %cst_127 = arith.constant dense<0.000000e+00> : vector<8x96xf32>
    %309 = tpu.matmul %237, %308, %cst_127 {dimension_numbers = #tpu.dot_dimension_numbers<[1], [0], [0], [1], [0, 0, 1, 1], [], []>} : vector<8x32xf32>, vector<32x96xf32>, vector<8x96xf32> -> vector<8x96xf32>
    %310 = vector.extract_strided_slice %246 {offsets = [0, 0], sizes = [8, 32], strides = [1, 1]} : vector<8x96xf32> to vector<8x32xf32>
    %311 = vector.extract_strided_slice %309 {offsets = [0, 0], sizes = [8, 32], strides = [1, 1]} : vector<8x96xf32> to vector<8x32xf32>
    %312 = arith.addf %310, %311 : vector<8x32xf32>
    %313 = arith.negf %312 : vector<8x32xf32>
    %314 = math.exp %313 : vector<8x32xf32>
    %cst_128 = arith.constant 1.000000e+00 : f32
    %315 = vector.broadcast %cst_128 : f32 to vector<8x32xf32>
    %316 = arith.addf %315, %314 : vector<8x32xf32>
    %317 = arith.divf %315, %316 : vector<8x32xf32>
    %318 = vector.extract_strided_slice %246 {offsets = [0, 32], sizes = [8, 32], strides = [1, 1]} : vector<8x96xf32> to vector<8x32xf32>
    %319 = vector.extract_strided_slice %309 {offsets = [0, 32], sizes = [8, 32], strides = [1, 1]} : vector<8x96xf32> to vector<8x32xf32>
    %320 = arith.addf %318, %319 : vector<8x32xf32>
    %321 = arith.negf %320 : vector<8x32xf32>
    %322 = math.exp %321 : vector<8x32xf32>
    %cst_129 = arith.constant 1.000000e+00 : f32
    %323 = vector.broadcast %cst_129 : f32 to vector<8x32xf32>
    %324 = arith.addf %323, %322 : vector<8x32xf32>
    %325 = arith.divf %323, %324 : vector<8x32xf32>
    %326 = vector.extract_strided_slice %246 {offsets = [0, 64], sizes = [8, 32], strides = [1, 1]} : vector<8x96xf32> to vector<8x32xf32>
    %327 = vector.extract_strided_slice %309 {offsets = [0, 64], sizes = [8, 32], strides = [1, 1]} : vector<8x96xf32> to vector<8x32xf32>
    %328 = arith.addf %327, %20 : vector<8x32xf32>
    %329 = arith.mulf %317, %328 : vector<8x32xf32>
    %330 = arith.addf %326, %329 : vector<8x32xf32>
    %331 = math.tanh %330 : vector<8x32xf32>
    %332 = arith.subf %237, %331 : vector<8x32xf32>
    %333 = arith.mulf %325, %332 : vector<8x32xf32>
    %334 = arith.addf %331, %333 : vector<8x32xf32>
    %c3_130 = arith.constant 3 : index
    %c0_131 = arith.constant 0 : index
    %c0_132 = arith.constant 0 : index
    %335 = vector.load %arg4[%c3_130, %c0_131, %c0_132] : memref<5x32x96xf32, #tpu.memory_space<vmem>>, vector<1x32x96xf32>
    %336 = vector.shape_cast %335 : vector<1x32x96xf32> to vector<32x96xf32>
    %cst_133 = arith.constant dense<0.000000e+00> : vector<8x96xf32>
    %337 = tpu.matmul %52, %336, %cst_133 {dimension_numbers = #tpu.dot_dimension_numbers<[1], [0], [0], [1], [0, 0, 1, 1], [], []>} : vector<8x32xf32>, vector<32x96xf32>, vector<8x96xf32> -> vector<8x96xf32>
    %338 = vector.extract_strided_slice %250 {offsets = [0, 0], sizes = [8, 32], strides = [1, 1]} : vector<8x96xf32> to vector<8x32xf32>
    %339 = vector.extract_strided_slice %337 {offsets = [0, 0], sizes = [8, 32], strides = [1, 1]} : vector<8x96xf32> to vector<8x32xf32>
    %340 = arith.addf %338, %339 : vector<8x32xf32>
    %341 = arith.negf %340 : vector<8x32xf32>
    %342 = math.exp %341 : vector<8x32xf32>
    %cst_134 = arith.constant 1.000000e+00 : f32
    %343 = vector.broadcast %cst_134 : f32 to vector<8x32xf32>
    %344 = arith.addf %343, %342 : vector<8x32xf32>
    %345 = arith.divf %343, %344 : vector<8x32xf32>
    %346 = vector.extract_strided_slice %250 {offsets = [0, 32], sizes = [8, 32], strides = [1, 1]} : vector<8x96xf32> to vector<8x32xf32>
    %347 = vector.extract_strided_slice %337 {offsets = [0, 32], sizes = [8, 32], strides = [1, 1]} : vector<8x96xf32> to vector<8x32xf32>
    %348 = arith.addf %346, %347 : vector<8x32xf32>
    %349 = arith.negf %348 : vector<8x32xf32>
    %350 = math.exp %349 : vector<8x32xf32>
    %cst_135 = arith.constant 1.000000e+00 : f32
    %351 = vector.broadcast %cst_135 : f32 to vector<8x32xf32>
    %352 = arith.addf %351, %350 : vector<8x32xf32>
    %353 = arith.divf %351, %352 : vector<8x32xf32>
    %354 = vector.extract_strided_slice %250 {offsets = [0, 64], sizes = [8, 32], strides = [1, 1]} : vector<8x96xf32> to vector<8x32xf32>
    %355 = vector.extract_strided_slice %337 {offsets = [0, 64], sizes = [8, 32], strides = [1, 1]} : vector<8x96xf32> to vector<8x32xf32>
    %356 = arith.addf %355, %24 : vector<8x32xf32>
    %357 = arith.mulf %345, %356 : vector<8x32xf32>
    %358 = arith.addf %354, %357 : vector<8x32xf32>
    %359 = math.tanh %358 : vector<8x32xf32>
    %360 = arith.subf %52, %359 : vector<8x32xf32>
    %361 = arith.mulf %353, %360 : vector<8x32xf32>
    %362 = arith.addf %359, %361 : vector<8x32xf32>
    %c4_i32 = arith.constant 4 : i32
    %c8_i32 = arith.constant 8 : i32
    %363 = arith.muli %c4_i32, %c8_i32 : i32
    %364 = tpu.assume_multiple %363, 8 : i32
    %365 = arith.index_cast %364 : i32 to index
    %c0_136 = arith.constant 0 : index
    %366 = vector.load %arg9[%365, %c0_136] : memref<64x96xf32, #tpu.memory_space<vmem>>, vector<8x96xf32>
    %c1_137 = arith.constant 1 : index
    %c0_138 = arith.constant 0 : index
    %c0_139 = arith.constant 0 : index
    %367 = vector.load %arg3[%c1_137, %c0_138, %c0_139] : memref<5x32x96xf32, #tpu.memory_space<vmem>>, vector<1x32x96xf32>
    %368 = vector.shape_cast %367 : vector<1x32x96xf32> to vector<32x96xf32>
    %cst_140 = arith.constant dense<0.000000e+00> : vector<8x96xf32>
    %369 = tpu.matmul %278, %368, %cst_140 {dimension_numbers = #tpu.dot_dimension_numbers<[1], [0], [0], [1], [0, 0, 1, 1], [], []>} : vector<8x32xf32>, vector<32x96xf32>, vector<8x96xf32> -> vector<8x96xf32>
    %370 = arith.addf %369, %32 : vector<8x96xf32>
    %c2_141 = arith.constant 2 : index
    %c0_142 = arith.constant 0 : index
    %c0_143 = arith.constant 0 : index
    %371 = vector.load %arg3[%c2_141, %c0_142, %c0_143] : memref<5x32x96xf32, #tpu.memory_space<vmem>>, vector<1x32x96xf32>
    %372 = vector.shape_cast %371 : vector<1x32x96xf32> to vector<32x96xf32>
    %cst_144 = arith.constant dense<0.000000e+00> : vector<8x96xf32>
    %373 = tpu.matmul %306, %372, %cst_144 {dimension_numbers = #tpu.dot_dimension_numbers<[1], [0], [0], [1], [0, 0, 1, 1], [], []>} : vector<8x32xf32>, vector<32x96xf32>, vector<8x96xf32> -> vector<8x96xf32>
    %374 = arith.addf %373, %36 : vector<8x96xf32>
    %c3_145 = arith.constant 3 : index
    %c0_146 = arith.constant 0 : index
    %c0_147 = arith.constant 0 : index
    %375 = vector.load %arg3[%c3_145, %c0_146, %c0_147] : memref<5x32x96xf32, #tpu.memory_space<vmem>>, vector<1x32x96xf32>
    %376 = vector.shape_cast %375 : vector<1x32x96xf32> to vector<32x96xf32>
    %cst_148 = arith.constant dense<0.000000e+00> : vector<8x96xf32>
    %377 = tpu.matmul %334, %376, %cst_148 {dimension_numbers = #tpu.dot_dimension_numbers<[1], [0], [0], [1], [0, 0, 1, 1], [], []>} : vector<8x32xf32>, vector<32x96xf32>, vector<8x96xf32> -> vector<8x96xf32>
    %378 = arith.addf %377, %40 : vector<8x96xf32>
    %c4_149 = arith.constant 4 : index
    %c0_150 = arith.constant 0 : index
    %c0_151 = arith.constant 0 : index
    %379 = vector.load %arg3[%c4_149, %c0_150, %c0_151] : memref<5x32x96xf32, #tpu.memory_space<vmem>>, vector<1x32x96xf32>
    %380 = vector.shape_cast %379 : vector<1x32x96xf32> to vector<32x96xf32>
    %cst_152 = arith.constant dense<0.000000e+00> : vector<8x96xf32>
    %381 = tpu.matmul %362, %380, %cst_152 {dimension_numbers = #tpu.dot_dimension_numbers<[1], [0], [0], [1], [0, 0, 1, 1], [], []>} : vector<8x32xf32>, vector<32x96xf32>, vector<8x96xf32> -> vector<8x96xf32>
    %382 = arith.addf %381, %44 : vector<8x96xf32>
    %c0_153 = arith.constant 0 : index
    %c0_154 = arith.constant 0 : index
    %c0_155 = arith.constant 0 : index
    %383 = vector.load %arg4[%c0_153, %c0_154, %c0_155] : memref<5x32x96xf32, #tpu.memory_space<vmem>>, vector<1x32x96xf32>
    %384 = vector.shape_cast %383 : vector<1x32x96xf32> to vector<32x96xf32>
    %cst_156 = arith.constant dense<0.000000e+00> : vector<8x96xf32>
    %385 = tpu.matmul %278, %384, %cst_156 {dimension_numbers = #tpu.dot_dimension_numbers<[1], [0], [0], [1], [0, 0, 1, 1], [], []>} : vector<8x32xf32>, vector<32x96xf32>, vector<8x96xf32> -> vector<8x96xf32>
    %386 = vector.extract_strided_slice %366 {offsets = [0, 0], sizes = [8, 32], strides = [1, 1]} : vector<8x96xf32> to vector<8x32xf32>
    %387 = vector.extract_strided_slice %385 {offsets = [0, 0], sizes = [8, 32], strides = [1, 1]} : vector<8x96xf32> to vector<8x32xf32>
    %388 = arith.addf %386, %387 : vector<8x32xf32>
    %389 = arith.negf %388 : vector<8x32xf32>
    %390 = math.exp %389 : vector<8x32xf32>
    %cst_157 = arith.constant 1.000000e+00 : f32
    %391 = vector.broadcast %cst_157 : f32 to vector<8x32xf32>
    %392 = arith.addf %391, %390 : vector<8x32xf32>
    %393 = arith.divf %391, %392 : vector<8x32xf32>
    %394 = vector.extract_strided_slice %366 {offsets = [0, 32], sizes = [8, 32], strides = [1, 1]} : vector<8x96xf32> to vector<8x32xf32>
    %395 = vector.extract_strided_slice %385 {offsets = [0, 32], sizes = [8, 32], strides = [1, 1]} : vector<8x96xf32> to vector<8x32xf32>
    %396 = arith.addf %394, %395 : vector<8x32xf32>
    %397 = arith.negf %396 : vector<8x32xf32>
    %398 = math.exp %397 : vector<8x32xf32>
    %cst_158 = arith.constant 1.000000e+00 : f32
    %399 = vector.broadcast %cst_158 : f32 to vector<8x32xf32>
    %400 = arith.addf %399, %398 : vector<8x32xf32>
    %401 = arith.divf %399, %400 : vector<8x32xf32>
    %402 = vector.extract_strided_slice %366 {offsets = [0, 64], sizes = [8, 32], strides = [1, 1]} : vector<8x96xf32> to vector<8x32xf32>
    %403 = vector.extract_strided_slice %385 {offsets = [0, 64], sizes = [8, 32], strides = [1, 1]} : vector<8x96xf32> to vector<8x32xf32>
    %404 = arith.addf %403, %12 : vector<8x32xf32>
    %405 = arith.mulf %393, %404 : vector<8x32xf32>
    %406 = arith.addf %402, %405 : vector<8x32xf32>
    %407 = math.tanh %406 : vector<8x32xf32>
    %408 = arith.subf %278, %407 : vector<8x32xf32>
    %409 = arith.mulf %401, %408 : vector<8x32xf32>
    %410 = arith.addf %407, %409 : vector<8x32xf32>
    %c1_159 = arith.constant 1 : index
    %c0_160 = arith.constant 0 : index
    %c0_161 = arith.constant 0 : index
    %411 = vector.load %arg4[%c1_159, %c0_160, %c0_161] : memref<5x32x96xf32, #tpu.memory_space<vmem>>, vector<1x32x96xf32>
    %412 = vector.shape_cast %411 : vector<1x32x96xf32> to vector<32x96xf32>
    %cst_162 = arith.constant dense<0.000000e+00> : vector<8x96xf32>
    %413 = tpu.matmul %306, %412, %cst_162 {dimension_numbers = #tpu.dot_dimension_numbers<[1], [0], [0], [1], [0, 0, 1, 1], [], []>} : vector<8x32xf32>, vector<32x96xf32>, vector<8x96xf32> -> vector<8x96xf32>
    %414 = vector.extract_strided_slice %370 {offsets = [0, 0], sizes = [8, 32], strides = [1, 1]} : vector<8x96xf32> to vector<8x32xf32>
    %415 = vector.extract_strided_slice %413 {offsets = [0, 0], sizes = [8, 32], strides = [1, 1]} : vector<8x96xf32> to vector<8x32xf32>
    %416 = arith.addf %414, %415 : vector<8x32xf32>
    %417 = arith.negf %416 : vector<8x32xf32>
    %418 = math.exp %417 : vector<8x32xf32>
    %cst_163 = arith.constant 1.000000e+00 : f32
    %419 = vector.broadcast %cst_163 : f32 to vector<8x32xf32>
    %420 = arith.addf %419, %418 : vector<8x32xf32>
    %421 = arith.divf %419, %420 : vector<8x32xf32>
    %422 = vector.extract_strided_slice %370 {offsets = [0, 32], sizes = [8, 32], strides = [1, 1]} : vector<8x96xf32> to vector<8x32xf32>
    %423 = vector.extract_strided_slice %413 {offsets = [0, 32], sizes = [8, 32], strides = [1, 1]} : vector<8x96xf32> to vector<8x32xf32>
    %424 = arith.addf %422, %423 : vector<8x32xf32>
    %425 = arith.negf %424 : vector<8x32xf32>
    %426 = math.exp %425 : vector<8x32xf32>
    %cst_164 = arith.constant 1.000000e+00 : f32
    %427 = vector.broadcast %cst_164 : f32 to vector<8x32xf32>
    %428 = arith.addf %427, %426 : vector<8x32xf32>
    %429 = arith.divf %427, %428 : vector<8x32xf32>
    %430 = vector.extract_strided_slice %370 {offsets = [0, 64], sizes = [8, 32], strides = [1, 1]} : vector<8x96xf32> to vector<8x32xf32>
    %431 = vector.extract_strided_slice %413 {offsets = [0, 64], sizes = [8, 32], strides = [1, 1]} : vector<8x96xf32> to vector<8x32xf32>
    %432 = arith.addf %431, %16 : vector<8x32xf32>
    %433 = arith.mulf %421, %432 : vector<8x32xf32>
    %434 = arith.addf %430, %433 : vector<8x32xf32>
    %435 = math.tanh %434 : vector<8x32xf32>
    %436 = arith.subf %306, %435 : vector<8x32xf32>
    %437 = arith.mulf %429, %436 : vector<8x32xf32>
    %438 = arith.addf %435, %437 : vector<8x32xf32>
    %c2_165 = arith.constant 2 : index
    %c0_166 = arith.constant 0 : index
    %c0_167 = arith.constant 0 : index
    %439 = vector.load %arg4[%c2_165, %c0_166, %c0_167] : memref<5x32x96xf32, #tpu.memory_space<vmem>>, vector<1x32x96xf32>
    %440 = vector.shape_cast %439 : vector<1x32x96xf32> to vector<32x96xf32>
    %cst_168 = arith.constant dense<0.000000e+00> : vector<8x96xf32>
    %441 = tpu.matmul %334, %440, %cst_168 {dimension_numbers = #tpu.dot_dimension_numbers<[1], [0], [0], [1], [0, 0, 1, 1], [], []>} : vector<8x32xf32>, vector<32x96xf32>, vector<8x96xf32> -> vector<8x96xf32>
    %442 = vector.extract_strided_slice %374 {offsets = [0, 0], sizes = [8, 32], strides = [1, 1]} : vector<8x96xf32> to vector<8x32xf32>
    %443 = vector.extract_strided_slice %441 {offsets = [0, 0], sizes = [8, 32], strides = [1, 1]} : vector<8x96xf32> to vector<8x32xf32>
    %444 = arith.addf %442, %443 : vector<8x32xf32>
    %445 = arith.negf %444 : vector<8x32xf32>
    %446 = math.exp %445 : vector<8x32xf32>
    %cst_169 = arith.constant 1.000000e+00 : f32
    %447 = vector.broadcast %cst_169 : f32 to vector<8x32xf32>
    %448 = arith.addf %447, %446 : vector<8x32xf32>
    %449 = arith.divf %447, %448 : vector<8x32xf32>
    %450 = vector.extract_strided_slice %374 {offsets = [0, 32], sizes = [8, 32], strides = [1, 1]} : vector<8x96xf32> to vector<8x32xf32>
    %451 = vector.extract_strided_slice %441 {offsets = [0, 32], sizes = [8, 32], strides = [1, 1]} : vector<8x96xf32> to vector<8x32xf32>
    %452 = arith.addf %450, %451 : vector<8x32xf32>
    %453 = arith.negf %452 : vector<8x32xf32>
    %454 = math.exp %453 : vector<8x32xf32>
    %cst_170 = arith.constant 1.000000e+00 : f32
    %455 = vector.broadcast %cst_170 : f32 to vector<8x32xf32>
    %456 = arith.addf %455, %454 : vector<8x32xf32>
    %457 = arith.divf %455, %456 : vector<8x32xf32>
    %458 = vector.extract_strided_slice %374 {offsets = [0, 64], sizes = [8, 32], strides = [1, 1]} : vector<8x96xf32> to vector<8x32xf32>
    %459 = vector.extract_strided_slice %441 {offsets = [0, 64], sizes = [8, 32], strides = [1, 1]} : vector<8x96xf32> to vector<8x32xf32>
    %460 = arith.addf %459, %20 : vector<8x32xf32>
    %461 = arith.mulf %449, %460 : vector<8x32xf32>
    %462 = arith.addf %458, %461 : vector<8x32xf32>
    %463 = math.tanh %462 : vector<8x32xf32>
    %464 = arith.subf %334, %463 : vector<8x32xf32>
    %465 = arith.mulf %457, %464 : vector<8x32xf32>
    %466 = arith.addf %463, %465 : vector<8x32xf32>
    %c3_171 = arith.constant 3 : index
    %c0_172 = arith.constant 0 : index
    %c0_173 = arith.constant 0 : index
    %467 = vector.load %arg4[%c3_171, %c0_172, %c0_173] : memref<5x32x96xf32, #tpu.memory_space<vmem>>, vector<1x32x96xf32>
    %468 = vector.shape_cast %467 : vector<1x32x96xf32> to vector<32x96xf32>
    %cst_174 = arith.constant dense<0.000000e+00> : vector<8x96xf32>
    %469 = tpu.matmul %362, %468, %cst_174 {dimension_numbers = #tpu.dot_dimension_numbers<[1], [0], [0], [1], [0, 0, 1, 1], [], []>} : vector<8x32xf32>, vector<32x96xf32>, vector<8x96xf32> -> vector<8x96xf32>
    %470 = vector.extract_strided_slice %378 {offsets = [0, 0], sizes = [8, 32], strides = [1, 1]} : vector<8x96xf32> to vector<8x32xf32>
    %471 = vector.extract_strided_slice %469 {offsets = [0, 0], sizes = [8, 32], strides = [1, 1]} : vector<8x96xf32> to vector<8x32xf32>
    %472 = arith.addf %470, %471 : vector<8x32xf32>
    %473 = arith.negf %472 : vector<8x32xf32>
    %474 = math.exp %473 : vector<8x32xf32>
    %cst_175 = arith.constant 1.000000e+00 : f32
    %475 = vector.broadcast %cst_175 : f32 to vector<8x32xf32>
    %476 = arith.addf %475, %474 : vector<8x32xf32>
    %477 = arith.divf %475, %476 : vector<8x32xf32>
    %478 = vector.extract_strided_slice %378 {offsets = [0, 32], sizes = [8, 32], strides = [1, 1]} : vector<8x96xf32> to vector<8x32xf32>
    %479 = vector.extract_strided_slice %469 {offsets = [0, 32], sizes = [8, 32], strides = [1, 1]} : vector<8x96xf32> to vector<8x32xf32>
    %480 = arith.addf %478, %479 : vector<8x32xf32>
    %481 = arith.negf %480 : vector<8x32xf32>
    %482 = math.exp %481 : vector<8x32xf32>
    %cst_176 = arith.constant 1.000000e+00 : f32
    %483 = vector.broadcast %cst_176 : f32 to vector<8x32xf32>
    %484 = arith.addf %483, %482 : vector<8x32xf32>
    %485 = arith.divf %483, %484 : vector<8x32xf32>
    %486 = vector.extract_strided_slice %378 {offsets = [0, 64], sizes = [8, 32], strides = [1, 1]} : vector<8x96xf32> to vector<8x32xf32>
    %487 = vector.extract_strided_slice %469 {offsets = [0, 64], sizes = [8, 32], strides = [1, 1]} : vector<8x96xf32> to vector<8x32xf32>
    %488 = arith.addf %487, %24 : vector<8x32xf32>
    %489 = arith.mulf %477, %488 : vector<8x32xf32>
    %490 = arith.addf %486, %489 : vector<8x32xf32>
    %491 = math.tanh %490 : vector<8x32xf32>
    %492 = arith.subf %362, %491 : vector<8x32xf32>
    %493 = arith.mulf %485, %492 : vector<8x32xf32>
    %494 = arith.addf %491, %493 : vector<8x32xf32>
    %c4_177 = arith.constant 4 : index
    %c0_178 = arith.constant 0 : index
    %c0_179 = arith.constant 0 : index
    %495 = vector.load %arg4[%c4_177, %c0_178, %c0_179] : memref<5x32x96xf32, #tpu.memory_space<vmem>>, vector<1x32x96xf32>
    %496 = vector.shape_cast %495 : vector<1x32x96xf32> to vector<32x96xf32>
    %cst_180 = arith.constant dense<0.000000e+00> : vector<8x96xf32>
    %497 = tpu.matmul %54, %496, %cst_180 {dimension_numbers = #tpu.dot_dimension_numbers<[1], [0], [0], [1], [0, 0, 1, 1], [], []>} : vector<8x32xf32>, vector<32x96xf32>, vector<8x96xf32> -> vector<8x96xf32>
    %498 = vector.extract_strided_slice %382 {offsets = [0, 0], sizes = [8, 32], strides = [1, 1]} : vector<8x96xf32> to vector<8x32xf32>
    %499 = vector.extract_strided_slice %497 {offsets = [0, 0], sizes = [8, 32], strides = [1, 1]} : vector<8x96xf32> to vector<8x32xf32>
    %500 = arith.addf %498, %499 : vector<8x32xf32>
    %501 = arith.negf %500 : vector<8x32xf32>
    %502 = math.exp %501 : vector<8x32xf32>
    %cst_181 = arith.constant 1.000000e+00 : f32
    %503 = vector.broadcast %cst_181 : f32 to vector<8x32xf32>
    %504 = arith.addf %503, %502 : vector<8x32xf32>
    %505 = arith.divf %503, %504 : vector<8x32xf32>
    %506 = vector.extract_strided_slice %382 {offsets = [0, 32], sizes = [8, 32], strides = [1, 1]} : vector<8x96xf32> to vector<8x32xf32>
    %507 = vector.extract_strided_slice %497 {offsets = [0, 32], sizes = [8, 32], strides = [1, 1]} : vector<8x96xf32> to vector<8x32xf32>
    %508 = arith.addf %506, %507 : vector<8x32xf32>
    %509 = arith.negf %508 : vector<8x32xf32>
    %510 = math.exp %509 : vector<8x32xf32>
    %cst_182 = arith.constant 1.000000e+00 : f32
    %511 = vector.broadcast %cst_182 : f32 to vector<8x32xf32>
    %512 = arith.addf %511, %510 : vector<8x32xf32>
    %513 = arith.divf %511, %512 : vector<8x32xf32>
    %514 = vector.extract_strided_slice %382 {offsets = [0, 64], sizes = [8, 32], strides = [1, 1]} : vector<8x96xf32> to vector<8x32xf32>
    %515 = vector.extract_strided_slice %497 {offsets = [0, 64], sizes = [8, 32], strides = [1, 1]} : vector<8x96xf32> to vector<8x32xf32>
    %516 = arith.addf %515, %28 : vector<8x32xf32>
    %517 = arith.mulf %505, %516 : vector<8x32xf32>
    %518 = arith.addf %514, %517 : vector<8x32xf32>
    %519 = math.tanh %518 : vector<8x32xf32>
    %520 = arith.subf %54, %519 : vector<8x32xf32>
    %521 = arith.mulf %513, %520 : vector<8x32xf32>
    %522 = arith.addf %519, %521 : vector<8x32xf32>
    %c4_i32_183 = arith.constant 4 : i32
    %523 = arith.subi %c4_i32, %c4_i32_183 : i32
    %c8_i32_184 = arith.constant 8 : i32
    %524 = arith.muli %523, %c8_i32_184 : i32
    %525 = tpu.assume_multiple %524, 8 : i32
    %526 = arith.index_cast %525 : i32 to index
    %c0_185 = arith.constant 0 : index
    %527 = vector.load %arg7[%526, %c0_185] : memref<64x32xf32, #tpu.memory_space<vmem>>, vector<8x32xf32>
    tpu.vector_store %arg7[%526, %c0_185], %522 {strides = array<i32>} : memref<64x32xf32, #tpu.memory_space<vmem>>, vector<8x32xf32>,
    %c5_i32 = arith.constant 5 : i32
    %c8_i32_186 = arith.constant 8 : i32
    %528 = arith.muli %c5_i32, %c8_i32_186 : i32
    %529 = tpu.assume_multiple %528, 8 : i32
    %530 = arith.index_cast %529 : i32 to index
    %c0_187 = arith.constant 0 : index
    %531 = vector.load %arg9[%530, %c0_187] : memref<64x96xf32, #tpu.memory_space<vmem>>, vector<8x96xf32>
    %c1_188 = arith.constant 1 : index
    %c0_189 = arith.constant 0 : index
    %c0_190 = arith.constant 0 : index
    %532 = vector.load %arg3[%c1_188, %c0_189, %c0_190] : memref<5x32x96xf32, #tpu.memory_space<vmem>>, vector<1x32x96xf32>
    %533 = vector.shape_cast %532 : vector<1x32x96xf32> to vector<32x96xf32>
    %cst_191 = arith.constant dense<0.000000e+00> : vector<8x96xf32>
    %534 = tpu.matmul %410, %533, %cst_191 {dimension_numbers = #tpu.dot_dimension_numbers<[1], [0], [0], [1], [0, 0, 1, 1], [], []>} : vector<8x32xf32>, vector<32x96xf32>, vector<8x96xf32> -> vector<8x96xf32>
    %535 = arith.addf %534, %32 : vector<8x96xf32>
    %c2_192 = arith.constant 2 : index
    %c0_193 = arith.constant 0 : index
    %c0_194 = arith.constant 0 : index
    %536 = vector.load %arg3[%c2_192, %c0_193, %c0_194] : memref<5x32x96xf32, #tpu.memory_space<vmem>>, vector<1x32x96xf32>
    %537 = vector.shape_cast %536 : vector<1x32x96xf32> to vector<32x96xf32>
    %cst_195 = arith.constant dense<0.000000e+00> : vector<8x96xf32>
    %538 = tpu.matmul %438, %537, %cst_195 {dimension_numbers = #tpu.dot_dimension_numbers<[1], [0], [0], [1], [0, 0, 1, 1], [], []>} : vector<8x32xf32>, vector<32x96xf32>, vector<8x96xf32> -> vector<8x96xf32>
    %539 = arith.addf %538, %36 : vector<8x96xf32>
    %c3_196 = arith.constant 3 : index
    %c0_197 = arith.constant 0 : index
    %c0_198 = arith.constant 0 : index
    %540 = vector.load %arg3[%c3_196, %c0_197, %c0_198] : memref<5x32x96xf32, #tpu.memory_space<vmem>>, vector<1x32x96xf32>
    %541 = vector.shape_cast %540 : vector<1x32x96xf32> to vector<32x96xf32>
    %cst_199 = arith.constant dense<0.000000e+00> : vector<8x96xf32>
    %542 = tpu.matmul %466, %541, %cst_199 {dimension_numbers = #tpu.dot_dimension_numbers<[1], [0], [0], [1], [0, 0, 1, 1], [], []>} : vector<8x32xf32>, vector<32x96xf32>, vector<8x96xf32> -> vector<8x96xf32>
    %543 = arith.addf %542, %40 : vector<8x96xf32>
    %c4_200 = arith.constant 4 : index
    %c0_201 = arith.constant 0 : index
    %c0_202 = arith.constant 0 : index
    %544 = vector.load %arg3[%c4_200, %c0_201, %c0_202] : memref<5x32x96xf32, #tpu.memory_space<vmem>>, vector<1x32x96xf32>
    %545 = vector.shape_cast %544 : vector<1x32x96xf32> to vector<32x96xf32>
    %cst_203 = arith.constant dense<0.000000e+00> : vector<8x96xf32>
    %546 = tpu.matmul %494, %545, %cst_203 {dimension_numbers = #tpu.dot_dimension_numbers<[1], [0], [0], [1], [0, 0, 1, 1], [], []>} : vector<8x32xf32>, vector<32x96xf32>, vector<8x96xf32> -> vector<8x96xf32>
    %547 = arith.addf %546, %44 : vector<8x96xf32>
    %c0_204 = arith.constant 0 : index
    %c0_205 = arith.constant 0 : index
    %c0_206 = arith.constant 0 : index
    %548 = vector.load %arg4[%c0_204, %c0_205, %c0_206] : memref<5x32x96xf32, #tpu.memory_space<vmem>>, vector<1x32x96xf32>
    %549 = vector.shape_cast %548 : vector<1x32x96xf32> to vector<32x96xf32>
    %cst_207 = arith.constant dense<0.000000e+00> : vector<8x96xf32>
    %550 = tpu.matmul %410, %549, %cst_207 {dimension_numbers = #tpu.dot_dimension_numbers<[1], [0], [0], [1], [0, 0, 1, 1], [], []>} : vector<8x32xf32>, vector<32x96xf32>, vector<8x96xf32> -> vector<8x96xf32>
    %551 = vector.extract_strided_slice %531 {offsets = [0, 0], sizes = [8, 32], strides = [1, 1]} : vector<8x96xf32> to vector<8x32xf32>
    %552 = vector.extract_strided_slice %550 {offsets = [0, 0], sizes = [8, 32], strides = [1, 1]} : vector<8x96xf32> to vector<8x32xf32>
    %553 = arith.addf %551, %552 : vector<8x32xf32>
    %554 = arith.negf %553 : vector<8x32xf32>
    %555 = math.exp %554 : vector<8x32xf32>
    %cst_208 = arith.constant 1.000000e+00 : f32
    %556 = vector.broadcast %cst_208 : f32 to vector<8x32xf32>
    %557 = arith.addf %556, %555 : vector<8x32xf32>
    %558 = arith.divf %556, %557 : vector<8x32xf32>
    %559 = vector.extract_strided_slice %531 {offsets = [0, 32], sizes = [8, 32], strides = [1, 1]} : vector<8x96xf32> to vector<8x32xf32>
    %560 = vector.extract_strided_slice %550 {offsets = [0, 32], sizes = [8, 32], strides = [1, 1]} : vector<8x96xf32> to vector<8x32xf32>
    %561 = arith.addf %559, %560 : vector<8x32xf32>
    %562 = arith.negf %561 : vector<8x32xf32>
    %563 = math.exp %562 : vector<8x32xf32>
    %cst_209 = arith.constant 1.000000e+00 : f32
    %564 = vector.broadcast %cst_209 : f32 to vector<8x32xf32>
    %565 = arith.addf %564, %563 : vector<8x32xf32>
    %566 = arith.divf %564, %565 : vector<8x32xf32>
    %567 = vector.extract_strided_slice %531 {offsets = [0, 64], sizes = [8, 32], strides = [1, 1]} : vector<8x96xf32> to vector<8x32xf32>
    %568 = vector.extract_strided_slice %550 {offsets = [0, 64], sizes = [8, 32], strides = [1, 1]} : vector<8x96xf32> to vector<8x32xf32>
    %569 = arith.addf %568, %12 : vector<8x32xf32>
    %570 = arith.mulf %558, %569 : vector<8x32xf32>
    %571 = arith.addf %567, %570 : vector<8x32xf32>
    %572 = math.tanh %571 : vector<8x32xf32>
    %573 = arith.subf %410, %572 : vector<8x32xf32>
    %574 = arith.mulf %566, %573 : vector<8x32xf32>
    %575 = arith.addf %572, %574 : vector<8x32xf32>
    %c1_210 = arith.constant 1 : index
    %c0_211 = arith.constant 0 : index
    %c0_212 = arith.constant 0 : index
    %576 = vector.load %arg4[%c1_210, %c0_211, %c0_212] : memref<5x32x96xf32, #tpu.memory_space<vmem>>, vector<1x32x96xf32>
    %577 = vector.shape_cast %576 : vector<1x32x96xf32> to vector<32x96xf32>
    %cst_213 = arith.constant dense<0.000000e+00> : vector<8x96xf32>
    %578 = tpu.matmul %438, %577, %cst_213 {dimension_numbers = #tpu.dot_dimension_numbers<[1], [0], [0], [1], [0, 0, 1, 1], [], []>} : vector<8x32xf32>, vector<32x96xf32>, vector<8x96xf32> -> vector<8x96xf32>
    %579 = vector.extract_strided_slice %535 {offsets = [0, 0], sizes = [8, 32], strides = [1, 1]} : vector<8x96xf32> to vector<8x32xf32>
    %580 = vector.extract_strided_slice %578 {offsets = [0, 0], sizes = [8, 32], strides = [1, 1]} : vector<8x96xf32> to vector<8x32xf32>
    %581 = arith.addf %579, %580 : vector<8x32xf32>
    %582 = arith.negf %581 : vector<8x32xf32>
    %583 = math.exp %582 : vector<8x32xf32>
    %cst_214 = arith.constant 1.000000e+00 : f32
    %584 = vector.broadcast %cst_214 : f32 to vector<8x32xf32>
    %585 = arith.addf %584, %583 : vector<8x32xf32>
    %586 = arith.divf %584, %585 : vector<8x32xf32>
    %587 = vector.extract_strided_slice %535 {offsets = [0, 32], sizes = [8, 32], strides = [1, 1]} : vector<8x96xf32> to vector<8x32xf32>
    %588 = vector.extract_strided_slice %578 {offsets = [0, 32], sizes = [8, 32], strides = [1, 1]} : vector<8x96xf32> to vector<8x32xf32>
    %589 = arith.addf %587, %588 : vector<8x32xf32>
    %590 = arith.negf %589 : vector<8x32xf32>
    %591 = math.exp %590 : vector<8x32xf32>
    %cst_215 = arith.constant 1.000000e+00 : f32
    %592 = vector.broadcast %cst_215 : f32 to vector<8x32xf32>
    %593 = arith.addf %592, %591 : vector<8x32xf32>
    %594 = arith.divf %592, %593 : vector<8x32xf32>
    %595 = vector.extract_strided_slice %535 {offsets = [0, 64], sizes = [8, 32], strides = [1, 1]} : vector<8x96xf32> to vector<8x32xf32>
    %596 = vector.extract_strided_slice %578 {offsets = [0, 64], sizes = [8, 32], strides = [1, 1]} : vector<8x96xf32> to vector<8x32xf32>
    %597 = arith.addf %596, %16 : vector<8x32xf32>
    %598 = arith.mulf %586, %597 : vector<8x32xf32>
    %599 = arith.addf %595, %598 : vector<8x32xf32>
    %600 = math.tanh %599 : vector<8x32xf32>
    %601 = arith.subf %438, %600 : vector<8x32xf32>
    %602 = arith.mulf %594, %601 : vector<8x32xf32>
    %603 = arith.addf %600, %602 : vector<8x32xf32>
    %c2_216 = arith.constant 2 : index
    %c0_217 = arith.constant 0 : index
    %c0_218 = arith.constant 0 : index
    %604 = vector.load %arg4[%c2_216, %c0_217, %c0_218] : memref<5x32x96xf32, #tpu.memory_space<vmem>>, vector<1x32x96xf32>
    %605 = vector.shape_cast %604 : vector<1x32x96xf32> to vector<32x96xf32>
    %cst_219 = arith.constant dense<0.000000e+00> : vector<8x96xf32>
    %606 = tpu.matmul %466, %605, %cst_219 {dimension_numbers = #tpu.dot_dimension_numbers<[1], [0], [0], [1], [0, 0, 1, 1], [], []>} : vector<8x32xf32>, vector<32x96xf32>, vector<8x96xf32> -> vector<8x96xf32>
    %607 = vector.extract_strided_slice %539 {offsets = [0, 0], sizes = [8, 32], strides = [1, 1]} : vector<8x96xf32> to vector<8x32xf32>
    %608 = vector.extract_strided_slice %606 {offsets = [0, 0], sizes = [8, 32], strides = [1, 1]} : vector<8x96xf32> to vector<8x32xf32>
    %609 = arith.addf %607, %608 : vector<8x32xf32>
    %610 = arith.negf %609 : vector<8x32xf32>
    %611 = math.exp %610 : vector<8x32xf32>
    %cst_220 = arith.constant 1.000000e+00 : f32
    %612 = vector.broadcast %cst_220 : f32 to vector<8x32xf32>
    %613 = arith.addf %612, %611 : vector<8x32xf32>
    %614 = arith.divf %612, %613 : vector<8x32xf32>
    %615 = vector.extract_strided_slice %539 {offsets = [0, 32], sizes = [8, 32], strides = [1, 1]} : vector<8x96xf32> to vector<8x32xf32>
    %616 = vector.extract_strided_slice %606 {offsets = [0, 32], sizes = [8, 32], strides = [1, 1]} : vector<8x96xf32> to vector<8x32xf32>
    %617 = arith.addf %615, %616 : vector<8x32xf32>
    %618 = arith.negf %617 : vector<8x32xf32>
    %619 = math.exp %618 : vector<8x32xf32>
    %cst_221 = arith.constant 1.000000e+00 : f32
    %620 = vector.broadcast %cst_221 : f32 to vector<8x32xf32>
    %621 = arith.addf %620, %619 : vector<8x32xf32>
    %622 = arith.divf %620, %621 : vector<8x32xf32>
    %623 = vector.extract_strided_slice %539 {offsets = [0, 64], sizes = [8, 32], strides = [1, 1]} : vector<8x96xf32> to vector<8x32xf32>
    %624 = vector.extract_strided_slice %606 {offsets = [0, 64], sizes = [8, 32], strides = [1, 1]} : vector<8x96xf32> to vector<8x32xf32>
    %625 = arith.addf %624, %20 : vector<8x32xf32>
    %626 = arith.mulf %614, %625 : vector<8x32xf32>
    %627 = arith.addf %623, %626 : vector<8x32xf32>
    %628 = math.tanh %627 : vector<8x32xf32>
    %629 = arith.subf %466, %628 : vector<8x32xf32>
    %630 = arith.mulf %622, %629 : vector<8x32xf32>
    %631 = arith.addf %628, %630 : vector<8x32xf32>
    %c3_222 = arith.constant 3 : index
    %c0_223 = arith.constant 0 : index
    %c0_224 = arith.constant 0 : index
    %632 = vector.load %arg4[%c3_222, %c0_223, %c0_224] : memref<5x32x96xf32, #tpu.memory_space<vmem>>, vector<1x32x96xf32>
    %633 = vector.shape_cast %632 : vector<1x32x96xf32> to vector<32x96xf32>
    %cst_225 = arith.constant dense<0.000000e+00> : vector<8x96xf32>
    %634 = tpu.matmul %494, %633, %cst_225 {dimension_numbers = #tpu.dot_dimension_numbers<[1], [0], [0], [1], [0, 0, 1, 1], [], []>} : vector<8x32xf32>, vector<32x96xf32>, vector<8x96xf32> -> vector<8x96xf32>
    %635 = vector.extract_strided_slice %543 {offsets = [0, 0], sizes = [8, 32], strides = [1, 1]} : vector<8x96xf32> to vector<8x32xf32>
    %636 = vector.extract_strided_slice %634 {offsets = [0, 0], sizes = [8, 32], strides = [1, 1]} : vector<8x96xf32> to vector<8x32xf32>
    %637 = arith.addf %635, %636 : vector<8x32xf32>
    %638 = arith.negf %637 : vector<8x32xf32>
    %639 = math.exp %638 : vector<8x32xf32>
    %cst_226 = arith.constant 1.000000e+00 : f32
    %640 = vector.broadcast %cst_226 : f32 to vector<8x32xf32>
    %641 = arith.addf %640, %639 : vector<8x32xf32>
    %642 = arith.divf %640, %641 : vector<8x32xf32>
    %643 = vector.extract_strided_slice %543 {offsets = [0, 32], sizes = [8, 32], strides = [1, 1]} : vector<8x96xf32> to vector<8x32xf32>
    %644 = vector.extract_strided_slice %634 {offsets = [0, 32], sizes = [8, 32], strides = [1, 1]} : vector<8x96xf32> to vector<8x32xf32>
    %645 = arith.addf %643, %644 : vector<8x32xf32>
    %646 = arith.negf %645 : vector<8x32xf32>
    %647 = math.exp %646 : vector<8x32xf32>
    %cst_227 = arith.constant 1.000000e+00 : f32
    %648 = vector.broadcast %cst_227 : f32 to vector<8x32xf32>
    %649 = arith.addf %648, %647 : vector<8x32xf32>
    %650 = arith.divf %648, %649 : vector<8x32xf32>
    %651 = vector.extract_strided_slice %543 {offsets = [0, 64], sizes = [8, 32], strides = [1, 1]} : vector<8x96xf32> to vector<8x32xf32>
    %652 = vector.extract_strided_slice %634 {offsets = [0, 64], sizes = [8, 32], strides = [1, 1]} : vector<8x96xf32> to vector<8x32xf32>
    %653 = arith.addf %652, %24 : vector<8x32xf32>
    %654 = arith.mulf %642, %653 : vector<8x32xf32>
    %655 = arith.addf %651, %654 : vector<8x32xf32>
    %656 = math.tanh %655 : vector<8x32xf32>
    %657 = arith.subf %494, %656 : vector<8x32xf32>
    %658 = arith.mulf %650, %657 : vector<8x32xf32>
    %659 = arith.addf %656, %658 : vector<8x32xf32>
    %c4_228 = arith.constant 4 : index
    %c0_229 = arith.constant 0 : index
    %c0_230 = arith.constant 0 : index
    %660 = vector.load %arg4[%c4_228, %c0_229, %c0_230] : memref<5x32x96xf32, #tpu.memory_space<vmem>>, vector<1x32x96xf32>
    %661 = vector.shape_cast %660 : vector<1x32x96xf32> to vector<32x96xf32>
    %cst_231 = arith.constant dense<0.000000e+00> : vector<8x96xf32>
    %662 = tpu.matmul %522, %661, %cst_231 {dimension_numbers = #tpu.dot_dimension_numbers<[1], [0], [0], [1], [0, 0, 1, 1], [], []>} : vector<8x32xf32>, vector<32x96xf32>, vector<8x96xf32> -> vector<8x96xf32>
    %663 = vector.extract_strided_slice %547 {offsets = [0, 0], sizes = [8, 32], strides = [1, 1]} : vector<8x96xf32> to vector<8x32xf32>
    %664 = vector.extract_strided_slice %662 {offsets = [0, 0], sizes = [8, 32], strides = [1, 1]} : vector<8x96xf32> to vector<8x32xf32>
    %665 = arith.addf %663, %664 : vector<8x32xf32>
    %666 = arith.negf %665 : vector<8x32xf32>
    %667 = math.exp %666 : vector<8x32xf32>
    %cst_232 = arith.constant 1.000000e+00 : f32
    %668 = vector.broadcast %cst_232 : f32 to vector<8x32xf32>
    %669 = arith.addf %668, %667 : vector<8x32xf32>
    %670 = arith.divf %668, %669 : vector<8x32xf32>
    %671 = vector.extract_strided_slice %547 {offsets = [0, 32], sizes = [8, 32], strides = [1, 1]} : vector<8x96xf32> to vector<8x32xf32>
    %672 = vector.extract_strided_slice %662 {offsets = [0, 32], sizes = [8, 32], strides = [1, 1]} : vector<8x96xf32> to vector<8x32xf32>
    %673 = arith.addf %671, %672 : vector<8x32xf32>
    %674 = arith.negf %673 : vector<8x32xf32>
    %675 = math.exp %674 : vector<8x32xf32>
    %cst_233 = arith.constant 1.000000e+00 : f32
    %676 = vector.broadcast %cst_233 : f32 to vector<8x32xf32>
    %677 = arith.addf %676, %675 : vector<8x32xf32>
    %678 = arith.divf %676, %677 : vector<8x32xf32>
    %679 = vector.extract_strided_slice %547 {offsets = [0, 64], sizes = [8, 32], strides = [1, 1]} : vector<8x96xf32> to vector<8x32xf32>
    %680 = vector.extract_strided_slice %662 {offsets = [0, 64], sizes = [8, 32], strides = [1, 1]} : vector<8x96xf32> to vector<8x32xf32>
    %681 = arith.addf %680, %28 : vector<8x32xf32>
    %682 = arith.mulf %670, %681 : vector<8x32xf32>
    %683 = arith.addf %679, %682 : vector<8x32xf32>
    %684 = math.tanh %683 : vector<8x32xf32>
    %685 = arith.subf %522, %684 : vector<8x32xf32>
    %686 = arith.mulf %678, %685 : vector<8x32xf32>
    %687 = arith.addf %684, %686 : vector<8x32xf32>
    %c4_i32_234 = arith.constant 4 : i32
    %688 = arith.subi %c5_i32, %c4_i32_234 : i32
    %c8_i32_235 = arith.constant 8 : i32
    %689 = arith.muli %688, %c8_i32_235 : i32
    %690 = tpu.assume_multiple %689, 8 : i32
    %691 = arith.index_cast %690 : i32 to index
    %c0_236 = arith.constant 0 : index
    %692 = vector.load %arg7[%691, %c0_236] : memref<64x32xf32, #tpu.memory_space<vmem>>, vector<8x32xf32>
    tpu.vector_store %arg7[%691, %c0_236], %687 {strides = array<i32>} : memref<64x32xf32, #tpu.memory_space<vmem>>, vector<8x32xf32>,
    %c6_i32 = arith.constant 6 : i32
    %c8_i32_237 = arith.constant 8 : i32
    %693 = arith.muli %c6_i32, %c8_i32_237 : i32
    %694 = tpu.assume_multiple %693, 8 : i32
    %695 = arith.index_cast %694 : i32 to index
    %c0_238 = arith.constant 0 : index
    %696 = vector.load %arg9[%695, %c0_238] : memref<64x96xf32, #tpu.memory_space<vmem>>, vector<8x96xf32>
    %c1_239 = arith.constant 1 : index
    %c0_240 = arith.constant 0 : index
    %c0_241 = arith.constant 0 : index
    %697 = vector.load %arg3[%c1_239, %c0_240, %c0_241] : memref<5x32x96xf32, #tpu.memory_space<vmem>>, vector<1x32x96xf32>
    %698 = vector.shape_cast %697 : vector<1x32x96xf32> to vector<32x96xf32>
    %cst_242 = arith.constant dense<0.000000e+00> : vector<8x96xf32>
    %699 = tpu.matmul %575, %698, %cst_242 {dimension_numbers = #tpu.dot_dimension_numbers<[1], [0], [0], [1], [0, 0, 1, 1], [], []>} : vector<8x32xf32>, vector<32x96xf32>, vector<8x96xf32> -> vector<8x96xf32>
    %700 = arith.addf %699, %32 : vector<8x96xf32>
    %c2_243 = arith.constant 2 : index
    %c0_244 = arith.constant 0 : index
    %c0_245 = arith.constant 0 : index
    %701 = vector.load %arg3[%c2_243, %c0_244, %c0_245] : memref<5x32x96xf32, #tpu.memory_space<vmem>>, vector<1x32x96xf32>
    %702 = vector.shape_cast %701 : vector<1x32x96xf32> to vector<32x96xf32>
    %cst_246 = arith.constant dense<0.000000e+00> : vector<8x96xf32>
    %703 = tpu.matmul %603, %702, %cst_246 {dimension_numbers = #tpu.dot_dimension_numbers<[1], [0], [0], [1], [0, 0, 1, 1], [], []>} : vector<8x32xf32>, vector<32x96xf32>, vector<8x96xf32> -> vector<8x96xf32>
    %704 = arith.addf %703, %36 : vector<8x96xf32>
    %c3_247 = arith.constant 3 : index
    %c0_248 = arith.constant 0 : index
    %c0_249 = arith.constant 0 : index
    %705 = vector.load %arg3[%c3_247, %c0_248, %c0_249] : memref<5x32x96xf32, #tpu.memory_space<vmem>>, vector<1x32x96xf32>
    %706 = vector.shape_cast %705 : vector<1x32x96xf32> to vector<32x96xf32>
    %cst_250 = arith.constant dense<0.000000e+00> : vector<8x96xf32>
    %707 = tpu.matmul %631, %706, %cst_250 {dimension_numbers = #tpu.dot_dimension_numbers<[1], [0], [0], [1], [0, 0, 1, 1], [], []>} : vector<8x32xf32>, vector<32x96xf32>, vector<8x96xf32> -> vector<8x96xf32>
    %708 = arith.addf %707, %40 : vector<8x96xf32>
    %c4_251 = arith.constant 4 : index
    %c0_252 = arith.constant 0 : index
    %c0_253 = arith.constant 0 : index
    %709 = vector.load %arg3[%c4_251, %c0_252, %c0_253] : memref<5x32x96xf32, #tpu.memory_space<vmem>>, vector<1x32x96xf32>
    %710 = vector.shape_cast %709 : vector<1x32x96xf32> to vector<32x96xf32>
    %cst_254 = arith.constant dense<0.000000e+00> : vector<8x96xf32>
    %711 = tpu.matmul %659, %710, %cst_254 {dimension_numbers = #tpu.dot_dimension_numbers<[1], [0], [0], [1], [0, 0, 1, 1], [], []>} : vector<8x32xf32>, vector<32x96xf32>, vector<8x96xf32> -> vector<8x96xf32>
    %712 = arith.addf %711, %44 : vector<8x96xf32>
    %c0_255 = arith.constant 0 : index
    %c0_256 = arith.constant 0 : index
    %c0_257 = arith.constant 0 : index
    %713 = vector.load %arg4[%c0_255, %c0_256, %c0_257] : memref<5x32x96xf32, #tpu.memory_space<vmem>>, vector<1x32x96xf32>
    %714 = vector.shape_cast %713 : vector<1x32x96xf32> to vector<32x96xf32>
    %cst_258 = arith.constant dense<0.000000e+00> : vector<8x96xf32>
    %715 = tpu.matmul %575, %714, %cst_258 {dimension_numbers = #tpu.dot_dimension_numbers<[1], [0], [0], [1], [0, 0, 1, 1], [], []>} : vector<8x32xf32>, vector<32x96xf32>, vector<8x96xf32> -> vector<8x96xf32>
    %716 = vector.extract_strided_slice %696 {offsets = [0, 0], sizes = [8, 32], strides = [1, 1]} : vector<8x96xf32> to vector<8x32xf32>
    %717 = vector.extract_strided_slice %715 {offsets = [0, 0], sizes = [8, 32], strides = [1, 1]} : vector<8x96xf32> to vector<8x32xf32>
    %718 = arith.addf %716, %717 : vector<8x32xf32>
    %719 = arith.negf %718 : vector<8x32xf32>
    %720 = math.exp %719 : vector<8x32xf32>
    %cst_259 = arith.constant 1.000000e+00 : f32
    %721 = vector.broadcast %cst_259 : f32 to vector<8x32xf32>
    %722 = arith.addf %721, %720 : vector<8x32xf32>
    %723 = arith.divf %721, %722 : vector<8x32xf32>
    %724 = vector.extract_strided_slice %696 {offsets = [0, 32], sizes = [8, 32], strides = [1, 1]} : vector<8x96xf32> to vector<8x32xf32>
    %725 = vector.extract_strided_slice %715 {offsets = [0, 32], sizes = [8, 32], strides = [1, 1]} : vector<8x96xf32> to vector<8x32xf32>
    %726 = arith.addf %724, %725 : vector<8x32xf32>
    %727 = arith.negf %726 : vector<8x32xf32>
    %728 = math.exp %727 : vector<8x32xf32>
    %cst_260 = arith.constant 1.000000e+00 : f32
    %729 = vector.broadcast %cst_260 : f32 to vector<8x32xf32>
    %730 = arith.addf %729, %728 : vector<8x32xf32>
    %731 = arith.divf %729, %730 : vector<8x32xf32>
    %732 = vector.extract_strided_slice %696 {offsets = [0, 64], sizes = [8, 32], strides = [1, 1]} : vector<8x96xf32> to vector<8x32xf32>
    %733 = vector.extract_strided_slice %715 {offsets = [0, 64], sizes = [8, 32], strides = [1, 1]} : vector<8x96xf32> to vector<8x32xf32>
    %734 = arith.addf %733, %12 : vector<8x32xf32>
    %735 = arith.mulf %723, %734 : vector<8x32xf32>
    %736 = arith.addf %732, %735 : vector<8x32xf32>
    %737 = math.tanh %736 : vector<8x32xf32>
    %738 = arith.subf %575, %737 : vector<8x32xf32>
    %739 = arith.mulf %731, %738 : vector<8x32xf32>
    %740 = arith.addf %737, %739 : vector<8x32xf32>
    %c1_261 = arith.constant 1 : index
    %c0_262 = arith.constant 0 : index
    %c0_263 = arith.constant 0 : index
    %741 = vector.load %arg4[%c1_261, %c0_262, %c0_263] : memref<5x32x96xf32, #tpu.memory_space<vmem>>, vector<1x32x96xf32>
    %742 = vector.shape_cast %741 : vector<1x32x96xf32> to vector<32x96xf32>
    %cst_264 = arith.constant dense<0.000000e+00> : vector<8x96xf32>
    %743 = tpu.matmul %603, %742, %cst_264 {dimension_numbers = #tpu.dot_dimension_numbers<[1], [0], [0], [1], [0, 0, 1, 1], [], []>} : vector<8x32xf32>, vector<32x96xf32>, vector<8x96xf32> -> vector<8x96xf32>
    %744 = vector.extract_strided_slice %700 {offsets = [0, 0], sizes = [8, 32], strides = [1, 1]} : vector<8x96xf32> to vector<8x32xf32>
    %745 = vector.extract_strided_slice %743 {offsets = [0, 0], sizes = [8, 32], strides = [1, 1]} : vector<8x96xf32> to vector<8x32xf32>
    %746 = arith.addf %744, %745 : vector<8x32xf32>
    %747 = arith.negf %746 : vector<8x32xf32>
    %748 = math.exp %747 : vector<8x32xf32>
    %cst_265 = arith.constant 1.000000e+00 : f32
    %749 = vector.broadcast %cst_265 : f32 to vector<8x32xf32>
    %750 = arith.addf %749, %748 : vector<8x32xf32>
    %751 = arith.divf %749, %750 : vector<8x32xf32>
    %752 = vector.extract_strided_slice %700 {offsets = [0, 32], sizes = [8, 32], strides = [1, 1]} : vector<8x96xf32> to vector<8x32xf32>
    %753 = vector.extract_strided_slice %743 {offsets = [0, 32], sizes = [8, 32], strides = [1, 1]} : vector<8x96xf32> to vector<8x32xf32>
    %754 = arith.addf %752, %753 : vector<8x32xf32>
    %755 = arith.negf %754 : vector<8x32xf32>
    %756 = math.exp %755 : vector<8x32xf32>
    %cst_266 = arith.constant 1.000000e+00 : f32
    %757 = vector.broadcast %cst_266 : f32 to vector<8x32xf32>
    %758 = arith.addf %757, %756 : vector<8x32xf32>
    %759 = arith.divf %757, %758 : vector<8x32xf32>
    %760 = vector.extract_strided_slice %700 {offsets = [0, 64], sizes = [8, 32], strides = [1, 1]} : vector<8x96xf32> to vector<8x32xf32>
    %761 = vector.extract_strided_slice %743 {offsets = [0, 64], sizes = [8, 32], strides = [1, 1]} : vector<8x96xf32> to vector<8x32xf32>
    %762 = arith.addf %761, %16 : vector<8x32xf32>
    %763 = arith.mulf %751, %762 : vector<8x32xf32>
    %764 = arith.addf %760, %763 : vector<8x32xf32>
    %765 = math.tanh %764 : vector<8x32xf32>
    %766 = arith.subf %603, %765 : vector<8x32xf32>
    %767 = arith.mulf %759, %766 : vector<8x32xf32>
    %768 = arith.addf %765, %767 : vector<8x32xf32>
    %c2_267 = arith.constant 2 : index
    %c0_268 = arith.constant 0 : index
    %c0_269 = arith.constant 0 : index
    %769 = vector.load %arg4[%c2_267, %c0_268, %c0_269] : memref<5x32x96xf32, #tpu.memory_space<vmem>>, vector<1x32x96xf32>
    %770 = vector.shape_cast %769 : vector<1x32x96xf32> to vector<32x96xf32>
    %cst_270 = arith.constant dense<0.000000e+00> : vector<8x96xf32>
    %771 = tpu.matmul %631, %770, %cst_270 {dimension_numbers = #tpu.dot_dimension_numbers<[1], [0], [0], [1], [0, 0, 1, 1], [], []>} : vector<8x32xf32>, vector<32x96xf32>, vector<8x96xf32> -> vector<8x96xf32>
    %772 = vector.extract_strided_slice %704 {offsets = [0, 0], sizes = [8, 32], strides = [1, 1]} : vector<8x96xf32> to vector<8x32xf32>
    %773 = vector.extract_strided_slice %771 {offsets = [0, 0], sizes = [8, 32], strides = [1, 1]} : vector<8x96xf32> to vector<8x32xf32>
    %774 = arith.addf %772, %773 : vector<8x32xf32>
    %775 = arith.negf %774 : vector<8x32xf32>
    %776 = math.exp %775 : vector<8x32xf32>
    %cst_271 = arith.constant 1.000000e+00 : f32
    %777 = vector.broadcast %cst_271 : f32 to vector<8x32xf32>
    %778 = arith.addf %777, %776 : vector<8x32xf32>
    %779 = arith.divf %777, %778 : vector<8x32xf32>
    %780 = vector.extract_strided_slice %704 {offsets = [0, 32], sizes = [8, 32], strides = [1, 1]} : vector<8x96xf32> to vector<8x32xf32>
    %781 = vector.extract_strided_slice %771 {offsets = [0, 32], sizes = [8, 32], strides = [1, 1]} : vector<8x96xf32> to vector<8x32xf32>
    %782 = arith.addf %780, %781 : vector<8x32xf32>
    %783 = arith.negf %782 : vector<8x32xf32>
    %784 = math.exp %783 : vector<8x32xf32>
    %cst_272 = arith.constant 1.000000e+00 : f32
    %785 = vector.broadcast %cst_272 : f32 to vector<8x32xf32>
    %786 = arith.addf %785, %784 : vector<8x32xf32>
    %787 = arith.divf %785, %786 : vector<8x32xf32>
    %788 = vector.extract_strided_slice %704 {offsets = [0, 64], sizes = [8, 32], strides = [1, 1]} : vector<8x96xf32> to vector<8x32xf32>
    %789 = vector.extract_strided_slice %771 {offsets = [0, 64], sizes = [8, 32], strides = [1, 1]} : vector<8x96xf32> to vector<8x32xf32>
    %790 = arith.addf %789, %20 : vector<8x32xf32>
    %791 = arith.mulf %779, %790 : vector<8x32xf32>
    %792 = arith.addf %788, %791 : vector<8x32xf32>
    %793 = math.tanh %792 : vector<8x32xf32>
    %794 = arith.subf %631, %793 : vector<8x32xf32>
    %795 = arith.mulf %787, %794 : vector<8x32xf32>
    %796 = arith.addf %793, %795 : vector<8x32xf32>
    %c3_273 = arith.constant 3 : index
    %c0_274 = arith.constant 0 : index
    %c0_275 = arith.constant 0 : index
    %797 = vector.load %arg4[%c3_273, %c0_274, %c0_275] : memref<5x32x96xf32, #tpu.memory_space<vmem>>, vector<1x32x96xf32>
    %798 = vector.shape_cast %797 : vector<1x32x96xf32> to vector<32x96xf32>
    %cst_276 = arith.constant dense<0.000000e+00> : vector<8x96xf32>
    %799 = tpu.matmul %659, %798, %cst_276 {dimension_numbers = #tpu.dot_dimension_numbers<[1], [0], [0], [1], [0, 0, 1, 1], [], []>} : vector<8x32xf32>, vector<32x96xf32>, vector<8x96xf32> -> vector<8x96xf32>
    %800 = vector.extract_strided_slice %708 {offsets = [0, 0], sizes = [8, 32], strides = [1, 1]} : vector<8x96xf32> to vector<8x32xf32>
    %801 = vector.extract_strided_slice %799 {offsets = [0, 0], sizes = [8, 32], strides = [1, 1]} : vector<8x96xf32> to vector<8x32xf32>
    %802 = arith.addf %800, %801 : vector<8x32xf32>
    %803 = arith.negf %802 : vector<8x32xf32>
    %804 = math.exp %803 : vector<8x32xf32>
    %cst_277 = arith.constant 1.000000e+00 : f32
    %805 = vector.broadcast %cst_277 : f32 to vector<8x32xf32>
    %806 = arith.addf %805, %804 : vector<8x32xf32>
    %807 = arith.divf %805, %806 : vector<8x32xf32>
    %808 = vector.extract_strided_slice %708 {offsets = [0, 32], sizes = [8, 32], strides = [1, 1]} : vector<8x96xf32> to vector<8x32xf32>
    %809 = vector.extract_strided_slice %799 {offsets = [0, 32], sizes = [8, 32], strides = [1, 1]} : vector<8x96xf32> to vector<8x32xf32>
    %810 = arith.addf %808, %809 : vector<8x32xf32>
    %811 = arith.negf %810 : vector<8x32xf32>
    %812 = math.exp %811 : vector<8x32xf32>
    %cst_278 = arith.constant 1.000000e+00 : f32
    %813 = vector.broadcast %cst_278 : f32 to vector<8x32xf32>
    %814 = arith.addf %813, %812 : vector<8x32xf32>
    %815 = arith.divf %813, %814 : vector<8x32xf32>
    %816 = vector.extract_strided_slice %708 {offsets = [0, 64], sizes = [8, 32], strides = [1, 1]} : vector<8x96xf32> to vector<8x32xf32>
    %817 = vector.extract_strided_slice %799 {offsets = [0, 64], sizes = [8, 32], strides = [1, 1]} : vector<8x96xf32> to vector<8x32xf32>
    %818 = arith.addf %817, %24 : vector<8x32xf32>
    %819 = arith.mulf %807, %818 : vector<8x32xf32>
    %820 = arith.addf %816, %819 : vector<8x32xf32>
    %821 = math.tanh %820 : vector<8x32xf32>
    %822 = arith.subf %659, %821 : vector<8x32xf32>
    %823 = arith.mulf %815, %822 : vector<8x32xf32>
    %824 = arith.addf %821, %823 : vector<8x32xf32>
    %c4_279 = arith.constant 4 : index
    %c0_280 = arith.constant 0 : index
    %c0_281 = arith.constant 0 : index
    %825 = vector.load %arg4[%c4_279, %c0_280, %c0_281] : memref<5x32x96xf32, #tpu.memory_space<vmem>>, vector<1x32x96xf32>
    %826 = vector.shape_cast %825 : vector<1x32x96xf32> to vector<32x96xf32>
    %cst_282 = arith.constant dense<0.000000e+00> : vector<8x96xf32>
    %827 = tpu.matmul %687, %826, %cst_282 {dimension_numbers = #tpu.dot_dimension_numbers<[1], [0], [0], [1], [0, 0, 1, 1], [], []>} : vector<8x32xf32>, vector<32x96xf32>, vector<8x96xf32> -> vector<8x96xf32>
    %828 = vector.extract_strided_slice %712 {offsets = [0, 0], sizes = [8, 32], strides = [1, 1]} : vector<8x96xf32> to vector<8x32xf32>
    %829 = vector.extract_strided_slice %827 {offsets = [0, 0], sizes = [8, 32], strides = [1, 1]} : vector<8x96xf32> to vector<8x32xf32>
    %830 = arith.addf %828, %829 : vector<8x32xf32>
    %831 = arith.negf %830 : vector<8x32xf32>
    %832 = math.exp %831 : vector<8x32xf32>
    %cst_283 = arith.constant 1.000000e+00 : f32
    %833 = vector.broadcast %cst_283 : f32 to vector<8x32xf32>
    %834 = arith.addf %833, %832 : vector<8x32xf32>
    %835 = arith.divf %833, %834 : vector<8x32xf32>
    %836 = vector.extract_strided_slice %712 {offsets = [0, 32], sizes = [8, 32], strides = [1, 1]} : vector<8x96xf32> to vector<8x32xf32>
    %837 = vector.extract_strided_slice %827 {offsets = [0, 32], sizes = [8, 32], strides = [1, 1]} : vector<8x96xf32> to vector<8x32xf32>
    %838 = arith.addf %836, %837 : vector<8x32xf32>
    %839 = arith.negf %838 : vector<8x32xf32>
    %840 = math.exp %839 : vector<8x32xf32>
    %cst_284 = arith.constant 1.000000e+00 : f32
    %841 = vector.broadcast %cst_284 : f32 to vector<8x32xf32>
    %842 = arith.addf %841, %840 : vector<8x32xf32>
    %843 = arith.divf %841, %842 : vector<8x32xf32>
    %844 = vector.extract_strided_slice %712 {offsets = [0, 64], sizes = [8, 32], strides = [1, 1]} : vector<8x96xf32> to vector<8x32xf32>
    %845 = vector.extract_strided_slice %827 {offsets = [0, 64], sizes = [8, 32], strides = [1, 1]} : vector<8x96xf32> to vector<8x32xf32>
    %846 = arith.addf %845, %28 : vector<8x32xf32>
    %847 = arith.mulf %835, %846 : vector<8x32xf32>
    %848 = arith.addf %844, %847 : vector<8x32xf32>
    %849 = math.tanh %848 : vector<8x32xf32>
    %850 = arith.subf %687, %849 : vector<8x32xf32>
    %851 = arith.mulf %843, %850 : vector<8x32xf32>
    %852 = arith.addf %849, %851 : vector<8x32xf32>
    %c4_i32_285 = arith.constant 4 : i32
    %853 = arith.subi %c6_i32, %c4_i32_285 : i32
    %c8_i32_286 = arith.constant 8 : i32
    %854 = arith.muli %853, %c8_i32_286 : i32
    %855 = tpu.assume_multiple %854, 8 : i32
    %856 = arith.index_cast %855 : i32 to index
    %c0_287 = arith.constant 0 : index
    %857 = vector.load %arg7[%856, %c0_287] : memref<64x32xf32, #tpu.memory_space<vmem>>, vector<8x32xf32>
    tpu.vector_store %arg7[%856, %c0_287], %852 {strides = array<i32>} : memref<64x32xf32, #tpu.memory_space<vmem>>, vector<8x32xf32>,
    %c7_i32 = arith.constant 7 : i32
    %c8_i32_288 = arith.constant 8 : i32
    %858 = arith.muli %c7_i32, %c8_i32_288 : i32
    %859 = tpu.assume_multiple %858, 8 : i32
    %860 = arith.index_cast %859 : i32 to index
    %c0_289 = arith.constant 0 : index
    %861 = vector.load %arg9[%860, %c0_289] : memref<64x96xf32, #tpu.memory_space<vmem>>, vector<8x96xf32>
    %c1_290 = arith.constant 1 : index
    %c0_291 = arith.constant 0 : index
    %c0_292 = arith.constant 0 : index
    %862 = vector.load %arg3[%c1_290, %c0_291, %c0_292] : memref<5x32x96xf32, #tpu.memory_space<vmem>>, vector<1x32x96xf32>
    %863 = vector.shape_cast %862 : vector<1x32x96xf32> to vector<32x96xf32>
    %cst_293 = arith.constant dense<0.000000e+00> : vector<8x96xf32>
    %864 = tpu.matmul %740, %863, %cst_293 {dimension_numbers = #tpu.dot_dimension_numbers<[1], [0], [0], [1], [0, 0, 1, 1], [], []>} : vector<8x32xf32>, vector<32x96xf32>, vector<8x96xf32> -> vector<8x96xf32>
    %865 = arith.addf %864, %32 : vector<8x96xf32>
    %c2_294 = arith.constant 2 : index
    %c0_295 = arith.constant 0 : index
    %c0_296 = arith.constant 0 : index
    %866 = vector.load %arg3[%c2_294, %c0_295, %c0_296] : memref<5x32x96xf32, #tpu.memory_space<vmem>>, vector<1x32x96xf32>
    %867 = vector.shape_cast %866 : vector<1x32x96xf32> to vector<32x96xf32>
    %cst_297 = arith.constant dense<0.000000e+00> : vector<8x96xf32>
    %868 = tpu.matmul %768, %867, %cst_297 {dimension_numbers = #tpu.dot_dimension_numbers<[1], [0], [0], [1], [0, 0, 1, 1], [], []>} : vector<8x32xf32>, vector<32x96xf32>, vector<8x96xf32> -> vector<8x96xf32>
    %869 = arith.addf %868, %36 : vector<8x96xf32>
    %c3_298 = arith.constant 3 : index
    %c0_299 = arith.constant 0 : index
    %c0_300 = arith.constant 0 : index
    %870 = vector.load %arg3[%c3_298, %c0_299, %c0_300] : memref<5x32x96xf32, #tpu.memory_space<vmem>>, vector<1x32x96xf32>
    %871 = vector.shape_cast %870 : vector<1x32x96xf32> to vector<32x96xf32>
    %cst_301 = arith.constant dense<0.000000e+00> : vector<8x96xf32>
    %872 = tpu.matmul %796, %871, %cst_301 {dimension_numbers = #tpu.dot_dimension_numbers<[1], [0], [0], [1], [0, 0, 1, 1], [], []>} : vector<8x32xf32>, vector<32x96xf32>, vector<8x96xf32> -> vector<8x96xf32>
    %873 = arith.addf %872, %40 : vector<8x96xf32>
    %c4_302 = arith.constant 4 : index
    %c0_303 = arith.constant 0 : index
    %c0_304 = arith.constant 0 : index
    %874 = vector.load %arg3[%c4_302, %c0_303, %c0_304] : memref<5x32x96xf32, #tpu.memory_space<vmem>>, vector<1x32x96xf32>
    %875 = vector.shape_cast %874 : vector<1x32x96xf32> to vector<32x96xf32>
    %cst_305 = arith.constant dense<0.000000e+00> : vector<8x96xf32>
    %876 = tpu.matmul %824, %875, %cst_305 {dimension_numbers = #tpu.dot_dimension_numbers<[1], [0], [0], [1], [0, 0, 1, 1], [], []>} : vector<8x32xf32>, vector<32x96xf32>, vector<8x96xf32> -> vector<8x96xf32>
    %877 = arith.addf %876, %44 : vector<8x96xf32>
    %c0_306 = arith.constant 0 : index
    %c0_307 = arith.constant 0 : index
    %c0_308 = arith.constant 0 : index
    %878 = vector.load %arg4[%c0_306, %c0_307, %c0_308] : memref<5x32x96xf32, #tpu.memory_space<vmem>>, vector<1x32x96xf32>
    %879 = vector.shape_cast %878 : vector<1x32x96xf32> to vector<32x96xf32>
    %cst_309 = arith.constant dense<0.000000e+00> : vector<8x96xf32>
    %880 = tpu.matmul %740, %879, %cst_309 {dimension_numbers = #tpu.dot_dimension_numbers<[1], [0], [0], [1], [0, 0, 1, 1], [], []>} : vector<8x32xf32>, vector<32x96xf32>, vector<8x96xf32> -> vector<8x96xf32>
    %881 = vector.extract_strided_slice %861 {offsets = [0, 0], sizes = [8, 32], strides = [1, 1]} : vector<8x96xf32> to vector<8x32xf32>
    %882 = vector.extract_strided_slice %880 {offsets = [0, 0], sizes = [8, 32], strides = [1, 1]} : vector<8x96xf32> to vector<8x32xf32>
    %883 = arith.addf %881, %882 : vector<8x32xf32>
    %884 = arith.negf %883 : vector<8x32xf32>
    %885 = math.exp %884 : vector<8x32xf32>
    %cst_310 = arith.constant 1.000000e+00 : f32
    %886 = vector.broadcast %cst_310 : f32 to vector<8x32xf32>
    %887 = arith.addf %886, %885 : vector<8x32xf32>
    %888 = arith.divf %886, %887 : vector<8x32xf32>
    %889 = vector.extract_strided_slice %861 {offsets = [0, 32], sizes = [8, 32], strides = [1, 1]} : vector<8x96xf32> to vector<8x32xf32>
    %890 = vector.extract_strided_slice %880 {offsets = [0, 32], sizes = [8, 32], strides = [1, 1]} : vector<8x96xf32> to vector<8x32xf32>
    %891 = arith.addf %889, %890 : vector<8x32xf32>
    %892 = arith.negf %891 : vector<8x32xf32>
    %893 = math.exp %892 : vector<8x32xf32>
    %cst_311 = arith.constant 1.000000e+00 : f32
    %894 = vector.broadcast %cst_311 : f32 to vector<8x32xf32>
    %895 = arith.addf %894, %893 : vector<8x32xf32>
    %896 = arith.divf %894, %895 : vector<8x32xf32>
    %897 = vector.extract_strided_slice %861 {offsets = [0, 64], sizes = [8, 32], strides = [1, 1]} : vector<8x96xf32> to vector<8x32xf32>
    %898 = vector.extract_strided_slice %880 {offsets = [0, 64], sizes = [8, 32], strides = [1, 1]} : vector<8x96xf32> to vector<8x32xf32>
    %899 = arith.addf %898, %12 : vector<8x32xf32>
    %900 = arith.mulf %888, %899 : vector<8x32xf32>
    %901 = arith.addf %897, %900 : vector<8x32xf32>
    %902 = math.tanh %901 : vector<8x32xf32>
    %903 = arith.subf %740, %902 : vector<8x32xf32>
    %904 = arith.mulf %896, %903 : vector<8x32xf32>
    %905 = arith.addf %902, %904 : vector<8x32xf32>
    %c1_312 = arith.constant 1 : index
    %c0_313 = arith.constant 0 : index
    %c0_314 = arith.constant 0 : index
    %906 = vector.load %arg4[%c1_312, %c0_313, %c0_314] : memref<5x32x96xf32, #tpu.memory_space<vmem>>, vector<1x32x96xf32>
    %907 = vector.shape_cast %906 : vector<1x32x96xf32> to vector<32x96xf32>
    %cst_315 = arith.constant dense<0.000000e+00> : vector<8x96xf32>
    %908 = tpu.matmul %768, %907, %cst_315 {dimension_numbers = #tpu.dot_dimension_numbers<[1], [0], [0], [1], [0, 0, 1, 1], [], []>} : vector<8x32xf32>, vector<32x96xf32>, vector<8x96xf32> -> vector<8x96xf32>
    %909 = vector.extract_strided_slice %865 {offsets = [0, 0], sizes = [8, 32], strides = [1, 1]} : vector<8x96xf32> to vector<8x32xf32>
    %910 = vector.extract_strided_slice %908 {offsets = [0, 0], sizes = [8, 32], strides = [1, 1]} : vector<8x96xf32> to vector<8x32xf32>
    %911 = arith.addf %909, %910 : vector<8x32xf32>
    %912 = arith.negf %911 : vector<8x32xf32>
    %913 = math.exp %912 : vector<8x32xf32>
    %cst_316 = arith.constant 1.000000e+00 : f32
    %914 = vector.broadcast %cst_316 : f32 to vector<8x32xf32>
    %915 = arith.addf %914, %913 : vector<8x32xf32>
    %916 = arith.divf %914, %915 : vector<8x32xf32>
    %917 = vector.extract_strided_slice %865 {offsets = [0, 32], sizes = [8, 32], strides = [1, 1]} : vector<8x96xf32> to vector<8x32xf32>
    %918 = vector.extract_strided_slice %908 {offsets = [0, 32], sizes = [8, 32], strides = [1, 1]} : vector<8x96xf32> to vector<8x32xf32>
    %919 = arith.addf %917, %918 : vector<8x32xf32>
    %920 = arith.negf %919 : vector<8x32xf32>
    %921 = math.exp %920 : vector<8x32xf32>
    %cst_317 = arith.constant 1.000000e+00 : f32
    %922 = vector.broadcast %cst_317 : f32 to vector<8x32xf32>
    %923 = arith.addf %922, %921 : vector<8x32xf32>
    %924 = arith.divf %922, %923 : vector<8x32xf32>
    %925 = vector.extract_strided_slice %865 {offsets = [0, 64], sizes = [8, 32], strides = [1, 1]} : vector<8x96xf32> to vector<8x32xf32>
    %926 = vector.extract_strided_slice %908 {offsets = [0, 64], sizes = [8, 32], strides = [1, 1]} : vector<8x96xf32> to vector<8x32xf32>
    %927 = arith.addf %926, %16 : vector<8x32xf32>
    %928 = arith.mulf %916, %927 : vector<8x32xf32>
    %929 = arith.addf %925, %928 : vector<8x32xf32>
    %930 = math.tanh %929 : vector<8x32xf32>
    %931 = arith.subf %768, %930 : vector<8x32xf32>
    %932 = arith.mulf %924, %931 : vector<8x32xf32>
    %933 = arith.addf %930, %932 : vector<8x32xf32>
    %c2_318 = arith.constant 2 : index
    %c0_319 = arith.constant 0 : index
    %c0_320 = arith.constant 0 : index
    %934 = vector.load %arg4[%c2_318, %c0_319, %c0_320] : memref<5x32x96xf32, #tpu.memory_space<vmem>>, vector<1x32x96xf32>
    %935 = vector.shape_cast %934 : vector<1x32x96xf32> to vector<32x96xf32>
    %cst_321 = arith.constant dense<0.000000e+00> : vector<8x96xf32>
    %936 = tpu.matmul %796, %935, %cst_321 {dimension_numbers = #tpu.dot_dimension_numbers<[1], [0], [0], [1], [0, 0, 1, 1], [], []>} : vector<8x32xf32>, vector<32x96xf32>, vector<8x96xf32> -> vector<8x96xf32>
    %937 = vector.extract_strided_slice %869 {offsets = [0, 0], sizes = [8, 32], strides = [1, 1]} : vector<8x96xf32> to vector<8x32xf32>
    %938 = vector.extract_strided_slice %936 {offsets = [0, 0], sizes = [8, 32], strides = [1, 1]} : vector<8x96xf32> to vector<8x32xf32>
    %939 = arith.addf %937, %938 : vector<8x32xf32>
    %940 = arith.negf %939 : vector<8x32xf32>
    %941 = math.exp %940 : vector<8x32xf32>
    %cst_322 = arith.constant 1.000000e+00 : f32
    %942 = vector.broadcast %cst_322 : f32 to vector<8x32xf32>
    %943 = arith.addf %942, %941 : vector<8x32xf32>
    %944 = arith.divf %942, %943 : vector<8x32xf32>
    %945 = vector.extract_strided_slice %869 {offsets = [0, 32], sizes = [8, 32], strides = [1, 1]} : vector<8x96xf32> to vector<8x32xf32>
    %946 = vector.extract_strided_slice %936 {offsets = [0, 32], sizes = [8, 32], strides = [1, 1]} : vector<8x96xf32> to vector<8x32xf32>
    %947 = arith.addf %945, %946 : vector<8x32xf32>
    %948 = arith.negf %947 : vector<8x32xf32>
    %949 = math.exp %948 : vector<8x32xf32>
    %cst_323 = arith.constant 1.000000e+00 : f32
    %950 = vector.broadcast %cst_323 : f32 to vector<8x32xf32>
    %951 = arith.addf %950, %949 : vector<8x32xf32>
    %952 = arith.divf %950, %951 : vector<8x32xf32>
    %953 = vector.extract_strided_slice %869 {offsets = [0, 64], sizes = [8, 32], strides = [1, 1]} : vector<8x96xf32> to vector<8x32xf32>
    %954 = vector.extract_strided_slice %936 {offsets = [0, 64], sizes = [8, 32], strides = [1, 1]} : vector<8x96xf32> to vector<8x32xf32>
    %955 = arith.addf %954, %20 : vector<8x32xf32>
    %956 = arith.mulf %944, %955 : vector<8x32xf32>
    %957 = arith.addf %953, %956 : vector<8x32xf32>
    %958 = math.tanh %957 : vector<8x32xf32>
    %959 = arith.subf %796, %958 : vector<8x32xf32>
    %960 = arith.mulf %952, %959 : vector<8x32xf32>
    %961 = arith.addf %958, %960 : vector<8x32xf32>
    %c3_324 = arith.constant 3 : index
    %c0_325 = arith.constant 0 : index
    %c0_326 = arith.constant 0 : index
    %962 = vector.load %arg4[%c3_324, %c0_325, %c0_326] : memref<5x32x96xf32, #tpu.memory_space<vmem>>, vector<1x32x96xf32>
    %963 = vector.shape_cast %962 : vector<1x32x96xf32> to vector<32x96xf32>
    %cst_327 = arith.constant dense<0.000000e+00> : vector<8x96xf32>
    %964 = tpu.matmul %824, %963, %cst_327 {dimension_numbers = #tpu.dot_dimension_numbers<[1], [0], [0], [1], [0, 0, 1, 1], [], []>} : vector<8x32xf32>, vector<32x96xf32>, vector<8x96xf32> -> vector<8x96xf32>
    %965 = vector.extract_strided_slice %873 {offsets = [0, 0], sizes = [8, 32], strides = [1, 1]} : vector<8x96xf32> to vector<8x32xf32>
    %966 = vector.extract_strided_slice %964 {offsets = [0, 0], sizes = [8, 32], strides = [1, 1]} : vector<8x96xf32> to vector<8x32xf32>
    %967 = arith.addf %965, %966 : vector<8x32xf32>
    %968 = arith.negf %967 : vector<8x32xf32>
    %969 = math.exp %968 : vector<8x32xf32>
    %cst_328 = arith.constant 1.000000e+00 : f32
    %970 = vector.broadcast %cst_328 : f32 to vector<8x32xf32>
    %971 = arith.addf %970, %969 : vector<8x32xf32>
    %972 = arith.divf %970, %971 : vector<8x32xf32>
    %973 = vector.extract_strided_slice %873 {offsets = [0, 32], sizes = [8, 32], strides = [1, 1]} : vector<8x96xf32> to vector<8x32xf32>
    %974 = vector.extract_strided_slice %964 {offsets = [0, 32], sizes = [8, 32], strides = [1, 1]} : vector<8x96xf32> to vector<8x32xf32>
    %975 = arith.addf %973, %974 : vector<8x32xf32>
    %976 = arith.negf %975 : vector<8x32xf32>
    %977 = math.exp %976 : vector<8x32xf32>
    %cst_329 = arith.constant 1.000000e+00 : f32
    %978 = vector.broadcast %cst_329 : f32 to vector<8x32xf32>
    %979 = arith.addf %978, %977 : vector<8x32xf32>
    %980 = arith.divf %978, %979 : vector<8x32xf32>
    %981 = vector.extract_strided_slice %873 {offsets = [0, 64], sizes = [8, 32], strides = [1, 1]} : vector<8x96xf32> to vector<8x32xf32>
    %982 = vector.extract_strided_slice %964 {offsets = [0, 64], sizes = [8, 32], strides = [1, 1]} : vector<8x96xf32> to vector<8x32xf32>
    %983 = arith.addf %982, %24 : vector<8x32xf32>
    %984 = arith.mulf %972, %983 : vector<8x32xf32>
    %985 = arith.addf %981, %984 : vector<8x32xf32>
    %986 = math.tanh %985 : vector<8x32xf32>
    %987 = arith.subf %824, %986 : vector<8x32xf32>
    %988 = arith.mulf %980, %987 : vector<8x32xf32>
    %989 = arith.addf %986, %988 : vector<8x32xf32>
    %c4_330 = arith.constant 4 : index
    %c0_331 = arith.constant 0 : index
    %c0_332 = arith.constant 0 : index
    %990 = vector.load %arg4[%c4_330, %c0_331, %c0_332] : memref<5x32x96xf32, #tpu.memory_space<vmem>>, vector<1x32x96xf32>
    %991 = vector.shape_cast %990 : vector<1x32x96xf32> to vector<32x96xf32>
    %cst_333 = arith.constant dense<0.000000e+00> : vector<8x96xf32>
    %992 = tpu.matmul %852, %991, %cst_333 {dimension_numbers = #tpu.dot_dimension_numbers<[1], [0], [0], [1], [0, 0, 1, 1], [], []>} : vector<8x32xf32>, vector<32x96xf32>, vector<8x96xf32> -> vector<8x96xf32>
    %993 = vector.extract_strided_slice %877 {offsets = [0, 0], sizes = [8, 32], strides = [1, 1]} : vector<8x96xf32> to vector<8x32xf32>
    %994 = vector.extract_strided_slice %992 {offsets = [0, 0], sizes = [8, 32], strides = [1, 1]} : vector<8x96xf32> to vector<8x32xf32>
    %995 = arith.addf %993, %994 : vector<8x32xf32>
    %996 = arith.negf %995 : vector<8x32xf32>
    %997 = math.exp %996 : vector<8x32xf32>
    %cst_334 = arith.constant 1.000000e+00 : f32
    %998 = vector.broadcast %cst_334 : f32 to vector<8x32xf32>
    %999 = arith.addf %998, %997 : vector<8x32xf32>
    %1000 = arith.divf %998, %999 : vector<8x32xf32>
    %1001 = vector.extract_strided_slice %877 {offsets = [0, 32], sizes = [8, 32], strides = [1, 1]} : vector<8x96xf32> to vector<8x32xf32>
    %1002 = vector.extract_strided_slice %992 {offsets = [0, 32], sizes = [8, 32], strides = [1, 1]} : vector<8x96xf32> to vector<8x32xf32>
    %1003 = arith.addf %1001, %1002 : vector<8x32xf32>
    %1004 = arith.negf %1003 : vector<8x32xf32>
    %1005 = math.exp %1004 : vector<8x32xf32>
    %cst_335 = arith.constant 1.000000e+00 : f32
    %1006 = vector.broadcast %cst_335 : f32 to vector<8x32xf32>
    %1007 = arith.addf %1006, %1005 : vector<8x32xf32>
    %1008 = arith.divf %1006, %1007 : vector<8x32xf32>
    %1009 = vector.extract_strided_slice %877 {offsets = [0, 64], sizes = [8, 32], strides = [1, 1]} : vector<8x96xf32> to vector<8x32xf32>
    %1010 = vector.extract_strided_slice %992 {offsets = [0, 64], sizes = [8, 32], strides = [1, 1]} : vector<8x96xf32> to vector<8x32xf32>
    %1011 = arith.addf %1010, %28 : vector<8x32xf32>
    %1012 = arith.mulf %1000, %1011 : vector<8x32xf32>
    %1013 = arith.addf %1009, %1012 : vector<8x32xf32>
    %1014 = math.tanh %1013 : vector<8x32xf32>
    %1015 = arith.subf %852, %1014 : vector<8x32xf32>
    %1016 = arith.mulf %1008, %1015 : vector<8x32xf32>
    %1017 = arith.addf %1014, %1016 : vector<8x32xf32>
    %c4_i32_336 = arith.constant 4 : i32
    %1018 = arith.subi %c7_i32, %c4_i32_336 : i32
    %c8_i32_337 = arith.constant 8 : i32
    %1019 = arith.muli %1018, %c8_i32_337 : i32
    %1020 = tpu.assume_multiple %1019, 8 : i32
    %1021 = arith.index_cast %1020 : i32 to index
    %c0_338 = arith.constant 0 : index
    %1022 = vector.load %arg7[%1021, %c0_338] : memref<64x32xf32, #tpu.memory_space<vmem>>, vector<8x32xf32>
    tpu.vector_store %arg7[%1021, %c0_338], %1017 {strides = array<i32>} : memref<64x32xf32, #tpu.memory_space<vmem>>, vector<8x32xf32>,
    %c4_i32_339 = arith.constant 4 : i32
    %c1_340 = arith.constant 1 : index
    %c0_341 = arith.constant 0 : index
    %c0_342 = arith.constant 0 : index
    %1023 = vector.load %arg3[%c1_340, %c0_341, %c0_342] : memref<5x32x96xf32, #tpu.memory_space<vmem>>, vector<1x32x96xf32>
    %1024 = vector.shape_cast %1023 : vector<1x32x96xf32> to vector<32x96xf32>
    %cst_343 = arith.constant dense<0.000000e+00> : vector<8x96xf32>
    %1025 = tpu.matmul %905, %1024, %cst_343 {dimension_numbers = #tpu.dot_dimension_numbers<[1], [0], [0], [1], [0, 0, 1, 1], [], []>} : vector<8x32xf32>, vector<32x96xf32>, vector<8x96xf32> -> vector<8x96xf32>
    %1026 = arith.addf %1025, %32 : vector<8x96xf32>
    %c2_344 = arith.constant 2 : index
    %c0_345 = arith.constant 0 : index
    %c0_346 = arith.constant 0 : index
    %1027 = vector.load %arg3[%c2_344, %c0_345, %c0_346] : memref<5x32x96xf32, #tpu.memory_space<vmem>>, vector<1x32x96xf32>
    %1028 = vector.shape_cast %1027 : vector<1x32x96xf32> to vector<32x96xf32>
    %cst_347 = arith.constant dense<0.000000e+00> : vector<8x96xf32>
    %1029 = tpu.matmul %933, %1028, %cst_347 {dimension_numbers = #tpu.dot_dimension_numbers<[1], [0], [0], [1], [0, 0, 1, 1], [], []>} : vector<8x32xf32>, vector<32x96xf32>, vector<8x96xf32> -> vector<8x96xf32>
    %1030 = arith.addf %1029, %36 : vector<8x96xf32>
    %c3_348 = arith.constant 3 : index
    %c0_349 = arith.constant 0 : index
    %c0_350 = arith.constant 0 : index
    %1031 = vector.load %arg3[%c3_348, %c0_349, %c0_350] : memref<5x32x96xf32, #tpu.memory_space<vmem>>, vector<1x32x96xf32>
    %1032 = vector.shape_cast %1031 : vector<1x32x96xf32> to vector<32x96xf32>
    %cst_351 = arith.constant dense<0.000000e+00> : vector<8x96xf32>
    %1033 = tpu.matmul %961, %1032, %cst_351 {dimension_numbers = #tpu.dot_dimension_numbers<[1], [0], [0], [1], [0, 0, 1, 1], [], []>} : vector<8x32xf32>, vector<32x96xf32>, vector<8x96xf32> -> vector<8x96xf32>
    %1034 = arith.addf %1033, %40 : vector<8x96xf32>
    %c4_352 = arith.constant 4 : index
    %c0_353 = arith.constant 0 : index
    %c0_354 = arith.constant 0 : index
    %1035 = vector.load %arg3[%c4_352, %c0_353, %c0_354] : memref<5x32x96xf32, #tpu.memory_space<vmem>>, vector<1x32x96xf32>
    %1036 = vector.shape_cast %1035 : vector<1x32x96xf32> to vector<32x96xf32>
    %cst_355 = arith.constant dense<0.000000e+00> : vector<8x96xf32>
    %1037 = tpu.matmul %989, %1036, %cst_355 {dimension_numbers = #tpu.dot_dimension_numbers<[1], [0], [0], [1], [0, 0, 1, 1], [], []>} : vector<8x32xf32>, vector<32x96xf32>, vector<8x96xf32> -> vector<8x96xf32>
    %1038 = arith.addf %1037, %44 : vector<8x96xf32>
    %c1_356 = arith.constant 1 : index
    %c0_357 = arith.constant 0 : index
    %c0_358 = arith.constant 0 : index
    %1039 = vector.load %arg4[%c1_356, %c0_357, %c0_358] : memref<5x32x96xf32, #tpu.memory_space<vmem>>, vector<1x32x96xf32>
    %1040 = vector.shape_cast %1039 : vector<1x32x96xf32> to vector<32x96xf32>
    %cst_359 = arith.constant dense<0.000000e+00> : vector<8x96xf32>
    %1041 = tpu.matmul %933, %1040, %cst_359 {dimension_numbers = #tpu.dot_dimension_numbers<[1], [0], [0], [1], [0, 0, 1, 1], [], []>} : vector<8x32xf32>, vector<32x96xf32>, vector<8x96xf32> -> vector<8x96xf32>
    %1042 = vector.extract_strided_slice %1026 {offsets = [0, 0], sizes = [8, 32], strides = [1, 1]} : vector<8x96xf32> to vector<8x32xf32>
    %1043 = vector.extract_strided_slice %1041 {offsets = [0, 0], sizes = [8, 32], strides = [1, 1]} : vector<8x96xf32> to vector<8x32xf32>
    %1044 = arith.addf %1042, %1043 : vector<8x32xf32>
    %1045 = arith.negf %1044 : vector<8x32xf32>
    %1046 = math.exp %1045 : vector<8x32xf32>
    %cst_360 = arith.constant 1.000000e+00 : f32
    %1047 = vector.broadcast %cst_360 : f32 to vector<8x32xf32>
    %1048 = arith.addf %1047, %1046 : vector<8x32xf32>
    %1049 = arith.divf %1047, %1048 : vector<8x32xf32>
    %1050 = vector.extract_strided_slice %1026 {offsets = [0, 32], sizes = [8, 32], strides = [1, 1]} : vector<8x96xf32> to vector<8x32xf32>
    %1051 = vector.extract_strided_slice %1041 {offsets = [0, 32], sizes = [8, 32], strides = [1, 1]} : vector<8x96xf32> to vector<8x32xf32>
    %1052 = arith.addf %1050, %1051 : vector<8x32xf32>
    %1053 = arith.negf %1052 : vector<8x32xf32>
    %1054 = math.exp %1053 : vector<8x32xf32>
    %cst_361 = arith.constant 1.000000e+00 : f32
    %1055 = vector.broadcast %cst_361 : f32 to vector<8x32xf32>
    %1056 = arith.addf %1055, %1054 : vector<8x32xf32>
    %1057 = arith.divf %1055, %1056 : vector<8x32xf32>
    %1058 = vector.extract_strided_slice %1026 {offsets = [0, 64], sizes = [8, 32], strides = [1, 1]} : vector<8x96xf32> to vector<8x32xf32>
    %1059 = vector.extract_strided_slice %1041 {offsets = [0, 64], sizes = [8, 32], strides = [1, 1]} : vector<8x96xf32> to vector<8x32xf32>
    %1060 = arith.addf %1059, %16 : vector<8x32xf32>
    %1061 = arith.mulf %1049, %1060 : vector<8x32xf32>
    %1062 = arith.addf %1058, %1061 : vector<8x32xf32>
    %1063 = math.tanh %1062 : vector<8x32xf32>
    %1064 = arith.subf %933, %1063 : vector<8x32xf32>
    %1065 = arith.mulf %1057, %1064 : vector<8x32xf32>
    %1066 = arith.addf %1063, %1065 : vector<8x32xf32>
    %c2_362 = arith.constant 2 : index
    %c0_363 = arith.constant 0 : index
    %c0_364 = arith.constant 0 : index
    %1067 = vector.load %arg4[%c2_362, %c0_363, %c0_364] : memref<5x32x96xf32, #tpu.memory_space<vmem>>, vector<1x32x96xf32>
    %1068 = vector.shape_cast %1067 : vector<1x32x96xf32> to vector<32x96xf32>
    %cst_365 = arith.constant dense<0.000000e+00> : vector<8x96xf32>
    %1069 = tpu.matmul %961, %1068, %cst_365 {dimension_numbers = #tpu.dot_dimension_numbers<[1], [0], [0], [1], [0, 0, 1, 1], [], []>} : vector<8x32xf32>, vector<32x96xf32>, vector<8x96xf32> -> vector<8x96xf32>
    %1070 = vector.extract_strided_slice %1030 {offsets = [0, 0], sizes = [8, 32], strides = [1, 1]} : vector<8x96xf32> to vector<8x32xf32>
    %1071 = vector.extract_strided_slice %1069 {offsets = [0, 0], sizes = [8, 32], strides = [1, 1]} : vector<8x96xf32> to vector<8x32xf32>
    %1072 = arith.addf %1070, %1071 : vector<8x32xf32>
    %1073 = arith.negf %1072 : vector<8x32xf32>
    %1074 = math.exp %1073 : vector<8x32xf32>
    %cst_366 = arith.constant 1.000000e+00 : f32
    %1075 = vector.broadcast %cst_366 : f32 to vector<8x32xf32>
    %1076 = arith.addf %1075, %1074 : vector<8x32xf32>
    %1077 = arith.divf %1075, %1076 : vector<8x32xf32>
    %1078 = vector.extract_strided_slice %1030 {offsets = [0, 32], sizes = [8, 32], strides = [1, 1]} : vector<8x96xf32> to vector<8x32xf32>
    %1079 = vector.extract_strided_slice %1069 {offsets = [0, 32], sizes = [8, 32], strides = [1, 1]} : vector<8x96xf32> to vector<8x32xf32>
    %1080 = arith.addf %1078, %1079 : vector<8x32xf32>
    %1081 = arith.negf %1080 : vector<8x32xf32>
    %1082 = math.exp %1081 : vector<8x32xf32>
    %cst_367 = arith.constant 1.000000e+00 : f32
    %1083 = vector.broadcast %cst_367 : f32 to vector<8x32xf32>
    %1084 = arith.addf %1083, %1082 : vector<8x32xf32>
    %1085 = arith.divf %1083, %1084 : vector<8x32xf32>
    %1086 = vector.extract_strided_slice %1030 {offsets = [0, 64], sizes = [8, 32], strides = [1, 1]} : vector<8x96xf32> to vector<8x32xf32>
    %1087 = vector.extract_strided_slice %1069 {offsets = [0, 64], sizes = [8, 32], strides = [1, 1]} : vector<8x96xf32> to vector<8x32xf32>
    %1088 = arith.addf %1087, %20 : vector<8x32xf32>
    %1089 = arith.mulf %1077, %1088 : vector<8x32xf32>
    %1090 = arith.addf %1086, %1089 : vector<8x32xf32>
    %1091 = math.tanh %1090 : vector<8x32xf32>
    %1092 = arith.subf %961, %1091 : vector<8x32xf32>
    %1093 = arith.mulf %1085, %1092 : vector<8x32xf32>
    %1094 = arith.addf %1091, %1093 : vector<8x32xf32>
    %c3_368 = arith.constant 3 : index
    %c0_369 = arith.constant 0 : index
    %c0_370 = arith.constant 0 : index
    %1095 = vector.load %arg4[%c3_368, %c0_369, %c0_370] : memref<5x32x96xf32, #tpu.memory_space<vmem>>, vector<1x32x96xf32>
    %1096 = vector.shape_cast %1095 : vector<1x32x96xf32> to vector<32x96xf32>
    %cst_371 = arith.constant dense<0.000000e+00> : vector<8x96xf32>
    %1097 = tpu.matmul %989, %1096, %cst_371 {dimension_numbers = #tpu.dot_dimension_numbers<[1], [0], [0], [1], [0, 0, 1, 1], [], []>} : vector<8x32xf32>, vector<32x96xf32>, vector<8x96xf32> -> vector<8x96xf32>
    %1098 = vector.extract_strided_slice %1034 {offsets = [0, 0], sizes = [8, 32], strides = [1, 1]} : vector<8x96xf32> to vector<8x32xf32>
    %1099 = vector.extract_strided_slice %1097 {offsets = [0, 0], sizes = [8, 32], strides = [1, 1]} : vector<8x96xf32> to vector<8x32xf32>
    %1100 = arith.addf %1098, %1099 : vector<8x32xf32>
    %1101 = arith.negf %1100 : vector<8x32xf32>
    %1102 = math.exp %1101 : vector<8x32xf32>
    %cst_372 = arith.constant 1.000000e+00 : f32
    %1103 = vector.broadcast %cst_372 : f32 to vector<8x32xf32>
    %1104 = arith.addf %1103, %1102 : vector<8x32xf32>
    %1105 = arith.divf %1103, %1104 : vector<8x32xf32>
    %1106 = vector.extract_strided_slice %1034 {offsets = [0, 32], sizes = [8, 32], strides = [1, 1]} : vector<8x96xf32> to vector<8x32xf32>
    %1107 = vector.extract_strided_slice %1097 {offsets = [0, 32], sizes = [8, 32], strides = [1, 1]} : vector<8x96xf32> to vector<8x32xf32>
    %1108 = arith.addf %1106, %1107 : vector<8x32xf32>
    %1109 = arith.negf %1108 : vector<8x32xf32>
    %1110 = math.exp %1109 : vector<8x32xf32>
    %cst_373 = arith.constant 1.000000e+00 : f32
    %1111 = vector.broadcast %cst_373 : f32 to vector<8x32xf32>
    %1112 = arith.addf %1111, %1110 : vector<8x32xf32>
    %1113 = arith.divf %1111, %1112 : vector<8x32xf32>
    %1114 = vector.extract_strided_slice %1034 {offsets = [0, 64], sizes = [8, 32], strides = [1, 1]} : vector<8x96xf32> to vector<8x32xf32>
    %1115 = vector.extract_strided_slice %1097 {offsets = [0, 64], sizes = [8, 32], strides = [1, 1]} : vector<8x96xf32> to vector<8x32xf32>
    %1116 = arith.addf %1115, %24 : vector<8x32xf32>
    %1117 = arith.mulf %1105, %1116 : vector<8x32xf32>
    %1118 = arith.addf %1114, %1117 : vector<8x32xf32>
    %1119 = math.tanh %1118 : vector<8x32xf32>
    %1120 = arith.subf %989, %1119 : vector<8x32xf32>
    %1121 = arith.mulf %1113, %1120 : vector<8x32xf32>
    %1122 = arith.addf %1119, %1121 : vector<8x32xf32>
    %c4_374 = arith.constant 4 : index
    %c0_375 = arith.constant 0 : index
    %c0_376 = arith.constant 0 : index
    %1123 = vector.load %arg4[%c4_374, %c0_375, %c0_376] : memref<5x32x96xf32, #tpu.memory_space<vmem>>, vector<1x32x96xf32>
    %1124 = vector.shape_cast %1123 : vector<1x32x96xf32> to vector<32x96xf32>
    %cst_377 = arith.constant dense<0.000000e+00> : vector<8x96xf32>
    %1125 = tpu.matmul %1017, %1124, %cst_377 {dimension_numbers = #tpu.dot_dimension_numbers<[1], [0], [0], [1], [0, 0, 1, 1], [], []>} : vector<8x32xf32>, vector<32x96xf32>, vector<8x96xf32> -> vector<8x96xf32>
    %1126 = vector.extract_strided_slice %1038 {offsets = [0, 0], sizes = [8, 32], strides = [1, 1]} : vector<8x96xf32> to vector<8x32xf32>
    %1127 = vector.extract_strided_slice %1125 {offsets = [0, 0], sizes = [8, 32], strides = [1, 1]} : vector<8x96xf32> to vector<8x32xf32>
    %1128 = arith.addf %1126, %1127 : vector<8x32xf32>
    %1129 = arith.negf %1128 : vector<8x32xf32>
    %1130 = math.exp %1129 : vector<8x32xf32>
    %cst_378 = arith.constant 1.000000e+00 : f32
    %1131 = vector.broadcast %cst_378 : f32 to vector<8x32xf32>
    %1132 = arith.addf %1131, %1130 : vector<8x32xf32>
    %1133 = arith.divf %1131, %1132 : vector<8x32xf32>
    %1134 = vector.extract_strided_slice %1038 {offsets = [0, 32], sizes = [8, 32], strides = [1, 1]} : vector<8x96xf32> to vector<8x32xf32>
    %1135 = vector.extract_strided_slice %1125 {offsets = [0, 32], sizes = [8, 32], strides = [1, 1]} : vector<8x96xf32> to vector<8x32xf32>
    %1136 = arith.addf %1134, %1135 : vector<8x32xf32>
    %1137 = arith.negf %1136 : vector<8x32xf32>
    %1138 = math.exp %1137 : vector<8x32xf32>
    %cst_379 = arith.constant 1.000000e+00 : f32
    %1139 = vector.broadcast %cst_379 : f32 to vector<8x32xf32>
    %1140 = arith.addf %1139, %1138 : vector<8x32xf32>
    %1141 = arith.divf %1139, %1140 : vector<8x32xf32>
    %1142 = vector.extract_strided_slice %1038 {offsets = [0, 64], sizes = [8, 32], strides = [1, 1]} : vector<8x96xf32> to vector<8x32xf32>
    %1143 = vector.extract_strided_slice %1125 {offsets = [0, 64], sizes = [8, 32], strides = [1, 1]} : vector<8x96xf32> to vector<8x32xf32>
    %1144 = arith.addf %1143, %28 : vector<8x32xf32>
    %1145 = arith.mulf %1133, %1144 : vector<8x32xf32>
    %1146 = arith.addf %1142, %1145 : vector<8x32xf32>
    %1147 = math.tanh %1146 : vector<8x32xf32>
    %1148 = arith.subf %1017, %1147 : vector<8x32xf32>
    %1149 = arith.mulf %1141, %1148 : vector<8x32xf32>
    %1150 = arith.addf %1147, %1149 : vector<8x32xf32>
    %c32 = arith.constant 32 : index
    %c0_380 = arith.constant 0 : index
    %1151 = vector.load %arg7[%c32, %c0_380] : memref<64x32xf32, #tpu.memory_space<vmem>>, vector<8x32xf32>
    tpu.vector_store %arg7[%c32, %c0_380], %1150 {strides = array<i32>} : memref<64x32xf32, #tpu.memory_space<vmem>>, vector<8x32xf32>,
    %c2_381 = arith.constant 2 : index
    %c0_382 = arith.constant 0 : index
    %c0_383 = arith.constant 0 : index
    %1152 = vector.load %arg3[%c2_381, %c0_382, %c0_383] : memref<5x32x96xf32, #tpu.memory_space<vmem>>, vector<1x32x96xf32>
    %1153 = vector.shape_cast %1152 : vector<1x32x96xf32> to vector<32x96xf32>
    %cst_384 = arith.constant dense<0.000000e+00> : vector<8x96xf32>
    %1154 = tpu.matmul %1066, %1153, %cst_384 {dimension_numbers = #tpu.dot_dimension_numbers<[1], [0], [0], [1], [0, 0, 1, 1], [], []>} : vector<8x32xf32>, vector<32x96xf32>, vector<8x96xf32> -> vector<8x96xf32>
    %1155 = arith.addf %1154, %36 : vector<8x96xf32>
    %c3_385 = arith.constant 3 : index
    %c0_386 = arith.constant 0 : index
    %c0_387 = arith.constant 0 : index
    %1156 = vector.load %arg3[%c3_385, %c0_386, %c0_387] : memref<5x32x96xf32, #tpu.memory_space<vmem>>, vector<1x32x96xf32>
    %1157 = vector.shape_cast %1156 : vector<1x32x96xf32> to vector<32x96xf32>
    %cst_388 = arith.constant dense<0.000000e+00> : vector<8x96xf32>
    %1158 = tpu.matmul %1094, %1157, %cst_388 {dimension_numbers = #tpu.dot_dimension_numbers<[1], [0], [0], [1], [0, 0, 1, 1], [], []>} : vector<8x32xf32>, vector<32x96xf32>, vector<8x96xf32> -> vector<8x96xf32>
    %1159 = arith.addf %1158, %40 : vector<8x96xf32>
    %c4_389 = arith.constant 4 : index
    %c0_390 = arith.constant 0 : index
    %c0_391 = arith.constant 0 : index
    %1160 = vector.load %arg3[%c4_389, %c0_390, %c0_391] : memref<5x32x96xf32, #tpu.memory_space<vmem>>, vector<1x32x96xf32>
    %1161 = vector.shape_cast %1160 : vector<1x32x96xf32> to vector<32x96xf32>
    %cst_392 = arith.constant dense<0.000000e+00> : vector<8x96xf32>
    %1162 = tpu.matmul %1122, %1161, %cst_392 {dimension_numbers = #tpu.dot_dimension_numbers<[1], [0], [0], [1], [0, 0, 1, 1], [], []>} : vector<8x32xf32>, vector<32x96xf32>, vector<8x96xf32> -> vector<8x96xf32>
    %1163 = arith.addf %1162, %44 : vector<8x96xf32>
    %c2_393 = arith.constant 2 : index
    %c0_394 = arith.constant 0 : index
    %c0_395 = arith.constant 0 : index
    %1164 = vector.load %arg4[%c2_393, %c0_394, %c0_395] : memref<5x32x96xf32, #tpu.memory_space<vmem>>, vector<1x32x96xf32>
    %1165 = vector.shape_cast %1164 : vector<1x32x96xf32> to vector<32x96xf32>
    %cst_396 = arith.constant dense<0.000000e+00> : vector<8x96xf32>
    %1166 = tpu.matmul %1094, %1165, %cst_396 {dimension_numbers = #tpu.dot_dimension_numbers<[1], [0], [0], [1], [0, 0, 1, 1], [], []>} : vector<8x32xf32>, vector<32x96xf32>, vector<8x96xf32> -> vector<8x96xf32>
    %1167 = vector.extract_strided_slice %1155 {offsets = [0, 0], sizes = [8, 32], strides = [1, 1]} : vector<8x96xf32> to vector<8x32xf32>
    %1168 = vector.extract_strided_slice %1166 {offsets = [0, 0], sizes = [8, 32], strides = [1, 1]} : vector<8x96xf32> to vector<8x32xf32>
    %1169 = arith.addf %1167, %1168 : vector<8x32xf32>
    %1170 = arith.negf %1169 : vector<8x32xf32>
    %1171 = math.exp %1170 : vector<8x32xf32>
    %cst_397 = arith.constant 1.000000e+00 : f32
    %1172 = vector.broadcast %cst_397 : f32 to vector<8x32xf32>
    %1173 = arith.addf %1172, %1171 : vector<8x32xf32>
    %1174 = arith.divf %1172, %1173 : vector<8x32xf32>
    %1175 = vector.extract_strided_slice %1155 {offsets = [0, 32], sizes = [8, 32], strides = [1, 1]} : vector<8x96xf32> to vector<8x32xf32>
    %1176 = vector.extract_strided_slice %1166 {offsets = [0, 32], sizes = [8, 32], strides = [1, 1]} : vector<8x96xf32> to vector<8x32xf32>
    %1177 = arith.addf %1175, %1176 : vector<8x32xf32>
    %1178 = arith.negf %1177 : vector<8x32xf32>
    %1179 = math.exp %1178 : vector<8x32xf32>
    %cst_398 = arith.constant 1.000000e+00 : f32
    %1180 = vector.broadcast %cst_398 : f32 to vector<8x32xf32>
    %1181 = arith.addf %1180, %1179 : vector<8x32xf32>
    %1182 = arith.divf %1180, %1181 : vector<8x32xf32>
    %1183 = vector.extract_strided_slice %1155 {offsets = [0, 64], sizes = [8, 32], strides = [1, 1]} : vector<8x96xf32> to vector<8x32xf32>
    %1184 = vector.extract_strided_slice %1166 {offsets = [0, 64], sizes = [8, 32], strides = [1, 1]} : vector<8x96xf32> to vector<8x32xf32>
    %1185 = arith.addf %1184, %20 : vector<8x32xf32>
    %1186 = arith.mulf %1174, %1185 : vector<8x32xf32>
    %1187 = arith.addf %1183, %1186 : vector<8x32xf32>
    %1188 = math.tanh %1187 : vector<8x32xf32>
    %1189 = arith.subf %1094, %1188 : vector<8x32xf32>
    %1190 = arith.mulf %1182, %1189 : vector<8x32xf32>
    %1191 = arith.addf %1188, %1190 : vector<8x32xf32>
    %c3_399 = arith.constant 3 : index
    %c0_400 = arith.constant 0 : index
    %c0_401 = arith.constant 0 : index
    %1192 = vector.load %arg4[%c3_399, %c0_400, %c0_401] : memref<5x32x96xf32, #tpu.memory_space<vmem>>, vector<1x32x96xf32>
    %1193 = vector.shape_cast %1192 : vector<1x32x96xf32> to vector<32x96xf32>
    %cst_402 = arith.constant dense<0.000000e+00> : vector<8x96xf32>
    %1194 = tpu.matmul %1122, %1193, %cst_402 {dimension_numbers = #tpu.dot_dimension_numbers<[1], [0], [0], [1], [0, 0, 1, 1], [], []>} : vector<8x32xf32>, vector<32x96xf32>, vector<8x96xf32> -> vector<8x96xf32>
    %1195 = vector.extract_strided_slice %1159 {offsets = [0, 0], sizes = [8, 32], strides = [1, 1]} : vector<8x96xf32> to vector<8x32xf32>
    %1196 = vector.extract_strided_slice %1194 {offsets = [0, 0], sizes = [8, 32], strides = [1, 1]} : vector<8x96xf32> to vector<8x32xf32>
    %1197 = arith.addf %1195, %1196 : vector<8x32xf32>
    %1198 = arith.negf %1197 : vector<8x32xf32>
    %1199 = math.exp %1198 : vector<8x32xf32>
    %cst_403 = arith.constant 1.000000e+00 : f32
    %1200 = vector.broadcast %cst_403 : f32 to vector<8x32xf32>
    %1201 = arith.addf %1200, %1199 : vector<8x32xf32>
    %1202 = arith.divf %1200, %1201 : vector<8x32xf32>
    %1203 = vector.extract_strided_slice %1159 {offsets = [0, 32], sizes = [8, 32], strides = [1, 1]} : vector<8x96xf32> to vector<8x32xf32>
    %1204 = vector.extract_strided_slice %1194 {offsets = [0, 32], sizes = [8, 32], strides = [1, 1]} : vector<8x96xf32> to vector<8x32xf32>
    %1205 = arith.addf %1203, %1204 : vector<8x32xf32>
    %1206 = arith.negf %1205 : vector<8x32xf32>
    %1207 = math.exp %1206 : vector<8x32xf32>
    %cst_404 = arith.constant 1.000000e+00 : f32
    %1208 = vector.broadcast %cst_404 : f32 to vector<8x32xf32>
    %1209 = arith.addf %1208, %1207 : vector<8x32xf32>
    %1210 = arith.divf %1208, %1209 : vector<8x32xf32>
    %1211 = vector.extract_strided_slice %1159 {offsets = [0, 64], sizes = [8, 32], strides = [1, 1]} : vector<8x96xf32> to vector<8x32xf32>
    %1212 = vector.extract_strided_slice %1194 {offsets = [0, 64], sizes = [8, 32], strides = [1, 1]} : vector<8x96xf32> to vector<8x32xf32>
    %1213 = arith.addf %1212, %24 : vector<8x32xf32>
    %1214 = arith.mulf %1202, %1213 : vector<8x32xf32>
    %1215 = arith.addf %1211, %1214 : vector<8x32xf32>
    %1216 = math.tanh %1215 : vector<8x32xf32>
    %1217 = arith.subf %1122, %1216 : vector<8x32xf32>
    %1218 = arith.mulf %1210, %1217 : vector<8x32xf32>
    %1219 = arith.addf %1216, %1218 : vector<8x32xf32>
    %c4_405 = arith.constant 4 : index
    %c0_406 = arith.constant 0 : index
    %c0_407 = arith.constant 0 : index
    %1220 = vector.load %arg4[%c4_405, %c0_406, %c0_407] : memref<5x32x96xf32, #tpu.memory_space<vmem>>, vector<1x32x96xf32>
    %1221 = vector.shape_cast %1220 : vector<1x32x96xf32> to vector<32x96xf32>
    %cst_408 = arith.constant dense<0.000000e+00> : vector<8x96xf32>
    %1222 = tpu.matmul %1150, %1221, %cst_408 {dimension_numbers = #tpu.dot_dimension_numbers<[1], [0], [0], [1], [0, 0, 1, 1], [], []>} : vector<8x32xf32>, vector<32x96xf32>, vector<8x96xf32> -> vector<8x96xf32>
    %1223 = vector.extract_strided_slice %1163 {offsets = [0, 0], sizes = [8, 32], strides = [1, 1]} : vector<8x96xf32> to vector<8x32xf32>
    %1224 = vector.extract_strided_slice %1222 {offsets = [0, 0], sizes = [8, 32], strides = [1, 1]} : vector<8x96xf32> to vector<8x32xf32>
    %1225 = arith.addf %1223, %1224 : vector<8x32xf32>
    %1226 = arith.negf %1225 : vector<8x32xf32>
    %1227 = math.exp %1226 : vector<8x32xf32>
    %cst_409 = arith.constant 1.000000e+00 : f32
    %1228 = vector.broadcast %cst_409 : f32 to vector<8x32xf32>
    %1229 = arith.addf %1228, %1227 : vector<8x32xf32>
    %1230 = arith.divf %1228, %1229 : vector<8x32xf32>
    %1231 = vector.extract_strided_slice %1163 {offsets = [0, 32], sizes = [8, 32], strides = [1, 1]} : vector<8x96xf32> to vector<8x32xf32>
    %1232 = vector.extract_strided_slice %1222 {offsets = [0, 32], sizes = [8, 32], strides = [1, 1]} : vector<8x96xf32> to vector<8x32xf32>
    %1233 = arith.addf %1231, %1232 : vector<8x32xf32>
    %1234 = arith.negf %1233 : vector<8x32xf32>
    %1235 = math.exp %1234 : vector<8x32xf32>
    %cst_410 = arith.constant 1.000000e+00 : f32
    %1236 = vector.broadcast %cst_410 : f32 to vector<8x32xf32>
    %1237 = arith.addf %1236, %1235 : vector<8x32xf32>
    %1238 = arith.divf %1236, %1237 : vector<8x32xf32>
    %1239 = vector.extract_strided_slice %1163 {offsets = [0, 64], sizes = [8, 32], strides = [1, 1]} : vector<8x96xf32> to vector<8x32xf32>
    %1240 = vector.extract_strided_slice %1222 {offsets = [0, 64], sizes = [8, 32], strides = [1, 1]} : vector<8x96xf32> to vector<8x32xf32>
    %1241 = arith.addf %1240, %28 : vector<8x32xf32>
    %1242 = arith.mulf %1230, %1241 : vector<8x32xf32>
    %1243 = arith.addf %1239, %1242 : vector<8x32xf32>
    %1244 = math.tanh %1243 : vector<8x32xf32>
    %1245 = arith.subf %1150, %1244 : vector<8x32xf32>
    %1246 = arith.mulf %1238, %1245 : vector<8x32xf32>
    %1247 = arith.addf %1244, %1246 : vector<8x32xf32>
    %c40 = arith.constant 40 : index
    %c0_411 = arith.constant 0 : index
    %1248 = vector.load %arg7[%c40, %c0_411] : memref<64x32xf32, #tpu.memory_space<vmem>>, vector<8x32xf32>
    tpu.vector_store %arg7[%c40, %c0_411], %1247 {strides = array<i32>} : memref<64x32xf32, #tpu.memory_space<vmem>>, vector<8x32xf32>,
    %c3_412 = arith.constant 3 : index
    %c0_413 = arith.constant 0 : index
    %c0_414 = arith.constant 0 : index
    %1249 = vector.load %arg3[%c3_412, %c0_413, %c0_414] : memref<5x32x96xf32, #tpu.memory_space<vmem>>, vector<1x32x96xf32>
    %1250 = vector.shape_cast %1249 : vector<1x32x96xf32> to vector<32x96xf32>
    %cst_415 = arith.constant dense<0.000000e+00> : vector<8x96xf32>
    %1251 = tpu.matmul %1191, %1250, %cst_415 {dimension_numbers = #tpu.dot_dimension_numbers<[1], [0], [0], [1], [0, 0, 1, 1], [], []>} : vector<8x32xf32>, vector<32x96xf32>, vector<8x96xf32> -> vector<8x96xf32>
    %1252 = arith.addf %1251, %40 : vector<8x96xf32>
    %c4_416 = arith.constant 4 : index
    %c0_417 = arith.constant 0 : index
    %c0_418 = arith.constant 0 : index
    %1253 = vector.load %arg3[%c4_416, %c0_417, %c0_418] : memref<5x32x96xf32, #tpu.memory_space<vmem>>, vector<1x32x96xf32>
    %1254 = vector.shape_cast %1253 : vector<1x32x96xf32> to vector<32x96xf32>
    %cst_419 = arith.constant dense<0.000000e+00> : vector<8x96xf32>
    %1255 = tpu.matmul %1219, %1254, %cst_419 {dimension_numbers = #tpu.dot_dimension_numbers<[1], [0], [0], [1], [0, 0, 1, 1], [], []>} : vector<8x32xf32>, vector<32x96xf32>, vector<8x96xf32> -> vector<8x96xf32>
    %1256 = arith.addf %1255, %44 : vector<8x96xf32>
    %c3_420 = arith.constant 3 : index
    %c0_421 = arith.constant 0 : index
    %c0_422 = arith.constant 0 : index
    %1257 = vector.load %arg4[%c3_420, %c0_421, %c0_422] : memref<5x32x96xf32, #tpu.memory_space<vmem>>, vector<1x32x96xf32>
    %1258 = vector.shape_cast %1257 : vector<1x32x96xf32> to vector<32x96xf32>
    %cst_423 = arith.constant dense<0.000000e+00> : vector<8x96xf32>
    %1259 = tpu.matmul %1219, %1258, %cst_423 {dimension_numbers = #tpu.dot_dimension_numbers<[1], [0], [0], [1], [0, 0, 1, 1], [], []>} : vector<8x32xf32>, vector<32x96xf32>, vector<8x96xf32> -> vector<8x96xf32>
    %1260 = vector.extract_strided_slice %1252 {offsets = [0, 0], sizes = [8, 32], strides = [1, 1]} : vector<8x96xf32> to vector<8x32xf32>
    %1261 = vector.extract_strided_slice %1259 {offsets = [0, 0], sizes = [8, 32], strides = [1, 1]} : vector<8x96xf32> to vector<8x32xf32>
    %1262 = arith.addf %1260, %1261 : vector<8x32xf32>
    %1263 = arith.negf %1262 : vector<8x32xf32>
    %1264 = math.exp %1263 : vector<8x32xf32>
    %cst_424 = arith.constant 1.000000e+00 : f32
    %1265 = vector.broadcast %cst_424 : f32 to vector<8x32xf32>
    %1266 = arith.addf %1265, %1264 : vector<8x32xf32>
    %1267 = arith.divf %1265, %1266 : vector<8x32xf32>
    %1268 = vector.extract_strided_slice %1252 {offsets = [0, 32], sizes = [8, 32], strides = [1, 1]} : vector<8x96xf32> to vector<8x32xf32>
    %1269 = vector.extract_strided_slice %1259 {offsets = [0, 32], sizes = [8, 32], strides = [1, 1]} : vector<8x96xf32> to vector<8x32xf32>
    %1270 = arith.addf %1268, %1269 : vector<8x32xf32>
    %1271 = arith.negf %1270 : vector<8x32xf32>
    %1272 = math.exp %1271 : vector<8x32xf32>
    %cst_425 = arith.constant 1.000000e+00 : f32
    %1273 = vector.broadcast %cst_425 : f32 to vector<8x32xf32>
    %1274 = arith.addf %1273, %1272 : vector<8x32xf32>
    %1275 = arith.divf %1273, %1274 : vector<8x32xf32>
    %1276 = vector.extract_strided_slice %1252 {offsets = [0, 64], sizes = [8, 32], strides = [1, 1]} : vector<8x96xf32> to vector<8x32xf32>
    %1277 = vector.extract_strided_slice %1259 {offsets = [0, 64], sizes = [8, 32], strides = [1, 1]} : vector<8x96xf32> to vector<8x32xf32>
    %1278 = arith.addf %1277, %24 : vector<8x32xf32>
    %1279 = arith.mulf %1267, %1278 : vector<8x32xf32>
    %1280 = arith.addf %1276, %1279 : vector<8x32xf32>
    %1281 = math.tanh %1280 : vector<8x32xf32>
    %1282 = arith.subf %1219, %1281 : vector<8x32xf32>
    %1283 = arith.mulf %1275, %1282 : vector<8x32xf32>
    %1284 = arith.addf %1281, %1283 : vector<8x32xf32>
    %c4_426 = arith.constant 4 : index
    %c0_427 = arith.constant 0 : index
    %c0_428 = arith.constant 0 : index
    %1285 = vector.load %arg4[%c4_426, %c0_427, %c0_428] : memref<5x32x96xf32, #tpu.memory_space<vmem>>, vector<1x32x96xf32>
    %1286 = vector.shape_cast %1285 : vector<1x32x96xf32> to vector<32x96xf32>
    %cst_429 = arith.constant dense<0.000000e+00> : vector<8x96xf32>
    %1287 = tpu.matmul %1247, %1286, %cst_429 {dimension_numbers = #tpu.dot_dimension_numbers<[1], [0], [0], [1], [0, 0, 1, 1], [], []>} : vector<8x32xf32>, vector<32x96xf32>, vector<8x96xf32> -> vector<8x96xf32>
    %1288 = vector.extract_strided_slice %1256 {offsets = [0, 0], sizes = [8, 32], strides = [1, 1]} : vector<8x96xf32> to vector<8x32xf32>
    %1289 = vector.extract_strided_slice %1287 {offsets = [0, 0], sizes = [8, 32], strides = [1, 1]} : vector<8x96xf32> to vector<8x32xf32>
    %1290 = arith.addf %1288, %1289 : vector<8x32xf32>
    %1291 = arith.negf %1290 : vector<8x32xf32>
    %1292 = math.exp %1291 : vector<8x32xf32>
    %cst_430 = arith.constant 1.000000e+00 : f32
    %1293 = vector.broadcast %cst_430 : f32 to vector<8x32xf32>
    %1294 = arith.addf %1293, %1292 : vector<8x32xf32>
    %1295 = arith.divf %1293, %1294 : vector<8x32xf32>
    %1296 = vector.extract_strided_slice %1256 {offsets = [0, 32], sizes = [8, 32], strides = [1, 1]} : vector<8x96xf32> to vector<8x32xf32>
    %1297 = vector.extract_strided_slice %1287 {offsets = [0, 32], sizes = [8, 32], strides = [1, 1]} : vector<8x96xf32> to vector<8x32xf32>
    %1298 = arith.addf %1296, %1297 : vector<8x32xf32>
    %1299 = arith.negf %1298 : vector<8x32xf32>
    %1300 = math.exp %1299 : vector<8x32xf32>
    %cst_431 = arith.constant 1.000000e+00 : f32
    %1301 = vector.broadcast %cst_431 : f32 to vector<8x32xf32>
    %1302 = arith.addf %1301, %1300 : vector<8x32xf32>
    %1303 = arith.divf %1301, %1302 : vector<8x32xf32>
    %1304 = vector.extract_strided_slice %1256 {offsets = [0, 64], sizes = [8, 32], strides = [1, 1]} : vector<8x96xf32> to vector<8x32xf32>
    %1305 = vector.extract_strided_slice %1287 {offsets = [0, 64], sizes = [8, 32], strides = [1, 1]} : vector<8x96xf32> to vector<8x32xf32>
    %1306 = arith.addf %1305, %28 : vector<8x32xf32>
    %1307 = arith.mulf %1295, %1306 : vector<8x32xf32>
    %1308 = arith.addf %1304, %1307 : vector<8x32xf32>
    %1309 = math.tanh %1308 : vector<8x32xf32>
    %1310 = arith.subf %1247, %1309 : vector<8x32xf32>
    %1311 = arith.mulf %1303, %1310 : vector<8x32xf32>
    %1312 = arith.addf %1309, %1311 : vector<8x32xf32>
    %c48 = arith.constant 48 : index
    %c0_432 = arith.constant 0 : index
    %1313 = vector.load %arg7[%c48, %c0_432] : memref<64x32xf32, #tpu.memory_space<vmem>>, vector<8x32xf32>
    tpu.vector_store %arg7[%c48, %c0_432], %1312 {strides = array<i32>} : memref<64x32xf32, #tpu.memory_space<vmem>>, vector<8x32xf32>,
    %c4_433 = arith.constant 4 : index
    %c0_434 = arith.constant 0 : index
    %c0_435 = arith.constant 0 : index
    %1314 = vector.load %arg3[%c4_433, %c0_434, %c0_435] : memref<5x32x96xf32, #tpu.memory_space<vmem>>, vector<1x32x96xf32>
    %1315 = vector.shape_cast %1314 : vector<1x32x96xf32> to vector<32x96xf32>
    %cst_436 = arith.constant dense<0.000000e+00> : vector<8x96xf32>
    %1316 = tpu.matmul %1284, %1315, %cst_436 {dimension_numbers = #tpu.dot_dimension_numbers<[1], [0], [0], [1], [0, 0, 1, 1], [], []>} : vector<8x32xf32>, vector<32x96xf32>, vector<8x96xf32> -> vector<8x96xf32>
    %1317 = arith.addf %1316, %44 : vector<8x96xf32>
    %c4_437 = arith.constant 4 : index
    %c0_438 = arith.constant 0 : index
    %c0_439 = arith.constant 0 : index
    %1318 = vector.load %arg4[%c4_437, %c0_438, %c0_439] : memref<5x32x96xf32, #tpu.memory_space<vmem>>, vector<1x32x96xf32>
    %1319 = vector.shape_cast %1318 : vector<1x32x96xf32> to vector<32x96xf32>
    %cst_440 = arith.constant dense<0.000000e+00> : vector<8x96xf32>
    %1320 = tpu.matmul %1312, %1319, %cst_440 {dimension_numbers = #tpu.dot_dimension_numbers<[1], [0], [0], [1], [0, 0, 1, 1], [], []>} : vector<8x32xf32>, vector<32x96xf32>, vector<8x96xf32> -> vector<8x96xf32>
    %1321 = vector.extract_strided_slice %1317 {offsets = [0, 0], sizes = [8, 32], strides = [1, 1]} : vector<8x96xf32> to vector<8x32xf32>
    %1322 = vector.extract_strided_slice %1320 {offsets = [0, 0], sizes = [8, 32], strides = [1, 1]} : vector<8x96xf32> to vector<8x32xf32>
    %1323 = arith.addf %1321, %1322 : vector<8x32xf32>
    %1324 = arith.negf %1323 : vector<8x32xf32>
    %1325 = math.exp %1324 : vector<8x32xf32>
    %cst_441 = arith.constant 1.000000e+00 : f32
    %1326 = vector.broadcast %cst_441 : f32 to vector<8x32xf32>
    %1327 = arith.addf %1326, %1325 : vector<8x32xf32>
    %1328 = arith.divf %1326, %1327 : vector<8x32xf32>
    %1329 = vector.extract_strided_slice %1317 {offsets = [0, 32], sizes = [8, 32], strides = [1, 1]} : vector<8x96xf32> to vector<8x32xf32>
    %1330 = vector.extract_strided_slice %1320 {offsets = [0, 32], sizes = [8, 32], strides = [1, 1]} : vector<8x96xf32> to vector<8x32xf32>
    %1331 = arith.addf %1329, %1330 : vector<8x32xf32>
    %1332 = arith.negf %1331 : vector<8x32xf32>
    %1333 = math.exp %1332 : vector<8x32xf32>
    %cst_442 = arith.constant 1.000000e+00 : f32
    %1334 = vector.broadcast %cst_442 : f32 to vector<8x32xf32>
    %1335 = arith.addf %1334, %1333 : vector<8x32xf32>
    %1336 = arith.divf %1334, %1335 : vector<8x32xf32>
    %1337 = vector.extract_strided_slice %1317 {offsets = [0, 64], sizes = [8, 32], strides = [1, 1]} : vector<8x96xf32> to vector<8x32xf32>
    %1338 = vector.extract_strided_slice %1320 {offsets = [0, 64], sizes = [8, 32], strides = [1, 1]} : vector<8x96xf32> to vector<8x32xf32>
    %1339 = arith.addf %1338, %28 : vector<8x32xf32>
    %1340 = arith.mulf %1328, %1339 : vector<8x32xf32>
    %1341 = arith.addf %1337, %1340 : vector<8x32xf32>
    %1342 = math.tanh %1341 : vector<8x32xf32>
    %1343 = arith.subf %1312, %1342 : vector<8x32xf32>
    %1344 = arith.mulf %1336, %1343 : vector<8x32xf32>
    %1345 = arith.addf %1342, %1344 : vector<8x32xf32>
    %c56 = arith.constant 56 : index
    %c0_443 = arith.constant 0 : index
    %1346 = vector.load %arg7[%c56, %c0_443] : memref<64x32xf32, #tpu.memory_space<vmem>>, vector<8x32xf32>
    tpu.vector_store %arg7[%c56, %c0_443], %1345 {strides = array<i32>} : memref<64x32xf32, #tpu.memory_space<vmem>>, vector<8x32xf32>,
    %c0_444 = arith.constant 0 : index
    %c0_445 = arith.constant 0 : index
    %c0_446 = arith.constant 0 : index
    %1347 = vector.load %arg8[%c0_444, %c0_445, %c0_446] : memref<5x8x32xf32, #tpu.memory_space<vmem>>, vector<1x8x32xf32>
    %1348 = vector.shape_cast %1347 : vector<1x8x32xf32> to vector<8x32xf32>
    %1349 = vector.shape_cast %905 : vector<8x32xf32> to vector<1x8x32xf32>
    tpu.vector_store %arg8[%c0_444, %c0_445, %c0_446], %1349 {strides = array<i32>} : memref<5x8x32xf32, #tpu.memory_space<vmem>>, vector<1x8x32xf32>,
    %c1_447 = arith.constant 1 : index
    %c0_448 = arith.constant 0 : index
    %c0_449 = arith.constant 0 : index
    %1350 = vector.load %arg8[%c1_447, %c0_448, %c0_449] : memref<5x8x32xf32, #tpu.memory_space<vmem>>, vector<1x8x32xf32>
    %1351 = vector.shape_cast %1350 : vector<1x8x32xf32> to vector<8x32xf32>
    %1352 = vector.shape_cast %1066 : vector<8x32xf32> to vector<1x8x32xf32>
    tpu.vector_store %arg8[%c1_447, %c0_448, %c0_449], %1352 {strides = array<i32>} : memref<5x8x32xf32, #tpu.memory_space<vmem>>, vector<1x8x32xf32>,
    %c2_450 = arith.constant 2 : index
    %c0_451 = arith.constant 0 : index
    %c0_452 = arith.constant 0 : index
    %1353 = vector.load %arg8[%c2_450, %c0_451, %c0_452] : memref<5x8x32xf32, #tpu.memory_space<vmem>>, vector<1x8x32xf32>
    %1354 = vector.shape_cast %1353 : vector<1x8x32xf32> to vector<8x32xf32>
    %1355 = vector.shape_cast %1191 : vector<8x32xf32> to vector<1x8x32xf32>
    tpu.vector_store %arg8[%c2_450, %c0_451, %c0_452], %1355 {strides = array<i32>} : memref<5x8x32xf32, #tpu.memory_space<vmem>>, vector<1x8x32xf32>,
    %c3_453 = arith.constant 3 : index
    %c0_454 = arith.constant 0 : index
    %c0_455 = arith.constant 0 : index
    %1356 = vector.load %arg8[%c3_453, %c0_454, %c0_455] : memref<5x8x32xf32, #tpu.memory_space<vmem>>, vector<1x8x32xf32>
    %1357 = vector.shape_cast %1356 : vector<1x8x32xf32> to vector<8x32xf32>
    %1358 = vector.shape_cast %1284 : vector<8x32xf32> to vector<1x8x32xf32>
    tpu.vector_store %arg8[%c3_453, %c0_454, %c0_455], %1358 {strides = array<i32>} : memref<5x8x32xf32, #tpu.memory_space<vmem>>, vector<1x8x32xf32>,
    %c4_456 = arith.constant 4 : index
    %c0_457 = arith.constant 0 : index
    %c0_458 = arith.constant 0 : index
    %1359 = vector.load %arg8[%c4_456, %c0_457, %c0_458] : memref<5x8x32xf32, #tpu.memory_space<vmem>>, vector<1x8x32xf32>
    %1360 = vector.shape_cast %1359 : vector<1x8x32xf32> to vector<8x32xf32>
    %1361 = vector.shape_cast %1345 : vector<8x32xf32> to vector<1x8x32xf32>
    tpu.vector_store %arg8[%c4_456, %c0_457, %c0_458], %1361 {strides = array<i32>} : memref<5x8x32xf32, #tpu.memory_space<vmem>>, vector<1x8x32xf32>,
    return
  }
  func.func @transform_0(%arg0: i32) -> (i32, i32) {
    %c0_i32 = arith.constant 0 : i32
    %c0_i32_0 = arith.constant 0 : i32
    %c0_i32_1 = arith.constant 0 : i32
    return %c0_i32, %c0_i32_0 : i32, i32
  }
  func.func @transform_1(%arg0: i32) -> (i32, i32, i32) {
    %c0_i32 = arith.constant 0 : i32
    %c0_i32_0 = arith.constant 0 : i32
    %c0_i32_1 = arith.constant 0 : i32
    %c0_i32_2 = arith.constant 0 : i32
    return %c0_i32, %c0_i32_0, %c0_i32_1 : i32, i32, i32
  }
  func.func @transform_2(%arg0: i32) -> (i32, i32, i32) {
    %c0_i32 = arith.constant 0 : i32
    %c0_i32_0 = arith.constant 0 : i32
    %c0_i32_1 = arith.constant 0 : i32
    %c0_i32_2 = arith.constant 0 : i32
    return %c0_i32, %c0_i32_0, %c0_i32_1 : i32, i32, i32
  }
  func.func @transform_3(%arg0: i32) -> (i32, i32, i32) {
    %c0_i32 = arith.constant 0 : i32
    %c0_i32_0 = arith.constant 0 : i32
    %c0_i32_1 = arith.constant 0 : i32
    %c0_i32_2 = arith.constant 0 : i32
    return %c0_i32, %c0_i32_0, %c0_i32_1 : i32, i32, i32
  }
  func.func @transform_4(%arg0: i32) -> (i32, i32, i32) {
    %c0_i32 = arith.constant 0 : i32
    %c0_i32_0 = arith.constant 0 : i32
    %c0_i32_1 = arith.constant 0 : i32
    %c0_i32_2 = arith.constant 0 : i32
    return %c0_i32, %c0_i32_0, %c0_i32_1 : i32, i32, i32
  }
  func.func @transform_5(%arg0: i32) -> (i32, i32, i32) {
    %c0_i32 = arith.constant 0 : i32
    %c0_i32_0 = arith.constant 0 : i32
    %c0_i32_1 = arith.constant 0 : i32
    %c0_i32_2 = arith.constant 0 : i32
    return %c0_i32, %c0_i32_0, %c0_i32_1 : i32, i32, i32
  }
  func.func @transform_6(%arg0: i32) -> (i32, i32) {
    %c0_i32 = arith.constant 0 : i32
    %c0_i32_0 = arith.constant 0 : i32
    %c0_i32_1 = arith.constant 0 : i32
    return %c0_i32, %c0_i32_0 : i32, i32
  }
  func.func @transform_7(%arg0: i32) -> (i32, i32, i32) {
    %c0_i32 = arith.constant 0 : i32
    %c0_i32_0 = arith.constant 0 : i32
    %c0_i32_1 = arith.constant 0 : i32
    %c0_i32_2 = arith.constant 0 : i32
    return %c0_i32, %c0_i32_0, %c0_i32_1 : i32, i32, i32
  }
}

</mosaic_0001>

<llo_original>
// kernel: encoder_rnn_forward.1
$region0: #{encoder_rnn_forward.1}
  #allocation0 [shape = 'u32[]', space=smem, size = 0x4, offset = 0x4, fixed_abs, tag = 'smem constant byte address 0x4 - core index']
  #allocation1 [shape = 'u32[144,128]{1,0:T(1,128)}', space=vmem, size = 0x12000, scoped, tag = 'internal scratch']
  #allocation2 [shape = 'f32[64,96]{1,0:T(8,128)}', space=vmem, size = 0x8000, scoped, tag = 'scratch operand']
  %s0 = inlined_call_operand.vmem [shape: f32[64,32], index: 0, kind: input, shape index: {}]
  %s1 = inlined_call_operand.vmem [shape: f32[5,8,32], index: 1, kind: input, shape index: {}]
  %s2 = inlined_call_operand.vmem [shape: f32[5,32,96], index: 2, kind: input, shape index: {}]
  %s3 = inlined_call_operand.vmem [shape: f32[5,32,96], index: 3, kind: input, shape index: {}]
  %s4 = inlined_call_operand.vmem [shape: f32[5,1,96], index: 4, kind: input, shape index: {}]
  %s5 = inlined_call_operand.vmem [shape: f32[5,1,32], index: 5, kind: input, shape index: {}]
  %s6 = inlined_call_operand.vmem [shape: f32[64,32], index: 6, kind: output, shape index: {0}]
  %s7 = inlined_call_operand.hbm [shape: f32[5,8,32], index: 7, kind: output, shape index: {1}]
  %8 = xla_tuple %s6, %s7
  %s9 = sld [smem:[#allocation0]]
  $region42: #{encoder_rnn_forward.1} parent=0
    _
  %s11 = ssub.s32 1, %s9
  %s12 = scalar_select 0, %s11, %s9
  $region1: #{encoder_rnn_forward.1} parent=0
    #allocation3 [shape = 'u8[20480]{0}', space=vmem, size = 0x5000, scoped, tag = 'output window, operand 1, single buffered']
    #allocation4 [shape = 's32[1]{0}', space=sflag, size = 0x4, scoped, tag = 'scoped memory for encoder_rnn_forward.1']
    %13 = vsyncpa [#allocation4], 0
    // Predicated region
    $region2: #{encoder_rnn_forward.1} parent=1 // pred_check
      _
    $region3: #{encoder_rnn_forward.1} parent=1 // pred_check_branch
      %15 = sbr.rel (0) target = $region5
    $region4: #{encoder_rnn_forward.1} parent=1 // pred_region
      _
    $region5: #{encoder_rnn_forward.1} parent=1 // pred_fallthru
      _
    // Predicated region
    $region6: #{encoder_rnn_forward.1} parent=1 // pred_check
      _
    $region7: #{encoder_rnn_forward.1} parent=1 // pred_check_branch
      %17 = sbr.rel (0) target = $region9
    $region8: #{encoder_rnn_forward.1} parent=1 // pred_region
      _
    $region9: #{encoder_rnn_forward.1} parent=1 // pred_fallthru
      _
    // Predicated region
    $region10: #{encoder_rnn_forward.1} parent=1 // pred_check
      _
    $region11: #{encoder_rnn_forward.1} parent=1 // pred_check_branch
      %19 = sbr.rel (0) target = $region13
    $region12: #{encoder_rnn_forward.1} parent=1 // pred_region
      _
    $region13: #{encoder_rnn_forward.1} parent=1 // pred_fallthru
      _
    // Predicated region
    $region14: #{encoder_rnn_forward.1} parent=1 // pred_check
      _
    $region15: #{encoder_rnn_forward.1} parent=1 // pred_check_branch
      %21 = sbr.rel (0) target = $region17
    $region16: #{encoder_rnn_forward.1} parent=1 // pred_region
      _
    $region17: #{encoder_rnn_forward.1} parent=1 // pred_fallthru
      _
    // Predicated region
    $region18: #{encoder_rnn_forward.1} parent=1 // pred_check
      _
    $region19: #{encoder_rnn_forward.1} parent=1 // pred_check_branch
      %23 = sbr.rel (0) target = $region21
    $region20: #{encoder_rnn_forward.1} parent=1 // pred_region
      _
    $region21: #{encoder_rnn_forward.1} parent=1 // pred_fallthru
      _
    // Predicated region
    $region22: #{encoder_rnn_forward.1} parent=1 // pred_check
      _
    $region23: #{encoder_rnn_forward.1} parent=1 // pred_check_branch
      %25 = sbr.rel (0) target = $region25
    $region24: #{encoder_rnn_forward.1} parent=1 // pred_region
      _
    $region25: #{encoder_rnn_forward.1} parent=1 // pred_fallthru
      _
    %v26 = vld [vmem:[%s0] sm:$0xff]
    %v27 = vld [vmem:[%s0 + $0x8] sm:$0xff]
    %v28 = vld [vmem:[%s0 + $0x10] sm:$0xff]
    %v29 = vld [vmem:[%s0 + $0x18] sm:$0xff]
    %v30 = vld [vmem:[%s0 + $0x20] sm:$0xff]
    %v31 = vld [vmem:[%s0 + $0x28] sm:$0xff]
    %v32 = vld [vmem:[%s0 + $0x30] sm:$0xff]
    %v33 = vld [vmem:[%s0 + $0x38] sm:$0xff]
    %v34 = vld [vmem:[%s2] sm:$0xff]
    %v35 = vld [vmem:[%s2 + $0x8] sm:$0xff]
    %v36 = vld [vmem:[%s2 + $0x10] sm:$0xff]
    %v37 = vld [vmem:[%s2 + $0x18] sm:$0xff]
    %v38 = vld [vmem:[%s4] sm:$0x1]
    %v40 = vlaneseq
    %v41 = vshrl.u32 %v40, 7
    %v42 = vsub.s32 0, %v41
    %v43 = vrot.slane %v38, %v42
    %vm45 = vcmask 261120
    %v47 = vsel %vm45, %v26, 0
    %v50 = vsel %vm45, %v27, 0
    %v53 = vsel %vm45, %v28, 0
    %v56 = vsel %vm45, %v29, 0
    %v59 = vsel %vm45, %v30, 0
    %v62 = vsel %vm45, %v31, 0
    %v65 = vsel %vm45, %v32, 0
    %v68 = vsel %vm45, %v33, 0
    %70 = vmatprep.subr.mxu0 0.0
    %71 = vmatpush1.msra.mxu0 0.0
    %72 = vmatprep.subr.mxu0 0.0
    %73 = vmatpush1.msra.mxu0 0.0
    %74 = vmatprep.subr.mxu0 0.0
    %75 = vmatpush1.msra.mxu0 0.0
    %76 = vmatprep.subr.mxu0 0.0
    %77 = vmatpush1.msra.mxu0 0.0
    %78 = vmatprep.subr.mxu0 0.0
    %79 = vmatpush1.msra.mxu0 0.0
    %80 = vmatprep.subr.mxu0 0.0
    %81 = vmatpush1.msra.mxu0 0.0
    %82 = vmatprep.subr.mxu0 0.0
    %83 = vmatpush1.msra.mxu0 0.0
    %84 = vmatprep.subr.mxu0 0.0
    %85 = vmatpush1.msra.mxu0 0.0
    %86 = vmatprep.subr.mxu0 0.0
    %87 = vmatpush1.msra.mxu0 0.0
    %88 = vmatprep.subr.mxu0 0.0
    %89 = vmatpush1.msra.mxu0 0.0
    %90 = vmatprep.subr.mxu0 0.0
    %91 = vmatpush1.msra.mxu0 0.0
    %92 = vmatprep.subr.mxu0 0.0
    %93 = vmatpush1.msra.mxu0 0.0
    %94 = vmatprep.subr.mxu0 0.0
    %95 = vmatpush1.msra.mxu0 %v37
    %96 = vmatprep.subr.mxu0 0.0
    %97 = vmatpush1.msra.mxu0 %v36
    %98 = vmatprep.subr.mxu0 0.0
    %99 = vmatpush1.msra.mxu0 %v35
    %100 = vmatprep.subr.mxu0 0.0
    %101 = vmatpush1.msra.mxu0 %v34
    %102 = vmatprep.subr.mxu0 0.0
    %103 = vmatpush2.msra.mxu0 0.0
    %104 = vmatprep.subr.mxu0 0.0
    %105 = vmatpush2.msra.mxu0 0.0
    %106 = vmatprep.subr.mxu0 0.0
    %107 = vmatpush2.msra.mxu0 0.0
    %108 = vmatprep.subr.mxu0 0.0
    %109 = vmatpush2.msra.mxu0 0.0
    %110 = vmatprep.subr.mxu0 0.0
    %111 = vmatpush2.msra.mxu0 0.0
    %112 = vmatprep.subr.mxu0 0.0
    %113 = vmatpush2.msra.mxu0 0.0
    %114 = vmatprep.subr.mxu0 0.0
    %115 = vmatpush2.msra.mxu0 0.0
    %116 = vmatprep.subr.mxu0 0.0
    %117 = vmatpush2.msra.mxu0 0.0
    %118 = vmatprep.subr.mxu0 0.0
    %119 = vmatpush2.msra.mxu0 0.0
    %120 = vmatprep.subr.mxu0 0.0
    %121 = vmatpush2.msra.mxu0 0.0
    %122 = vmatprep.subr.mxu0 0.0
    %123 = vmatpush2.msra.mxu0 0.0
    %124 = vmatprep.subr.mxu0 0.0
    %125 = vmatpush2.msra.mxu0 0.0
    %126 = vmatprep.subr.mxu0 0.0
    %127 = vmatpush2.msra.mxu0 0.0
    %128 = vmatprep.subr.mxu0 0.0
    %129 = vmatpush2.msra.mxu0 0.0
    %130 = vmatprep.subr.mxu0 0.0
    %131 = vmatpush2.msra.mxu0 0.0
    %132 = vmatprep.subr.mxu0 0.0
    %133 = vmatpush2.msra.mxu0 0.0
    %134 = vmatprep.mubr.f32.mxu0 0.0
    %135 = vmatmul.mubr.f32.gmra.mxu0 %v47
    %v136 = vpop.f32.mrf.mxu0
    %v137 = vadd.f32 %v43, %v136
    %v138 = vpop.f32.mrf.mxu0
    %139 = vmatprep.mubr.f32.mxu0 0.0
    %140 = vmatmul.mubr.f32.gmra.mxu0 %v50
    %v141 = vpop.f32.mrf.mxu0
    %v142 = vadd.f32 %v43, %v141
    %v143 = vpop.f32.mrf.mxu0
    %144 = vmatprep.mubr.f32.mxu0 0.0
    %145 = vmatmul.mubr.f32.gmra.mxu0 %v53
    %v146 = vpop.f32.mrf.mxu0
    %v147 = vadd.f32 %v43, %v146
    %v148 = vpop.f32.mrf.mxu0
    %149 = vmatprep.mubr.f32.mxu0 0.0
    %150 = vmatmul.mubr.f32.gmra.mxu0 %v56
    %v151 = vpop.f32.mrf.mxu0
    %v152 = vadd.f32 %v43, %v151
    %v153 = vpop.f32.mrf.mxu0
    %154 = vmatprep.mubr.f32.mxu0 0.0
    %155 = vmatmul.mubr.f32.gmra.mxu0 %v59
    %v156 = vpop.f32.mrf.mxu0
    %v157 = vadd.f32 %v43, %v156
    %v158 = vpop.f32.mrf.mxu0
    %159 = vmatprep.mubr.f32.mxu0 0.0
    %160 = vmatmul.mubr.f32.gmra.mxu0 %v62
    %v161 = vpop.f32.mrf.mxu0
    %v162 = vadd.f32 %v43, %v161
    %v163 = vpop.f32.mrf.mxu0
    %164 = vmatprep.mubr.f32.mxu0 0.0
    %165 = vmatmul.mubr.f32.gmra.mxu0 %v65
    %v166 = vpop.f32.mrf.mxu0
    %v167 = vadd.f32 %v43, %v166
    %v168 = vpop.f32.mrf.mxu0
    %169 = vmatprep.mubr.f32.mxu0 0.0
    %170 = vmatmul.mubr.f32.gmra.mxu0 %v68
    %v171 = vpop.f32.mrf.mxu0
    %v172 = vadd.f32 %v43, %v171
    %v173 = vpop.f32.mrf.mxu0
    %174 = vdwg.mxu0
    %vm175 = vcmask 785408
    %176 = vst.msk [vmem:[#allocation2] sm:$0xff] %vm175, %v137
    %177 = vst.msk [vmem:[#allocation2 + $0x8] sm:$0xff] %vm175, %v142
    %178 = vst.msk [vmem:[#allocation2 + $0x10] sm:$0xff] %vm175, %v147
    %179 = vst.msk [vmem:[#allocation2 + $0x18] sm:$0xff] %vm175, %v152
    %180 = vst.msk [vmem:[#allocation2 + $0x20] sm:$0xff] %vm175, %v157
    %181 = vst.msk [vmem:[#allocation2 + $0x28] sm:$0xff] %vm175, %v162
    %182 = vst.msk [vmem:[#allocation2 + $0x30] sm:$0xff] %vm175, %v167
    %183 = vst.msk [vmem:[#allocation2 + $0x38] sm:$0xff] %vm175, %v172
    %v184 = vld [vmem:[%s5] sm:$0x1]
    %v186 = vlaneseq
    %v187 = vshrl.u32 %v186, 7
    %v188 = vsub.s32 0, %v187
    %v189 = vrot.slane %v184, %v188
    %s190 = scalar_lea.vmem %s5, 1
    %v191 = vld [vmem:[%s190] sm:$0x1]
    %v193 = vlaneseq
    %v194 = vshrl.u32 %v193, 7
    %v195 = vsub.s32 0, %v194
    %v196 = vrot.slane %v191, %v195
    %s197 = scalar_lea.vmem %s5, 2
    %v198 = vld [vmem:[%s197] sm:$0x1]
    %v200 = vlaneseq
    %v201 = vshrl.u32 %v200, 7
    %v202 = vsub.s32 0, %v201
    %v203 = vrot.slane %v198, %v202
    %s204 = scalar_lea.vmem %s5, 3
    %v205 = vld [vmem:[%s204] sm:$0x1]
    %v207 = vlaneseq
    %v208 = vshrl.u32 %v207, 7
    %v209 = vsub.s32 0, %v208
    %v210 = vrot.slane %v205, %v209
    %s211 = scalar_lea.vmem %s5, 4
    %v212 = vld [vmem:[%s211] sm:$0x1]
    %v214 = vlaneseq
    %v215 = vshrl.u32 %v214, 7
    %v216 = vsub.s32 0, %v215
    %v217 = vrot.slane %v212, %v216
    %s218 = scalar_lea.vmem %s4, 1
    %v219 = vld [vmem:[%s218] sm:$0x1]
    %v221 = vlaneseq
    %v222 = vshrl.u32 %v221, 7
    %v223 = vsub.s32 0, %v222
    %v224 = vrot.slane %v219, %v223
    %s226 = scalar_lea.vmem %s4, 2
    %v227 = vld [vmem:[%s226] sm:$0x1]
    %v229 = vlaneseq
    %v230 = vshrl.u32 %v229, 7
    %v231 = vsub.s32 0, %v230
    %v232 = vrot.slane %v227, %v231
    %s234 = scalar_lea.vmem %s4, 3
    %v235 = vld [vmem:[%s234] sm:$0x1]
    %v237 = vlaneseq
    %v238 = vshrl.u32 %v237, 7
    %v239 = vsub.s32 0, %v238
    %v240 = vrot.slane %v235, %v239
    %s242 = scalar_lea.vmem %s4, 4
    %v243 = vld [vmem:[%s242] sm:$0x1]
    %v245 = vlaneseq
    %v246 = vshrl.u32 %v245, 7
    %v247 = vsub.s32 0, %v246
    %v248 = vrot.slane %v243, %v247
    %v250 = vld [vmem:[%s1] sm:$0xff]
    %s251 = scalar_lea.vmem %s1, 8
    %v252 = vld [vmem:[%s251] sm:$0xff]
    %s253 = scalar_lea.vmem %s1, 16
    %v254 = vld [vmem:[%s253] sm:$0xff]
    %s255 = scalar_lea.vmem %s1, 24
    %v256 = vld [vmem:[%s255] sm:$0xff]
    %s257 = scalar_lea.vmem %s1, 32
    %v258 = vld [vmem:[%s257] sm:$0xff]
    %v259 = vld [vmem:[#allocation2] sm:$0xff]
    %v260 = vld [vmem:[%s3] sm:$0xff]
    %v261 = vld [vmem:[%s3 + $0x8] sm:$0xff]
    %v262 = vld [vmem:[%s3 + $0x10] sm:$0xff]
    %v263 = vld [vmem:[%s3 + $0x18] sm:$0xff]
    %v265 = vsel %vm45, %v250, 0
    %267 = vmatprep.subr.mxu0 0.0
    %268 = vmatpush1.msra.mxu0 0.0
    %269 = vmatprep.subr.mxu0 0.0
    %270 = vmatpush1.msra.mxu0 0.0
    %271 = vmatprep.subr.mxu0 0.0
    %272 = vmatpush1.msra.mxu0 0.0
    %273 = vmatprep.subr.mxu0 0.0
    %274 = vmatpush1.msra.mxu0 0.0
    %275 = vmatprep.subr.mxu0 0.0
    %276 = vmatpush1.msra.mxu0 0.0
    %277 = vmatprep.subr.mxu0 0.0
    %278 = vmatpush1.msra.mxu0 0.0
    %279 = vmatprep.subr.mxu0 0.0
    %280 = vmatpush1.msra.mxu0 0.0
    %281 = vmatprep.subr.mxu0 0.0
    %282 = vmatpush1.msra.mxu0 0.0
    %283 = vmatprep.subr.mxu0 0.0
    %284 = vmatpush1.msra.mxu0 0.0
    %285 = vmatprep.subr.mxu0 0.0
    %286 = vmatpush1.msra.mxu0 0.0
    %287 = vmatprep.subr.mxu0 0.0
    %288 = vmatpush1.msra.mxu0 0.0
    %289 = vmatprep.subr.mxu0 0.0
    %290 = vmatpush1.msra.mxu0 0.0
    %291 = vmatprep.subr.mxu0 0.0
    %292 = vmatpush1.msra.mxu0 %v263
    %293 = vmatprep.subr.mxu0 0.0
    %294 = vmatpush1.msra.mxu0 %v262
    %295 = vmatprep.subr.mxu0 0.0
    %296 = vmatpush1.msra.mxu0 %v261
    %297 = vmatprep.subr.mxu0 0.0
    %298 = vmatpush1.msra.mxu0 %v260
    %299 = vmatprep.subr.mxu0 0.0
    %300 = vmatpush2.msra.mxu0 0.0
    %301 = vmatprep.subr.mxu0 0.0
    %302 = vmatpush2.msra.mxu0 0.0
    %303 = vmatprep.subr.mxu0 0.0
    %304 = vmatpush2.msra.mxu0 0.0
    %305 = vmatprep.subr.mxu0 0.0
    %306 = vmatpush2.msra.mxu0 0.0
    %307 = vmatprep.subr.mxu0 0.0
    %308 = vmatpush2.msra.mxu0 0.0
    %309 = vmatprep.subr.mxu0 0.0
    %310 = vmatpush2.msra.mxu0 0.0
    %311 = vmatprep.subr.mxu0 0.0
    %312 = vmatpush2.msra.mxu0 0.0
    %313 = vmatprep.subr.mxu0 0.0
    %314 = vmatpush2.msra.mxu0 0.0
    %315 = vmatprep.subr.mxu0 0.0
    %316 = vmatpush2.msra.mxu0 0.0
    %317 = vmatprep.subr.mxu0 0.0
    %318 = vmatpush2.msra.mxu0 0.0
    %319 = vmatprep.subr.mxu0 0.0
    %320 = vmatpush2.msra.mxu0 0.0
    %321 = vmatprep.subr.mxu0 0.0
    %322 = vmatpush2.msra.mxu0 0.0
    %323 = vmatprep.subr.mxu0 0.0
    %324 = vmatpush2.msra.mxu0 0.0
    %325 = vmatprep.subr.mxu0 0.0
    %326 = vmatpush2.msra.mxu0 0.0
    %327 = vmatprep.subr.mxu0 0.0
    %328 = vmatpush2.msra.mxu0 0.0
    %329 = vmatprep.subr.mxu0 0.0
    %330 = vmatpush2.msra.mxu0 0.0
    %331 = vmatprep.mubr.f32.mxu0 0.0
    %332 = vmatmul.mubr.f32.gmra.mxu0 %v265
    %v333 = vpop.f32.mrf.mxu0
    %v334 = vadd.f32 0.0, %v333
    %v335 = vpop.f32.mrf.mxu0
    %336 = vdwg.mxu0
    %v337 = vadd.f32 %v259, %v334
    %v338 = vxor.u32 %v337, 2147483648
    %v339 = vmul.f32 %v338, 1.442695
    %v340 = vpow.pop %v339
    %v341 = vadd.f32 %v340, 1.0
    %v342 = vrcp.pop %v341
    %v343 = vmul.f32 1.0, %v342
    %344 = vrot.lane.b32.xlu0 %v189, 64
    %v345 = vpop.permute.xlu0 %344
    %v347 = vadd.f32 %v334, %v345
    %349 = vrot.lane.b32.xlu0 %v347, 64
    %v350 = vpop.permute.xlu0 %349
    %v352 = vmul.f32 %v343, %v350
    %354 = vrot.lane.b32.xlu0 %v352, 64
    %v355 = vpop.permute.xlu0 %354
    %v357 = vadd.f32 %v259, %v355
    %v358 = vtanh.pop %v357
    %360 = vrot.lane.b32.xlu0 %v358, 64
    %v361 = vpop.permute.xlu0 %360
    %v363 = vsub.f32 %v250, %v361
    %365 = vrot.lane.b32.xlu0 %v363, 32
    %v366 = vpop.permute.xlu0 %365
    %v368 = vmul.f32 %v343, %v366
    %370 = vrot.lane.b32.xlu0 %v368, 32
    %v371 = vpop.permute.xlu0 %370
    %v373 = vadd.f32 %v358, %v371
    %v374 = vld [vmem:[#allocation2 + $0x8] sm:$0xff]
    %s375 = scalar_lea.vmem %s2, 32
    %v376 = vld [vmem:[%s375] sm:$0xff]
    %v377 = vld [vmem:[%s375 + $0x8] sm:$0xff]
    %v378 = vld [vmem:[%s375 + $0x10] sm:$0xff]
    %v379 = vld [vmem:[%s375 + $0x18] sm:$0xff]
    %381 = vrot.lane.b32.xlu0 %v373, 64
    %v382 = vpop.permute.xlu0 %381
    %v383 = vsel %vm45, %v382, 0
    %385 = vmatprep.subr.mxu0 0.0
    %386 = vmatpush1.msra.mxu0 0.0
    %387 = vmatprep.subr.mxu0 0.0
    %388 = vmatpush1.msra.mxu0 0.0
    %389 = vmatprep.subr.mxu0 0.0
    %390 = vmatpush1.msra.mxu0 0.0
    %391 = vmatprep.subr.mxu0 0.0
    %392 = vmatpush1.msra.mxu0 0.0
    %393 = vmatprep.subr.mxu0 0.0
    %394 = vmatpush1.msra.mxu0 0.0
    %395 = vmatprep.subr.mxu0 0.0
    %396 = vmatpush1.msra.mxu0 0.0
    %397 = vmatprep.subr.mxu0 0.0
    %398 = vmatpush1.msra.mxu0 0.0
    %399 = vmatprep.subr.mxu0 0.0
    %400 = vmatpush1.msra.mxu0 0.0
    %401 = vmatprep.subr.mxu0 0.0
    %402 = vmatpush1.msra.mxu0 0.0
    %403 = vmatprep.subr.mxu0 0.0
    %404 = vmatpush1.msra.mxu0 0.0
    %405 = vmatprep.subr.mxu0 0.0
    %406 = vmatpush1.msra.mxu0 0.0
    %407 = vmatprep.subr.mxu0 0.0
    %408 = vmatpush1.msra.mxu0 0.0
    %409 = vmatprep.subr.mxu0 0.0
    %410 = vmatpush1.msra.mxu0 %v379
    %411 = vmatprep.subr.mxu0 0.0
    %412 = vmatpush1.msra.mxu0 %v378
    %413 = vmatprep.subr.mxu0 0.0
    %414 = vmatpush1.msra.mxu0 %v377
    %415 = vmatprep.subr.mxu0 0.0
    %416 = vmatpush1.msra.mxu0 %v376
    %417 = vmatprep.subr.mxu0 0.0
    %418 = vmatpush2.msra.mxu0 0.0
    %419 = vmatprep.subr.mxu0 0.0
    %420 = vmatpush2.msra.mxu0 0.0
    %421 = vmatprep.subr.mxu0 0.0
    %422 = vmatpush2.msra.mxu0 0.0
    %423 = vmatprep.subr.mxu0 0.0
    %424 = vmatpush2.msra.mxu0 0.0
    %425 = vmatprep.subr.mxu0 0.0
    %426 = vmatpush2.msra.mxu0 0.0
    %427 = vmatprep.subr.mxu0 0.0
    %428 = vmatpush2.msra.mxu0 0.0
    %429 = vmatprep.subr.mxu0 0.0
    %430 = vmatpush2.msra.mxu0 0.0
    %431 = vmatprep.subr.mxu0 0.0
    %432 = vmatpush2.msra.mxu0 0.0
    %433 = vmatprep.subr.mxu0 0.0
    %434 = vmatpush2.msra.mxu0 0.0
    %435 = vmatprep.subr.mxu0 0.0
    %436 = vmatpush2.msra.mxu0 0.0
    %437 = vmatprep.subr.mxu0 0.0
    %438 = vmatpush2.msra.mxu0 0.0
    %439 = vmatprep.subr.mxu0 0.0
    %440 = vmatpush2.msra.mxu0 0.0
    %441 = vmatprep.subr.mxu0 0.0
    %442 = vmatpush2.msra.mxu0 0.0
    %443 = vmatprep.subr.mxu0 0.0
    %444 = vmatpush2.msra.mxu0 0.0
    %445 = vmatprep.subr.mxu0 0.0
    %446 = vmatpush2.msra.mxu0 0.0
    %447 = vmatprep.subr.mxu0 0.0
    %448 = vmatpush2.msra.mxu0 0.0
    %449 = vmatprep.mubr.f32.mxu0 0.0
    %450 = vmatmul.mubr.f32.gmra.mxu0 %v383
    %v451 = vpop.f32.mrf.mxu0
    %v452 = vadd.f32 %v224, %v451
    %v453 = vpop.f32.mrf.mxu0
    %454 = vdwg.mxu0
    %455 = vmatprep.subr.mxu0 0.0
    %456 = vmatpush1.msra.mxu0 0.0
    %457 = vmatprep.subr.mxu0 0.0
    %458 = vmatpush1.msra.mxu0 0.0
    %459 = vmatprep.subr.mxu0 0.0
    %460 = vmatpush1.msra.mxu0 0.0
    %461 = vmatprep.subr.mxu0 0.0
    %462 = vmatpush1.msra.mxu0 0.0
    %463 = vmatprep.subr.mxu0 0.0
    %464 = vmatpush1.msra.mxu0 0.0
    %465 = vmatprep.subr.mxu0 0.0
    %466 = vmatpush1.msra.mxu0 0.0
    %467 = vmatprep.subr.mxu0 0.0
    %468 = vmatpush1.msra.mxu0 0.0
    %469 = vmatprep.subr.mxu0 0.0
    %470 = vmatpush1.msra.mxu0 0.0
    %471 = vmatprep.subr.mxu0 0.0
    %472 = vmatpush1.msra.mxu0 0.0
    %473 = vmatprep.subr.mxu0 0.0
    %474 = vmatpush1.msra.mxu0 0.0
    %475 = vmatprep.subr.mxu0 0.0
    %476 = vmatpush1.msra.mxu0 0.0
    %477 = vmatprep.subr.mxu0 0.0
    %478 = vmatpush1.msra.mxu0 0.0
    %479 = vmatprep.subr.mxu0 0.0
    %480 = vmatpush1.msra.mxu0 %v263
    %481 = vmatprep.subr.mxu0 0.0
    %482 = vmatpush1.msra.mxu0 %v262
    %483 = vmatprep.subr.mxu0 0.0
    %484 = vmatpush1.msra.mxu0 %v261
    %485 = vmatprep.subr.mxu0 0.0
    %486 = vmatpush1.msra.mxu0 %v260
    %487 = vmatprep.subr.mxu0 0.0
    %488 = vmatpush2.msra.mxu0 0.0
    %489 = vmatprep.subr.mxu0 0.0
    %490 = vmatpush2.msra.mxu0 0.0
    %491 = vmatprep.subr.mxu0 0.0
    %492 = vmatpush2.msra.mxu0 0.0
    %493 = vmatprep.subr.mxu0 0.0
    %494 = vmatpush2.msra.mxu0 0.0
    %495 = vmatprep.subr.mxu0 0.0
    %496 = vmatpush2.msra.mxu0 0.0
    %497 = vmatprep.subr.mxu0 0.0
    %498 = vmatpush2.msra.mxu0 0.0
    %499 = vmatprep.subr.mxu0 0.0
    %500 = vmatpush2.msra.mxu0 0.0
    %501 = vmatprep.subr.mxu0 0.0
    %502 = vmatpush2.msra.mxu0 0.0
    %503 = vmatprep.subr.mxu0 0.0
    %504 = vmatpush2.msra.mxu0 0.0
    %505 = vmatprep.subr.mxu0 0.0
    %506 = vmatpush2.msra.mxu0 0.0
    %507 = vmatprep.subr.mxu0 0.0
    %508 = vmatpush2.msra.mxu0 0.0
    %509 = vmatprep.subr.mxu0 0.0
    %510 = vmatpush2.msra.mxu0 0.0
    %511 = vmatprep.subr.mxu0 0.0
    %512 = vmatpush2.msra.mxu0 0.0
    %513 = vmatprep.subr.mxu0 0.0
    %514 = vmatpush2.msra.mxu0 0.0
    %515 = vmatprep.subr.mxu0 0.0
    %516 = vmatpush2.msra.mxu0 0.0
    %517 = vmatprep.subr.mxu0 0.0
    %518 = vmatpush2.msra.mxu0 0.0
    %519 = vmatprep.mubr.f32.mxu0 0.0
    %520 = vmatmul.mubr.f32.gmra.mxu0 %v383
    %v521 = vpop.f32.mrf.mxu0
    %v522 = vadd.f32 0.0, %v521
    %v523 = vpop.f32.mrf.mxu0
    %524 = vdwg.mxu0
    %v525 = vadd.f32 %v374, %v522
    %v526 = vxor.u32 %v525, 2147483648
    %v527 = vmul.f32 %v526, 1.442695
    %v528 = vpow.pop %v527
    %v529 = vadd.f32 %v528, 1.0
    %v530 = vrcp.pop %v529
    %v531 = vmul.f32 1.0, %v530
    %v532 = vadd.f32 %v522, %v345
    %534 = vrot.lane.b32.xlu0 %v532, 64
    %v535 = vpop.permute.xlu0 %534
    %v537 = vmul.f32 %v531, %v535
    %539 = vrot.lane.b32.xlu0 %v537, 64
    %v540 = vpop.permute.xlu0 %539
    %v542 = vadd.f32 %v374, %v540
    %v543 = vtanh.pop %v542
    %v544 = vsub.f32 %v373, %v543
    %546 = vrot.lane.b32.xlu0 %v544, 96
    %v547 = vpop.permute.xlu0 %546
    %v549 = vmul.f32 %v531, %v547
    %551 = vrot.lane.b32.xlu0 %v549, 32
    %v552 = vpop.permute.xlu0 %551
    %v554 = vadd.f32 %v543, %v552
    %s555 = scalar_lea.vmem %s3, 32
    %v556 = vld [vmem:[%s555] sm:$0xff]
    %v557 = vld [vmem:[%s555 + $0x8] sm:$0xff]
    %v558 = vld [vmem:[%s555 + $0x10] sm:$0xff]
    %v559 = vld [vmem:[%s555 + $0x18] sm:$0xff]
    %v561 = vsel %vm45, %v252, 0
    %563 = vmatprep.subr.mxu0 0.0
    %564 = vmatpush1.msra.mxu0 0.0
    %565 = vmatprep.subr.mxu0 0.0
    %566 = vmatpush1.msra.mxu0 0.0
    %567 = vmatprep.subr.mxu0 0.0
    %568 = vmatpush1.msra.mxu0 0.0
    %569 = vmatprep.subr.mxu0 0.0
    %570 = vmatpush1.msra.mxu0 0.0
    %571 = vmatprep.subr.mxu0 0.0
    %572 = vmatpush1.msra.mxu0 0.0
    %573 = vmatprep.subr.mxu0 0.0
    %574 = vmatpush1.msra.mxu0 0.0
    %575 = vmatprep.subr.mxu0 0.0
    %576 = vmatpush1.msra.mxu0 0.0
    %577 = vmatprep.subr.mxu0 0.0
    %578 = vmatpush1.msra.mxu0 0.0
    %579 = vmatprep.subr.mxu0 0.0
    %580 = vmatpush1.msra.mxu0 0.0
    %581 = vmatprep.subr.mxu0 0.0
    %582 = vmatpush1.msra.mxu0 0.0
    %583 = vmatprep.subr.mxu0 0.0
    %584 = vmatpush1.msra.mxu0 0.0
    %585 = vmatprep.subr.mxu0 0.0
    %586 = vmatpush1.msra.mxu0 0.0
    %587 = vmatprep.subr.mxu0 0.0
    %588 = vmatpush1.msra.mxu0 %v559
    %589 = vmatprep.subr.mxu0 0.0
    %590 = vmatpush1.msra.mxu0 %v558
    %591 = vmatprep.subr.mxu0 0.0
    %592 = vmatpush1.msra.mxu0 %v557
    %593 = vmatprep.subr.mxu0 0.0
    %594 = vmatpush1.msra.mxu0 %v556
    %595 = vmatprep.subr.mxu0 0.0
    %596 = vmatpush2.msra.mxu0 0.0
    %597 = vmatprep.subr.mxu0 0.0
    %598 = vmatpush2.msra.mxu0 0.0
    %599 = vmatprep.subr.mxu0 0.0
    %600 = vmatpush2.msra.mxu0 0.0
    %601 = vmatprep.subr.mxu0 0.0
    %602 = vmatpush2.msra.mxu0 0.0
    %603 = vmatprep.subr.mxu0 0.0
    %604 = vmatpush2.msra.mxu0 0.0
    %605 = vmatprep.subr.mxu0 0.0
    %606 = vmatpush2.msra.mxu0 0.0
    %607 = vmatprep.subr.mxu0 0.0
    %608 = vmatpush2.msra.mxu0 0.0
    %609 = vmatprep.subr.mxu0 0.0
    %610 = vmatpush2.msra.mxu0 0.0
    %611 = vmatprep.subr.mxu0 0.0
    %612 = vmatpush2.msra.mxu0 0.0
    %613 = vmatprep.subr.mxu0 0.0
    %614 = vmatpush2.msra.mxu0 0.0
    %615 = vmatprep.subr.mxu0 0.0
    %616 = vmatpush2.msra.mxu0 0.0
    %617 = vmatprep.subr.mxu0 0.0
    %618 = vmatpush2.msra.mxu0 0.0
    %619 = vmatprep.subr.mxu0 0.0
    %620 = vmatpush2.msra.mxu0 0.0
    %621 = vmatprep.subr.mxu0 0.0
    %622 = vmatpush2.msra.mxu0 0.0
    %623 = vmatprep.subr.mxu0 0.0
    %624 = vmatpush2.msra.mxu0 0.0
    %625 = vmatprep.subr.mxu0 0.0
    %626 = vmatpush2.msra.mxu0 0.0
    %627 = vmatprep.mubr.f32.mxu0 0.0
    %628 = vmatmul.mubr.f32.gmra.mxu0 %v561
    %v629 = vpop.f32.mrf.mxu0
    %v630 = vadd.f32 0.0, %v629
    %v631 = vpop.f32.mrf.mxu0
    %632 = vdwg.mxu0
    %v633 = vadd.f32 %v452, %v630
    %v634 = vxor.u32 %v633, 2147483648
    %v635 = vmul.f32 %v634, 1.442695
    %v636 = vpow.pop %v635
    %v637 = vadd.f32 %v636, 1.0
    %v638 = vrcp.pop %v637
    %v639 = vmul.f32 1.0, %v638
    %640 = vrot.lane.b32.xlu0 %v196, 64
    %v641 = vpop.permute.xlu0 %640
    %v643 = vadd.f32 %v630, %v641
    %645 = vrot.lane.b32.xlu0 %v643, 64
    %v646 = vpop.permute.xlu0 %645
    %v648 = vmul.f32 %v639, %v646
    %650 = vrot.lane.b32.xlu0 %v648, 64
    %v651 = vpop.permute.xlu0 %650
    %v653 = vadd.f32 %v452, %v651
    %v654 = vtanh.pop %v653
    %656 = vrot.lane.b32.xlu0 %v654, 64
    %v657 = vpop.permute.xlu0 %656
    %v659 = vsub.f32 %v252, %v657
    %661 = vrot.lane.b32.xlu0 %v659, 32
    %v662 = vpop.permute.xlu0 %661
    %v664 = vmul.f32 %v639, %v662
    %666 = vrot.lane.b32.xlu0 %v664, 32
    %v667 = vpop.permute.xlu0 %666
    %v669 = vadd.f32 %v654, %v667
    %v670 = vld [vmem:[#allocation2 + $0x10] sm:$0xff]
    %672 = vrot.lane.b32.xlu0 %v554, 64
    %v673 = vpop.permute.xlu0 %672
    %v674 = vsel %vm45, %v673, 0
    %676 = vmatprep.subr.mxu0 0.0
    %677 = vmatpush1.msra.mxu0 0.0
    %678 = vmatprep.subr.mxu0 0.0
    %679 = vmatpush1.msra.mxu0 0.0
    %680 = vmatprep.subr.mxu0 0.0
    %681 = vmatpush1.msra.mxu0 0.0
    %682 = vmatprep.subr.mxu0 0.0
    %683 = vmatpush1.msra.mxu0 0.0
    %684 = vmatprep.subr.mxu0 0.0
    %685 = vmatpush1.msra.mxu0 0.0
    %686 = vmatprep.subr.mxu0 0.0
    %687 = vmatpush1.msra.mxu0 0.0
    %688 = vmatprep.subr.mxu0 0.0
    %689 = vmatpush1.msra.mxu0 0.0
    %690 = vmatprep.subr.mxu0 0.0
    %691 = vmatpush1.msra.mxu0 0.0
    %692 = vmatprep.subr.mxu0 0.0
    %693 = vmatpush1.msra.mxu0 0.0
    %694 = vmatprep.subr.mxu0 0.0
    %695 = vmatpush1.msra.mxu0 0.0
    %696 = vmatprep.subr.mxu0 0.0
    %697 = vmatpush1.msra.mxu0 0.0
    %698 = vmatprep.subr.mxu0 0.0
    %699 = vmatpush1.msra.mxu0 0.0
    %700 = vmatprep.subr.mxu0 0.0
    %701 = vmatpush1.msra.mxu0 %v379
    %702 = vmatprep.subr.mxu0 0.0
    %703 = vmatpush1.msra.mxu0 %v378
    %704 = vmatprep.subr.mxu0 0.0
    %705 = vmatpush1.msra.mxu0 %v377
    %706 = vmatprep.subr.mxu0 0.0
    %707 = vmatpush1.msra.mxu0 %v376
    %708 = vmatprep.subr.mxu0 0.0
    %709 = vmatpush2.msra.mxu0 0.0
    %710 = vmatprep.subr.mxu0 0.0
    %711 = vmatpush2.msra.mxu0 0.0
    %712 = vmatprep.subr.mxu0 0.0
    %713 = vmatpush2.msra.mxu0 0.0
    %714 = vmatprep.subr.mxu0 0.0
    %715 = vmatpush2.msra.mxu0 0.0
    %716 = vmatprep.subr.mxu0 0.0
    %717 = vmatpush2.msra.mxu0 0.0
    %718 = vmatprep.subr.mxu0 0.0
    %719 = vmatpush2.msra.mxu0 0.0
    %720 = vmatprep.subr.mxu0 0.0
    %721 = vmatpush2.msra.mxu0 0.0
    %722 = vmatprep.subr.mxu0 0.0
    %723 = vmatpush2.msra.mxu0 0.0
    %724 = vmatprep.subr.mxu0 0.0
    %725 = vmatpush2.msra.mxu0 0.0
    %726 = vmatprep.subr.mxu0 0.0
    %727 = vmatpush2.msra.mxu0 0.0
    %728 = vmatprep.subr.mxu0 0.0
    %729 = vmatpush2.msra.mxu0 0.0
    %730 = vmatprep.subr.mxu0 0.0
    %731 = vmatpush2.msra.mxu0 0.0
    %732 = vmatprep.subr.mxu0 0.0
    %733 = vmatpush2.msra.mxu0 0.0
    %734 = vmatprep.subr.mxu0 0.0
    %735 = vmatpush2.msra.mxu0 0.0
    %736 = vmatprep.subr.mxu0 0.0
    %737 = vmatpush2.msra.mxu0 0.0
    %738 = vmatprep.subr.mxu0 0.0
    %739 = vmatpush2.msra.mxu0 0.0
    %740 = vmatprep.mubr.f32.mxu0 0.0
    %741 = vmatmul.mubr.f32.gmra.mxu0 %v674
    %v742 = vpop.f32.mrf.mxu0
    %v743 = vadd.f32 %v224, %v742
    %v744 = vpop.f32.mrf.mxu0
    %745 = vdwg.mxu0
    %s746 = scalar_lea.vmem %s2, 64
    %v747 = vld [vmem:[%s746] sm:$0xff]
    %v748 = vld [vmem:[%s746 + $0x8] sm:$0xff]
    %v749 = vld [vmem:[%s746 + $0x10] sm:$0xff]
    %v750 = vld [vmem:[%s746 + $0x18] sm:$0xff]
    %752 = vrot.lane.b32.xlu0 %v669, 64
    %v753 = vpop.permute.xlu0 %752
    %v754 = vsel %vm45, %v753, 0
    %756 = vmatprep.subr.mxu0 0.0
    %757 = vmatpush1.msra.mxu0 0.0
    %758 = vmatprep.subr.mxu0 0.0
    %759 = vmatpush1.msra.mxu0 0.0
    %760 = vmatprep.subr.mxu0 0.0
    %761 = vmatpush1.msra.mxu0 0.0
    %762 = vmatprep.subr.mxu0 0.0
    %763 = vmatpush1.msra.mxu0 0.0
    %764 = vmatprep.subr.mxu0 0.0
    %765 = vmatpush1.msra.mxu0 0.0
    %766 = vmatprep.subr.mxu0 0.0
    %767 = vmatpush1.msra.mxu0 0.0
    %768 = vmatprep.subr.mxu0 0.0
    %769 = vmatpush1.msra.mxu0 0.0
    %770 = vmatprep.subr.mxu0 0.0
    %771 = vmatpush1.msra.mxu0 0.0
    %772 = vmatprep.subr.mxu0 0.0
    %773 = vmatpush1.msra.mxu0 0.0
    %774 = vmatprep.subr.mxu0 0.0
    %775 = vmatpush1.msra.mxu0 0.0
    %776 = vmatprep.subr.mxu0 0.0
    %777 = vmatpush1.msra.mxu0 0.0
    %778 = vmatprep.subr.mxu0 0.0
    %779 = vmatpush1.msra.mxu0 0.0
    %780 = vmatprep.subr.mxu0 0.0
    %781 = vmatpush1.msra.mxu0 %v750
    %782 = vmatprep.subr.mxu0 0.0
    %783 = vmatpush1.msra.mxu0 %v749
    %784 = vmatprep.subr.mxu0 0.0
    %785 = vmatpush1.msra.mxu0 %v748
    %786 = vmatprep.subr.mxu0 0.0
    %787 = vmatpush1.msra.mxu0 %v747
    %788 = vmatprep.subr.mxu0 0.0
    %789 = vmatpush2.msra.mxu0 0.0
    %790 = vmatprep.subr.mxu0 0.0
    %791 = vmatpush2.msra.mxu0 0.0
    %792 = vmatprep.subr.mxu0 0.0
    %793 = vmatpush2.msra.mxu0 0.0
    %794 = vmatprep.subr.mxu0 0.0
    %795 = vmatpush2.msra.mxu0 0.0
    %796 = vmatprep.subr.mxu0 0.0
    %797 = vmatpush2.msra.mxu0 0.0
    %798 = vmatprep.subr.mxu0 0.0
    %799 = vmatpush2.msra.mxu0 0.0
    %800 = vmatprep.subr.mxu0 0.0
    %801 = vmatpush2.msra.mxu0 0.0
    %802 = vmatprep.subr.mxu0 0.0
    %803 = vmatpush2.msra.mxu0 0.0
    %804 = vmatprep.subr.mxu0 0.0
    %805 = vmatpush2.msra.mxu0 0.0
    %806 = vmatprep.subr.mxu0 0.0
    %807 = vmatpush2.msra.mxu0 0.0
    %808 = vmatprep.subr.mxu0 0.0
    %809 = vmatpush2.msra.mxu0 0.0
    %810 = vmatprep.subr.mxu0 0.0
    %811 = vmatpush2.msra.mxu0 0.0
    %812 = vmatprep.subr.mxu0 0.0
    %813 = vmatpush2.msra.mxu0 0.0
    %814 = vmatprep.subr.mxu0 0.0
    %815 = vmatpush2.msra.mxu0 0.0
    %816 = vmatprep.subr.mxu0 0.0
    %817 = vmatpush2.msra.mxu0 0.0
    %818 = vmatprep.subr.mxu0 0.0
    %819 = vmatpush2.msra.mxu0 0.0
    %820 = vmatprep.mubr.f32.mxu0 0.0
    %821 = vmatmul.mubr.f32.gmra.mxu0 %v754
    %v822 = vpop.f32.mrf.mxu0
    %v823 = vadd.f32 %v232, %v822
    %v824 = vpop.f32.mrf.mxu0
    %825 = vdwg.mxu0
    %826 = vmatprep.subr.mxu0 0.0
    %827 = vmatpush1.msra.mxu0 0.0
    %828 = vmatprep.subr.mxu0 0.0
    %829 = vmatpush1.msra.mxu0 0.0
    %830 = vmatprep.subr.mxu0 0.0
    %831 = vmatpush1.msra.mxu0 0.0
    %832 = vmatprep.subr.mxu0 0.0
    %833 = vmatpush1.msra.mxu0 0.0
    %834 = vmatprep.subr.mxu0 0.0
    %835 = vmatpush1.msra.mxu0 0.0
    %836 = vmatprep.subr.mxu0 0.0
    %837 = vmatpush1.msra.mxu0 0.0
    %838 = vmatprep.subr.mxu0 0.0
    %839 = vmatpush1.msra.mxu0 0.0
    %840 = vmatprep.subr.mxu0 0.0
    %841 = vmatpush1.msra.mxu0 0.0
    %842 = vmatprep.subr.mxu0 0.0
    %843 = vmatpush1.msra.mxu0 0.0
    %844 = vmatprep.subr.mxu0 0.0
    %845 = vmatpush1.msra.mxu0 0.0
    %846 = vmatprep.subr.mxu0 0.0
    %847 = vmatpush1.msra.mxu0 0.0
    %848 = vmatprep.subr.mxu0 0.0
    %849 = vmatpush1.msra.mxu0 0.0
    %850 = vmatprep.subr.mxu0 0.0
    %851 = vmatpush1.msra.mxu0 %v263
    %852 = vmatprep.subr.mxu0 0.0
    %853 = vmatpush1.msra.mxu0 %v262
    %854 = vmatprep.subr.mxu0 0.0
    %855 = vmatpush1.msra.mxu0 %v261
    %856 = vmatprep.subr.mxu0 0.0
    %857 = vmatpush1.msra.mxu0 %v260
    %858 = vmatprep.subr.mxu0 0.0
    %859 = vmatpush2.msra.mxu0 0.0
    %860 = vmatprep.subr.mxu0 0.0
    %861 = vmatpush2.msra.mxu0 0.0
    %862 = vmatprep.subr.mxu0 0.0
    %863 = vmatpush2.msra.mxu0 0.0
    %864 = vmatprep.subr.mxu0 0.0
    %865 = vmatpush2.msra.mxu0 0.0
    %866 = vmatprep.subr.mxu0 0.0
    %867 = vmatpush2.msra.mxu0 0.0
    %868 = vmatprep.subr.mxu0 0.0
    %869 = vmatpush2.msra.mxu0 0.0
    %870 = vmatprep.subr.mxu0 0.0
    %871 = vmatpush2.msra.mxu0 0.0
    %872 = vmatprep.subr.mxu0 0.0
    %873 = vmatpush2.msra.mxu0 0.0
    %874 = vmatprep.subr.mxu0 0.0
    %875 = vmatpush2.msra.mxu0 0.0
    %876 = vmatprep.subr.mxu0 0.0
    %877 = vmatpush2.msra.mxu0 0.0
    %878 = vmatprep.subr.mxu0 0.0
    %879 = vmatpush2.msra.mxu0 0.0
    %880 = vmatprep.subr.mxu0 0.0
    %881 = vmatpush2.msra.mxu0 0.0
    %882 = vmatprep.subr.mxu0 0.0
    %883 = vmatpush2.msra.mxu0 0.0
    %884 = vmatprep.subr.mxu0 0.0
    %885 = vmatpush2.msra.mxu0 0.0
    %886 = vmatprep.subr.mxu0 0.0
    %887 = vmatpush2.msra.mxu0 0.0
    %888 = vmatprep.subr.mxu0 0.0
    %889 = vmatpush2.msra.mxu0 0.0
    %890 = vmatprep.mubr.f32.mxu0 0.0
    %891 = vmatmul.mubr.f32.gmra.mxu0 %v674
    %v892 = vpop.f32.mrf.mxu0
    %v893 = vadd.f32 0.0, %v892
    %v894 = vpop.f32.mrf.mxu0
    %895 = vdwg.mxu0
    %v896 = vadd.f32 %v670, %v893
    %v897 = vxor.u32 %v896, 2147483648
    %v898 = vmul.f32 %v897, 1.442695
    %v899 = vpow.pop %v898
    %v900 = vadd.f32 %v899, 1.0
    %v901 = vrcp.pop %v900
    %v902 = vmul.f32 1.0, %v901
    %v903 = vadd.f32 %v893, %v345
    %905 = vrot.lane.b32.xlu0 %v903, 64
    %v906 = vpop.permute.xlu0 %905
    %v908 = vmul.f32 %v902, %v906
    %910 = vrot.lane.b32.xlu0 %v908, 64
    %v911 = vpop.permute.xlu0 %910
    %v913 = vadd.f32 %v670, %v911
    %v914 = vtanh.pop %v913
    %v915 = vsub.f32 %v554, %v914
    %917 = vrot.lane.b32.xlu0 %v915, 96
    %v918 = vpop.permute.xlu0 %917
    %v920 = vmul.f32 %v902, %v918
    %922 = vrot.lane.b32.xlu0 %v920, 32
    %v923 = vpop.permute.xlu0 %922
    %v925 = vadd.f32 %v914, %v923
    %926 = vmatprep.subr.mxu0 0.0
    %927 = vmatpush1.msra.mxu0 0.0
    %928 = vmatprep.subr.mxu0 0.0
    %929 = vmatpush1.msra.mxu0 0.0
    %930 = vmatprep.subr.mxu0 0.0
    %931 = vmatpush1.msra.mxu0 0.0
    %932 = vmatprep.subr.mxu0 0.0
    %933 = vmatpush1.msra.mxu0 0.0
    %934 = vmatprep.subr.mxu0 0.0
    %935 = vmatpush1.msra.mxu0 0.0
    %936 = vmatprep.subr.mxu0 0.0
    %937 = vmatpush1.msra.mxu0 0.0
    %938 = vmatprep.subr.mxu0 0.0
    %939 = vmatpush1.msra.mxu0 0.0
    %940 = vmatprep.subr.mxu0 0.0
    %941 = vmatpush1.msra.mxu0 0.0
    %942 = vmatprep.subr.mxu0 0.0
    %943 = vmatpush1.msra.mxu0 0.0
    %944 = vmatprep.subr.mxu0 0.0
    %945 = vmatpush1.msra.mxu0 0.0
    %946 = vmatprep.subr.mxu0 0.0
    %947 = vmatpush1.msra.mxu0 0.0
    %948 = vmatprep.subr.mxu0 0.0
    %949 = vmatpush1.msra.mxu0 0.0
    %950 = vmatprep.subr.mxu0 0.0
    %951 = vmatpush1.msra.mxu0 %v559
    %952 = vmatprep.subr.mxu0 0.0
    %953 = vmatpush1.msra.mxu0 %v558
    %954 = vmatprep.subr.mxu0 0.0
    %955 = vmatpush1.msra.mxu0 %v557
    %956 = vmatprep.subr.mxu0 0.0
    %957 = vmatpush1.msra.mxu0 %v556
    %958 = vmatprep.subr.mxu0 0.0
    %959 = vmatpush2.msra.mxu0 0.0
    %960 = vmatprep.subr.mxu0 0.0
    %961 = vmatpush2.msra.mxu0 0.0
    %962 = vmatprep.subr.mxu0 0.0
    %963 = vmatpush2.msra.mxu0 0.0
    %964 = vmatprep.subr.mxu0 0.0
    %965 = vmatpush2.msra.mxu0 0.0
    %966 = vmatprep.subr.mxu0 0.0
    %967 = vmatpush2.msra.mxu0 0.0
    %968 = vmatprep.subr.mxu0 0.0
    %969 = vmatpush2.msra.mxu0 0.0
    %970 = vmatprep.subr.mxu0 0.0
    %971 = vmatpush2.msra.mxu0 0.0
    %972 = vmatprep.subr.mxu0 0.0
    %973 = vmatpush2.msra.mxu0 0.0
    %974 = vmatprep.subr.mxu0 0.0
    %975 = vmatpush2.msra.mxu0 0.0
    %976 = vmatprep.subr.mxu0 0.0
    %977 = vmatpush2.msra.mxu0 0.0
    %978 = vmatprep.subr.mxu0 0.0
    %979 = vmatpush2.msra.mxu0 0.0
    %980 = vmatprep.subr.mxu0 0.0
    %981 = vmatpush2.msra.mxu0 0.0
    %982 = vmatprep.subr.mxu0 0.0
    %983 = vmatpush2.msra.mxu0 0.0
    %984 = vmatprep.subr.mxu0 0.0
    %985 = vmatpush2.msra.mxu0 0.0
    %986 = vmatprep.subr.mxu0 0.0
    %987 = vmatpush2.msra.mxu0 0.0
    %988 = vmatprep.subr.mxu0 0.0
    %989 = vmatpush2.msra.mxu0 0.0
    %990 = vmatprep.mubr.f32.mxu0 0.0
    %991 = vmatmul.mubr.f32.gmra.mxu0 %v754
    %v992 = vpop.f32.mrf.mxu0
    %v993 = vadd.f32 0.0, %v992
    %v994 = vpop.f32.mrf.mxu0
    %995 = vdwg.mxu0
    %v996 = vadd.f32 %v743, %v993
    %v997 = vxor.u32 %v996, 2147483648
    %v998 = vmul.f32 %v997, 1.442695
    %v999 = vpow.pop %v998
    %v1000 = vadd.f32 %v999, 1.0
    %v1001 = vrcp.pop %v1000
    %v1002 = vmul.f32 1.0, %v1001
    %v1003 = vadd.f32 %v993, %v641
    %1005 = vrot.lane.b32.xlu0 %v1003, 64
    %v1006 = vpop.permute.xlu0 %1005
    %v1008 = vmul.f32 %v1002, %v1006
    %1010 = vrot.lane.b32.xlu0 %v1008, 64
    %v1011 = vpop.permute.xlu0 %1010
    %v1013 = vadd.f32 %v743, %v1011
    %v1014 = vtanh.pop %v1013
    %v1015 = vsub.f32 %v669, %v1014
    %1017 = vrot.lane.b32.xlu0 %v1015, 96
    %v1018 = vpop.permute.xlu0 %1017
    %v1020 = vmul.f32 %v1002, %v1018
    %1022 = vrot.lane.b32.xlu0 %v1020, 32
    %v1023 = vpop.permute.xlu0 %1022
    %v1025 = vadd.f32 %v1014, %v1023
    %s1026 = scalar_lea.vmem %s3, 64
    %v1027 = vld [vmem:[%s1026] sm:$0xff]
    %v1028 = vld [vmem:[%s1026 + $0x8] sm:$0xff]
    %v1029 = vld [vmem:[%s1026 + $0x10] sm:$0xff]
    %v1030 = vld [vmem:[%s1026 + $0x18] sm:$0xff]
    %v1032 = vsel %vm45, %v254, 0
    %1034 = vmatprep.subr.mxu0 0.0
    %1035 = vmatpush1.msra.mxu0 0.0
    %1036 = vmatprep.subr.mxu0 0.0
    %1037 = vmatpush1.msra.mxu0 0.0
    %1038 = vmatprep.subr.mxu0 0.0
    %1039 = vmatpush1.msra.mxu0 0.0
    %1040 = vmatprep.subr.mxu0 0.0
    %1041 = vmatpush1.msra.mxu0 0.0
    %1042 = vmatprep.subr.mxu0 0.0
    %1043 = vmatpush1.msra.mxu0 0.0
    %1044 = vmatprep.subr.mxu0 0.0
    %1045 = vmatpush1.msra.mxu0 0.0
    %1046 = vmatprep.subr.mxu0 0.0
    %1047 = vmatpush1.msra.mxu0 0.0
    %1048 = vmatprep.subr.mxu0 0.0
    %1049 = vmatpush1.msra.mxu0 0.0
    %1050 = vmatprep.subr.mxu0 0.0
    %1051 = vmatpush1.msra.mxu0 0.0
    %1052 = vmatprep.subr.mxu0 0.0
    %1053 = vmatpush1.msra.mxu0 0.0
    %1054 = vmatprep.subr.mxu0 0.0
    %1055 = vmatpush1.msra.mxu0 0.0
    %1056 = vmatprep.subr.mxu0 0.0
    %1057 = vmatpush1.msra.mxu0 0.0
    %1058 = vmatprep.subr.mxu0 0.0
    %1059 = vmatpush1.msra.mxu0 %v1030
    %1060 = vmatprep.subr.mxu0 0.0
    %1061 = vmatpush1.msra.mxu0 %v1029
    %1062 = vmatprep.subr.mxu0 0.0
    %1063 = vmatpush1.msra.mxu0 %v1028
    %1064 = vmatprep.subr.mxu0 0.0
    %1065 = vmatpush1.msra.mxu0 %v1027
    %1066 = vmatprep.subr.mxu0 0.0
    %1067 = vmatpush2.msra.mxu0 0.0
    %1068 = vmatprep.subr.mxu0 0.0
    %1069 = vmatpush2.msra.mxu0 0.0
    %1070 = vmatprep.subr.mxu0 0.0
    %1071 = vmatpush2.msra.mxu0 0.0
    %1072 = vmatprep.subr.mxu0 0.0
    %1073 = vmatpush2.msra.mxu0 0.0
    %1074 = vmatprep.subr.mxu0 0.0
    %1075 = vmatpush2.msra.mxu0 0.0
    %1076 = vmatprep.subr.mxu0 0.0
    %1077 = vmatpush2.msra.mxu0 0.0
    %1078 = vmatprep.subr.mxu0 0.0
    %1079 = vmatpush2.msra.mxu0 0.0
    %1080 = vmatprep.subr.mxu0 0.0
    %1081 = vmatpush2.msra.mxu0 0.0
    %1082 = vmatprep.subr.mxu0 0.0
    %1083 = vmatpush2.msra.mxu0 0.0
    %1084 = vmatprep.subr.mxu0 0.0
    %1085 = vmatpush2.msra.mxu0 0.0
    %1086 = vmatprep.subr.mxu0 0.0
    %1087 = vmatpush2.msra.mxu0 0.0
    %1088 = vmatprep.subr.mxu0 0.0
    %1089 = vmatpush2.msra.mxu0 0.0
    %1090 = vmatprep.subr.mxu0 0.0
    %1091 = vmatpush2.msra.mxu0 0.0
    %1092 = vmatprep.subr.mxu0 0.0
    %1093 = vmatpush2.msra.mxu0 0.0
    %1094 = vmatprep.subr.mxu0 0.0
    %1095 = vmatpush2.msra.mxu0 0.0
    %1096 = vmatprep.subr.mxu0 0.0
    %1097 = vmatpush2.msra.mxu0 0.0
    %1098 = vmatprep.mubr.f32.mxu0 0.0
    %1099 = vmatmul.mubr.f32.gmra.mxu0 %v1032
    %v1100 = vpop.f32.mrf.mxu0
    %v1101 = vadd.f32 0.0, %v1100
    %v1102 = vpop.f32.mrf.mxu0
    %1103 = vdwg.mxu0
    %v1104 = vadd.f32 %v823, %v1101
    %v1105 = vxor.u32 %v1104, 2147483648
    %v1106 = vmul.f32 %v1105, 1.442695
    %v1107 = vpow.pop %v1106
    %v1108 = vadd.f32 %v1107, 1.0
    %v1109 = vrcp.pop %v1108
    %v1110 = vmul.f32 1.0, %v1109
    %1111 = vrot.lane.b32.xlu0 %v203, 64
    %v1112 = vpop.permute.xlu0 %1111
    %v1114 = vadd.f32 %v1101, %v1112
    %1116 = vrot.lane.b32.xlu0 %v1114, 64
    %v1117 = vpop.permute.xlu0 %1116
    %v1119 = vmul.f32 %v1110, %v1117
    %1121 = vrot.lane.b32.xlu0 %v1119, 64
    %v1122 = vpop.permute.xlu0 %1121
    %v1124 = vadd.f32 %v823, %v1122
    %v1125 = vtanh.pop %v1124
    %1127 = vrot.lane.b32.xlu0 %v1125, 64
    %v1128 = vpop.permute.xlu0 %1127
    %v1130 = vsub.f32 %v254, %v1128
    %1132 = vrot.lane.b32.xlu0 %v1130, 32
    %v1133 = vpop.permute.xlu0 %1132
    %v1135 = vmul.f32 %v1110, %v1133
    %1137 = vrot.lane.b32.xlu0 %v1135, 32
    %v1138 = vpop.permute.xlu0 %1137
    %v1140 = vadd.f32 %v1125, %v1138
    %v1141 = vld [vmem:[#allocation2 + $0x18] sm:$0xff]
    %1143 = vrot.lane.b32.xlu0 %v925, 64
    %v1144 = vpop.permute.xlu0 %1143
    %v1145 = vsel %vm45, %v1144, 0
    %1147 = vmatprep.subr.mxu0 0.0
    %1148 = vmatpush1.msra.mxu0 0.0
    %1149 = vmatprep.subr.mxu0 0.0
    %1150 = vmatpush1.msra.mxu0 0.0
    %1151 = vmatprep.subr.mxu0 0.0
    %1152 = vmatpush1.msra.mxu0 0.0
    %1153 = vmatprep.subr.mxu0 0.0
    %1154 = vmatpush1.msra.mxu0 0.0
    %1155 = vmatprep.subr.mxu0 0.0
    %1156 = vmatpush1.msra.mxu0 0.0
    %1157 = vmatprep.subr.mxu0 0.0
    %1158 = vmatpush1.msra.mxu0 0.0
    %1159 = vmatprep.subr.mxu0 0.0
    %1160 = vmatpush1.msra.mxu0 0.0
    %1161 = vmatprep.subr.mxu0 0.0
    %1162 = vmatpush1.msra.mxu0 0.0
    %1163 = vmatprep.subr.mxu0 0.0
    %1164 = vmatpush1.msra.mxu0 0.0
    %1165 = vmatprep.subr.mxu0 0.0
    %1166 = vmatpush1.msra.mxu0 0.0
    %1167 = vmatprep.subr.mxu0 0.0
    %1168 = vmatpush1.msra.mxu0 0.0
    %1169 = vmatprep.subr.mxu0 0.0
    %1170 = vmatpush1.msra.mxu0 0.0
    %1171 = vmatprep.subr.mxu0 0.0
    %1172 = vmatpush1.msra.mxu0 %v379
    %1173 = vmatprep.subr.mxu0 0.0
    %1174 = vmatpush1.msra.mxu0 %v378
    %1175 = vmatprep.subr.mxu0 0.0
    %1176 = vmatpush1.msra.mxu0 %v377
    %1177 = vmatprep.subr.mxu0 0.0
    %1178 = vmatpush1.msra.mxu0 %v376
    %1179 = vmatprep.subr.mxu0 0.0
    %1180 = vmatpush2.msra.mxu0 0.0
    %1181 = vmatprep.subr.mxu0 0.0
    %1182 = vmatpush2.msra.mxu0 0.0
    %1183 = vmatprep.subr.mxu0 0.0
    %1184 = vmatpush2.msra.mxu0 0.0
    %1185 = vmatprep.subr.mxu0 0.0
    %1186 = vmatpush2.msra.mxu0 0.0
    %1187 = vmatprep.subr.mxu0 0.0
    %1188 = vmatpush2.msra.mxu0 0.0
    %1189 = vmatprep.subr.mxu0 0.0
    %1190 = vmatpush2.msra.mxu0 0.0
    %1191 = vmatprep.subr.mxu0 0.0
    %1192 = vmatpush2.msra.mxu0 0.0
    %1193 = vmatprep.subr.mxu0 0.0
    %1194 = vmatpush2.msra.mxu0 0.0
    %1195 = vmatprep.subr.mxu0 0.0
    %1196 = vmatpush2.msra.mxu0 0.0
    %1197 = vmatprep.subr.mxu0 0.0
    %1198 = vmatpush2.msra.mxu0 0.0
    %1199 = vmatprep.subr.mxu0 0.0
    %1200 = vmatpush2.msra.mxu0 0.0
    %1201 = vmatprep.subr.mxu0 0.0
    %1202 = vmatpush2.msra.mxu0 0.0
    %1203 = vmatprep.subr.mxu0 0.0
    %1204 = vmatpush2.msra.mxu0 0.0
    %1205 = vmatprep.subr.mxu0 0.0
    %1206 = vmatpush2.msra.mxu0 0.0
    %1207 = vmatprep.subr.mxu0 0.0
    %1208 = vmatpush2.msra.mxu0 0.0
    %1209 = vmatprep.subr.mxu0 0.0
    %1210 = vmatpush2.msra.mxu0 0.0
    %1211 = vmatprep.mubr.f32.mxu0 0.0
    %1212 = vmatmul.mubr.f32.gmra.mxu0 %v1145
    %v1213 = vpop.f32.mrf.mxu0
    %v1214 = vadd.f32 %v224, %v1213
    %v1215 = vpop.f32.mrf.mxu0
    %1216 = vdwg.mxu0
    %1218 = vrot.lane.b32.xlu0 %v1025, 64
    %v1219 = vpop.permute.xlu0 %1218
    %v1220 = vsel %vm45, %v1219, 0
    %1222 = vmatprep.subr.mxu0 0.0
    %1223 = vmatpush1.msra.mxu0 0.0
    %1224 = vmatprep.subr.mxu0 0.0
    %1225 = vmatpush1.msra.mxu0 0.0
    %1226 = vmatprep.subr.mxu0 0.0
    %1227 = vmatpush1.msra.mxu0 0.0
    %1228 = vmatprep.subr.mxu0 0.0
    %1229 = vmatpush1.msra.mxu0 0.0
    %1230 = vmatprep.subr.mxu0 0.0
    %1231 = vmatpush1.msra.mxu0 0.0
    %1232 = vmatprep.subr.mxu0 0.0
    %1233 = vmatpush1.msra.mxu0 0.0
    %1234 = vmatprep.subr.mxu0 0.0
    %1235 = vmatpush1.msra.mxu0 0.0
    %1236 = vmatprep.subr.mxu0 0.0
    %1237 = vmatpush1.msra.mxu0 0.0
    %1238 = vmatprep.subr.mxu0 0.0
    %1239 = vmatpush1.msra.mxu0 0.0
    %1240 = vmatprep.subr.mxu0 0.0
    %1241 = vmatpush1.msra.mxu0 0.0
    %1242 = vmatprep.subr.mxu0 0.0
    %1243 = vmatpush1.msra.mxu0 0.0
    %1244 = vmatprep.subr.mxu0 0.0
    %1245 = vmatpush1.msra.mxu0 0.0
    %1246 = vmatprep.subr.mxu0 0.0
    %1247 = vmatpush1.msra.mxu0 %v750
    %1248 = vmatprep.subr.mxu0 0.0
    %1249 = vmatpush1.msra.mxu0 %v749
    %1250 = vmatprep.subr.mxu0 0.0
    %1251 = vmatpush1.msra.mxu0 %v748
    %1252 = vmatprep.subr.mxu0 0.0
    %1253 = vmatpush1.msra.mxu0 %v747
    %1254 = vmatprep.subr.mxu0 0.0
    %1255 = vmatpush2.msra.mxu0 0.0
    %1256 = vmatprep.subr.mxu0 0.0
    %1257 = vmatpush2.msra.mxu0 0.0
    %1258 = vmatprep.subr.mxu0 0.0
    %1259 = vmatpush2.msra.mxu0 0.0
    %1260 = vmatprep.subr.mxu0 0.0
    %1261 = vmatpush2.msra.mxu0 0.0
    %1262 = vmatprep.subr.mxu0 0.0
    %1263 = vmatpush2.msra.mxu0 0.0
    %1264 = vmatprep.subr.mxu0 0.0
    %1265 = vmatpush2.msra.mxu0 0.0
    %1266 = vmatprep.subr.mxu0 0.0
    %1267 = vmatpush2.msra.mxu0 0.0
    %1268 = vmatprep.subr.mxu0 0.0
    %1269 = vmatpush2.msra.mxu0 0.0
    %1270 = vmatprep.subr.mxu0 0.0
    %1271 = vmatpush2.msra.mxu0 0.0
    %1272 = vmatprep.subr.mxu0 0.0
    %1273 = vmatpush2.msra.mxu0 0.0
    %1274 = vmatprep.subr.mxu0 0.0
    %1275 = vmatpush2.msra.mxu0 0.0
    %1276 = vmatprep.subr.mxu0 0.0
    %1277 = vmatpush2.msra.mxu0 0.0
    %1278 = vmatprep.subr.mxu0 0.0
    %1279 = vmatpush2.msra.mxu0 0.0
    %1280 = vmatprep.subr.mxu0 0.0
    %1281 = vmatpush2.msra.mxu0 0.0
    %1282 = vmatprep.subr.mxu0 0.0
    %1283 = vmatpush2.msra.mxu0 0.0
    %1284 = vmatprep.subr.mxu0 0.0
    %1285 = vmatpush2.msra.mxu0 0.0
    %1286 = vmatprep.mubr.f32.mxu0 0.0
    %1287 = vmatmul.mubr.f32.gmra.mxu0 %v1220
    %v1288 = vpop.f32.mrf.mxu0
    %v1289 = vadd.f32 %v232, %v1288
    %v1290 = vpop.f32.mrf.mxu0
    %1291 = vdwg.mxu0
    %s1292 = scalar_lea.vmem %s2, 96
    %v1293 = vld [vmem:[%s1292] sm:$0xff]
    %v1294 = vld [vmem:[%s1292 + $0x8] sm:$0xff]
    %v1295 = vld [vmem:[%s1292 + $0x10] sm:$0xff]
    %v1296 = vld [vmem:[%s1292 + $0x18] sm:$0xff]
    %1298 = vrot.lane.b32.xlu0 %v1140, 64
    %v1299 = vpop.permute.xlu0 %1298
    %v1300 = vsel %vm45, %v1299, 0
    %1302 = vmatprep.subr.mxu0 0.0
    %1303 = vmatpush1.msra.mxu0 0.0
    %1304 = vmatprep.subr.mxu0 0.0
    %1305 = vmatpush1.msra.mxu0 0.0
    %1306 = vmatprep.subr.mxu0 0.0
    %1307 = vmatpush1.msra.mxu0 0.0
    %1308 = vmatprep.subr.mxu0 0.0
    %1309 = vmatpush1.msra.mxu0 0.0
    %1310 = vmatprep.subr.mxu0 0.0
    %1311 = vmatpush1.msra.mxu0 0.0
    %1312 = vmatprep.subr.mxu0 0.0
    %1313 = vmatpush1.msra.mxu0 0.0
    %1314 = vmatprep.subr.mxu0 0.0
    %1315 = vmatpush1.msra.mxu0 0.0
    %1316 = vmatprep.subr.mxu0 0.0
    %1317 = vmatpush1.msra.mxu0 0.0
    %1318 = vmatprep.subr.mxu0 0.0
    %1319 = vmatpush1.msra.mxu0 0.0
    %1320 = vmatprep.subr.mxu0 0.0
    %1321 = vmatpush1.msra.mxu0 0.0
    %1322 = vmatprep.subr.mxu0 0.0
    %1323 = vmatpush1.msra.mxu0 0.0
    %1324 = vmatprep.subr.mxu0 0.0
    %1325 = vmatpush1.msra.mxu0 0.0
    %1326 = vmatprep.subr.mxu0 0.0
    %1327 = vmatpush1.msra.mxu0 %v1296
    %1328 = vmatprep.subr.mxu0 0.0
    %1329 = vmatpush1.msra.mxu0 %v1295
    %1330 = vmatprep.subr.mxu0 0.0
    %1331 = vmatpush1.msra.mxu0 %v1294
    %1332 = vmatprep.subr.mxu0 0.0
    %1333 = vmatpush1.msra.mxu0 %v1293
    %1334 = vmatprep.subr.mxu0 0.0
    %1335 = vmatpush2.msra.mxu0 0.0
    %1336 = vmatprep.subr.mxu0 0.0
    %1337 = vmatpush2.msra.mxu0 0.0
    %1338 = vmatprep.subr.mxu0 0.0
    %1339 = vmatpush2.msra.mxu0 0.0
    %1340 = vmatprep.subr.mxu0 0.0
    %1341 = vmatpush2.msra.mxu0 0.0
    %1342 = vmatprep.subr.mxu0 0.0
    %1343 = vmatpush2.msra.mxu0 0.0
    %1344 = vmatprep.subr.mxu0 0.0
    %1345 = vmatpush2.msra.mxu0 0.0
    %1346 = vmatprep.subr.mxu0 0.0
    %1347 = vmatpush2.msra.mxu0 0.0
    %1348 = vmatprep.subr.mxu0 0.0
    %1349 = vmatpush2.msra.mxu0 0.0
    %1350 = vmatprep.subr.mxu0 0.0
    %1351 = vmatpush2.msra.mxu0 0.0
    %1352 = vmatprep.subr.mxu0 0.0
    %1353 = vmatpush2.msra.mxu0 0.0
    %1354 = vmatprep.subr.mxu0 0.0
    %1355 = vmatpush2.msra.mxu0 0.0
    %1356 = vmatprep.subr.mxu0 0.0
    %1357 = vmatpush2.msra.mxu0 0.0
    %1358 = vmatprep.subr.mxu0 0.0
    %1359 = vmatpush2.msra.mxu0 0.0
    %1360 = vmatprep.subr.mxu0 0.0
    %1361 = vmatpush2.msra.mxu0 0.0
    %1362 = vmatprep.subr.mxu0 0.0
    %1363 = vmatpush2.msra.mxu0 0.0
    %1364 = vmatprep.subr.mxu0 0.0
    %1365 = vmatpush2.msra.mxu0 0.0
    %1366 = vmatprep.mubr.f32.mxu0 0.0
    %1367 = vmatmul.mubr.f32.gmra.mxu0 %v1300
    %v1368 = vpop.f32.mrf.mxu0
    %v1369 = vadd.f32 %v240, %v1368
    %v1370 = vpop.f32.mrf.mxu0
    %1371 = vdwg.mxu0
    %1372 = vmatprep.subr.mxu0 0.0
    %1373 = vmatpush1.msra.mxu0 0.0
    %1374 = vmatprep.subr.mxu0 0.0
    %1375 = vmatpush1.msra.mxu0 0.0
    %1376 = vmatprep.subr.mxu0 0.0
    %1377 = vmatpush1.msra.mxu0 0.0
    %1378 = vmatprep.subr.mxu0 0.0
    %1379 = vmatpush1.msra.mxu0 0.0
    %1380 = vmatprep.subr.mxu0 0.0
    %1381 = vmatpush1.msra.mxu0 0.0
    %1382 = vmatprep.subr.mxu0 0.0
    %1383 = vmatpush1.msra.mxu0 0.0
    %1384 = vmatprep.subr.mxu0 0.0
    %1385 = vmatpush1.msra.mxu0 0.0
    %1386 = vmatprep.subr.mxu0 0.0
    %1387 = vmatpush1.msra.mxu0 0.0
    %1388 = vmatprep.subr.mxu0 0.0
    %1389 = vmatpush1.msra.mxu0 0.0
    %1390 = vmatprep.subr.mxu0 0.0
    %1391 = vmatpush1.msra.mxu0 0.0
    %1392 = vmatprep.subr.mxu0 0.0
    %1393 = vmatpush1.msra.mxu0 0.0
    %1394 = vmatprep.subr.mxu0 0.0
    %1395 = vmatpush1.msra.mxu0 0.0
    %1396 = vmatprep.subr.mxu0 0.0
    %1397 = vmatpush1.msra.mxu0 %v263
    %1398 = vmatprep.subr.mxu0 0.0
    %1399 = vmatpush1.msra.mxu0 %v262
    %1400 = vmatprep.subr.mxu0 0.0
    %1401 = vmatpush1.msra.mxu0 %v261
    %1402 = vmatprep.subr.mxu0 0.0
    %1403 = vmatpush1.msra.mxu0 %v260
    %1404 = vmatprep.subr.mxu0 0.0
    %1405 = vmatpush2.msra.mxu0 0.0
    %1406 = vmatprep.subr.mxu0 0.0
    %1407 = vmatpush2.msra.mxu0 0.0
    %1408 = vmatprep.subr.mxu0 0.0
    %1409 = vmatpush2.msra.mxu0 0.0
    %1410 = vmatprep.subr.mxu0 0.0
    %1411 = vmatpush2.msra.mxu0 0.0
    %1412 = vmatprep.subr.mxu0 0.0
    %1413 = vmatpush2.msra.mxu0 0.0
    %1414 = vmatprep.subr.mxu0 0.0
    %1415 = vmatpush2.msra.mxu0 0.0
    %1416 = vmatprep.subr.mxu0 0.0
    %1417 = vmatpush2.msra.mxu0 0.0
    %1418 = vmatprep.subr.mxu0 0.0
    %1419 = vmatpush2.msra.mxu0 0.0
    %1420 = vmatprep.subr.mxu0 0.0
    %1421 = vmatpush2.msra.mxu0 0.0
    %1422 = vmatprep.subr.mxu0 0.0
    %1423 = vmatpush2.msra.mxu0 0.0
    %1424 = vmatprep.subr.mxu0 0.0
    %1425 = vmatpush2.msra.mxu0 0.0
    %1426 = vmatprep.subr.mxu0 0.0
    %1427 = vmatpush2.msra.mxu0 0.0
    %1428 = vmatprep.subr.mxu0 0.0
    %1429 = vmatpush2.msra.mxu0 0.0
    %1430 = vmatprep.subr.mxu0 0.0
    %1431 = vmatpush2.msra.mxu0 0.0
    %1432 = vmatprep.subr.mxu0 0.0
    %1433 = vmatpush2.msra.mxu0 0.0
    %1434 = vmatprep.subr.mxu0 0.0
    %1435 = vmatpush2.msra.mxu0 0.0
    %1436 = vmatprep.mubr.f32.mxu0 0.0
    %1437 = vmatmul.mubr.f32.gmra.mxu0 %v1145
    %v1438 = vpop.f32.mrf.mxu0
    %v1439 = vadd.f32 0.0, %v1438
    %v1440 = vpop.f32.mrf.mxu0
    %1441 = vdwg.mxu0
    %v1442 = vadd.f32 %v1141, %v1439
    %v1443 = vxor.u32 %v1442, 2147483648
    %v1444 = vmul.f32 %v1443, 1.442695
    %v1445 = vpow.pop %v1444
    %v1446 = vadd.f32 %v1445, 1.0
    %v1447 = vrcp.pop %v1446
    %v1448 = vmul.f32 1.0, %v1447
    %v1449 = vadd.f32 %v1439, %v345
    %1451 = vrot.lane.b32.xlu0 %v1449, 64
    %v1452 = vpop.permute.xlu0 %1451
    %v1454 = vmul.f32 %v1448, %v1452
    %1456 = vrot.lane.b32.xlu0 %v1454, 64
    %v1457 = vpop.permute.xlu0 %1456
    %v1459 = vadd.f32 %v1141, %v1457
    %v1460 = vtanh.pop %v1459
    %v1461 = vsub.f32 %v925, %v1460
    %1463 = vrot.lane.b32.xlu0 %v1461, 96
    %v1464 = vpop.permute.xlu0 %1463
    %v1466 = vmul.f32 %v1448, %v1464
    %1468 = vrot.lane.b32.xlu0 %v1466, 32
    %v1469 = vpop.permute.xlu0 %1468
    %v1471 = vadd.f32 %v1460, %v1469
    %1472 = vmatprep.subr.mxu0 0.0
    %1473 = vmatpush1.msra.mxu0 0.0
    %1474 = vmatprep.subr.mxu0 0.0
    %1475 = vmatpush1.msra.mxu0 0.0
    %1476 = vmatprep.subr.mxu0 0.0
    %1477 = vmatpush1.msra.mxu0 0.0
    %1478 = vmatprep.subr.mxu0 0.0
    %1479 = vmatpush1.msra.mxu0 0.0
    %1480 = vmatprep.subr.mxu0 0.0
    %1481 = vmatpush1.msra.mxu0 0.0
    %1482 = vmatprep.subr.mxu0 0.0
    %1483 = vmatpush1.msra.mxu0 0.0
    %1484 = vmatprep.subr.mxu0 0.0
    %1485 = vmatpush1.msra.mxu0 0.0
    %1486 = vmatprep.subr.mxu0 0.0
    %1487 = vmatpush1.msra.mxu0 0.0
    %1488 = vmatprep.subr.mxu0 0.0
    %1489 = vmatpush1.msra.mxu0 0.0
    %1490 = vmatprep.subr.mxu0 0.0
    %1491 = vmatpush1.msra.mxu0 0.0
    %1492 = vmatprep.subr.mxu0 0.0
    %1493 = vmatpush1.msra.mxu0 0.0
    %1494 = vmatprep.subr.mxu0 0.0
    %1495 = vmatpush1.msra.mxu0 0.0
    %1496 = vmatprep.subr.mxu0 0.0
    %1497 = vmatpush1.msra.mxu0 %v559
    %1498 = vmatprep.subr.mxu0 0.0
    %1499 = vmatpush1.msra.mxu0 %v558
    %1500 = vmatprep.subr.mxu0 0.0
    %1501 = vmatpush1.msra.mxu0 %v557
    %1502 = vmatprep.subr.mxu0 0.0
    %1503 = vmatpush1.msra.mxu0 %v556
    %1504 = vmatprep.subr.mxu0 0.0
    %1505 = vmatpush2.msra.mxu0 0.0
    %1506 = vmatprep.subr.mxu0 0.0
    %1507 = vmatpush2.msra.mxu0 0.0
    %1508 = vmatprep.subr.mxu0 0.0
    %1509 = vmatpush2.msra.mxu0 0.0
    %1510 = vmatprep.subr.mxu0 0.0
    %1511 = vmatpush2.msra.mxu0 0.0
    %1512 = vmatprep.subr.mxu0 0.0
    %1513 = vmatpush2.msra.mxu0 0.0
    %1514 = vmatprep.subr.mxu0 0.0
    %1515 = vmatpush2.msra.mxu0 0.0
    %1516 = vmatprep.subr.mxu0 0.0
    %1517 = vmatpush2.msra.mxu0 0.0
    %1518 = vmatprep.subr.mxu0 0.0
    %1519 = vmatpush2.msra.mxu0 0.0
    %1520 = vmatprep.subr.mxu0 0.0
    %1521 = vmatpush2.msra.mxu0 0.0
    %1522 = vmatprep.subr.mxu0 0.0
    %1523 = vmatpush2.msra.mxu0 0.0
    %1524 = vmatprep.subr.mxu0 0.0
    %1525 = vmatpush2.msra.mxu0 0.0
    %1526 = vmatprep.subr.mxu0 0.0
    %1527 = vmatpush2.msra.mxu0 0.0
    %1528 = vmatprep.subr.mxu0 0.0
    %1529 = vmatpush2.msra.mxu0 0.0
    %1530 = vmatprep.subr.mxu0 0.0
    %1531 = vmatpush2.msra.mxu0 0.0
    %1532 = vmatprep.subr.mxu0 0.0
    %1533 = vmatpush2.msra.mxu0 0.0
    %1534 = vmatprep.subr.mxu0 0.0
    %1535 = vmatpush2.msra.mxu0 0.0
    %1536 = vmatprep.mubr.f32.mxu0 0.0
    %1537 = vmatmul.mubr.f32.gmra.mxu0 %v1220
    %v1538 = vpop.f32.mrf.mxu0
    %v1539 = vadd.f32 0.0, %v1538
    %v1540 = vpop.f32.mrf.mxu0
    %1541 = vdwg.mxu0
    %v1542 = vadd.f32 %v1214, %v1539
    %v1543 = vxor.u32 %v1542, 2147483648
    %v1544 = vmul.f32 %v1543, 1.442695
    %v1545 = vpow.pop %v1544
    %v1546 = vadd.f32 %v1545, 1.0
    %v1547 = vrcp.pop %v1546
    %v1548 = vmul.f32 1.0, %v1547
    %v1549 = vadd.f32 %v1539, %v641
    %1551 = vrot.lane.b32.xlu0 %v1549, 64
    %v1552 = vpop.permute.xlu0 %1551
    %v1554 = vmul.f32 %v1548, %v1552
    %1556 = vrot.lane.b32.xlu0 %v1554, 64
    %v1557 = vpop.permute.xlu0 %1556
    %v1559 = vadd.f32 %v1214, %v1557
    %v1560 = vtanh.pop %v1559
    %v1561 = vsub.f32 %v1025, %v1560
    %1563 = vrot.lane.b32.xlu0 %v1561, 96
    %v1564 = vpop.permute.xlu0 %1563
    %v1566 = vmul.f32 %v1548, %v1564
    %1568 = vrot.lane.b32.xlu0 %v1566, 32
    %v1569 = vpop.permute.xlu0 %1568
    %v1571 = vadd.f32 %v1560, %v1569
    %1572 = vmatprep.subr.mxu0 0.0
    %1573 = vmatpush1.msra.mxu0 0.0
    %1574 = vmatprep.subr.mxu0 0.0
    %1575 = vmatpush1.msra.mxu0 0.0
    %1576 = vmatprep.subr.mxu0 0.0
    %1577 = vmatpush1.msra.mxu0 0.0
    %1578 = vmatprep.subr.mxu0 0.0
    %1579 = vmatpush1.msra.mxu0 0.0
    %1580 = vmatprep.subr.mxu0 0.0
    %1581 = vmatpush1.msra.mxu0 0.0
    %1582 = vmatprep.subr.mxu0 0.0
    %1583 = vmatpush1.msra.mxu0 0.0
    %1584 = vmatprep.subr.mxu0 0.0
    %1585 = vmatpush1.msra.mxu0 0.0
    %1586 = vmatprep.subr.mxu0 0.0
    %1587 = vmatpush1.msra.mxu0 0.0
    %1588 = vmatprep.subr.mxu0 0.0
    %1589 = vmatpush1.msra.mxu0 0.0
    %1590 = vmatprep.subr.mxu0 0.0
    %1591 = vmatpush1.msra.mxu0 0.0
    %1592 = vmatprep.subr.mxu0 0.0
    %1593 = vmatpush1.msra.mxu0 0.0
    %1594 = vmatprep.subr.mxu0 0.0
    %1595 = vmatpush1.msra.mxu0 0.0
    %1596 = vmatprep.subr.mxu0 0.0
    %1597 = vmatpush1.msra.mxu0 %v1030
    %1598 = vmatprep.subr.mxu0 0.0
    %1599 = vmatpush1.msra.mxu0 %v1029
    %1600 = vmatprep.subr.mxu0 0.0
    %1601 = vmatpush1.msra.mxu0 %v1028
    %1602 = vmatprep.subr.mxu0 0.0
    %1603 = vmatpush1.msra.mxu0 %v1027
    %1604 = vmatprep.subr.mxu0 0.0
    %1605 = vmatpush2.msra.mxu0 0.0
    %1606 = vmatprep.subr.mxu0 0.0
    %1607 = vmatpush2.msra.mxu0 0.0
    %1608 = vmatprep.subr.mxu0 0.0
    %1609 = vmatpush2.msra.mxu0 0.0
    %1610 = vmatprep.subr.mxu0 0.0
    %1611 = vmatpush2.msra.mxu0 0.0
    %1612 = vmatprep.subr.mxu0 0.0
    %1613 = vmatpush2.msra.mxu0 0.0
    %1614 = vmatprep.subr.mxu0 0.0
    %1615 = vmatpush2.msra.mxu0 0.0
    %1616 = vmatprep.subr.mxu0 0.0
    %1617 = vmatpush2.msra.mxu0 0.0
    %1618 = vmatprep.subr.mxu0 0.0
    %1619 = vmatpush2.msra.mxu0 0.0
    %1620 = vmatprep.subr.mxu0 0.0
    %1621 = vmatpush2.msra.mxu0 0.0
    %1622 = vmatprep.subr.mxu0 0.0
    %1623 = vmatpush2.msra.mxu0 0.0
    %1624 = vmatprep.subr.mxu0 0.0
    %1625 = vmatpush2.msra.mxu0 0.0
    %1626 = vmatprep.subr.mxu0 0.0
    %1627 = vmatpush2.msra.mxu0 0.0
    %1628 = vmatprep.subr.mxu0 0.0
    %1629 = vmatpush2.msra.mxu0 0.0
    %1630 = vmatprep.subr.mxu0 0.0
    %1631 = vmatpush2.msra.mxu0 0.0
    %1632 = vmatprep.subr.mxu0 0.0
    %1633 = vmatpush2.msra.mxu0 0.0
    %1634 = vmatprep.subr.mxu0 0.0
    %1635 = vmatpush2.msra.mxu0 0.0
    %1636 = vmatprep.mubr.f32.mxu0 0.0
    %1637 = vmatmul.mubr.f32.gmra.mxu0 %v1300
    %v1638 = vpop.f32.mrf.mxu0
    %v1639 = vadd.f32 0.0, %v1638
    %v1640 = vpop.f32.mrf.mxu0
    %1641 = vdwg.mxu0
    %v1642 = vadd.f32 %v1289, %v1639
    %v1643 = vxor.u32 %v1642, 2147483648
    %v1644 = vmul.f32 %v1643, 1.442695
    %v1645 = vpow.pop %v1644
    %v1646 = vadd.f32 %v1645, 1.0
    %v1647 = vrcp.pop %v1646
    %v1648 = vmul.f32 1.0, %v1647
    %v1649 = vadd.f32 %v1639, %v1112
    %1651 = vrot.lane.b32.xlu0 %v1649, 64
    %v1652 = vpop.permute.xlu0 %1651
    %v1654 = vmul.f32 %v1648, %v1652
    %1656 = vrot.lane.b32.xlu0 %v1654, 64
    %v1657 = vpop.permute.xlu0 %1656
    %v1659 = vadd.f32 %v1289, %v1657
    %v1660 = vtanh.pop %v1659
    %v1661 = vsub.f32 %v1140, %v1660
    %1663 = vrot.lane.b32.xlu0 %v1661, 96
    %v1664 = vpop.permute.xlu0 %1663
    %v1666 = vmul.f32 %v1648, %v1664
    %1668 = vrot.lane.b32.xlu0 %v1666, 32
    %v1669 = vpop.permute.xlu0 %1668
    %v1671 = vadd.f32 %v1660, %v1669
    %s1672 = scalar_lea.vmem %s3, 96
    %v1673 = vld [vmem:[%s1672] sm:$0xff]
    %v1674 = vld [vmem:[%s1672 + $0x8] sm:$0xff]
    %v1675 = vld [vmem:[%s1672 + $0x10] sm:$0xff]
    %v1676 = vld [vmem:[%s1672 + $0x18] sm:$0xff]
    %v1678 = vsel %vm45, %v256, 0
    %1680 = vmatprep.subr.mxu0 0.0
    %1681 = vmatpush1.msra.mxu0 0.0
    %1682 = vmatprep.subr.mxu0 0.0
    %1683 = vmatpush1.msra.mxu0 0.0
    %1684 = vmatprep.subr.mxu0 0.0
    %1685 = vmatpush1.msra.mxu0 0.0
    %1686 = vmatprep.subr.mxu0 0.0
    %1687 = vmatpush1.msra.mxu0 0.0
    %1688 = vmatprep.subr.mxu0 0.0
    %1689 = vmatpush1.msra.mxu0 0.0
    %1690 = vmatprep.subr.mxu0 0.0
    %1691 = vmatpush1.msra.mxu0 0.0
    %1692 = vmatprep.subr.mxu0 0.0
    %1693 = vmatpush1.msra.mxu0 0.0
    %1694 = vmatprep.subr.mxu0 0.0
    %1695 = vmatpush1.msra.mxu0 0.0
    %1696 = vmatprep.subr.mxu0 0.0
    %1697 = vmatpush1.msra.mxu0 0.0
    %1698 = vmatprep.subr.mxu0 0.0
    %1699 = vmatpush1.msra.mxu0 0.0
    %1700 = vmatprep.subr.mxu0 0.0
    %1701 = vmatpush1.msra.mxu0 0.0
    %1702 = vmatprep.subr.mxu0 0.0
    %1703 = vmatpush1.msra.mxu0 0.0
    %1704 = vmatprep.subr.mxu0 0.0
    %1705 = vmatpush1.msra.mxu0 %v1676
    %1706 = vmatprep.subr.mxu0 0.0
    %1707 = vmatpush1.msra.mxu0 %v1675
    %1708 = vmatprep.subr.mxu0 0.0
    %1709 = vmatpush1.msra.mxu0 %v1674
    %1710 = vmatprep.subr.mxu0 0.0
    %1711 = vmatpush1.msra.mxu0 %v1673
    %1712 = vmatprep.subr.mxu0 0.0
    %1713 = vmatpush2.msra.mxu0 0.0
    %1714 = vmatprep.subr.mxu0 0.0
    %1715 = vmatpush2.msra.mxu0 0.0
    %1716 = vmatprep.subr.mxu0 0.0
    %1717 = vmatpush2.msra.mxu0 0.0
    %1718 = vmatprep.subr.mxu0 0.0
    %1719 = vmatpush2.msra.mxu0 0.0
    %1720 = vmatprep.subr.mxu0 0.0
    %1721 = vmatpush2.msra.mxu0 0.0
    %1722 = vmatprep.subr.mxu0 0.0
    %1723 = vmatpush2.msra.mxu0 0.0
    %1724 = vmatprep.subr.mxu0 0.0
    %1725 = vmatpush2.msra.mxu0 0.0
    %1726 = vmatprep.subr.mxu0 0.0
    %1727 = vmatpush2.msra.mxu0 0.0
    %1728 = vmatprep.subr.mxu0 0.0
    %1729 = vmatpush2.msra.mxu0 0.0
    %1730 = vmatprep.subr.mxu0 0.0
    %1731 = vmatpush2.msra.mxu0 0.0
    %1732 = vmatprep.subr.mxu0 0.0
    %1733 = vmatpush2.msra.mxu0 0.0
    %1734 = vmatprep.subr.mxu0 0.0
    %1735 = vmatpush2.msra.mxu0 0.0
    %1736 = vmatprep.subr.mxu0 0.0
    %1737 = vmatpush2.msra.mxu0 0.0
    %1738 = vmatprep.subr.mxu0 0.0
    %1739 = vmatpush2.msra.mxu0 0.0
    %1740 = vmatprep.subr.mxu0 0.0
    %1741 = vmatpush2.msra.mxu0 0.0
    %1742 = vmatprep.subr.mxu0 0.0
    %1743 = vmatpush2.msra.mxu0 0.0
    %1744 = vmatprep.mubr.f32.mxu0 0.0
    %1745 = vmatmul.mubr.f32.gmra.mxu0 %v1678
    %v1746 = vpop.f32.mrf.mxu0
    %v1747 = vadd.f32 0.0, %v1746
    %v1748 = vpop.f32.mrf.mxu0
    %1749 = vdwg.mxu0
    %v1750 = vadd.f32 %v1369, %v1747
    %v1751 = vxor.u32 %v1750, 2147483648
    %v1752 = vmul.f32 %v1751, 1.442695
    %v1753 = vpow.pop %v1752
    %v1754 = vadd.f32 %v1753, 1.0
    %v1755 = vrcp.pop %v1754
    %v1756 = vmul.f32 1.0, %v1755
    %1757 = vrot.lane.b32.xlu0 %v210, 64
    %v1758 = vpop.permute.xlu0 %1757
    %v1760 = vadd.f32 %v1747, %v1758
    %1762 = vrot.lane.b32.xlu0 %v1760, 64
    %v1763 = vpop.permute.xlu0 %1762
    %v1765 = vmul.f32 %v1756, %v1763
    %1767 = vrot.lane.b32.xlu0 %v1765, 64
    %v1768 = vpop.permute.xlu0 %1767
    %v1770 = vadd.f32 %v1369, %v1768
    %v1771 = vtanh.pop %v1770
    %1773 = vrot.lane.b32.xlu0 %v1771, 64
    %v1774 = vpop.permute.xlu0 %1773
    %v1776 = vsub.f32 %v256, %v1774
    %1778 = vrot.lane.b32.xlu0 %v1776, 32
    %v1779 = vpop.permute.xlu0 %1778
    %v1781 = vmul.f32 %v1756, %v1779
    %1783 = vrot.lane.b32.xlu0 %v1781, 32
    %v1784 = vpop.permute.xlu0 %1783
    %v1786 = vadd.f32 %v1771, %v1784
    %s1787 = scalar_lea.vmem [#allocation2], 32
    %v1788 = vld [vmem:[%s1787] sm:$0xff]
    %1790 = vrot.lane.b32.xlu0 %v1471, 64
    %v1791 = vpop.permute.xlu0 %1790
    %v1792 = vsel %vm45, %v1791, 0
    %1794 = vmatprep.subr.mxu0 0.0
    %1795 = vmatpush1.msra.mxu0 0.0
    %1796 = vmatprep.subr.mxu0 0.0
    %1797 = vmatpush1.msra.mxu0 0.0
    %1798 = vmatprep.subr.mxu0 0.0
    %1799 = vmatpush1.msra.mxu0 0.0
    %1800 = vmatprep.subr.mxu0 0.0
    %1801 = vmatpush1.msra.mxu0 0.0
    %1802 = vmatprep.subr.mxu0 0.0
    %1803 = vmatpush1.msra.mxu0 0.0
    %1804 = vmatprep.subr.mxu0 0.0
    %1805 = vmatpush1.msra.mxu0 0.0
    %1806 = vmatprep.subr.mxu0 0.0
    %1807 = vmatpush1.msra.mxu0 0.0
    %1808 = vmatprep.subr.mxu0 0.0
    %1809 = vmatpush1.msra.mxu0 0.0
    %1810 = vmatprep.subr.mxu0 0.0
    %1811 = vmatpush1.msra.mxu0 0.0
    %1812 = vmatprep.subr.mxu0 0.0
    %1813 = vmatpush1.msra.mxu0 0.0
    %1814 = vmatprep.subr.mxu0 0.0
    %1815 = vmatpush1.msra.mxu0 0.0
    %1816 = vmatprep.subr.mxu0 0.0
    %1817 = vmatpush1.msra.mxu0 0.0
    %1818 = vmatprep.subr.mxu0 0.0
    %1819 = vmatpush1.msra.mxu0 %v379
    %1820 = vmatprep.subr.mxu0 0.0
    %1821 = vmatpush1.msra.mxu0 %v378
    %1822 = vmatprep.subr.mxu0 0.0
    %1823 = vmatpush1.msra.mxu0 %v377
    %1824 = vmatprep.subr.mxu0 0.0
    %1825 = vmatpush1.msra.mxu0 %v376
    %1826 = vmatprep.subr.mxu0 0.0
    %1827 = vmatpush2.msra.mxu0 0.0
    %1828 = vmatprep.subr.mxu0 0.0
    %1829 = vmatpush2.msra.mxu0 0.0
    %1830 = vmatprep.subr.mxu0 0.0
    %1831 = vmatpush2.msra.mxu0 0.0
    %1832 = vmatprep.subr.mxu0 0.0
    %1833 = vmatpush2.msra.mxu0 0.0
    %1834 = vmatprep.subr.mxu0 0.0
    %1835 = vmatpush2.msra.mxu0 0.0
    %1836 = vmatprep.subr.mxu0 0.0
    %1837 = vmatpush2.msra.mxu0 0.0
    %1838 = vmatprep.subr.mxu0 0.0
    %1839 = vmatpush2.msra.mxu0 0.0
    %1840 = vmatprep.subr.mxu0 0.0
    %1841 = vmatpush2.msra.mxu0 0.0
    %1842 = vmatprep.subr.mxu0 0.0
    %1843 = vmatpush2.msra.mxu0 0.0
    %1844 = vmatprep.subr.mxu0 0.0
    %1845 = vmatpush2.msra.mxu0 0.0
    %1846 = vmatprep.subr.mxu0 0.0
    %1847 = vmatpush2.msra.mxu0 0.0
    %1848 = vmatprep.subr.mxu0 0.0
    %1849 = vmatpush2.msra.mxu0 0.0
    %1850 = vmatprep.subr.mxu0 0.0
    %1851 = vmatpush2.msra.mxu0 0.0
    %1852 = vmatprep.subr.mxu0 0.0
    %1853 = vmatpush2.msra.mxu0 0.0
    %1854 = vmatprep.subr.mxu0 0.0
    %1855 = vmatpush2.msra.mxu0 0.0
    %1856 = vmatprep.subr.mxu0 0.0
    %1857 = vmatpush2.msra.mxu0 0.0
    %1858 = vmatprep.mubr.f32.mxu0 0.0
    %1859 = vmatmul.mubr.f32.gmra.mxu0 %v1792
    %v1860 = vpop.f32.mrf.mxu0
    %v1861 = vadd.f32 %v224, %v1860
    %v1862 = vpop.f32.mrf.mxu0
    %1863 = vdwg.mxu0
    %1865 = vrot.lane.b32.xlu0 %v1571, 64
    %v1866 = vpop.permute.xlu0 %1865
    %v1867 = vsel %vm45, %v1866, 0
    %1869 = vmatprep.subr.mxu0 0.0
    %1870 = vmatpush1.msra.mxu0 0.0
    %1871 = vmatprep.subr.mxu0 0.0
    %1872 = vmatpush1.msra.mxu0 0.0
    %1873 = vmatprep.subr.mxu0 0.0
    %1874 = vmatpush1.msra.mxu0 0.0
    %1875 = vmatprep.subr.mxu0 0.0
    %1876 = vmatpush1.msra.mxu0 0.0
    %1877 = vmatprep.subr.mxu0 0.0
    %1878 = vmatpush1.msra.mxu0 0.0
    %1879 = vmatprep.subr.mxu0 0.0
    %1880 = vmatpush1.msra.mxu0 0.0
    %1881 = vmatprep.subr.mxu0 0.0
    %1882 = vmatpush1.msra.mxu0 0.0
    %1883 = vmatprep.subr.mxu0 0.0
    %1884 = vmatpush1.msra.mxu0 0.0
    %1885 = vmatprep.subr.mxu0 0.0
    %1886 = vmatpush1.msra.mxu0 0.0
    %1887 = vmatprep.subr.mxu0 0.0
    %1888 = vmatpush1.msra.mxu0 0.0
    %1889 = vmatprep.subr.mxu0 0.0
    %1890 = vmatpush1.msra.mxu0 0.0
    %1891 = vmatprep.subr.mxu0 0.0
    %1892 = vmatpush1.msra.mxu0 0.0
    %1893 = vmatprep.subr.mxu0 0.0
    %1894 = vmatpush1.msra.mxu0 %v750
    %1895 = vmatprep.subr.mxu0 0.0
    %1896 = vmatpush1.msra.mxu0 %v749
    %1897 = vmatprep.subr.mxu0 0.0
    %1898 = vmatpush1.msra.mxu0 %v748
    %1899 = vmatprep.subr.mxu0 0.0
    %1900 = vmatpush1.msra.mxu0 %v747
    %1901 = vmatprep.subr.mxu0 0.0
    %1902 = vmatpush2.msra.mxu0 0.0
    %1903 = vmatprep.subr.mxu0 0.0
    %1904 = vmatpush2.msra.mxu0 0.0
    %1905 = vmatprep.subr.mxu0 0.0
    %1906 = vmatpush2.msra.mxu0 0.0
    %1907 = vmatprep.subr.mxu0 0.0
    %1908 = vmatpush2.msra.mxu0 0.0
    %1909 = vmatprep.subr.mxu0 0.0
    %1910 = vmatpush2.msra.mxu0 0.0
    %1911 = vmatprep.subr.mxu0 0.0
    %1912 = vmatpush2.msra.mxu0 0.0
    %1913 = vmatprep.subr.mxu0 0.0
    %1914 = vmatpush2.msra.mxu0 0.0
    %1915 = vmatprep.subr.mxu0 0.0
    %1916 = vmatpush2.msra.mxu0 0.0
    %1917 = vmatprep.subr.mxu0 0.0
    %1918 = vmatpush2.msra.mxu0 0.0
    %1919 = vmatprep.subr.mxu0 0.0
    %1920 = vmatpush2.msra.mxu0 0.0
    %1921 = vmatprep.subr.mxu0 0.0
    %1922 = vmatpush2.msra.mxu0 0.0
    %1923 = vmatprep.subr.mxu0 0.0
    %1924 = vmatpush2.msra.mxu0 0.0
    %1925 = vmatprep.subr.mxu0 0.0
    %1926 = vmatpush2.msra.mxu0 0.0
    %1927 = vmatprep.subr.mxu0 0.0
    %1928 = vmatpush2.msra.mxu0 0.0
    %1929 = vmatprep.subr.mxu0 0.0
    %1930 = vmatpush2.msra.mxu0 0.0
    %1931 = vmatprep.subr.mxu0 0.0
    %1932 = vmatpush2.msra.mxu0 0.0
    %1933 = vmatprep.mubr.f32.mxu0 0.0
    %1934 = vmatmul.mubr.f32.gmra.mxu0 %v1867
    %v1935 = vpop.f32.mrf.mxu0
    %v1936 = vadd.f32 %v232, %v1935
    %v1937 = vpop.f32.mrf.mxu0
    %1938 = vdwg.mxu0
    %1940 = vrot.lane.b32.xlu0 %v1671, 64
    %v1941 = vpop.permute.xlu0 %1940
    %v1942 = vsel %vm45, %v1941, 0
    %1944 = vmatprep.subr.mxu0 0.0
    %1945 = vmatpush1.msra.mxu0 0.0
    %1946 = vmatprep.subr.mxu0 0.0
    %1947 = vmatpush1.msra.mxu0 0.0
    %1948 = vmatprep.subr.mxu0 0.0
    %1949 = vmatpush1.msra.mxu0 0.0
    %1950 = vmatprep.subr.mxu0 0.0
    %1951 = vmatpush1.msra.mxu0 0.0
    %1952 = vmatprep.subr.mxu0 0.0
    %1953 = vmatpush1.msra.mxu0 0.0
    %1954 = vmatprep.subr.mxu0 0.0
    %1955 = vmatpush1.msra.mxu0 0.0
    %1956 = vmatprep.subr.mxu0 0.0
    %1957 = vmatpush1.msra.mxu0 0.0
    %1958 = vmatprep.subr.mxu0 0.0
    %1959 = vmatpush1.msra.mxu0 0.0
    %1960 = vmatprep.subr.mxu0 0.0
    %1961 = vmatpush1.msra.mxu0 0.0
    %1962 = vmatprep.subr.mxu0 0.0
    %1963 = vmatpush1.msra.mxu0 0.0
    %1964 = vmatprep.subr.mxu0 0.0
    %1965 = vmatpush1.msra.mxu0 0.0
    %1966 = vmatprep.subr.mxu0 0.0
    %1967 = vmatpush1.msra.mxu0 0.0
    %1968 = vmatprep.subr.mxu0 0.0
    %1969 = vmatpush1.msra.mxu0 %v1296
    %1970 = vmatprep.subr.mxu0 0.0
    %1971 = vmatpush1.msra.mxu0 %v1295
    %1972 = vmatprep.subr.mxu0 0.0
    %1973 = vmatpush1.msra.mxu0 %v1294
    %1974 = vmatprep.subr.mxu0 0.0
    %1975 = vmatpush1.msra.mxu0 %v1293
    %1976 = vmatprep.subr.mxu0 0.0
    %1977 = vmatpush2.msra.mxu0 0.0
    %1978 = vmatprep.subr.mxu0 0.0
    %1979 = vmatpush2.msra.mxu0 0.0
    %1980 = vmatprep.subr.mxu0 0.0
    %1981 = vmatpush2.msra.mxu0 0.0
    %1982 = vmatprep.subr.mxu0 0.0
    %1983 = vmatpush2.msra.mxu0 0.0
    %1984 = vmatprep.subr.mxu0 0.0
    %1985 = vmatpush2.msra.mxu0 0.0
    %1986 = vmatprep.subr.mxu0 0.0
    %1987 = vmatpush2.msra.mxu0 0.0
    %1988 = vmatprep.subr.mxu0 0.0
    %1989 = vmatpush2.msra.mxu0 0.0
    %1990 = vmatprep.subr.mxu0 0.0
    %1991 = vmatpush2.msra.mxu0 0.0
    %1992 = vmatprep.subr.mxu0 0.0
    %1993 = vmatpush2.msra.mxu0 0.0
    %1994 = vmatprep.subr.mxu0 0.0
    %1995 = vmatpush2.msra.mxu0 0.0
    %1996 = vmatprep.subr.mxu0 0.0
    %1997 = vmatpush2.msra.mxu0 0.0
    %1998 = vmatprep.subr.mxu0 0.0
    %1999 = vmatpush2.msra.mxu0 0.0
    %2000 = vmatprep.subr.mxu0 0.0
    %2001 = vmatpush2.msra.mxu0 0.0
    %2002 = vmatprep.subr.mxu0 0.0
    %2003 = vmatpush2.msra.mxu0 0.0
    %2004 = vmatprep.subr.mxu0 0.0
    %2005 = vmatpush2.msra.mxu0 0.0
    %2006 = vmatprep.subr.mxu0 0.0
    %2007 = vmatpush2.msra.mxu0 0.0
    %2008 = vmatprep.mubr.f32.mxu0 0.0
    %2009 = vmatmul.mubr.f32.gmra.mxu0 %v1942
    %v2010 = vpop.f32.mrf.mxu0
    %v2011 = vadd.f32 %v240, %v2010
    %v2012 = vpop.f32.mrf.mxu0
    %2013 = vdwg.mxu0
    %s2014 = scalar_lea.vmem %s2, 128
    %v2015 = vld [vmem:[%s2014] sm:$0xff]
    %v2016 = vld [vmem:[%s2014 + $0x8] sm:$0xff]
    %v2017 = vld [vmem:[%s2014 + $0x10] sm:$0xff]
    %v2018 = vld [vmem:[%s2014 + $0x18] sm:$0xff]
    %2020 = vrot.lane.b32.xlu0 %v1786, 64
    %v2021 = vpop.permute.xlu0 %2020
    %v2022 = vsel %vm45, %v2021, 0
    %2024 = vmatprep.subr.mxu0 0.0
    %2025 = vmatpush1.msra.mxu0 0.0
    %2026 = vmatprep.subr.mxu0 0.0
    %2027 = vmatpush1.msra.mxu0 0.0
    %2028 = vmatprep.subr.mxu0 0.0
    %2029 = vmatpush1.msra.mxu0 0.0
    %2030 = vmatprep.subr.mxu0 0.0
    %2031 = vmatpush1.msra.mxu0 0.0
    %2032 = vmatprep.subr.mxu0 0.0
    %2033 = vmatpush1.msra.mxu0 0.0
    %2034 = vmatprep.subr.mxu0 0.0
    %2035 = vmatpush1.msra.mxu0 0.0
    %2036 = vmatprep.subr.mxu0 0.0
    %2037 = vmatpush1.msra.mxu0 0.0
    %2038 = vmatprep.subr.mxu0 0.0
    %2039 = vmatpush1.msra.mxu0 0.0
    %2040 = vmatprep.subr.mxu0 0.0
    %2041 = vmatpush1.msra.mxu0 0.0
    %2042 = vmatprep.subr.mxu0 0.0
    %2043 = vmatpush1.msra.mxu0 0.0
    %2044 = vmatprep.subr.mxu0 0.0
    %2045 = vmatpush1.msra.mxu0 0.0
    %2046 = vmatprep.subr.mxu0 0.0
    %2047 = vmatpush1.msra.mxu0 0.0
    %2048 = vmatprep.subr.mxu0 0.0
    %2049 = vmatpush1.msra.mxu0 %v2018
    %2050 = vmatprep.subr.mxu0 0.0
    %2051 = vmatpush1.msra.mxu0 %v2017
    %2052 = vmatprep.subr.mxu0 0.0
    %2053 = vmatpush1.msra.mxu0 %v2016
    %2054 = vmatprep.subr.mxu0 0.0
    %2055 = vmatpush1.msra.mxu0 %v2015
    %2056 = vmatprep.subr.mxu0 0.0
    %2057 = vmatpush2.msra.mxu0 0.0
    %2058 = vmatprep.subr.mxu0 0.0
    %2059 = vmatpush2.msra.mxu0 0.0
    %2060 = vmatprep.subr.mxu0 0.0
    %2061 = vmatpush2.msra.mxu0 0.0
    %2062 = vmatprep.subr.mxu0 0.0
    %2063 = vmatpush2.msra.mxu0 0.0
    %2064 = vmatprep.subr.mxu0 0.0
    %2065 = vmatpush2.msra.mxu0 0.0
    %2066 = vmatprep.subr.mxu0 0.0
    %2067 = vmatpush2.msra.mxu0 0.0
    %2068 = vmatprep.subr.mxu0 0.0
    %2069 = vmatpush2.msra.mxu0 0.0
    %2070 = vmatprep.subr.mxu0 0.0
    %2071 = vmatpush2.msra.mxu0 0.0
    %2072 = vmatprep.subr.mxu0 0.0
    %2073 = vmatpush2.msra.mxu0 0.0
    %2074 = vmatprep.subr.mxu0 0.0
    %2075 = vmatpush2.msra.mxu0 0.0
    %2076 = vmatprep.subr.mxu0 0.0
    %2077 = vmatpush2.msra.mxu0 0.0
    %2078 = vmatprep.subr.mxu0 0.0
    %2079 = vmatpush2.msra.mxu0 0.0
    %2080 = vmatprep.subr.mxu0 0.0
    %2081 = vmatpush2.msra.mxu0 0.0
    %2082 = vmatprep.subr.mxu0 0.0
    %2083 = vmatpush2.msra.mxu0 0.0
    %2084 = vmatprep.subr.mxu0 0.0
    %2085 = vmatpush2.msra.mxu0 0.0
    %2086 = vmatprep.subr.mxu0 0.0
    %2087 = vmatpush2.msra.mxu0 0.0
    %2088 = vmatprep.mubr.f32.mxu0 0.0
    %2089 = vmatmul.mubr.f32.gmra.mxu0 %v2022
    %v2090 = vpop.f32.mrf.mxu0
    %v2091 = vadd.f32 %v248, %v2090
    %v2092 = vpop.f32.mrf.mxu0
    %2093 = vdwg.mxu0
    %2094 = vmatprep.subr.mxu0 0.0
    %2095 = vmatpush1.msra.mxu0 0.0
    %2096 = vmatprep.subr.mxu0 0.0
    %2097 = vmatpush1.msra.mxu0 0.0
    %2098 = vmatprep.subr.mxu0 0.0
    %2099 = vmatpush1.msra.mxu0 0.0
    %2100 = vmatprep.subr.mxu0 0.0
    %2101 = vmatpush1.msra.mxu0 0.0
    %2102 = vmatprep.subr.mxu0 0.0
    %2103 = vmatpush1.msra.mxu0 0.0
    %2104 = vmatprep.subr.mxu0 0.0
    %2105 = vmatpush1.msra.mxu0 0.0
    %2106 = vmatprep.subr.mxu0 0.0
    %2107 = vmatpush1.msra.mxu0 0.0
    %2108 = vmatprep.subr.mxu0 0.0
    %2109 = vmatpush1.msra.mxu0 0.0
    %2110 = vmatprep.subr.mxu0 0.0
    %2111 = vmatpush1.msra.mxu0 0.0
    %2112 = vmatprep.subr.mxu0 0.0
    %2113 = vmatpush1.msra.mxu0 0.0
    %2114 = vmatprep.subr.mxu0 0.0
    %2115 = vmatpush1.msra.mxu0 0.0
    %2116 = vmatprep.subr.mxu0 0.0
    %2117 = vmatpush1.msra.mxu0 0.0
    %2118 = vmatprep.subr.mxu0 0.0
    %2119 = vmatpush1.msra.mxu0 %v263
    %2120 = vmatprep.subr.mxu0 0.0
    %2121 = vmatpush1.msra.mxu0 %v262
    %2122 = vmatprep.subr.mxu0 0.0
    %2123 = vmatpush1.msra.mxu0 %v261
    %2124 = vmatprep.subr.mxu0 0.0
    %2125 = vmatpush1.msra.mxu0 %v260
    %2126 = vmatprep.subr.mxu0 0.0
    %2127 = vmatpush2.msra.mxu0 0.0
    %2128 = vmatprep.subr.mxu0 0.0
    %2129 = vmatpush2.msra.mxu0 0.0
    %2130 = vmatprep.subr.mxu0 0.0
    %2131 = vmatpush2.msra.mxu0 0.0
    %2132 = vmatprep.subr.mxu0 0.0
    %2133 = vmatpush2.msra.mxu0 0.0
    %2134 = vmatprep.subr.mxu0 0.0
    %2135 = vmatpush2.msra.mxu0 0.0
    %2136 = vmatprep.subr.mxu0 0.0
    %2137 = vmatpush2.msra.mxu0 0.0
    %2138 = vmatprep.subr.mxu0 0.0
    %2139 = vmatpush2.msra.mxu0 0.0
    %2140 = vmatprep.subr.mxu0 0.0
    %2141 = vmatpush2.msra.mxu0 0.0
    %2142 = vmatprep.subr.mxu0 0.0
    %2143 = vmatpush2.msra.mxu0 0.0
    %2144 = vmatprep.subr.mxu0 0.0
    %2145 = vmatpush2.msra.mxu0 0.0
    %2146 = vmatprep.subr.mxu0 0.0
    %2147 = vmatpush2.msra.mxu0 0.0
    %2148 = vmatprep.subr.mxu0 0.0
    %2149 = vmatpush2.msra.mxu0 0.0
    %2150 = vmatprep.subr.mxu0 0.0
    %2151 = vmatpush2.msra.mxu0 0.0
    %2152 = vmatprep.subr.mxu0 0.0
    %2153 = vmatpush2.msra.mxu0 0.0
    %2154 = vmatprep.subr.mxu0 0.0
    %2155 = vmatpush2.msra.mxu0 0.0
    %2156 = vmatprep.subr.mxu0 0.0
    %2157 = vmatpush2.msra.mxu0 0.0
    %2158 = vmatprep.mubr.f32.mxu0 0.0
    %2159 = vmatmul.mubr.f32.gmra.mxu0 %v1792
    %v2160 = vpop.f32.mrf.mxu0
    %v2161 = vadd.f32 0.0, %v2160
    %v2162 = vpop.f32.mrf.mxu0
    %2163 = vdwg.mxu0
    %v2164 = vadd.f32 %v1788, %v2161
    %v2165 = vxor.u32 %v2164, 2147483648
    %v2166 = vmul.f32 %v2165, 1.442695
    %v2167 = vpow.pop %v2166
    %v2168 = vadd.f32 %v2167, 1.0
    %v2169 = vrcp.pop %v2168
    %v2170 = vmul.f32 1.0, %v2169
    %v2171 = vadd.f32 %v2161, %v345
    %2173 = vrot.lane.b32.xlu0 %v2171, 64
    %v2174 = vpop.permute.xlu0 %2173
    %v2176 = vmul.f32 %v2170, %v2174
    %2178 = vrot.lane.b32.xlu0 %v2176, 64
    %v2179 = vpop.permute.xlu0 %2178
    %v2181 = vadd.f32 %v1788, %v2179
    %v2182 = vtanh.pop %v2181
    %v2183 = vsub.f32 %v1471, %v2182
    %2185 = vrot.lane.b32.xlu0 %v2183, 96
    %v2186 = vpop.permute.xlu0 %2185
    %v2188 = vmul.f32 %v2170, %v2186
    %2190 = vrot.lane.b32.xlu0 %v2188, 32
    %v2191 = vpop.permute.xlu0 %2190
    %v2193 = vadd.f32 %v2182, %v2191
    %2194 = vmatprep.subr.mxu0 0.0
    %2195 = vmatpush1.msra.mxu0 0.0
    %2196 = vmatprep.subr.mxu0 0.0
    %2197 = vmatpush1.msra.mxu0 0.0
    %2198 = vmatprep.subr.mxu0 0.0
    %2199 = vmatpush1.msra.mxu0 0.0
    %2200 = vmatprep.subr.mxu0 0.0
    %2201 = vmatpush1.msra.mxu0 0.0
    %2202 = vmatprep.subr.mxu0 0.0
    %2203 = vmatpush1.msra.mxu0 0.0
    %2204 = vmatprep.subr.mxu0 0.0
    %2205 = vmatpush1.msra.mxu0 0.0
    %2206 = vmatprep.subr.mxu0 0.0
    %2207 = vmatpush1.msra.mxu0 0.0
    %2208 = vmatprep.subr.mxu0 0.0
    %2209 = vmatpush1.msra.mxu0 0.0
    %2210 = vmatprep.subr.mxu0 0.0
    %2211 = vmatpush1.msra.mxu0 0.0
    %2212 = vmatprep.subr.mxu0 0.0
    %2213 = vmatpush1.msra.mxu0 0.0
    %2214 = vmatprep.subr.mxu0 0.0
    %2215 = vmatpush1.msra.mxu0 0.0
    %2216 = vmatprep.subr.mxu0 0.0
    %2217 = vmatpush1.msra.mxu0 0.0
    %2218 = vmatprep.subr.mxu0 0.0
    %2219 = vmatpush1.msra.mxu0 %v559
    %2220 = vmatprep.subr.mxu0 0.0
    %2221 = vmatpush1.msra.mxu0 %v558
    %2222 = vmatprep.subr.mxu0 0.0
    %2223 = vmatpush1.msra.mxu0 %v557
    %2224 = vmatprep.subr.mxu0 0.0
    %2225 = vmatpush1.msra.mxu0 %v556
    %2226 = vmatprep.subr.mxu0 0.0
    %2227 = vmatpush2.msra.mxu0 0.0
    %2228 = vmatprep.subr.mxu0 0.0
    %2229 = vmatpush2.msra.mxu0 0.0
    %2230 = vmatprep.subr.mxu0 0.0
    %2231 = vmatpush2.msra.mxu0 0.0
    %2232 = vmatprep.subr.mxu0 0.0
    %2233 = vmatpush2.msra.mxu0 0.0
    %2234 = vmatprep.subr.mxu0 0.0
    %2235 = vmatpush2.msra.mxu0 0.0
    %2236 = vmatprep.subr.mxu0 0.0
    %2237 = vmatpush2.msra.mxu0 0.0
    %2238 = vmatprep.subr.mxu0 0.0
    %2239 = vmatpush2.msra.mxu0 0.0
    %2240 = vmatprep.subr.mxu0 0.0
    %2241 = vmatpush2.msra.mxu0 0.0
    %2242 = vmatprep.subr.mxu0 0.0
    %2243 = vmatpush2.msra.mxu0 0.0
    %2244 = vmatprep.subr.mxu0 0.0
    %2245 = vmatpush2.msra.mxu0 0.0
    %2246 = vmatprep.subr.mxu0 0.0
    %2247 = vmatpush2.msra.mxu0 0.0
    %2248 = vmatprep.subr.mxu0 0.0
    %2249 = vmatpush2.msra.mxu0 0.0
    %2250 = vmatprep.subr.mxu0 0.0
    %2251 = vmatpush2.msra.mxu0 0.0
    %2252 = vmatprep.subr.mxu0 0.0
    %2253 = vmatpush2.msra.mxu0 0.0
    %2254 = vmatprep.subr.mxu0 0.0
    %2255 = vmatpush2.msra.mxu0 0.0
    %2256 = vmatprep.subr.mxu0 0.0
    %2257 = vmatpush2.msra.mxu0 0.0
    %2258 = vmatprep.mubr.f32.mxu0 0.0
    %2259 = vmatmul.mubr.f32.gmra.mxu0 %v1867
    %v2260 = vpop.f32.mrf.mxu0
    %v2261 = vadd.f32 0.0, %v2260
    %v2262 = vpop.f32.mrf.mxu0
    %2263 = vdwg.mxu0
    %v2264 = vadd.f32 %v1861, %v2261
    %v2265 = vxor.u32 %v2264, 2147483648
    %v2266 = vmul.f32 %v2265, 1.442695
    %v2267 = vpow.pop %v2266
    %v2268 = vadd.f32 %v2267, 1.0
    %v2269 = vrcp.pop %v2268
    %v2270 = vmul.f32 1.0, %v2269
    %v2271 = vadd.f32 %v2261, %v641
    %2273 = vrot.lane.b32.xlu0 %v2271, 64
    %v2274 = vpop.permute.xlu0 %2273
    %v2276 = vmul.f32 %v2270, %v2274
    %2278 = vrot.lane.b32.xlu0 %v2276, 64
    %v2279 = vpop.permute.xlu0 %2278
    %v2281 = vadd.f32 %v1861, %v2279
    %v2282 = vtanh.pop %v2281
    %v2283 = vsub.f32 %v1571, %v2282
    %2285 = vrot.lane.b32.xlu0 %v2283, 96
    %v2286 = vpop.permute.xlu0 %2285
    %v2288 = vmul.f32 %v2270, %v2286
    %2290 = vrot.lane.b32.xlu0 %v2288, 32
    %v2291 = vpop.permute.xlu0 %2290
    %v2293 = vadd.f32 %v2282, %v2291
    %2294 = vmatprep.subr.mxu0 0.0
    %2295 = vmatpush1.msra.mxu0 0.0
    %2296 = vmatprep.subr.mxu0 0.0
    %2297 = vmatpush1.msra.mxu0 0.0
    %2298 = vmatprep.subr.mxu0 0.0
    %2299 = vmatpush1.msra.mxu0 0.0
    %2300 = vmatprep.subr.mxu0 0.0
    %2301 = vmatpush1.msra.mxu0 0.0
    %2302 = vmatprep.subr.mxu0 0.0
    %2303 = vmatpush1.msra.mxu0 0.0
    %2304 = vmatprep.subr.mxu0 0.0
    %2305 = vmatpush1.msra.mxu0 0.0
    %2306 = vmatprep.subr.mxu0 0.0
    %2307 = vmatpush1.msra.mxu0 0.0
    %2308 = vmatprep.subr.mxu0 0.0
    %2309 = vmatpush1.msra.mxu0 0.0
    %2310 = vmatprep.subr.mxu0 0.0
    %2311 = vmatpush1.msra.mxu0 0.0
    %2312 = vmatprep.subr.mxu0 0.0
    %2313 = vmatpush1.msra.mxu0 0.0
    %2314 = vmatprep.subr.mxu0 0.0
    %2315 = vmatpush1.msra.mxu0 0.0
    %2316 = vmatprep.subr.mxu0 0.0
    %2317 = vmatpush1.msra.mxu0 0.0
    %2318 = vmatprep.subr.mxu0 0.0
    %2319 = vmatpush1.msra.mxu0 %v1030
    %2320 = vmatprep.subr.mxu0 0.0
    %2321 = vmatpush1.msra.mxu0 %v1029
    %2322 = vmatprep.subr.mxu0 0.0
    %2323 = vmatpush1.msra.mxu0 %v1028
    %2324 = vmatprep.subr.mxu0 0.0
    %2325 = vmatpush1.msra.mxu0 %v1027
    %2326 = vmatprep.subr.mxu0 0.0
    %2327 = vmatpush2.msra.mxu0 0.0
    %2328 = vmatprep.subr.mxu0 0.0
    %2329 = vmatpush2.msra.mxu0 0.0
    %2330 = vmatprep.subr.mxu0 0.0
    %2331 = vmatpush2.msra.mxu0 0.0
    %2332 = vmatprep.subr.mxu0 0.0
    %2333 = vmatpush2.msra.mxu0 0.0
    %2334 = vmatprep.subr.mxu0 0.0
    %2335 = vmatpush2.msra.mxu0 0.0
    %2336 = vmatprep.subr.mxu0 0.0
    %2337 = vmatpush2.msra.mxu0 0.0
    %2338 = vmatprep.subr.mxu0 0.0
    %2339 = vmatpush2.msra.mxu0 0.0
    %2340 = vmatprep.subr.mxu0 0.0
    %2341 = vmatpush2.msra.mxu0 0.0
    %2342 = vmatprep.subr.mxu0 0.0
    %2343 = vmatpush2.msra.mxu0 0.0
    %2344 = vmatprep.subr.mxu0 0.0
    %2345 = vmatpush2.msra.mxu0 0.0
    %2346 = vmatprep.subr.mxu0 0.0
    %2347 = vmatpush2.msra.mxu0 0.0
    %2348 = vmatprep.subr.mxu0 0.0
    %2349 = vmatpush2.msra.mxu0 0.0
    %2350 = vmatprep.subr.mxu0 0.0
    %2351 = vmatpush2.msra.mxu0 0.0
    %2352 = vmatprep.subr.mxu0 0.0
    %2353 = vmatpush2.msra.mxu0 0.0
    %2354 = vmatprep.subr.mxu0 0.0
    %2355 = vmatpush2.msra.mxu0 0.0
    %2356 = vmatprep.subr.mxu0 0.0
    %2357 = vmatpush2.msra.mxu0 0.0
    %2358 = vmatprep.mubr.f32.mxu0 0.0
    %2359 = vmatmul.mubr.f32.gmra.mxu0 %v1942
    %v2360 = vpop.f32.mrf.mxu0
    %v2361 = vadd.f32 0.0, %v2360
    %v2362 = vpop.f32.mrf.mxu0
    %2363 = vdwg.mxu0
    %v2364 = vadd.f32 %v1936, %v2361
    %v2365 = vxor.u32 %v2364, 2147483648
    %v2366 = vmul.f32 %v2365, 1.442695
    %v2367 = vpow.pop %v2366
    %v2368 = vadd.f32 %v2367, 1.0
    %v2369 = vrcp.pop %v2368
    %v2370 = vmul.f32 1.0, %v2369
    %v2371 = vadd.f32 %v2361, %v1112
    %2373 = vrot.lane.b32.xlu0 %v2371, 64
    %v2374 = vpop.permute.xlu0 %2373
    %v2376 = vmul.f32 %v2370, %v2374
    %2378 = vrot.lane.b32.xlu0 %v2376, 64
    %v2379 = vpop.permute.xlu0 %2378
    %v2381 = vadd.f32 %v1936, %v2379
    %v2382 = vtanh.pop %v2381
    %v2383 = vsub.f32 %v1671, %v2382
    %2385 = vrot.lane.b32.xlu0 %v2383, 96
    %v2386 = vpop.permute.xlu0 %2385
    %v2388 = vmul.f32 %v2370, %v2386
    %2390 = vrot.lane.b32.xlu0 %v2388, 32
    %v2391 = vpop.permute.xlu0 %2390
    %v2393 = vadd.f32 %v2382, %v2391
    %2394 = vmatprep.subr.mxu0 0.0
    %2395 = vmatpush1.msra.mxu0 0.0
    %2396 = vmatprep.subr.mxu0 0.0
    %2397 = vmatpush1.msra.mxu0 0.0
    %2398 = vmatprep.subr.mxu0 0.0
    %2399 = vmatpush1.msra.mxu0 0.0
    %2400 = vmatprep.subr.mxu0 0.0
    %2401 = vmatpush1.msra.mxu0 0.0
    %2402 = vmatprep.subr.mxu0 0.0
    %2403 = vmatpush1.msra.mxu0 0.0
    %2404 = vmatprep.subr.mxu0 0.0
    %2405 = vmatpush1.msra.mxu0 0.0
    %2406 = vmatprep.subr.mxu0 0.0
    %2407 = vmatpush1.msra.mxu0 0.0
    %2408 = vmatprep.subr.mxu0 0.0
    %2409 = vmatpush1.msra.mxu0 0.0
    %2410 = vmatprep.subr.mxu0 0.0
    %2411 = vmatpush1.msra.mxu0 0.0
    %2412 = vmatprep.subr.mxu0 0.0
    %2413 = vmatpush1.msra.mxu0 0.0
    %2414 = vmatprep.subr.mxu0 0.0
    %2415 = vmatpush1.msra.mxu0 0.0
    %2416 = vmatprep.subr.mxu0 0.0
    %2417 = vmatpush1.msra.mxu0 0.0
    %2418 = vmatprep.subr.mxu0 0.0
    %2419 = vmatpush1.msra.mxu0 %v1676
    %2420 = vmatprep.subr.mxu0 0.0
    %2421 = vmatpush1.msra.mxu0 %v1675
    %2422 = vmatprep.subr.mxu0 0.0
    %2423 = vmatpush1.msra.mxu0 %v1674
    %2424 = vmatprep.subr.mxu0 0.0
    %2425 = vmatpush1.msra.mxu0 %v1673
    %2426 = vmatprep.subr.mxu0 0.0
    %2427 = vmatpush2.msra.mxu0 0.0
    %2428 = vmatprep.subr.mxu0 0.0
    %2429 = vmatpush2.msra.mxu0 0.0
    %2430 = vmatprep.subr.mxu0 0.0
    %2431 = vmatpush2.msra.mxu0 0.0
    %2432 = vmatprep.subr.mxu0 0.0
    %2433 = vmatpush2.msra.mxu0 0.0
    %2434 = vmatprep.subr.mxu0 0.0
    %2435 = vmatpush2.msra.mxu0 0.0
    %2436 = vmatprep.subr.mxu0 0.0
    %2437 = vmatpush2.msra.mxu0 0.0
    %2438 = vmatprep.subr.mxu0 0.0
    %2439 = vmatpush2.msra.mxu0 0.0
    %2440 = vmatprep.subr.mxu0 0.0
    %2441 = vmatpush2.msra.mxu0 0.0
    %2442 = vmatprep.subr.mxu0 0.0
    %2443 = vmatpush2.msra.mxu0 0.0
    %2444 = vmatprep.subr.mxu0 0.0
    %2445 = vmatpush2.msra.mxu0 0.0
    %2446 = vmatprep.subr.mxu0 0.0
    %2447 = vmatpush2.msra.mxu0 0.0
    %2448 = vmatprep.subr.mxu0 0.0
    %2449 = vmatpush2.msra.mxu0 0.0
    %2450 = vmatprep.subr.mxu0 0.0
    %2451 = vmatpush2.msra.mxu0 0.0
    %2452 = vmatprep.subr.mxu0 0.0
    %2453 = vmatpush2.msra.mxu0 0.0
    %2454 = vmatprep.subr.mxu0 0.0
    %2455 = vmatpush2.msra.mxu0 0.0
    %2456 = vmatprep.subr.mxu0 0.0
    %2457 = vmatpush2.msra.mxu0 0.0
    %2458 = vmatprep.mubr.f32.mxu0 0.0
    %2459 = vmatmul.mubr.f32.gmra.mxu0 %v2022
    %v2460 = vpop.f32.mrf.mxu0
    %v2461 = vadd.f32 0.0, %v2460
    %v2462 = vpop.f32.mrf.mxu0
    %2463 = vdwg.mxu0
    %v2464 = vadd.f32 %v2011, %v2461
    %v2465 = vxor.u32 %v2464, 2147483648
    %v2466 = vmul.f32 %v2465, 1.442695
    %v2467 = vpow.pop %v2466
    %v2468 = vadd.f32 %v2467, 1.0
    %v2469 = vrcp.pop %v2468
    %v2470 = vmul.f32 1.0, %v2469
    %v2471 = vadd.f32 %v2461, %v1758
    %2473 = vrot.lane.b32.xlu0 %v2471, 64
    %v2474 = vpop.permute.xlu0 %2473
    %v2476 = vmul.f32 %v2470, %v2474
    %2478 = vrot.lane.b32.xlu0 %v2476, 64
    %v2479 = vpop.permute.xlu0 %2478
    %v2481 = vadd.f32 %v2011, %v2479
    %v2482 = vtanh.pop %v2481
    %v2483 = vsub.f32 %v1786, %v2482
    %2485 = vrot.lane.b32.xlu0 %v2483, 96
    %v2486 = vpop.permute.xlu0 %2485
    %v2488 = vmul.f32 %v2470, %v2486
    %2490 = vrot.lane.b32.xlu0 %v2488, 32
    %v2491 = vpop.permute.xlu0 %2490
    %v2493 = vadd.f32 %v2482, %v2491
    %s2494 = scalar_lea.vmem %s3, 128
    %v2495 = vld [vmem:[%s2494] sm:$0xff]
    %v2496 = vld [vmem:[%s2494 + $0x8] sm:$0xff]
    %v2497 = vld [vmem:[%s2494 + $0x10] sm:$0xff]
    %v2498 = vld [vmem:[%s2494 + $0x18] sm:$0xff]
    %v2500 = vsel %vm45, %v258, 0
    %2502 = vmatprep.subr.mxu0 0.0
    %2503 = vmatpush1.msra.mxu0 0.0
    %2504 = vmatprep.subr.mxu0 0.0
    %2505 = vmatpush1.msra.mxu0 0.0
    %2506 = vmatprep.subr.mxu0 0.0
    %2507 = vmatpush1.msra.mxu0 0.0
    %2508 = vmatprep.subr.mxu0 0.0
    %2509 = vmatpush1.msra.mxu0 0.0
    %2510 = vmatprep.subr.mxu0 0.0
    %2511 = vmatpush1.msra.mxu0 0.0
    %2512 = vmatprep.subr.mxu0 0.0
    %2513 = vmatpush1.msra.mxu0 0.0
    %2514 = vmatprep.subr.mxu0 0.0
    %2515 = vmatpush1.msra.mxu0 0.0
    %2516 = vmatprep.subr.mxu0 0.0
    %2517 = vmatpush1.msra.mxu0 0.0
    %2518 = vmatprep.subr.mxu0 0.0
    %2519 = vmatpush1.msra.mxu0 0.0
    %2520 = vmatprep.subr.mxu0 0.0
    %2521 = vmatpush1.msra.mxu0 0.0
    %2522 = vmatprep.subr.mxu0 0.0
    %2523 = vmatpush1.msra.mxu0 0.0
    %2524 = vmatprep.subr.mxu0 0.0
    %2525 = vmatpush1.msra.mxu0 0.0
    %2526 = vmatprep.subr.mxu0 0.0
    %2527 = vmatpush1.msra.mxu0 %v2498
    %2528 = vmatprep.subr.mxu0 0.0
    %2529 = vmatpush1.msra.mxu0 %v2497
    %2530 = vmatprep.subr.mxu0 0.0
    %2531 = vmatpush1.msra.mxu0 %v2496
    %2532 = vmatprep.subr.mxu0 0.0
    %2533 = vmatpush1.msra.mxu0 %v2495
    %2534 = vmatprep.subr.mxu0 0.0
    %2535 = vmatpush2.msra.mxu0 0.0
    %2536 = vmatprep.subr.mxu0 0.0
    %2537 = vmatpush2.msra.mxu0 0.0
    %2538 = vmatprep.subr.mxu0 0.0
    %2539 = vmatpush2.msra.mxu0 0.0
    %2540 = vmatprep.subr.mxu0 0.0
    %2541 = vmatpush2.msra.mxu0 0.0
    %2542 = vmatprep.subr.mxu0 0.0
    %2543 = vmatpush2.msra.mxu0 0.0
    %2544 = vmatprep.subr.mxu0 0.0
    %2545 = vmatpush2.msra.mxu0 0.0
    %2546 = vmatprep.subr.mxu0 0.0
    %2547 = vmatpush2.msra.mxu0 0.0
    %2548 = vmatprep.subr.mxu0 0.0
    %2549 = vmatpush2.msra.mxu0 0.0
    %2550 = vmatprep.subr.mxu0 0.0
    %2551 = vmatpush2.msra.mxu0 0.0
    %2552 = vmatprep.subr.mxu0 0.0
    %2553 = vmatpush2.msra.mxu0 0.0
    %2554 = vmatprep.subr.mxu0 0.0
    %2555 = vmatpush2.msra.mxu0 0.0
    %2556 = vmatprep.subr.mxu0 0.0
    %2557 = vmatpush2.msra.mxu0 0.0
    %2558 = vmatprep.subr.mxu0 0.0
    %2559 = vmatpush2.msra.mxu0 0.0
    %2560 = vmatprep.subr.mxu0 0.0
    %2561 = vmatpush2.msra.mxu0 0.0
    %2562 = vmatprep.subr.mxu0 0.0
    %2563 = vmatpush2.msra.mxu0 0.0
    %2564 = vmatprep.subr.mxu0 0.0
    %2565 = vmatpush2.msra.mxu0 0.0
    %2566 = vmatprep.mubr.f32.mxu0 0.0
    %2567 = vmatmul.mubr.f32.gmra.mxu0 %v2500
    %v2568 = vpop.f32.mrf.mxu0
    %v2569 = vadd.f32 0.0, %v2568
    %v2570 = vpop.f32.mrf.mxu0
    %2571 = vdwg.mxu0
    %v2572 = vadd.f32 %v2091, %v2569
    %v2573 = vxor.u32 %v2572, 2147483648
    %v2574 = vmul.f32 %v2573, 1.442695
    %v2575 = vpow.pop %v2574
    %v2576 = vadd.f32 %v2575, 1.0
    %v2577 = vrcp.pop %v2576
    %v2578 = vmul.f32 1.0, %v2577
    %2579 = vrot.lane.b32.xlu0 %v217, 64
    %v2580 = vpop.permute.xlu0 %2579
    %v2582 = vadd.f32 %v2569, %v2580
    %2584 = vrot.lane.b32.xlu0 %v2582, 64
    %v2585 = vpop.permute.xlu0 %2584
    %v2587 = vmul.f32 %v2578, %v2585
    %2589 = vrot.lane.b32.xlu0 %v2587, 64
    %v2590 = vpop.permute.xlu0 %2589
    %v2592 = vadd.f32 %v2091, %v2590
    %v2593 = vtanh.pop %v2592
    %2595 = vrot.lane.b32.xlu0 %v2593, 64
    %v2596 = vpop.permute.xlu0 %2595
    %v2598 = vsub.f32 %v258, %v2596
    %2600 = vrot.lane.b32.xlu0 %v2598, 32
    %v2601 = vpop.permute.xlu0 %2600
    %v2603 = vmul.f32 %v2578, %v2601
    %2605 = vrot.lane.b32.xlu0 %v2603, 32
    %v2606 = vpop.permute.xlu0 %2605
    %v2608 = vadd.f32 %v2593, %v2606
    %2610 = vrot.lane.b32.xlu0 %v2608, 64
    %v2611 = vpop.permute.xlu0 %2610
    %2613 = vst.msk [vmem:[%s6] sm:$0xff] %vm45, %v2611
    %s2614 = scalar_lea.vmem [#allocation2], 40
    %v2615 = vld [vmem:[%s2614] sm:$0xff]
    %v2616 = vld [vmem:[%s375] sm:$0xff]
    %v2617 = vld [vmem:[%s375 + $0x8] sm:$0xff]
    %v2618 = vld [vmem:[%s375 + $0x10] sm:$0xff]
    %v2619 = vld [vmem:[%s375 + $0x18] sm:$0xff]
    %2621 = vrot.lane.b32.xlu0 %v2193, 64
    %v2622 = vpop.permute.xlu0 %2621
    %v2623 = vsel %vm45, %v2622, 0
    %2625 = vmatprep.subr.mxu0 0.0
    %2626 = vmatpush1.msra.mxu0 0.0
    %2627 = vmatprep.subr.mxu0 0.0
    %2628 = vmatpush1.msra.mxu0 0.0
    %2629 = vmatprep.subr.mxu0 0.0
    %2630 = vmatpush1.msra.mxu0 0.0
    %2631 = vmatprep.subr.mxu0 0.0
    %2632 = vmatpush1.msra.mxu0 0.0
    %2633 = vmatprep.subr.mxu0 0.0
    %2634 = vmatpush1.msra.mxu0 0.0
    %2635 = vmatprep.subr.mxu0 0.0
    %2636 = vmatpush1.msra.mxu0 0.0
    %2637 = vmatprep.subr.mxu0 0.0
    %2638 = vmatpush1.msra.mxu0 0.0
    %2639 = vmatprep.subr.mxu0 0.0
    %2640 = vmatpush1.msra.mxu0 0.0
    %2641 = vmatprep.subr.mxu0 0.0
    %2642 = vmatpush1.msra.mxu0 0.0
    %2643 = vmatprep.subr.mxu0 0.0
    %2644 = vmatpush1.msra.mxu0 0.0
    %2645 = vmatprep.subr.mxu0 0.0
    %2646 = vmatpush1.msra.mxu0 0.0
    %2647 = vmatprep.subr.mxu0 0.0
    %2648 = vmatpush1.msra.mxu0 0.0
    %2649 = vmatprep.subr.mxu0 0.0
    %2650 = vmatpush1.msra.mxu0 %v2619
    %2651 = vmatprep.subr.mxu0 0.0
    %2652 = vmatpush1.msra.mxu0 %v2618
    %2653 = vmatprep.subr.mxu0 0.0
    %2654 = vmatpush1.msra.mxu0 %v2617
    %2655 = vmatprep.subr.mxu0 0.0
    %2656 = vmatpush1.msra.mxu0 %v2616
    %2657 = vmatprep.subr.mxu0 0.0
    %2658 = vmatpush2.msra.mxu0 0.0
    %2659 = vmatprep.subr.mxu0 0.0
    %2660 = vmatpush2.msra.mxu0 0.0
    %2661 = vmatprep.subr.mxu0 0.0
    %2662 = vmatpush2.msra.mxu0 0.0
    %2663 = vmatprep.subr.mxu0 0.0
    %2664 = vmatpush2.msra.mxu0 0.0
    %2665 = vmatprep.subr.mxu0 0.0
    %2666 = vmatpush2.msra.mxu0 0.0
    %2667 = vmatprep.subr.mxu0 0.0
    %2668 = vmatpush2.msra.mxu0 0.0
    %2669 = vmatprep.subr.mxu0 0.0
    %2670 = vmatpush2.msra.mxu0 0.0
    %2671 = vmatprep.subr.mxu0 0.0
    %2672 = vmatpush2.msra.mxu0 0.0
    %2673 = vmatprep.subr.mxu0 0.0
    %2674 = vmatpush2.msra.mxu0 0.0
    %2675 = vmatprep.subr.mxu0 0.0
    %2676 = vmatpush2.msra.mxu0 0.0
    %2677 = vmatprep.subr.mxu0 0.0
    %2678 = vmatpush2.msra.mxu0 0.0
    %2679 = vmatprep.subr.mxu0 0.0
    %2680 = vmatpush2.msra.mxu0 0.0
    %2681 = vmatprep.subr.mxu0 0.0
    %2682 = vmatpush2.msra.mxu0 0.0
    %2683 = vmatprep.subr.mxu0 0.0
    %2684 = vmatpush2.msra.mxu0 0.0
    %2685 = vmatprep.subr.mxu0 0.0
    %2686 = vmatpush2.msra.mxu0 0.0
    %2687 = vmatprep.subr.mxu0 0.0
    %2688 = vmatpush2.msra.mxu0 0.0
    %2689 = vmatprep.mubr.f32.mxu0 0.0
    %2690 = vmatmul.mubr.f32.gmra.mxu0 %v2623
    %v2691 = vpop.f32.mrf.mxu0
    %v2692 = vadd.f32 %v224, %v2691
    %v2693 = vpop.f32.mrf.mxu0
    %2694 = vdwg.mxu0
    %v2695 = vld [vmem:[%s746] sm:$0xff]
    %v2696 = vld [vmem:[%s746 + $0x8] sm:$0xff]
    %v2697 = vld [vmem:[%s746 + $0x10] sm:$0xff]
    %v2698 = vld [vmem:[%s746 + $0x18] sm:$0xff]
    %2700 = vrot.lane.b32.xlu0 %v2293, 64
    %v2701 = vpop.permute.xlu0 %2700
    %v2702 = vsel %vm45, %v2701, 0
    %2704 = vmatprep.subr.mxu0 0.0
    %2705 = vmatpush1.msra.mxu0 0.0
    %2706 = vmatprep.subr.mxu0 0.0
    %2707 = vmatpush1.msra.mxu0 0.0
    %2708 = vmatprep.subr.mxu0 0.0
    %2709 = vmatpush1.msra.mxu0 0.0
    %2710 = vmatprep.subr.mxu0 0.0
    %2711 = vmatpush1.msra.mxu0 0.0
    %2712 = vmatprep.subr.mxu0 0.0
    %2713 = vmatpush1.msra.mxu0 0.0
    %2714 = vmatprep.subr.mxu0 0.0
    %2715 = vmatpush1.msra.mxu0 0.0
    %2716 = vmatprep.subr.mxu0 0.0
    %2717 = vmatpush1.msra.mxu0 0.0
    %2718 = vmatprep.subr.mxu0 0.0
    %2719 = vmatpush1.msra.mxu0 0.0
    %2720 = vmatprep.subr.mxu0 0.0
    %2721 = vmatpush1.msra.mxu0 0.0
    %2722 = vmatprep.subr.mxu0 0.0
    %2723 = vmatpush1.msra.mxu0 0.0
    %2724 = vmatprep.subr.mxu0 0.0
    %2725 = vmatpush1.msra.mxu0 0.0
    %2726 = vmatprep.subr.mxu0 0.0
    %2727 = vmatpush1.msra.mxu0 0.0
    %2728 = vmatprep.subr.mxu0 0.0
    %2729 = vmatpush1.msra.mxu0 %v2698
    %2730 = vmatprep.subr.mxu0 0.0
    %2731 = vmatpush1.msra.mxu0 %v2697
    %2732 = vmatprep.subr.mxu0 0.0
    %2733 = vmatpush1.msra.mxu0 %v2696
    %2734 = vmatprep.subr.mxu0 0.0
    %2735 = vmatpush1.msra.mxu0 %v2695
    %2736 = vmatprep.subr.mxu0 0.0
    %2737 = vmatpush2.msra.mxu0 0.0
    %2738 = vmatprep.subr.mxu0 0.0
    %2739 = vmatpush2.msra.mxu0 0.0
    %2740 = vmatprep.subr.mxu0 0.0
    %2741 = vmatpush2.msra.mxu0 0.0
    %2742 = vmatprep.subr.mxu0 0.0
    %2743 = vmatpush2.msra.mxu0 0.0
    %2744 = vmatprep.subr.mxu0 0.0
    %2745 = vmatpush2.msra.mxu0 0.0
    %2746 = vmatprep.subr.mxu0 0.0
    %2747 = vmatpush2.msra.mxu0 0.0
    %2748 = vmatprep.subr.mxu0 0.0
    %2749 = vmatpush2.msra.mxu0 0.0
    %2750 = vmatprep.subr.mxu0 0.0
    %2751 = vmatpush2.msra.mxu0 0.0
    %2752 = vmatprep.subr.mxu0 0.0
    %2753 = vmatpush2.msra.mxu0 0.0
    %2754 = vmatprep.subr.mxu0 0.0
    %2755 = vmatpush2.msra.mxu0 0.0
    %2756 = vmatprep.subr.mxu0 0.0
    %2757 = vmatpush2.msra.mxu0 0.0
    %2758 = vmatprep.subr.mxu0 0.0
    %2759 = vmatpush2.msra.mxu0 0.0
    %2760 = vmatprep.subr.mxu0 0.0
    %2761 = vmatpush2.msra.mxu0 0.0
    %2762 = vmatprep.subr.mxu0 0.0
    %2763 = vmatpush2.msra.mxu0 0.0
    %2764 = vmatprep.subr.mxu0 0.0
    %2765 = vmatpush2.msra.mxu0 0.0
    %2766 = vmatprep.subr.mxu0 0.0
    %2767 = vmatpush2.msra.mxu0 0.0
    %2768 = vmatprep.mubr.f32.mxu0 0.0
    %2769 = vmatmul.mubr.f32.gmra.mxu0 %v2702
    %v2770 = vpop.f32.mrf.mxu0
    %v2771 = vadd.f32 %v232, %v2770
    %v2772 = vpop.f32.mrf.mxu0
    %2773 = vdwg.mxu0
    %v2774 = vld [vmem:[%s1292] sm:$0xff]
    %v2775 = vld [vmem:[%s1292 + $0x8] sm:$0xff]
    %v2776 = vld [vmem:[%s1292 + $0x10] sm:$0xff]
    %v2777 = vld [vmem:[%s1292 + $0x18] sm:$0xff]
    %2779 = vrot.lane.b32.xlu0 %v2393, 64
    %v2780 = vpop.permute.xlu0 %2779
    %v2781 = vsel %vm45, %v2780, 0
    %2783 = vmatprep.subr.mxu0 0.0
    %2784 = vmatpush1.msra.mxu0 0.0
    %2785 = vmatprep.subr.mxu0 0.0
    %2786 = vmatpush1.msra.mxu0 0.0
    %2787 = vmatprep.subr.mxu0 0.0
    %2788 = vmatpush1.msra.mxu0 0.0
    %2789 = vmatprep.subr.mxu0 0.0
    %2790 = vmatpush1.msra.mxu0 0.0
    %2791 = vmatprep.subr.mxu0 0.0
    %2792 = vmatpush1.msra.mxu0 0.0
    %2793 = vmatprep.subr.mxu0 0.0
    %2794 = vmatpush1.msra.mxu0 0.0
    %2795 = vmatprep.subr.mxu0 0.0
    %2796 = vmatpush1.msra.mxu0 0.0
    %2797 = vmatprep.subr.mxu0 0.0
    %2798 = vmatpush1.msra.mxu0 0.0
    %2799 = vmatprep.subr.mxu0 0.0
    %2800 = vmatpush1.msra.mxu0 0.0
    %2801 = vmatprep.subr.mxu0 0.0
    %2802 = vmatpush1.msra.mxu0 0.0
    %2803 = vmatprep.subr.mxu0 0.0
    %2804 = vmatpush1.msra.mxu0 0.0
    %2805 = vmatprep.subr.mxu0 0.0
    %2806 = vmatpush1.msra.mxu0 0.0
    %2807 = vmatprep.subr.mxu0 0.0
    %2808 = vmatpush1.msra.mxu0 %v2777
    %2809 = vmatprep.subr.mxu0 0.0
    %2810 = vmatpush1.msra.mxu0 %v2776
    %2811 = vmatprep.subr.mxu0 0.0
    %2812 = vmatpush1.msra.mxu0 %v2775
    %2813 = vmatprep.subr.mxu0 0.0
    %2814 = vmatpush1.msra.mxu0 %v2774
    %2815 = vmatprep.subr.mxu0 0.0
    %2816 = vmatpush2.msra.mxu0 0.0
    %2817 = vmatprep.subr.mxu0 0.0
    %2818 = vmatpush2.msra.mxu0 0.0
    %2819 = vmatprep.subr.mxu0 0.0
    %2820 = vmatpush2.msra.mxu0 0.0
    %2821 = vmatprep.subr.mxu0 0.0
    %2822 = vmatpush2.msra.mxu0 0.0
    %2823 = vmatprep.subr.mxu0 0.0
    %2824 = vmatpush2.msra.mxu0 0.0
    %2825 = vmatprep.subr.mxu0 0.0
    %2826 = vmatpush2.msra.mxu0 0.0
    %2827 = vmatprep.subr.mxu0 0.0
    %2828 = vmatpush2.msra.mxu0 0.0
    %2829 = vmatprep.subr.mxu0 0.0
    %2830 = vmatpush2.msra.mxu0 0.0
    %2831 = vmatprep.subr.mxu0 0.0
    %2832 = vmatpush2.msra.mxu0 0.0
    %2833 = vmatprep.subr.mxu0 0.0
    %2834 = vmatpush2.msra.mxu0 0.0
    %2835 = vmatprep.subr.mxu0 0.0
    %2836 = vmatpush2.msra.mxu0 0.0
    %2837 = vmatprep.subr.mxu0 0.0
    %2838 = vmatpush2.msra.mxu0 0.0
    %2839 = vmatprep.subr.mxu0 0.0
    %2840 = vmatpush2.msra.mxu0 0.0
    %2841 = vmatprep.subr.mxu0 0.0
    %2842 = vmatpush2.msra.mxu0 0.0
    %2843 = vmatprep.subr.mxu0 0.0
    %2844 = vmatpush2.msra.mxu0 0.0
    %2845 = vmatprep.subr.mxu0 0.0
    %2846 = vmatpush2.msra.mxu0 0.0
    %2847 = vmatprep.mubr.f32.mxu0 0.0
    %2848 = vmatmul.mubr.f32.gmra.mxu0 %v2781
    %v2849 = vpop.f32.mrf.mxu0
    %v2850 = vadd.f32 %v240, %v2849
    %v2851 = vpop.f32.mrf.mxu0
    %2852 = vdwg.mxu0
    %v2853 = vld [vmem:[%s2014] sm:$0xff]
    %v2854 = vld [vmem:[%s2014 + $0x8] sm:$0xff]
    %v2855 = vld [vmem:[%s2014 + $0x10] sm:$0xff]
    %v2856 = vld [vmem:[%s2014 + $0x18] sm:$0xff]
    %2858 = vrot.lane.b32.xlu0 %v2493, 64
    %v2859 = vpop.permute.xlu0 %2858
    %v2860 = vsel %vm45, %v2859, 0
    %2862 = vmatprep.subr.mxu0 0.0
    %2863 = vmatpush1.msra.mxu0 0.0
    %2864 = vmatprep.subr.mxu0 0.0
    %2865 = vmatpush1.msra.mxu0 0.0
    %2866 = vmatprep.subr.mxu0 0.0
    %2867 = vmatpush1.msra.mxu0 0.0
    %2868 = vmatprep.subr.mxu0 0.0
    %2869 = vmatpush1.msra.mxu0 0.0
    %2870 = vmatprep.subr.mxu0 0.0
    %2871 = vmatpush1.msra.mxu0 0.0
    %2872 = vmatprep.subr.mxu0 0.0
    %2873 = vmatpush1.msra.mxu0 0.0
    %2874 = vmatprep.subr.mxu0 0.0
    %2875 = vmatpush1.msra.mxu0 0.0
    %2876 = vmatprep.subr.mxu0 0.0
    %2877 = vmatpush1.msra.mxu0 0.0
    %2878 = vmatprep.subr.mxu0 0.0
    %2879 = vmatpush1.msra.mxu0 0.0
    %2880 = vmatprep.subr.mxu0 0.0
    %2881 = vmatpush1.msra.mxu0 0.0
    %2882 = vmatprep.subr.mxu0 0.0
    %2883 = vmatpush1.msra.mxu0 0.0
    %2884 = vmatprep.subr.mxu0 0.0
    %2885 = vmatpush1.msra.mxu0 0.0
    %2886 = vmatprep.subr.mxu0 0.0
    %2887 = vmatpush1.msra.mxu0 %v2856
    %2888 = vmatprep.subr.mxu0 0.0
    %2889 = vmatpush1.msra.mxu0 %v2855
    %2890 = vmatprep.subr.mxu0 0.0
    %2891 = vmatpush1.msra.mxu0 %v2854
    %2892 = vmatprep.subr.mxu0 0.0
    %2893 = vmatpush1.msra.mxu0 %v2853
    %2894 = vmatprep.subr.mxu0 0.0
    %2895 = vmatpush2.msra.mxu0 0.0
    %2896 = vmatprep.subr.mxu0 0.0
    %2897 = vmatpush2.msra.mxu0 0.0
    %2898 = vmatprep.subr.mxu0 0.0
    %2899 = vmatpush2.msra.mxu0 0.0
    %2900 = vmatprep.subr.mxu0 0.0
    %2901 = vmatpush2.msra.mxu0 0.0
    %2902 = vmatprep.subr.mxu0 0.0
    %2903 = vmatpush2.msra.mxu0 0.0
    %2904 = vmatprep.subr.mxu0 0.0
    %2905 = vmatpush2.msra.mxu0 0.0
    %2906 = vmatprep.subr.mxu0 0.0
    %2907 = vmatpush2.msra.mxu0 0.0
    %2908 = vmatprep.subr.mxu0 0.0
    %2909 = vmatpush2.msra.mxu0 0.0
    %2910 = vmatprep.subr.mxu0 0.0
    %2911 = vmatpush2.msra.mxu0 0.0
    %2912 = vmatprep.subr.mxu0 0.0
    %2913 = vmatpush2.msra.mxu0 0.0
    %2914 = vmatprep.subr.mxu0 0.0
    %2915 = vmatpush2.msra.mxu0 0.0
    %2916 = vmatprep.subr.mxu0 0.0
    %2917 = vmatpush2.msra.mxu0 0.0
    %2918 = vmatprep.subr.mxu0 0.0
    %2919 = vmatpush2.msra.mxu0 0.0
    %2920 = vmatprep.subr.mxu0 0.0
    %2921 = vmatpush2.msra.mxu0 0.0
    %2922 = vmatprep.subr.mxu0 0.0
    %2923 = vmatpush2.msra.mxu0 0.0
    %2924 = vmatprep.subr.mxu0 0.0
    %2925 = vmatpush2.msra.mxu0 0.0
    %2926 = vmatprep.mubr.f32.mxu0 0.0
    %2927 = vmatmul.mubr.f32.gmra.mxu0 %v2860
    %v2928 = vpop.f32.mrf.mxu0
    %v2929 = vadd.f32 %v248, %v2928
    %v2930 = vpop.f32.mrf.mxu0
    %2931 = vdwg.mxu0
    %v2932 = vld [vmem:[%s3] sm:$0xff]
    %v2933 = vld [vmem:[%s3 + $0x8] sm:$0xff]
    %v2934 = vld [vmem:[%s3 + $0x10] sm:$0xff]
    %v2935 = vld [vmem:[%s3 + $0x18] sm:$0xff]
    %2936 = vmatprep.subr.mxu0 0.0
    %2937 = vmatpush1.msra.mxu0 0.0
    %2938 = vmatprep.subr.mxu0 0.0
    %2939 = vmatpush1.msra.mxu0 0.0
    %2940 = vmatprep.subr.mxu0 0.0
    %2941 = vmatpush1.msra.mxu0 0.0
    %2942 = vmatprep.subr.mxu0 0.0
    %2943 = vmatpush1.msra.mxu0 0.0
    %2944 = vmatprep.subr.mxu0 0.0
    %2945 = vmatpush1.msra.mxu0 0.0
    %2946 = vmatprep.subr.mxu0 0.0
    %2947 = vmatpush1.msra.mxu0 0.0
    %2948 = vmatprep.subr.mxu0 0.0
    %2949 = vmatpush1.msra.mxu0 0.0
    %2950 = vmatprep.subr.mxu0 0.0
    %2951 = vmatpush1.msra.mxu0 0.0
    %2952 = vmatprep.subr.mxu0 0.0
    %2953 = vmatpush1.msra.mxu0 0.0
    %2954 = vmatprep.subr.mxu0 0.0
    %2955 = vmatpush1.msra.mxu0 0.0
    %2956 = vmatprep.subr.mxu0 0.0
    %2957 = vmatpush1.msra.mxu0 0.0
    %2958 = vmatprep.subr.mxu0 0.0
    %2959 = vmatpush1.msra.mxu0 0.0
    %2960 = vmatprep.subr.mxu0 0.0
    %2961 = vmatpush1.msra.mxu0 %v2935
    %2962 = vmatprep.subr.mxu0 0.0
    %2963 = vmatpush1.msra.mxu0 %v2934
    %2964 = vmatprep.subr.mxu0 0.0
    %2965 = vmatpush1.msra.mxu0 %v2933
    %2966 = vmatprep.subr.mxu0 0.0
    %2967 = vmatpush1.msra.mxu0 %v2932
    %2968 = vmatprep.subr.mxu0 0.0
    %2969 = vmatpush2.msra.mxu0 0.0
    %2970 = vmatprep.subr.mxu0 0.0
    %2971 = vmatpush2.msra.mxu0 0.0
    %2972 = vmatprep.subr.mxu0 0.0
    %2973 = vmatpush2.msra.mxu0 0.0
    %2974 = vmatprep.subr.mxu0 0.0
    %2975 = vmatpush2.msra.mxu0 0.0
    %2976 = vmatprep.subr.mxu0 0.0
    %2977 = vmatpush2.msra.mxu0 0.0
    %2978 = vmatprep.subr.mxu0 0.0
    %2979 = vmatpush2.msra.mxu0 0.0
    %2980 = vmatprep.subr.mxu0 0.0
    %2981 = vmatpush2.msra.mxu0 0.0
    %2982 = vmatprep.subr.mxu0 0.0
    %2983 = vmatpush2.msra.mxu0 0.0
    %2984 = vmatprep.subr.mxu0 0.0
    %2985 = vmatpush2.msra.mxu0 0.0
    %2986 = vmatprep.subr.mxu0 0.0
    %2987 = vmatpush2.msra.mxu0 0.0
    %2988 = vmatprep.subr.mxu0 0.0
    %2989 = vmatpush2.msra.mxu0 0.0
    %2990 = vmatprep.subr.mxu0 0.0
    %2991 = vmatpush2.msra.mxu0 0.0
    %2992 = vmatprep.subr.mxu0 0.0
    %2993 = vmatpush2.msra.mxu0 0.0
    %2994 = vmatprep.subr.mxu0 0.0
    %2995 = vmatpush2.msra.mxu0 0.0
    %2996 = vmatprep.subr.mxu0 0.0
    %2997 = vmatpush2.msra.mxu0 0.0
    %2998 = vmatprep.subr.mxu0 0.0
    %2999 = vmatpush2.msra.mxu0 0.0
    %3000 = vmatprep.mubr.f32.mxu0 0.0
    %3001 = vmatmul.mubr.f32.gmra.mxu0 %v2623
    %v3002 = vpop.f32.mrf.mxu0
    %v3003 = vadd.f32 0.0, %v3002
    %v3004 = vpop.f32.mrf.mxu0
    %3005 = vdwg.mxu0
    %v3006 = vadd.f32 %v2615, %v3003
    %v3007 = vxor.u32 %v3006, 2147483648
    %v3008 = vmul.f32 %v3007, 1.442695
    %v3009 = vpow.pop %v3008
    %v3010 = vadd.f32 %v3009, 1.0
    %v3011 = vrcp.pop %v3010
    %v3012 = vmul.f32 1.0, %v3011
    %v3013 = vadd.f32 %v3003, %v345
    %3015 = vrot.lane.b32.xlu0 %v3013, 64
    %v3016 = vpop.permute.xlu0 %3015
    %v3018 = vmul.f32 %v3012, %v3016
    %3020 = vrot.lane.b32.xlu0 %v3018, 64
    %v3021 = vpop.permute.xlu0 %3020
    %v3023 = vadd.f32 %v2615, %v3021
    %v3024 = vtanh.pop %v3023
    %v3025 = vsub.f32 %v2193, %v3024
    %3027 = vrot.lane.b32.xlu0 %v3025, 96
    %v3028 = vpop.permute.xlu0 %3027
    %v3030 = vmul.f32 %v3012, %v3028
    %3032 = vrot.lane.b32.xlu0 %v3030, 32
    %v3033 = vpop.permute.xlu0 %3032
    %v3035 = vadd.f32 %v3024, %v3033
    %v3036 = vld [vmem:[%s555] sm:$0xff]
    %v3037 = vld [vmem:[%s555 + $0x8] sm:$0xff]
    %v3038 = vld [vmem:[%s555 + $0x10] sm:$0xff]
    %v3039 = vld [vmem:[%s555 + $0x18] sm:$0xff]
    %3040 = vmatprep.subr.mxu0 0.0
    %3041 = vmatpush1.msra.mxu0 0.0
    %3042 = vmatprep.subr.mxu0 0.0
    %3043 = vmatpush1.msra.mxu0 0.0
    %3044 = vmatprep.subr.mxu0 0.0
    %3045 = vmatpush1.msra.mxu0 0.0
    %3046 = vmatprep.subr.mxu0 0.0
    %3047 = vmatpush1.msra.mxu0 0.0
    %3048 = vmatprep.subr.mxu0 0.0
    %3049 = vmatpush1.msra.mxu0 0.0
    %3050 = vmatprep.subr.mxu0 0.0
    %3051 = vmatpush1.msra.mxu0 0.0
    %3052 = vmatprep.subr.mxu0 0.0
    %3053 = vmatpush1.msra.mxu0 0.0
    %3054 = vmatprep.subr.mxu0 0.0
    %3055 = vmatpush1.msra.mxu0 0.0
    %3056 = vmatprep.subr.mxu0 0.0
    %3057 = vmatpush1.msra.mxu0 0.0
    %3058 = vmatprep.subr.mxu0 0.0
    %3059 = vmatpush1.msra.mxu0 0.0
    %3060 = vmatprep.subr.mxu0 0.0
    %3061 = vmatpush1.msra.mxu0 0.0
    %3062 = vmatprep.subr.mxu0 0.0
    %3063 = vmatpush1.msra.mxu0 0.0
    %3064 = vmatprep.subr.mxu0 0.0
    %3065 = vmatpush1.msra.mxu0 %v3039
    %3066 = vmatprep.subr.mxu0 0.0
    %3067 = vmatpush1.msra.mxu0 %v3038
    %3068 = vmatprep.subr.mxu0 0.0
    %3069 = vmatpush1.msra.mxu0 %v3037
    %3070 = vmatprep.subr.mxu0 0.0
    %3071 = vmatpush1.msra.mxu0 %v3036
    %3072 = vmatprep.subr.mxu0 0.0
    %3073 = vmatpush2.msra.mxu0 0.0
    %3074 = vmatprep.subr.mxu0 0.0
    %3075 = vmatpush2.msra.mxu0 0.0
    %3076 = vmatprep.subr.mxu0 0.0
    %3077 = vmatpush2.msra.mxu0 0.0
    %3078 = vmatprep.subr.mxu0 0.0
    %3079 = vmatpush2.msra.mxu0 0.0
    %3080 = vmatprep.subr.mxu0 0.0
    %3081 = vmatpush2.msra.mxu0 0.0
    %3082 = vmatprep.subr.mxu0 0.0
    %3083 = vmatpush2.msra.mxu0 0.0
    %3084 = vmatprep.subr.mxu0 0.0
    %3085 = vmatpush2.msra.mxu0 0.0
    %3086 = vmatprep.subr.mxu0 0.0
    %3087 = vmatpush2.msra.mxu0 0.0
    %3088 = vmatprep.subr.mxu0 0.0
    %3089 = vmatpush2.msra.mxu0 0.0
    %3090 = vmatprep.subr.mxu0 0.0
    %3091 = vmatpush2.msra.mxu0 0.0
    %3092 = vmatprep.subr.mxu0 0.0
    %3093 = vmatpush2.msra.mxu0 0.0
    %3094 = vmatprep.subr.mxu0 0.0
    %3095 = vmatpush2.msra.mxu0 0.0
    %3096 = vmatprep.subr.mxu0 0.0
    %3097 = vmatpush2.msra.mxu0 0.0
    %3098 = vmatprep.subr.mxu0 0.0
    %3099 = vmatpush2.msra.mxu0 0.0
    %3100 = vmatprep.subr.mxu0 0.0
    %3101 = vmatpush2.msra.mxu0 0.0
    %3102 = vmatprep.subr.mxu0 0.0
    %3103 = vmatpush2.msra.mxu0 0.0
    %3104 = vmatprep.mubr.f32.mxu0 0.0
    %3105 = vmatmul.mubr.f32.gmra.mxu0 %v2702
    %v3106 = vpop.f32.mrf.mxu0
    %v3107 = vadd.f32 0.0, %v3106
    %v3108 = vpop.f32.mrf.mxu0
    %3109 = vdwg.mxu0
    %v3110 = vadd.f32 %v2692, %v3107
    %v3111 = vxor.u32 %v3110, 2147483648
    %v3112 = vmul.f32 %v3111, 1.442695
    %v3113 = vpow.pop %v3112
    %v3114 = vadd.f32 %v3113, 1.0
    %v3115 = vrcp.pop %v3114
    %v3116 = vmul.f32 1.0, %v3115
    %v3117 = vadd.f32 %v3107, %v641
    %3119 = vrot.lane.b32.xlu0 %v3117, 64
    %v3120 = vpop.permute.xlu0 %3119
    %v3122 = vmul.f32 %v3116, %v3120
    %3124 = vrot.lane.b32.xlu0 %v3122, 64
    %v3125 = vpop.permute.xlu0 %3124
    %v3127 = vadd.f32 %v2692, %v3125
    %v3128 = vtanh.pop %v3127
    %v3129 = vsub.f32 %v2293, %v3128
    %3131 = vrot.lane.b32.xlu0 %v3129, 96
    %v3132 = vpop.permute.xlu0 %3131
    %v3134 = vmul.f32 %v3116, %v3132
    %3136 = vrot.lane.b32.xlu0 %v3134, 32
    %v3137 = vpop.permute.xlu0 %3136
    %v3139 = vadd.f32 %v3128, %v3137
    %v3140 = vld [vmem:[%s1026] sm:$0xff]
    %v3141 = vld [vmem:[%s1026 + $0x8] sm:$0xff]
    %v3142 = vld [vmem:[%s1026 + $0x10] sm:$0xff]
    %v3143 = vld [vmem:[%s1026 + $0x18] sm:$0xff]
    %3144 = vmatprep.subr.mxu0 0.0
    %3145 = vmatpush1.msra.mxu0 0.0
    %3146 = vmatprep.subr.mxu0 0.0
    %3147 = vmatpush1.msra.mxu0 0.0
    %3148 = vmatprep.subr.mxu0 0.0
    %3149 = vmatpush1.msra.mxu0 0.0
    %3150 = vmatprep.subr.mxu0 0.0
    %3151 = vmatpush1.msra.mxu0 0.0
    %3152 = vmatprep.subr.mxu0 0.0
    %3153 = vmatpush1.msra.mxu0 0.0
    %3154 = vmatprep.subr.mxu0 0.0
    %3155 = vmatpush1.msra.mxu0 0.0
    %3156 = vmatprep.subr.mxu0 0.0
    %3157 = vmatpush1.msra.mxu0 0.0
    %3158 = vmatprep.subr.mxu0 0.0
    %3159 = vmatpush1.msra.mxu0 0.0
    %3160 = vmatprep.subr.mxu0 0.0
    %3161 = vmatpush1.msra.mxu0 0.0
    %3162 = vmatprep.subr.mxu0 0.0
    %3163 = vmatpush1.msra.mxu0 0.0
    %3164 = vmatprep.subr.mxu0 0.0
    %3165 = vmatpush1.msra.mxu0 0.0
    %3166 = vmatprep.subr.mxu0 0.0
    %3167 = vmatpush1.msra.mxu0 0.0
    %3168 = vmatprep.subr.mxu0 0.0
    %3169 = vmatpush1.msra.mxu0 %v3143
    %3170 = vmatprep.subr.mxu0 0.0
    %3171 = vmatpush1.msra.mxu0 %v3142
    %3172 = vmatprep.subr.mxu0 0.0
    %3173 = vmatpush1.msra.mxu0 %v3141
    %3174 = vmatprep.subr.mxu0 0.0
    %3175 = vmatpush1.msra.mxu0 %v3140
    %3176 = vmatprep.subr.mxu0 0.0
    %3177 = vmatpush2.msra.mxu0 0.0
    %3178 = vmatprep.subr.mxu0 0.0
    %3179 = vmatpush2.msra.mxu0 0.0
    %3180 = vmatprep.subr.mxu0 0.0
    %3181 = vmatpush2.msra.mxu0 0.0
    %3182 = vmatprep.subr.mxu0 0.0
    %3183 = vmatpush2.msra.mxu0 0.0
    %3184 = vmatprep.subr.mxu0 0.0
    %3185 = vmatpush2.msra.mxu0 0.0
    %3186 = vmatprep.subr.mxu0 0.0
    %3187 = vmatpush2.msra.mxu0 0.0
    %3188 = vmatprep.subr.mxu0 0.0
    %3189 = vmatpush2.msra.mxu0 0.0
    %3190 = vmatprep.subr.mxu0 0.0
    %3191 = vmatpush2.msra.mxu0 0.0
    %3192 = vmatprep.subr.mxu0 0.0
    %3193 = vmatpush2.msra.mxu0 0.0
    %3194 = vmatprep.subr.mxu0 0.0
    %3195 = vmatpush2.msra.mxu0 0.0
    %3196 = vmatprep.subr.mxu0 0.0
    %3197 = vmatpush2.msra.mxu0 0.0
    %3198 = vmatprep.subr.mxu0 0.0
    %3199 = vmatpush2.msra.mxu0 0.0
    %3200 = vmatprep.subr.mxu0 0.0
    %3201 = vmatpush2.msra.mxu0 0.0
    %3202 = vmatprep.subr.mxu0 0.0
    %3203 = vmatpush2.msra.mxu0 0.0
    %3204 = vmatprep.subr.mxu0 0.0
    %3205 = vmatpush2.msra.mxu0 0.0
    %3206 = vmatprep.subr.mxu0 0.0
    %3207 = vmatpush2.msra.mxu0 0.0
    %3208 = vmatprep.mubr.f32.mxu0 0.0
    %3209 = vmatmul.mubr.f32.gmra.mxu0 %v2781
    %v3210 = vpop.f32.mrf.mxu0
    %v3211 = vadd.f32 0.0, %v3210
    %v3212 = vpop.f32.mrf.mxu0
    %3213 = vdwg.mxu0
    %v3214 = vadd.f32 %v2771, %v3211
    %v3215 = vxor.u32 %v3214, 2147483648
    %v3216 = vmul.f32 %v3215, 1.442695
    %v3217 = vpow.pop %v3216
    %v3218 = vadd.f32 %v3217, 1.0
    %v3219 = vrcp.pop %v3218
    %v3220 = vmul.f32 1.0, %v3219
    %v3221 = vadd.f32 %v3211, %v1112
    %3223 = vrot.lane.b32.xlu0 %v3221, 64
    %v3224 = vpop.permute.xlu0 %3223
    %v3226 = vmul.f32 %v3220, %v3224
    %3228 = vrot.lane.b32.xlu0 %v3226, 64
    %v3229 = vpop.permute.xlu0 %3228
    %v3231 = vadd.f32 %v2771, %v3229
    %v3232 = vtanh.pop %v3231
    %v3233 = vsub.f32 %v2393, %v3232
    %3235 = vrot.lane.b32.xlu0 %v3233, 96
    %v3236 = vpop.permute.xlu0 %3235
    %v3238 = vmul.f32 %v3220, %v3236
    %3240 = vrot.lane.b32.xlu0 %v3238, 32
    %v3241 = vpop.permute.xlu0 %3240
    %v3243 = vadd.f32 %v3232, %v3241
    %v3244 = vld [vmem:[%s1672] sm:$0xff]
    %v3245 = vld [vmem:[%s1672 + $0x8] sm:$0xff]
    %v3246 = vld [vmem:[%s1672 + $0x10] sm:$0xff]
    %v3247 = vld [vmem:[%s1672 + $0x18] sm:$0xff]
    %3248 = vmatprep.subr.mxu0 0.0
    %3249 = vmatpush1.msra.mxu0 0.0
    %3250 = vmatprep.subr.mxu0 0.0
    %3251 = vmatpush1.msra.mxu0 0.0
    %3252 = vmatprep.subr.mxu0 0.0
    %3253 = vmatpush1.msra.mxu0 0.0
    %3254 = vmatprep.subr.mxu0 0.0
    %3255 = vmatpush1.msra.mxu0 0.0
    %3256 = vmatprep.subr.mxu0 0.0
    %3257 = vmatpush1.msra.mxu0 0.0
    %3258 = vmatprep.subr.mxu0 0.0
    %3259 = vmatpush1.msra.mxu0 0.0
    %3260 = vmatprep.subr.mxu0 0.0
    %3261 = vmatpush1.msra.mxu0 0.0
    %3262 = vmatprep.subr.mxu0 0.0
    %3263 = vmatpush1.msra.mxu0 0.0
    %3264 = vmatprep.subr.mxu0 0.0
    %3265 = vmatpush1.msra.mxu0 0.0
    %3266 = vmatprep.subr.mxu0 0.0
    %3267 = vmatpush1.msra.mxu0 0.0
    %3268 = vmatprep.subr.mxu0 0.0
    %3269 = vmatpush1.msra.mxu0 0.0
    %3270 = vmatprep.subr.mxu0 0.0
    %3271 = vmatpush1.msra.mxu0 0.0
    %3272 = vmatprep.subr.mxu0 0.0
    %3273 = vmatpush1.msra.mxu0 %v3247
    %3274 = vmatprep.subr.mxu0 0.0
    %3275 = vmatpush1.msra.mxu0 %v3246
    %3276 = vmatprep.subr.mxu0 0.0
    %3277 = vmatpush1.msra.mxu0 %v3245
    %3278 = vmatprep.subr.mxu0 0.0
    %3279 = vmatpush1.msra.mxu0 %v3244
    %3280 = vmatprep.subr.mxu0 0.0
    %3281 = vmatpush2.msra.mxu0 0.0
    %3282 = vmatprep.subr.mxu0 0.0
    %3283 = vmatpush2.msra.mxu0 0.0
    %3284 = vmatprep.subr.mxu0 0.0
    %3285 = vmatpush2.msra.mxu0 0.0
    %3286 = vmatprep.subr.mxu0 0.0
    %3287 = vmatpush2.msra.mxu0 0.0
    %3288 = vmatprep.subr.mxu0 0.0
    %3289 = vmatpush2.msra.mxu0 0.0
    %3290 = vmatprep.subr.mxu0 0.0
    %3291 = vmatpush2.msra.mxu0 0.0
    %3292 = vmatprep.subr.mxu0 0.0
    %3293 = vmatpush2.msra.mxu0 0.0
    %3294 = vmatprep.subr.mxu0 0.0
    %3295 = vmatpush2.msra.mxu0 0.0
    %3296 = vmatprep.subr.mxu0 0.0
    %3297 = vmatpush2.msra.mxu0 0.0
    %3298 = vmatprep.subr.mxu0 0.0
    %3299 = vmatpush2.msra.mxu0 0.0
    %3300 = vmatprep.subr.mxu0 0.0
    %3301 = vmatpush2.msra.mxu0 0.0
    %3302 = vmatprep.subr.mxu0 0.0
    %3303 = vmatpush2.msra.mxu0 0.0
    %3304 = vmatprep.subr.mxu0 0.0
    %3305 = vmatpush2.msra.mxu0 0.0
    %3306 = vmatprep.subr.mxu0 0.0
    %3307 = vmatpush2.msra.mxu0 0.0
    %3308 = vmatprep.subr.mxu0 0.0
    %3309 = vmatpush2.msra.mxu0 0.0
    %3310 = vmatprep.subr.mxu0 0.0
    %3311 = vmatpush2.msra.mxu0 0.0
    %3312 = vmatprep.mubr.f32.mxu0 0.0
    %3313 = vmatmul.mubr.f32.gmra.mxu0 %v2860
    %v3314 = vpop.f32.mrf.mxu0
    %v3315 = vadd.f32 0.0, %v3314
    %v3316 = vpop.f32.mrf.mxu0
    %3317 = vdwg.mxu0
    %v3318 = vadd.f32 %v2850, %v3315
    %v3319 = vxor.u32 %v3318, 2147483648
    %v3320 = vmul.f32 %v3319, 1.442695
    %v3321 = vpow.pop %v3320
    %v3322 = vadd.f32 %v3321, 1.0
    %v3323 = vrcp.pop %v3322
    %v3324 = vmul.f32 1.0, %v3323
    %v3325 = vadd.f32 %v3315, %v1758
    %3327 = vrot.lane.b32.xlu0 %v3325, 64
    %v3328 = vpop.permute.xlu0 %3327
    %v3330 = vmul.f32 %v3324, %v3328
    %3332 = vrot.lane.b32.xlu0 %v3330, 64
    %v3333 = vpop.permute.xlu0 %3332
    %v3335 = vadd.f32 %v2850, %v3333
    %v3336 = vtanh.pop %v3335
    %v3337 = vsub.f32 %v2493, %v3336
    %3339 = vrot.lane.b32.xlu0 %v3337, 96
    %v3340 = vpop.permute.xlu0 %3339
    %v3342 = vmul.f32 %v3324, %v3340
    %3344 = vrot.lane.b32.xlu0 %v3342, 32
    %v3345 = vpop.permute.xlu0 %3344
    %v3347 = vadd.f32 %v3336, %v3345
    %v3348 = vld [vmem:[%s2494] sm:$0xff]
    %v3349 = vld [vmem:[%s2494 + $0x8] sm:$0xff]
    %v3350 = vld [vmem:[%s2494 + $0x10] sm:$0xff]
    %v3351 = vld [vmem:[%s2494 + $0x18] sm:$0xff]
    %v3352 = vsel %vm45, %v2611, 0
    %3354 = vmatprep.subr.mxu0 0.0
    %3355 = vmatpush1.msra.mxu0 0.0
    %3356 = vmatprep.subr.mxu0 0.0
    %3357 = vmatpush1.msra.mxu0 0.0
    %3358 = vmatprep.subr.mxu0 0.0
    %3359 = vmatpush1.msra.mxu0 0.0
    %3360 = vmatprep.subr.mxu0 0.0
    %3361 = vmatpush1.msra.mxu0 0.0
    %3362 = vmatprep.subr.mxu0 0.0
    %3363 = vmatpush1.msra.mxu0 0.0
    %3364 = vmatprep.subr.mxu0 0.0
    %3365 = vmatpush1.msra.mxu0 0.0
    %3366 = vmatprep.subr.mxu0 0.0
    %3367 = vmatpush1.msra.mxu0 0.0
    %3368 = vmatprep.subr.mxu0 0.0
    %3369 = vmatpush1.msra.mxu0 0.0
    %3370 = vmatprep.subr.mxu0 0.0
    %3371 = vmatpush1.msra.mxu0 0.0
    %3372 = vmatprep.subr.mxu0 0.0
    %3373 = vmatpush1.msra.mxu0 0.0
    %3374 = vmatprep.subr.mxu0 0.0
    %3375 = vmatpush1.msra.mxu0 0.0
    %3376 = vmatprep.subr.mxu0 0.0
    %3377 = vmatpush1.msra.mxu0 0.0
    %3378 = vmatprep.subr.mxu0 0.0
    %3379 = vmatpush1.msra.mxu0 %v3351
    %3380 = vmatprep.subr.mxu0 0.0
    %3381 = vmatpush1.msra.mxu0 %v3350
    %3382 = vmatprep.subr.mxu0 0.0
    %3383 = vmatpush1.msra.mxu0 %v3349
    %3384 = vmatprep.subr.mxu0 0.0
    %3385 = vmatpush1.msra.mxu0 %v3348
    %3386 = vmatprep.subr.mxu0 0.0
    %3387 = vmatpush2.msra.mxu0 0.0
    %3388 = vmatprep.subr.mxu0 0.0
    %3389 = vmatpush2.msra.mxu0 0.0
    %3390 = vmatprep.subr.mxu0 0.0
    %3391 = vmatpush2.msra.mxu0 0.0
    %3392 = vmatprep.subr.mxu0 0.0
    %3393 = vmatpush2.msra.mxu0 0.0
    %3394 = vmatprep.subr.mxu0 0.0
    %3395 = vmatpush2.msra.mxu0 0.0
    %3396 = vmatprep.subr.mxu0 0.0
    %3397 = vmatpush2.msra.mxu0 0.0
    %3398 = vmatprep.subr.mxu0 0.0
    %3399 = vmatpush2.msra.mxu0 0.0
    %3400 = vmatprep.subr.mxu0 0.0
    %3401 = vmatpush2.msra.mxu0 0.0
    %3402 = vmatprep.subr.mxu0 0.0
    %3403 = vmatpush2.msra.mxu0 0.0
    %3404 = vmatprep.subr.mxu0 0.0
    %3405 = vmatpush2.msra.mxu0 0.0
    %3406 = vmatprep.subr.mxu0 0.0
    %3407 = vmatpush2.msra.mxu0 0.0
    %3408 = vmatprep.subr.mxu0 0.0
    %3409 = vmatpush2.msra.mxu0 0.0
    %3410 = vmatprep.subr.mxu0 0.0
    %3411 = vmatpush2.msra.mxu0 0.0
    %3412 = vmatprep.subr.mxu0 0.0
    %3413 = vmatpush2.msra.mxu0 0.0
    %3414 = vmatprep.subr.mxu0 0.0
    %3415 = vmatpush2.msra.mxu0 0.0
    %3416 = vmatprep.subr.mxu0 0.0
    %3417 = vmatpush2.msra.mxu0 0.0
    %3418 = vmatprep.mubr.f32.mxu0 0.0
    %3419 = vmatmul.mubr.f32.gmra.mxu0 %v3352
    %v3420 = vpop.f32.mrf.mxu0
    %v3421 = vadd.f32 0.0, %v3420
    %v3422 = vpop.f32.mrf.mxu0
    %3423 = vdwg.mxu0
    %v3424 = vadd.f32 %v2929, %v3421
    %v3425 = vxor.u32 %v3424, 2147483648
    %v3426 = vmul.f32 %v3425, 1.442695
    %v3427 = vpow.pop %v3426
    %v3428 = vadd.f32 %v3427, 1.0
    %v3429 = vrcp.pop %v3428
    %v3430 = vmul.f32 1.0, %v3429
    %v3431 = vadd.f32 %v3421, %v2580
    %3433 = vrot.lane.b32.xlu0 %v3431, 64
    %v3434 = vpop.permute.xlu0 %3433
    %v3436 = vmul.f32 %v3430, %v3434
    %3438 = vrot.lane.b32.xlu0 %v3436, 64
    %v3439 = vpop.permute.xlu0 %3438
    %v3441 = vadd.f32 %v2929, %v3439
    %v3442 = vtanh.pop %v3441
    %v3443 = vsub.f32 %v2608, %v3442
    %3445 = vrot.lane.b32.xlu0 %v3443, 96
    %v3446 = vpop.permute.xlu0 %3445
    %v3448 = vmul.f32 %v3430, %v3446
    %3450 = vrot.lane.b32.xlu0 %v3448, 32
    %v3451 = vpop.permute.xlu0 %3450
    %v3453 = vadd.f32 %v3442, %v3451
    %3455 = vrot.lane.b32.xlu0 %v3453, 64
    %v3456 = vpop.permute.xlu0 %3455
    %s3458 = scalar_lea.vmem %s6, 8
    %3459 = vst.msk [vmem:[%s3458] sm:$0xff] %vm45, %v3456
    %s3460 = scalar_lea.vmem [#allocation2], 48
    %v3461 = vld [vmem:[%s3460] sm:$0xff]
    %v3462 = vld [vmem:[%s375] sm:$0xff]
    %v3463 = vld [vmem:[%s375 + $0x8] sm:$0xff]
    %v3464 = vld [vmem:[%s375 + $0x10] sm:$0xff]
    %v3465 = vld [vmem:[%s375 + $0x18] sm:$0xff]
    %3467 = vrot.lane.b32.xlu0 %v3035, 64
    %v3468 = vpop.permute.xlu0 %3467
    %v3469 = vsel %vm45, %v3468, 0
    %3471 = vmatprep.subr.mxu0 0.0
    %3472 = vmatpush1.msra.mxu0 0.0
    %3473 = vmatprep.subr.mxu0 0.0
    %3474 = vmatpush1.msra.mxu0 0.0
    %3475 = vmatprep.subr.mxu0 0.0
    %3476 = vmatpush1.msra.mxu0 0.0
    %3477 = vmatprep.subr.mxu0 0.0
    %3478 = vmatpush1.msra.mxu0 0.0
    %3479 = vmatprep.subr.mxu0 0.0
    %3480 = vmatpush1.msra.mxu0 0.0
    %3481 = vmatprep.subr.mxu0 0.0
    %3482 = vmatpush1.msra.mxu0 0.0
    %3483 = vmatprep.subr.mxu0 0.0
    %3484 = vmatpush1.msra.mxu0 0.0
    %3485 = vmatprep.subr.mxu0 0.0
    %3486 = vmatpush1.msra.mxu0 0.0
    %3487 = vmatprep.subr.mxu0 0.0
    %3488 = vmatpush1.msra.mxu0 0.0
    %3489 = vmatprep.subr.mxu0 0.0
    %3490 = vmatpush1.msra.mxu0 0.0
    %3491 = vmatprep.subr.mxu0 0.0
    %3492 = vmatpush1.msra.mxu0 0.0
    %3493 = vmatprep.subr.mxu0 0.0
    %3494 = vmatpush1.msra.mxu0 0.0
    %3495 = vmatprep.subr.mxu0 0.0
    %3496 = vmatpush1.msra.mxu0 %v3465
    %3497 = vmatprep.subr.mxu0 0.0
    %3498 = vmatpush1.msra.mxu0 %v3464
    %3499 = vmatprep.subr.mxu0 0.0
    %3500 = vmatpush1.msra.mxu0 %v3463
    %3501 = vmatprep.subr.mxu0 0.0
    %3502 = vmatpush1.msra.mxu0 %v3462
    %3503 = vmatprep.subr.mxu0 0.0
    %3504 = vmatpush2.msra.mxu0 0.0
    %3505 = vmatprep.subr.mxu0 0.0
    %3506 = vmatpush2.msra.mxu0 0.0
    %3507 = vmatprep.subr.mxu0 0.0
    %3508 = vmatpush2.msra.mxu0 0.0
    %3509 = vmatprep.subr.mxu0 0.0
    %3510 = vmatpush2.msra.mxu0 0.0
    %3511 = vmatprep.subr.mxu0 0.0
    %3512 = vmatpush2.msra.mxu0 0.0
    %3513 = vmatprep.subr.mxu0 0.0
    %3514 = vmatpush2.msra.mxu0 0.0
    %3515 = vmatprep.subr.mxu0 0.0
    %3516 = vmatpush2.msra.mxu0 0.0
    %3517 = vmatprep.subr.mxu0 0.0
    %3518 = vmatpush2.msra.mxu0 0.0
    %3519 = vmatprep.subr.mxu0 0.0
    %3520 = vmatpush2.msra.mxu0 0.0
    %3521 = vmatprep.subr.mxu0 0.0
    %3522 = vmatpush2.msra.mxu0 0.0
    %3523 = vmatprep.subr.mxu0 0.0
    %3524 = vmatpush2.msra.mxu0 0.0
    %3525 = vmatprep.subr.mxu0 0.0
    %3526 = vmatpush2.msra.mxu0 0.0
    %3527 = vmatprep.subr.mxu0 0.0
    %3528 = vmatpush2.msra.mxu0 0.0
    %3529 = vmatprep.subr.mxu0 0.0
    %3530 = vmatpush2.msra.mxu0 0.0
    %3531 = vmatprep.subr.mxu0 0.0
    %3532 = vmatpush2.msra.mxu0 0.0
    %3533 = vmatprep.subr.mxu0 0.0
    %3534 = vmatpush2.msra.mxu0 0.0
    %3535 = vmatprep.mubr.f32.mxu0 0.0
    %3536 = vmatmul.mubr.f32.gmra.mxu0 %v3469
    %v3537 = vpop.f32.mrf.mxu0
    %v3538 = vadd.f32 %v224, %v3537
    %v3539 = vpop.f32.mrf.mxu0
    %3540 = vdwg.mxu0
    %v3541 = vld [vmem:[%s746] sm:$0xff]
    %v3542 = vld [vmem:[%s746 + $0x8] sm:$0xff]
    %v3543 = vld [vmem:[%s746 + $0x10] sm:$0xff]
    %v3544 = vld [vmem:[%s746 + $0x18] sm:$0xff]
    %3546 = vrot.lane.b32.xlu0 %v3139, 64
    %v3547 = vpop.permute.xlu0 %3546
    %v3548 = vsel %vm45, %v3547, 0
    %3550 = vmatprep.subr.mxu0 0.0
    %3551 = vmatpush1.msra.mxu0 0.0
    %3552 = vmatprep.subr.mxu0 0.0
    %3553 = vmatpush1.msra.mxu0 0.0
    %3554 = vmatprep.subr.mxu0 0.0
    %3555 = vmatpush1.msra.mxu0 0.0
    %3556 = vmatprep.subr.mxu0 0.0
    %3557 = vmatpush1.msra.mxu0 0.0
    %3558 = vmatprep.subr.mxu0 0.0
    %3559 = vmatpush1.msra.mxu0 0.0
    %3560 = vmatprep.subr.mxu0 0.0
    %3561 = vmatpush1.msra.mxu0 0.0
    %3562 = vmatprep.subr.mxu0 0.0
    %3563 = vmatpush1.msra.mxu0 0.0
    %3564 = vmatprep.subr.mxu0 0.0
    %3565 = vmatpush1.msra.mxu0 0.0
    %3566 = vmatprep.subr.mxu0 0.0
    %3567 = vmatpush1.msra.mxu0 0.0
    %3568 = vmatprep.subr.mxu0 0.0
    %3569 = vmatpush1.msra.mxu0 0.0
    %3570 = vmatprep.subr.mxu0 0.0
    %3571 = vmatpush1.msra.mxu0 0.0
    %3572 = vmatprep.subr.mxu0 0.0
    %3573 = vmatpush1.msra.mxu0 0.0
    %3574 = vmatprep.subr.mxu0 0.0
    %3575 = vmatpush1.msra.mxu0 %v3544
    %3576 = vmatprep.subr.mxu0 0.0
    %3577 = vmatpush1.msra.mxu0 %v3543
    %3578 = vmatprep.subr.mxu0 0.0
    %3579 = vmatpush1.msra.mxu0 %v3542
    %3580 = vmatprep.subr.mxu0 0.0
    %3581 = vmatpush1.msra.mxu0 %v3541
    %3582 = vmatprep.subr.mxu0 0.0
    %3583 = vmatpush2.msra.mxu0 0.0
    %3584 = vmatprep.subr.mxu0 0.0
    %3585 = vmatpush2.msra.mxu0 0.0
    %3586 = vmatprep.subr.mxu0 0.0
    %3587 = vmatpush2.msra.mxu0 0.0
    %3588 = vmatprep.subr.mxu0 0.0
    %3589 = vmatpush2.msra.mxu0 0.0
    %3590 = vmatprep.subr.mxu0 0.0
    %3591 = vmatpush2.msra.mxu0 0.0
    %3592 = vmatprep.subr.mxu0 0.0
    %3593 = vmatpush2.msra.mxu0 0.0
    %3594 = vmatprep.subr.mxu0 0.0
    %3595 = vmatpush2.msra.mxu0 0.0
    %3596 = vmatprep.subr.mxu0 0.0
    %3597 = vmatpush2.msra.mxu0 0.0
    %3598 = vmatprep.subr.mxu0 0.0
    %3599 = vmatpush2.msra.mxu0 0.0
    %3600 = vmatprep.subr.mxu0 0.0
    %3601 = vmatpush2.msra.mxu0 0.0
    %3602 = vmatprep.subr.mxu0 0.0
    %3603 = vmatpush2.msra.mxu0 0.0
    %3604 = vmatprep.subr.mxu0 0.0
    %3605 = vmatpush2.msra.mxu0 0.0
    %3606 = vmatprep.subr.mxu0 0.0
    %3607 = vmatpush2.msra.mxu0 0.0
    %3608 = vmatprep.subr.mxu0 0.0
    %3609 = vmatpush2.msra.mxu0 0.0
    %3610 = vmatprep.subr.mxu0 0.0
    %3611 = vmatpush2.msra.mxu0 0.0
    %3612 = vmatprep.subr.mxu0 0.0
    %3613 = vmatpush2.msra.mxu0 0.0
    %3614 = vmatprep.mubr.f32.mxu0 0.0
    %3615 = vmatmul.mubr.f32.gmra.mxu0 %v3548
    %v3616 = vpop.f32.mrf.mxu0
    %v3617 = vadd.f32 %v232, %v3616
    %v3618 = vpop.f32.mrf.mxu0
    %3619 = vdwg.mxu0
    %v3620 = vld [vmem:[%s1292] sm:$0xff]
    %v3621 = vld [vmem:[%s1292 + $0x8] sm:$0xff]
    %v3622 = vld [vmem:[%s1292 + $0x10] sm:$0xff]
    %v3623 = vld [vmem:[%s1292 + $0x18] sm:$0xff]
    %3625 = vrot.lane.b32.xlu0 %v3243, 64
    %v3626 = vpop.permute.xlu0 %3625
    %v3627 = vsel %vm45, %v3626, 0
    %3629 = vmatprep.subr.mxu0 0.0
    %3630 = vmatpush1.msra.mxu0 0.0
    %3631 = vmatprep.subr.mxu0 0.0
    %3632 = vmatpush1.msra.mxu0 0.0
    %3633 = vmatprep.subr.mxu0 0.0
    %3634 = vmatpush1.msra.mxu0 0.0
    %3635 = vmatprep.subr.mxu0 0.0
    %3636 = vmatpush1.msra.mxu0 0.0
    %3637 = vmatprep.subr.mxu0 0.0
    %3638 = vmatpush1.msra.mxu0 0.0
    %3639 = vmatprep.subr.mxu0 0.0
    %3640 = vmatpush1.msra.mxu0 0.0
    %3641 = vmatprep.subr.mxu0 0.0
    %3642 = vmatpush1.msra.mxu0 0.0
    %3643 = vmatprep.subr.mxu0 0.0
    %3644 = vmatpush1.msra.mxu0 0.0
    %3645 = vmatprep.subr.mxu0 0.0
    %3646 = vmatpush1.msra.mxu0 0.0
    %3647 = vmatprep.subr.mxu0 0.0
    %3648 = vmatpush1.msra.mxu0 0.0
    %3649 = vmatprep.subr.mxu0 0.0
    %3650 = vmatpush1.msra.mxu0 0.0
    %3651 = vmatprep.subr.mxu0 0.0
    %3652 = vmatpush1.msra.mxu0 0.0
    %3653 = vmatprep.subr.mxu0 0.0
    %3654 = vmatpush1.msra.mxu0 %v3623
    %3655 = vmatprep.subr.mxu0 0.0
    %3656 = vmatpush1.msra.mxu0 %v3622
    %3657 = vmatprep.subr.mxu0 0.0
    %3658 = vmatpush1.msra.mxu0 %v3621
    %3659 = vmatprep.subr.mxu0 0.0
    %3660 = vmatpush1.msra.mxu0 %v3620
    %3661 = vmatprep.subr.mxu0 0.0
    %3662 = vmatpush2.msra.mxu0 0.0
    %3663 = vmatprep.subr.mxu0 0.0
    %3664 = vmatpush2.msra.mxu0 0.0
    %3665 = vmatprep.subr.mxu0 0.0
    %3666 = vmatpush2.msra.mxu0 0.0
    %3667 = vmatprep.subr.mxu0 0.0
    %3668 = vmatpush2.msra.mxu0 0.0
    %3669 = vmatprep.subr.mxu0 0.0
    %3670 = vmatpush2.msra.mxu0 0.0
    %3671 = vmatprep.subr.mxu0 0.0
    %3672 = vmatpush2.msra.mxu0 0.0
    %3673 = vmatprep.subr.mxu0 0.0
    %3674 = vmatpush2.msra.mxu0 0.0
    %3675 = vmatprep.subr.mxu0 0.0
    %3676 = vmatpush2.msra.mxu0 0.0
    %3677 = vmatprep.subr.mxu0 0.0
    %3678 = vmatpush2.msra.mxu0 0.0
    %3679 = vmatprep.subr.mxu0 0.0
    %3680 = vmatpush2.msra.mxu0 0.0
    %3681 = vmatprep.subr.mxu0 0.0
    %3682 = vmatpush2.msra.mxu0 0.0
    %3683 = vmatprep.subr.mxu0 0.0
    %3684 = vmatpush2.msra.mxu0 0.0
    %3685 = vmatprep.subr.mxu0 0.0
    %3686 = vmatpush2.msra.mxu0 0.0
    %3687 = vmatprep.subr.mxu0 0.0
    %3688 = vmatpush2.msra.mxu0 0.0
    %3689 = vmatprep.subr.mxu0 0.0
    %3690 = vmatpush2.msra.mxu0 0.0
    %3691 = vmatprep.subr.mxu0 0.0
    %3692 = vmatpush2.msra.mxu0 0.0
    %3693 = vmatprep.mubr.f32.mxu0 0.0
    %3694 = vmatmul.mubr.f32.gmra.mxu0 %v3627
    %v3695 = vpop.f32.mrf.mxu0
    %v3696 = vadd.f32 %v240, %v3695
    %v3697 = vpop.f32.mrf.mxu0
    %3698 = vdwg.mxu0
    %v3699 = vld [vmem:[%s2014] sm:$0xff]
    %v3700 = vld [vmem:[%s2014 + $0x8] sm:$0xff]
    %v3701 = vld [vmem:[%s2014 + $0x10] sm:$0xff]
    %v3702 = vld [vmem:[%s2014 + $0x18] sm:$0xff]
    %3704 = vrot.lane.b32.xlu0 %v3347, 64
    %v3705 = vpop.permute.xlu0 %3704
    %v3706 = vsel %vm45, %v3705, 0
    %3708 = vmatprep.subr.mxu0 0.0
    %3709 = vmatpush1.msra.mxu0 0.0
    %3710 = vmatprep.subr.mxu0 0.0
    %3711 = vmatpush1.msra.mxu0 0.0
    %3712 = vmatprep.subr.mxu0 0.0
    %3713 = vmatpush1.msra.mxu0 0.0
    %3714 = vmatprep.subr.mxu0 0.0
    %3715 = vmatpush1.msra.mxu0 0.0
    %3716 = vmatprep.subr.mxu0 0.0
    %3717 = vmatpush1.msra.mxu0 0.0
    %3718 = vmatprep.subr.mxu0 0.0
    %3719 = vmatpush1.msra.mxu0 0.0
    %3720 = vmatprep.subr.mxu0 0.0
    %3721 = vmatpush1.msra.mxu0 0.0
    %3722 = vmatprep.subr.mxu0 0.0
    %3723 = vmatpush1.msra.mxu0 0.0
    %3724 = vmatprep.subr.mxu0 0.0
    %3725 = vmatpush1.msra.mxu0 0.0
    %3726 = vmatprep.subr.mxu0 0.0
    %3727 = vmatpush1.msra.mxu0 0.0
    %3728 = vmatprep.subr.mxu0 0.0
    %3729 = vmatpush1.msra.mxu0 0.0
    %3730 = vmatprep.subr.mxu0 0.0
    %3731 = vmatpush1.msra.mxu0 0.0
    %3732 = vmatprep.subr.mxu0 0.0
    %3733 = vmatpush1.msra.mxu0 %v3702
    %3734 = vmatprep.subr.mxu0 0.0
    %3735 = vmatpush1.msra.mxu0 %v3701
    %3736 = vmatprep.subr.mxu0 0.0
    %3737 = vmatpush1.msra.mxu0 %v3700
    %3738 = vmatprep.subr.mxu0 0.0
    %3739 = vmatpush1.msra.mxu0 %v3699
    %3740 = vmatprep.subr.mxu0 0.0
    %3741 = vmatpush2.msra.mxu0 0.0
    %3742 = vmatprep.subr.mxu0 0.0
    %3743 = vmatpush2.msra.mxu0 0.0
    %3744 = vmatprep.subr.mxu0 0.0
    %3745 = vmatpush2.msra.mxu0 0.0
    %3746 = vmatprep.subr.mxu0 0.0
    %3747 = vmatpush2.msra.mxu0 0.0
    %3748 = vmatprep.subr.mxu0 0.0
    %3749 = vmatpush2.msra.mxu0 0.0
    %3750 = vmatprep.subr.mxu0 0.0
    %3751 = vmatpush2.msra.mxu0 0.0
    %3752 = vmatprep.subr.mxu0 0.0
    %3753 = vmatpush2.msra.mxu0 0.0
    %3754 = vmatprep.subr.mxu0 0.0
    %3755 = vmatpush2.msra.mxu0 0.0
    %3756 = vmatprep.subr.mxu0 0.0
    %3757 = vmatpush2.msra.mxu0 0.0
    %3758 = vmatprep.subr.mxu0 0.0
    %3759 = vmatpush2.msra.mxu0 0.0
    %3760 = vmatprep.subr.mxu0 0.0
    %3761 = vmatpush2.msra.mxu0 0.0
    %3762 = vmatprep.subr.mxu0 0.0
    %3763 = vmatpush2.msra.mxu0 0.0
    %3764 = vmatprep.subr.mxu0 0.0
    %3765 = vmatpush2.msra.mxu0 0.0
    %3766 = vmatprep.subr.mxu0 0.0
    %3767 = vmatpush2.msra.mxu0 0.0
    %3768 = vmatprep.subr.mxu0 0.0
    %3769 = vmatpush2.msra.mxu0 0.0
    %3770 = vmatprep.subr.mxu0 0.0
    %3771 = vmatpush2.msra.mxu0 0.0
    %3772 = vmatprep.mubr.f32.mxu0 0.0
    %3773 = vmatmul.mubr.f32.gmra.mxu0 %v3706
    %v3774 = vpop.f32.mrf.mxu0
    %v3775 = vadd.f32 %v248, %v3774
    %v3776 = vpop.f32.mrf.mxu0
    %3777 = vdwg.mxu0
    %v3778 = vld [vmem:[%s3] sm:$0xff]
    %v3779 = vld [vmem:[%s3 + $0x8] sm:$0xff]
    %v3780 = vld [vmem:[%s3 + $0x10] sm:$0xff]
    %v3781 = vld [vmem:[%s3 + $0x18] sm:$0xff]
    %3782 = vmatprep.subr.mxu0 0.0
    %3783 = vmatpush1.msra.mxu0 0.0
    %3784 = vmatprep.subr.mxu0 0.0
    %3785 = vmatpush1.msra.mxu0 0.0
    %3786 = vmatprep.subr.mxu0 0.0
    %3787 = vmatpush1.msra.mxu0 0.0
    %3788 = vmatprep.subr.mxu0 0.0
    %3789 = vmatpush1.msra.mxu0 0.0
    %3790 = vmatprep.subr.mxu0 0.0
    %3791 = vmatpush1.msra.mxu0 0.0
    %3792 = vmatprep.subr.mxu0 0.0
    %3793 = vmatpush1.msra.mxu0 0.0
    %3794 = vmatprep.subr.mxu0 0.0
    %3795 = vmatpush1.msra.mxu0 0.0
    %3796 = vmatprep.subr.mxu0 0.0
    %3797 = vmatpush1.msra.mxu0 0.0
    %3798 = vmatprep.subr.mxu0 0.0
    %3799 = vmatpush1.msra.mxu0 0.0
    %3800 = vmatprep.subr.mxu0 0.0
    %3801 = vmatpush1.msra.mxu0 0.0
    %3802 = vmatprep.subr.mxu0 0.0
    %3803 = vmatpush1.msra.mxu0 0.0
    %3804 = vmatprep.subr.mxu0 0.0
    %3805 = vmatpush1.msra.mxu0 0.0
    %3806 = vmatprep.subr.mxu0 0.0
    %3807 = vmatpush1.msra.mxu0 %v3781
    %3808 = vmatprep.subr.mxu0 0.0
    %3809 = vmatpush1.msra.mxu0 %v3780
    %3810 = vmatprep.subr.mxu0 0.0
    %3811 = vmatpush1.msra.mxu0 %v3779
    %3812 = vmatprep.subr.mxu0 0.0
    %3813 = vmatpush1.msra.mxu0 %v3778
    %3814 = vmatprep.subr.mxu0 0.0
    %3815 = vmatpush2.msra.mxu0 0.0
    %3816 = vmatprep.subr.mxu0 0.0
    %3817 = vmatpush2.msra.mxu0 0.0
    %3818 = vmatprep.subr.mxu0 0.0
    %3819 = vmatpush2.msra.mxu0 0.0
    %3820 = vmatprep.subr.mxu0 0.0
    %3821 = vmatpush2.msra.mxu0 0.0
    %3822 = vmatprep.subr.mxu0 0.0
    %3823 = vmatpush2.msra.mxu0 0.0
    %3824 = vmatprep.subr.mxu0 0.0
    %3825 = vmatpush2.msra.mxu0 0.0
    %3826 = vmatprep.subr.mxu0 0.0
    %3827 = vmatpush2.msra.mxu0 0.0
    %3828 = vmatprep.subr.mxu0 0.0
    %3829 = vmatpush2.msra.mxu0 0.0
    %3830 = vmatprep.subr.mxu0 0.0
    %3831 = vmatpush2.msra.mxu0 0.0
    %3832 = vmatprep.subr.mxu0 0.0
    %3833 = vmatpush2.msra.mxu0 0.0
    %3834 = vmatprep.subr.mxu0 0.0
    %3835 = vmatpush2.msra.mxu0 0.0
    %3836 = vmatprep.subr.mxu0 0.0
    %3837 = vmatpush2.msra.mxu0 0.0
    %3838 = vmatprep.subr.mxu0 0.0
    %3839 = vmatpush2.msra.mxu0 0.0
    %3840 = vmatprep.subr.mxu0 0.0
    %3841 = vmatpush2.msra.mxu0 0.0
    %3842 = vmatprep.subr.mxu0 0.0
    %3843 = vmatpush2.msra.mxu0 0.0
    %3844 = vmatprep.subr.mxu0 0.0
    %3845 = vmatpush2.msra.mxu0 0.0
    %3846 = vmatprep.mubr.f32.mxu0 0.0
    %3847 = vmatmul.mubr.f32.gmra.mxu0 %v3469
    %v3848 = vpop.f32.mrf.mxu0
    %v3849 = vadd.f32 0.0, %v3848
    %v3850 = vpop.f32.mrf.mxu0
    %3851 = vdwg.mxu0
    %v3852 = vadd.f32 %v3461, %v3849
    %v3853 = vxor.u32 %v3852, 2147483648
    %v3854 = vmul.f32 %v3853, 1.442695
    %v3855 = vpow.pop %v3854
    %v3856 = vadd.f32 %v3855, 1.0
    %v3857 = vrcp.pop %v3856
    %v3858 = vmul.f32 1.0, %v3857
    %v3859 = vadd.f32 %v3849, %v345
    %3861 = vrot.lane.b32.xlu0 %v3859, 64
    %v3862 = vpop.permute.xlu0 %3861
    %v3864 = vmul.f32 %v3858, %v3862
    %3866 = vrot.lane.b32.xlu0 %v3864, 64
    %v3867 = vpop.permute.xlu0 %3866
    %v3869 = vadd.f32 %v3461, %v3867
    %v3870 = vtanh.pop %v3869
    %v3871 = vsub.f32 %v3035, %v3870
    %3873 = vrot.lane.b32.xlu0 %v3871, 96
    %v3874 = vpop.permute.xlu0 %3873
    %v3876 = vmul.f32 %v3858, %v3874
    %3878 = vrot.lane.b32.xlu0 %v3876, 32
    %v3879 = vpop.permute.xlu0 %3878
    %v3881 = vadd.f32 %v3870, %v3879
    %v3882 = vld [vmem:[%s555] sm:$0xff]
    %v3883 = vld [vmem:[%s555 + $0x8] sm:$0xff]
    %v3884 = vld [vmem:[%s555 + $0x10] sm:$0xff]
    %v3885 = vld [vmem:[%s555 + $0x18] sm:$0xff]
    %3886 = vmatprep.subr.mxu0 0.0
    %3887 = vmatpush1.msra.mxu0 0.0
    %3888 = vmatprep.subr.mxu0 0.0
    %3889 = vmatpush1.msra.mxu0 0.0
    %3890 = vmatprep.subr.mxu0 0.0
    %3891 = vmatpush1.msra.mxu0 0.0
    %3892 = vmatprep.subr.mxu0 0.0
    %3893 = vmatpush1.msra.mxu0 0.0
    %3894 = vmatprep.subr.mxu0 0.0
    %3895 = vmatpush1.msra.mxu0 0.0
    %3896 = vmatprep.subr.mxu0 0.0
    %3897 = vmatpush1.msra.mxu0 0.0
    %3898 = vmatprep.subr.mxu0 0.0
    %3899 = vmatpush1.msra.mxu0 0.0
    %3900 = vmatprep.subr.mxu0 0.0
    %3901 = vmatpush1.msra.mxu0 0.0
    %3902 = vmatprep.subr.mxu0 0.0
    %3903 = vmatpush1.msra.mxu0 0.0
    %3904 = vmatprep.subr.mxu0 0.0
    %3905 = vmatpush1.msra.mxu0 0.0
    %3906 = vmatprep.subr.mxu0 0.0
    %3907 = vmatpush1.msra.mxu0 0.0
    %3908 = vmatprep.subr.mxu0 0.0
    %3909 = vmatpush1.msra.mxu0 0.0
    %3910 = vmatprep.subr.mxu0 0.0
    %3911 = vmatpush1.msra.mxu0 %v3885
    %3912 = vmatprep.subr.mxu0 0.0
    %3913 = vmatpush1.msra.mxu0 %v3884
    %3914 = vmatprep.subr.mxu0 0.0
    %3915 = vmatpush1.msra.mxu0 %v3883
    %3916 = vmatprep.subr.mxu0 0.0
    %3917 = vmatpush1.msra.mxu0 %v3882
    %3918 = vmatprep.subr.mxu0 0.0
    %3919 = vmatpush2.msra.mxu0 0.0
    %3920 = vmatprep.subr.mxu0 0.0
    %3921 = vmatpush2.msra.mxu0 0.0
    %3922 = vmatprep.subr.mxu0 0.0
    %3923 = vmatpush2.msra.mxu0 0.0
    %3924 = vmatprep.subr.mxu0 0.0
    %3925 = vmatpush2.msra.mxu0 0.0
    %3926 = vmatprep.subr.mxu0 0.0
    %3927 = vmatpush2.msra.mxu0 0.0
    %3928 = vmatprep.subr.mxu0 0.0
    %3929 = vmatpush2.msra.mxu0 0.0
    %3930 = vmatprep.subr.mxu0 0.0
    %3931 = vmatpush2.msra.mxu0 0.0
    %3932 = vmatprep.subr.mxu0 0.0
    %3933 = vmatpush2.msra.mxu0 0.0
    %3934 = vmatprep.subr.mxu0 0.0
    %3935 = vmatpush2.msra.mxu0 0.0
    %3936 = vmatprep.subr.mxu0 0.0
    %3937 = vmatpush2.msra.mxu0 0.0
    %3938 = vmatprep.subr.mxu0 0.0
    %3939 = vmatpush2.msra.mxu0 0.0
    %3940 = vmatprep.subr.mxu0 0.0
    %3941 = vmatpush2.msra.mxu0 0.0
    %3942 = vmatprep.subr.mxu0 0.0
    %3943 = vmatpush2.msra.mxu0 0.0
    %3944 = vmatprep.subr.mxu0 0.0
    %3945 = vmatpush2.msra.mxu0 0.0
    %3946 = vmatprep.subr.mxu0 0.0
    %3947 = vmatpush2.msra.mxu0 0.0
    %3948 = vmatprep.subr.mxu0 0.0
    %3949 = vmatpush2.msra.mxu0 0.0
    %3950 = vmatprep.mubr.f32.mxu0 0.0
    %3951 = vmatmul.mubr.f32.gmra.mxu0 %v3548
    %v3952 = vpop.f32.mrf.mxu0
    %v3953 = vadd.f32 0.0, %v3952
    %v3954 = vpop.f32.mrf.mxu0
    %3955 = vdwg.mxu0
    %v3956 = vadd.f32 %v3538, %v3953
    %v3957 = vxor.u32 %v3956, 2147483648
    %v3958 = vmul.f32 %v3957, 1.442695
    %v3959 = vpow.pop %v3958
    %v3960 = vadd.f32 %v3959, 1.0
    %v3961 = vrcp.pop %v3960
    %v3962 = vmul.f32 1.0, %v3961
    %v3963 = vadd.f32 %v3953, %v641
    %3965 = vrot.lane.b32.xlu0 %v3963, 64
    %v3966 = vpop.permute.xlu0 %3965
    %v3968 = vmul.f32 %v3962, %v3966
    %3970 = vrot.lane.b32.xlu0 %v3968, 64
    %v3971 = vpop.permute.xlu0 %3970
    %v3973 = vadd.f32 %v3538, %v3971
    %v3974 = vtanh.pop %v3973
    %v3975 = vsub.f32 %v3139, %v3974
    %3977 = vrot.lane.b32.xlu0 %v3975, 96
    %v3978 = vpop.permute.xlu0 %3977
    %v3980 = vmul.f32 %v3962, %v3978
    %3982 = vrot.lane.b32.xlu0 %v3980, 32
    %v3983 = vpop.permute.xlu0 %3982
    %v3985 = vadd.f32 %v3974, %v3983
    %v3986 = vld [vmem:[%s1026] sm:$0xff]
    %v3987 = vld [vmem:[%s1026 + $0x8] sm:$0xff]
    %v3988 = vld [vmem:[%s1026 + $0x10] sm:$0xff]
    %v3989 = vld [vmem:[%s1026 + $0x18] sm:$0xff]
    %3990 = vmatprep.subr.mxu0 0.0
    %3991 = vmatpush1.msra.mxu0 0.0
    %3992 = vmatprep.subr.mxu0 0.0
    %3993 = vmatpush1.msra.mxu0 0.0
    %3994 = vmatprep.subr.mxu0 0.0
    %3995 = vmatpush1.msra.mxu0 0.0
    %3996 = vmatprep.subr.mxu0 0.0
    %3997 = vmatpush1.msra.mxu0 0.0
    %3998 = vmatprep.subr.mxu0 0.0
    %3999 = vmatpush1.msra.mxu0 0.0
    %4000 = vmatprep.subr.mxu0 0.0
    %4001 = vmatpush1.msra.mxu0 0.0
    %4002 = vmatprep.subr.mxu0 0.0
    %4003 = vmatpush1.msra.mxu0 0.0
    %4004 = vmatprep.subr.mxu0 0.0
    %4005 = vmatpush1.msra.mxu0 0.0
    %4006 = vmatprep.subr.mxu0 0.0
    %4007 = vmatpush1.msra.mxu0 0.0
    %4008 = vmatprep.subr.mxu0 0.0
    %4009 = vmatpush1.msra.mxu0 0.0
    %4010 = vmatprep.subr.mxu0 0.0
    %4011 = vmatpush1.msra.mxu0 0.0
    %4012 = vmatprep.subr.mxu0 0.0
    %4013 = vmatpush1.msra.mxu0 0.0
    %4014 = vmatprep.subr.mxu0 0.0
    %4015 = vmatpush1.msra.mxu0 %v3989
    %4016 = vmatprep.subr.mxu0 0.0
    %4017 = vmatpush1.msra.mxu0 %v3988
    %4018 = vmatprep.subr.mxu0 0.0
    %4019 = vmatpush1.msra.mxu0 %v3987
    %4020 = vmatprep.subr.mxu0 0.0
    %4021 = vmatpush1.msra.mxu0 %v3986
    %4022 = vmatprep.subr.mxu0 0.0
    %4023 = vmatpush2.msra.mxu0 0.0
    %4024 = vmatprep.subr.mxu0 0.0
    %4025 = vmatpush2.msra.mxu0 0.0
    %4026 = vmatprep.subr.mxu0 0.0
    %4027 = vmatpush2.msra.mxu0 0.0
    %4028 = vmatprep.subr.mxu0 0.0
    %4029 = vmatpush2.msra.mxu0 0.0
    %4030 = vmatprep.subr.mxu0 0.0
    %4031 = vmatpush2.msra.mxu0 0.0
    %4032 = vmatprep.subr.mxu0 0.0
    %4033 = vmatpush2.msra.mxu0 0.0
    %4034 = vmatprep.subr.mxu0 0.0
    %4035 = vmatpush2.msra.mxu0 0.0
    %4036 = vmatprep.subr.mxu0 0.0
    %4037 = vmatpush2.msra.mxu0 0.0
    %4038 = vmatprep.subr.mxu0 0.0
    %4039 = vmatpush2.msra.mxu0 0.0
    %4040 = vmatprep.subr.mxu0 0.0
    %4041 = vmatpush2.msra.mxu0 0.0
    %4042 = vmatprep.subr.mxu0 0.0
    %4043 = vmatpush2.msra.mxu0 0.0
    %4044 = vmatprep.subr.mxu0 0.0
    %4045 = vmatpush2.msra.mxu0 0.0
    %4046 = vmatprep.subr.mxu0 0.0
    %4047 = vmatpush2.msra.mxu0 0.0
    %4048 = vmatprep.subr.mxu0 0.0
    %4049 = vmatpush2.msra.mxu0 0.0
    %4050 = vmatprep.subr.mxu0 0.0
    %4051 = vmatpush2.msra.mxu0 0.0
    %4052 = vmatprep.subr.mxu0 0.0
    %4053 = vmatpush2.msra.mxu0 0.0
    %4054 = vmatprep.mubr.f32.mxu0 0.0
    %4055 = vmatmul.mubr.f32.gmra.mxu0 %v3627
    %v4056 = vpop.f32.mrf.mxu0
    %v4057 = vadd.f32 0.0, %v4056
    %v4058 = vpop.f32.mrf.mxu0
    %4059 = vdwg.mxu0
    %v4060 = vadd.f32 %v3617, %v4057
    %v4061 = vxor.u32 %v4060, 2147483648
    %v4062 = vmul.f32 %v4061, 1.442695
    %v4063 = vpow.pop %v4062
    %v4064 = vadd.f32 %v4063, 1.0
    %v4065 = vrcp.pop %v4064
    %v4066 = vmul.f32 1.0, %v4065
    %v4067 = vadd.f32 %v4057, %v1112
    %4069 = vrot.lane.b32.xlu0 %v4067, 64
    %v4070 = vpop.permute.xlu0 %4069
    %v4072 = vmul.f32 %v4066, %v4070
    %4074 = vrot.lane.b32.xlu0 %v4072, 64
    %v4075 = vpop.permute.xlu0 %4074
    %v4077 = vadd.f32 %v3617, %v4075
    %v4078 = vtanh.pop %v4077
    %v4079 = vsub.f32 %v3243, %v4078
    %4081 = vrot.lane.b32.xlu0 %v4079, 96
    %v4082 = vpop.permute.xlu0 %4081
    %v4084 = vmul.f32 %v4066, %v4082
    %4086 = vrot.lane.b32.xlu0 %v4084, 32
    %v4087 = vpop.permute.xlu0 %4086
    %v4089 = vadd.f32 %v4078, %v4087
    %v4090 = vld [vmem:[%s1672] sm:$0xff]
    %v4091 = vld [vmem:[%s1672 + $0x8] sm:$0xff]
    %v4092 = vld [vmem:[%s1672 + $0x10] sm:$0xff]
    %v4093 = vld [vmem:[%s1672 + $0x18] sm:$0xff]
    %4094 = vmatprep.subr.mxu0 0.0
    %4095 = vmatpush1.msra.mxu0 0.0
    %4096 = vmatprep.subr.mxu0 0.0
    %4097 = vmatpush1.msra.mxu0 0.0
    %4098 = vmatprep.subr.mxu0 0.0
    %4099 = vmatpush1.msra.mxu0 0.0
    %4100 = vmatprep.subr.mxu0 0.0
    %4101 = vmatpush1.msra.mxu0 0.0
    %4102 = vmatprep.subr.mxu0 0.0
    %4103 = vmatpush1.msra.mxu0 0.0
    %4104 = vmatprep.subr.mxu0 0.0
    %4105 = vmatpush1.msra.mxu0 0.0
    %4106 = vmatprep.subr.mxu0 0.0
    %4107 = vmatpush1.msra.mxu0 0.0
    %4108 = vmatprep.subr.mxu0 0.0
    %4109 = vmatpush1.msra.mxu0 0.0
    %4110 = vmatprep.subr.mxu0 0.0
    %4111 = vmatpush1.msra.mxu0 0.0
    %4112 = vmatprep.subr.mxu0 0.0
    %4113 = vmatpush1.msra.mxu0 0.0
    %4114 = vmatprep.subr.mxu0 0.0
    %4115 = vmatpush1.msra.mxu0 0.0
    %4116 = vmatprep.subr.mxu0 0.0
    %4117 = vmatpush1.msra.mxu0 0.0
    %4118 = vmatprep.subr.mxu0 0.0
    %4119 = vmatpush1.msra.mxu0 %v4093
    %4120 = vmatprep.subr.mxu0 0.0
    %4121 = vmatpush1.msra.mxu0 %v4092
    %4122 = vmatprep.subr.mxu0 0.0
    %4123 = vmatpush1.msra.mxu0 %v4091
    %4124 = vmatprep.subr.mxu0 0.0
    %4125 = vmatpush1.msra.mxu0 %v4090
    %4126 = vmatprep.subr.mxu0 0.0
    %4127 = vmatpush2.msra.mxu0 0.0
    %4128 = vmatprep.subr.mxu0 0.0
    %4129 = vmatpush2.msra.mxu0 0.0
    %4130 = vmatprep.subr.mxu0 0.0
    %4131 = vmatpush2.msra.mxu0 0.0
    %4132 = vmatprep.subr.mxu0 0.0
    %4133 = vmatpush2.msra.mxu0 0.0
    %4134 = vmatprep.subr.mxu0 0.0
    %4135 = vmatpush2.msra.mxu0 0.0
    %4136 = vmatprep.subr.mxu0 0.0
    %4137 = vmatpush2.msra.mxu0 0.0
    %4138 = vmatprep.subr.mxu0 0.0
    %4139 = vmatpush2.msra.mxu0 0.0
    %4140 = vmatprep.subr.mxu0 0.0
    %4141 = vmatpush2.msra.mxu0 0.0
    %4142 = vmatprep.subr.mxu0 0.0
    %4143 = vmatpush2.msra.mxu0 0.0
    %4144 = vmatprep.subr.mxu0 0.0
    %4145 = vmatpush2.msra.mxu0 0.0
    %4146 = vmatprep.subr.mxu0 0.0
    %4147 = vmatpush2.msra.mxu0 0.0
    %4148 = vmatprep.subr.mxu0 0.0
    %4149 = vmatpush2.msra.mxu0 0.0
    %4150 = vmatprep.subr.mxu0 0.0
    %4151 = vmatpush2.msra.mxu0 0.0
    %4152 = vmatprep.subr.mxu0 0.0
    %4153 = vmatpush2.msra.mxu0 0.0
    %4154 = vmatprep.subr.mxu0 0.0
    %4155 = vmatpush2.msra.mxu0 0.0
    %4156 = vmatprep.subr.mxu0 0.0
    %4157 = vmatpush2.msra.mxu0 0.0
    %4158 = vmatprep.mubr.f32.mxu0 0.0
    %4159 = vmatmul.mubr.f32.gmra.mxu0 %v3706
    %v4160 = vpop.f32.mrf.mxu0
    %v4161 = vadd.f32 0.0, %v4160
    %v4162 = vpop.f32.mrf.mxu0
    %4163 = vdwg.mxu0
    %v4164 = vadd.f32 %v3696, %v4161
    %v4165 = vxor.u32 %v4164, 2147483648
    %v4166 = vmul.f32 %v4165, 1.442695
    %v4167 = vpow.pop %v4166
    %v4168 = vadd.f32 %v4167, 1.0
    %v4169 = vrcp.pop %v4168
    %v4170 = vmul.f32 1.0, %v4169
    %v4171 = vadd.f32 %v4161, %v1758
    %4173 = vrot.lane.b32.xlu0 %v4171, 64
    %v4174 = vpop.permute.xlu0 %4173
    %v4176 = vmul.f32 %v4170, %v4174
    %4178 = vrot.lane.b32.xlu0 %v4176, 64
    %v4179 = vpop.permute.xlu0 %4178
    %v4181 = vadd.f32 %v3696, %v4179
    %v4182 = vtanh.pop %v4181
    %v4183 = vsub.f32 %v3347, %v4182
    %4185 = vrot.lane.b32.xlu0 %v4183, 96
    %v4186 = vpop.permute.xlu0 %4185
    %v4188 = vmul.f32 %v4170, %v4186
    %4190 = vrot.lane.b32.xlu0 %v4188, 32
    %v4191 = vpop.permute.xlu0 %4190
    %v4193 = vadd.f32 %v4182, %v4191
    %v4194 = vld [vmem:[%s2494] sm:$0xff]
    %v4195 = vld [vmem:[%s2494 + $0x8] sm:$0xff]
    %v4196 = vld [vmem:[%s2494 + $0x10] sm:$0xff]
    %v4197 = vld [vmem:[%s2494 + $0x18] sm:$0xff]
    %v4198 = vsel %vm45, %v3456, 0
    %4200 = vmatprep.subr.mxu0 0.0
    %4201 = vmatpush1.msra.mxu0 0.0
    %4202 = vmatprep.subr.mxu0 0.0
    %4203 = vmatpush1.msra.mxu0 0.0
    %4204 = vmatprep.subr.mxu0 0.0
    %4205 = vmatpush1.msra.mxu0 0.0
    %4206 = vmatprep.subr.mxu0 0.0
    %4207 = vmatpush1.msra.mxu0 0.0
    %4208 = vmatprep.subr.mxu0 0.0
    %4209 = vmatpush1.msra.mxu0 0.0
    %4210 = vmatprep.subr.mxu0 0.0
    %4211 = vmatpush1.msra.mxu0 0.0
    %4212 = vmatprep.subr.mxu0 0.0
    %4213 = vmatpush1.msra.mxu0 0.0
    %4214 = vmatprep.subr.mxu0 0.0
    %4215 = vmatpush1.msra.mxu0 0.0
    %4216 = vmatprep.subr.mxu0 0.0
    %4217 = vmatpush1.msra.mxu0 0.0
    %4218 = vmatprep.subr.mxu0 0.0
    %4219 = vmatpush1.msra.mxu0 0.0
    %4220 = vmatprep.subr.mxu0 0.0
    %4221 = vmatpush1.msra.mxu0 0.0
    %4222 = vmatprep.subr.mxu0 0.0
    %4223 = vmatpush1.msra.mxu0 0.0
    %4224 = vmatprep.subr.mxu0 0.0
    %4225 = vmatpush1.msra.mxu0 %v4197
    %4226 = vmatprep.subr.mxu0 0.0
    %4227 = vmatpush1.msra.mxu0 %v4196
    %4228 = vmatprep.subr.mxu0 0.0
    %4229 = vmatpush1.msra.mxu0 %v4195
    %4230 = vmatprep.subr.mxu0 0.0
    %4231 = vmatpush1.msra.mxu0 %v4194
    %4232 = vmatprep.subr.mxu0 0.0
    %4233 = vmatpush2.msra.mxu0 0.0
    %4234 = vmatprep.subr.mxu0 0.0
    %4235 = vmatpush2.msra.mxu0 0.0
    %4236 = vmatprep.subr.mxu0 0.0
    %4237 = vmatpush2.msra.mxu0 0.0
    %4238 = vmatprep.subr.mxu0 0.0
    %4239 = vmatpush2.msra.mxu0 0.0
    %4240 = vmatprep.subr.mxu0 0.0
    %4241 = vmatpush2.msra.mxu0 0.0
    %4242 = vmatprep.subr.mxu0 0.0
    %4243 = vmatpush2.msra.mxu0 0.0
    %4244 = vmatprep.subr.mxu0 0.0
    %4245 = vmatpush2.msra.mxu0 0.0
    %4246 = vmatprep.subr.mxu0 0.0
    %4247 = vmatpush2.msra.mxu0 0.0
    %4248 = vmatprep.subr.mxu0 0.0
    %4249 = vmatpush2.msra.mxu0 0.0
    %4250 = vmatprep.subr.mxu0 0.0
    %4251 = vmatpush2.msra.mxu0 0.0
    %4252 = vmatprep.subr.mxu0 0.0
    %4253 = vmatpush2.msra.mxu0 0.0
    %4254 = vmatprep.subr.mxu0 0.0
    %4255 = vmatpush2.msra.mxu0 0.0
    %4256 = vmatprep.subr.mxu0 0.0
    %4257 = vmatpush2.msra.mxu0 0.0
    %4258 = vmatprep.subr.mxu0 0.0
    %4259 = vmatpush2.msra.mxu0 0.0
    %4260 = vmatprep.subr.mxu0 0.0
    %4261 = vmatpush2.msra.mxu0 0.0
    %4262 = vmatprep.subr.mxu0 0.0
    %4263 = vmatpush2.msra.mxu0 0.0
    %4264 = vmatprep.mubr.f32.mxu0 0.0
    %4265 = vmatmul.mubr.f32.gmra.mxu0 %v4198
    %v4266 = vpop.f32.mrf.mxu0
    %v4267 = vadd.f32 0.0, %v4266
    %v4268 = vpop.f32.mrf.mxu0
    %4269 = vdwg.mxu0
    %v4270 = vadd.f32 %v3775, %v4267
    %v4271 = vxor.u32 %v4270, 2147483648
    %v4272 = vmul.f32 %v4271, 1.442695
    %v4273 = vpow.pop %v4272
    %v4274 = vadd.f32 %v4273, 1.0
    %v4275 = vrcp.pop %v4274
    %v4276 = vmul.f32 1.0, %v4275
    %v4277 = vadd.f32 %v4267, %v2580
    %4279 = vrot.lane.b32.xlu0 %v4277, 64
    %v4280 = vpop.permute.xlu0 %4279
    %v4282 = vmul.f32 %v4276, %v4280
    %4284 = vrot.lane.b32.xlu0 %v4282, 64
    %v4285 = vpop.permute.xlu0 %4284
    %v4287 = vadd.f32 %v3775, %v4285
    %v4288 = vtanh.pop %v4287
    %v4289 = vsub.f32 %v3453, %v4288
    %4291 = vrot.lane.b32.xlu0 %v4289, 96
    %v4292 = vpop.permute.xlu0 %4291
    %v4294 = vmul.f32 %v4276, %v4292
    %4296 = vrot.lane.b32.xlu0 %v4294, 32
    %v4297 = vpop.permute.xlu0 %4296
    %v4299 = vadd.f32 %v4288, %v4297
    %4301 = vrot.lane.b32.xlu0 %v4299, 64
    %v4302 = vpop.permute.xlu0 %4301
    %s4304 = scalar_lea.vmem %s6, 16
    %4305 = vst.msk [vmem:[%s4304] sm:$0xff] %vm45, %v4302
    %s4306 = scalar_lea.vmem [#allocation2], 56
    %v4307 = vld [vmem:[%s4306] sm:$0xff]
    %v4308 = vld [vmem:[%s375] sm:$0xff]
    %v4309 = vld [vmem:[%s375 + $0x8] sm:$0xff]
    %v4310 = vld [vmem:[%s375 + $0x10] sm:$0xff]
    %v4311 = vld [vmem:[%s375 + $0x18] sm:$0xff]
    %4313 = vrot.lane.b32.xlu0 %v3881, 64
    %v4314 = vpop.permute.xlu0 %4313
    %v4315 = vsel %vm45, %v4314, 0
    %4317 = vmatprep.subr.mxu0 0.0
    %4318 = vmatpush1.msra.mxu0 0.0
    %4319 = vmatprep.subr.mxu0 0.0
    %4320 = vmatpush1.msra.mxu0 0.0
    %4321 = vmatprep.subr.mxu0 0.0
    %4322 = vmatpush1.msra.mxu0 0.0
    %4323 = vmatprep.subr.mxu0 0.0
    %4324 = vmatpush1.msra.mxu0 0.0
    %4325 = vmatprep.subr.mxu0 0.0
    %4326 = vmatpush1.msra.mxu0 0.0
    %4327 = vmatprep.subr.mxu0 0.0
    %4328 = vmatpush1.msra.mxu0 0.0
    %4329 = vmatprep.subr.mxu0 0.0
    %4330 = vmatpush1.msra.mxu0 0.0
    %4331 = vmatprep.subr.mxu0 0.0
    %4332 = vmatpush1.msra.mxu0 0.0
    %4333 = vmatprep.subr.mxu0 0.0
    %4334 = vmatpush1.msra.mxu0 0.0
    %4335 = vmatprep.subr.mxu0 0.0
    %4336 = vmatpush1.msra.mxu0 0.0
    %4337 = vmatprep.subr.mxu0 0.0
    %4338 = vmatpush1.msra.mxu0 0.0
    %4339 = vmatprep.subr.mxu0 0.0
    %4340 = vmatpush1.msra.mxu0 0.0
    %4341 = vmatprep.subr.mxu0 0.0
    %4342 = vmatpush1.msra.mxu0 %v4311
    %4343 = vmatprep.subr.mxu0 0.0
    %4344 = vmatpush1.msra.mxu0 %v4310
    %4345 = vmatprep.subr.mxu0 0.0
    %4346 = vmatpush1.msra.mxu0 %v4309
    %4347 = vmatprep.subr.mxu0 0.0
    %4348 = vmatpush1.msra.mxu0 %v4308
    %4349 = vmatprep.subr.mxu0 0.0
    %4350 = vmatpush2.msra.mxu0 0.0
    %4351 = vmatprep.subr.mxu0 0.0
    %4352 = vmatpush2.msra.mxu0 0.0
    %4353 = vmatprep.subr.mxu0 0.0
    %4354 = vmatpush2.msra.mxu0 0.0
    %4355 = vmatprep.subr.mxu0 0.0
    %4356 = vmatpush2.msra.mxu0 0.0
    %4357 = vmatprep.subr.mxu0 0.0
    %4358 = vmatpush2.msra.mxu0 0.0
    %4359 = vmatprep.subr.mxu0 0.0
    %4360 = vmatpush2.msra.mxu0 0.0
    %4361 = vmatprep.subr.mxu0 0.0
    %4362 = vmatpush2.msra.mxu0 0.0
    %4363 = vmatprep.subr.mxu0 0.0
    %4364 = vmatpush2.msra.mxu0 0.0
    %4365 = vmatprep.subr.mxu0 0.0
    %4366 = vmatpush2.msra.mxu0 0.0
    %4367 = vmatprep.subr.mxu0 0.0
    %4368 = vmatpush2.msra.mxu0 0.0
    %4369 = vmatprep.subr.mxu0 0.0
    %4370 = vmatpush2.msra.mxu0 0.0
    %4371 = vmatprep.subr.mxu0 0.0
    %4372 = vmatpush2.msra.mxu0 0.0
    %4373 = vmatprep.subr.mxu0 0.0
    %4374 = vmatpush2.msra.mxu0 0.0
    %4375 = vmatprep.subr.mxu0 0.0
    %4376 = vmatpush2.msra.mxu0 0.0
    %4377 = vmatprep.subr.mxu0 0.0
    %4378 = vmatpush2.msra.mxu0 0.0
    %4379 = vmatprep.subr.mxu0 0.0
    %4380 = vmatpush2.msra.mxu0 0.0
    %4381 = vmatprep.mubr.f32.mxu0 0.0
    %4382 = vmatmul.mubr.f32.gmra.mxu0 %v4315
    %v4383 = vpop.f32.mrf.mxu0
    %v4384 = vadd.f32 %v224, %v4383
    %v4385 = vpop.f32.mrf.mxu0
    %4386 = vdwg.mxu0
    %v4387 = vld [vmem:[%s746] sm:$0xff]
    %v4388 = vld [vmem:[%s746 + $0x8] sm:$0xff]
    %v4389 = vld [vmem:[%s746 + $0x10] sm:$0xff]
    %v4390 = vld [vmem:[%s746 + $0x18] sm:$0xff]
    %4392 = vrot.lane.b32.xlu0 %v3985, 64
    %v4393 = vpop.permute.xlu0 %4392
    %v4394 = vsel %vm45, %v4393, 0
    %4396 = vmatprep.subr.mxu0 0.0
    %4397 = vmatpush1.msra.mxu0 0.0
    %4398 = vmatprep.subr.mxu0 0.0
    %4399 = vmatpush1.msra.mxu0 0.0
    %4400 = vmatprep.subr.mxu0 0.0
    %4401 = vmatpush1.msra.mxu0 0.0
    %4402 = vmatprep.subr.mxu0 0.0
    %4403 = vmatpush1.msra.mxu0 0.0
    %4404 = vmatprep.subr.mxu0 0.0
    %4405 = vmatpush1.msra.mxu0 0.0
    %4406 = vmatprep.subr.mxu0 0.0
    %4407 = vmatpush1.msra.mxu0 0.0
    %4408 = vmatprep.subr.mxu0 0.0
    %4409 = vmatpush1.msra.mxu0 0.0
    %4410 = vmatprep.subr.mxu0 0.0
    %4411 = vmatpush1.msra.mxu0 0.0
    %4412 = vmatprep.subr.mxu0 0.0
    %4413 = vmatpush1.msra.mxu0 0.0
    %4414 = vmatprep.subr.mxu0 0.0
    %4415 = vmatpush1.msra.mxu0 0.0
    %4416 = vmatprep.subr.mxu0 0.0
    %4417 = vmatpush1.msra.mxu0 0.0
    %4418 = vmatprep.subr.mxu0 0.0
    %4419 = vmatpush1.msra.mxu0 0.0
    %4420 = vmatprep.subr.mxu0 0.0
    %4421 = vmatpush1.msra.mxu0 %v4390
    %4422 = vmatprep.subr.mxu0 0.0
    %4423 = vmatpush1.msra.mxu0 %v4389
    %4424 = vmatprep.subr.mxu0 0.0
    %4425 = vmatpush1.msra.mxu0 %v4388
    %4426 = vmatprep.subr.mxu0 0.0
    %4427 = vmatpush1.msra.mxu0 %v4387
    %4428 = vmatprep.subr.mxu0 0.0
    %4429 = vmatpush2.msra.mxu0 0.0
    %4430 = vmatprep.subr.mxu0 0.0
    %4431 = vmatpush2.msra.mxu0 0.0
    %4432 = vmatprep.subr.mxu0 0.0
    %4433 = vmatpush2.msra.mxu0 0.0
    %4434 = vmatprep.subr.mxu0 0.0
    %4435 = vmatpush2.msra.mxu0 0.0
    %4436 = vmatprep.subr.mxu0 0.0
    %4437 = vmatpush2.msra.mxu0 0.0
    %4438 = vmatprep.subr.mxu0 0.0
    %4439 = vmatpush2.msra.mxu0 0.0
    %4440 = vmatprep.subr.mxu0 0.0
    %4441 = vmatpush2.msra.mxu0 0.0
    %4442 = vmatprep.subr.mxu0 0.0
    %4443 = vmatpush2.msra.mxu0 0.0
    %4444 = vmatprep.subr.mxu0 0.0
    %4445 = vmatpush2.msra.mxu0 0.0
    %4446 = vmatprep.subr.mxu0 0.0
    %4447 = vmatpush2.msra.mxu0 0.0
    %4448 = vmatprep.subr.mxu0 0.0
    %4449 = vmatpush2.msra.mxu0 0.0
    %4450 = vmatprep.subr.mxu0 0.0
    %4451 = vmatpush2.msra.mxu0 0.0
    %4452 = vmatprep.subr.mxu0 0.0
    %4453 = vmatpush2.msra.mxu0 0.0
    %4454 = vmatprep.subr.mxu0 0.0
    %4455 = vmatpush2.msra.mxu0 0.0
    %4456 = vmatprep.subr.mxu0 0.0
    %4457 = vmatpush2.msra.mxu0 0.0
    %4458 = vmatprep.subr.mxu0 0.0
    %4459 = vmatpush2.msra.mxu0 0.0
    %4460 = vmatprep.mubr.f32.mxu0 0.0
    %4461 = vmatmul.mubr.f32.gmra.mxu0 %v4394
    %v4462 = vpop.f32.mrf.mxu0
    %v4463 = vadd.f32 %v232, %v4462
    %v4464 = vpop.f32.mrf.mxu0
    %4465 = vdwg.mxu0
    %v4466 = vld [vmem:[%s1292] sm:$0xff]
    %v4467 = vld [vmem:[%s1292 + $0x8] sm:$0xff]
    %v4468 = vld [vmem:[%s1292 + $0x10] sm:$0xff]
    %v4469 = vld [vmem:[%s1292 + $0x18] sm:$0xff]
    %4471 = vrot.lane.b32.xlu0 %v4089, 64
    %v4472 = vpop.permute.xlu0 %4471
    %v4473 = vsel %vm45, %v4472, 0
    %4475 = vmatprep.subr.mxu0 0.0
    %4476 = vmatpush1.msra.mxu0 0.0
    %4477 = vmatprep.subr.mxu0 0.0
    %4478 = vmatpush1.msra.mxu0 0.0
    %4479 = vmatprep.subr.mxu0 0.0
    %4480 = vmatpush1.msra.mxu0 0.0
    %4481 = vmatprep.subr.mxu0 0.0
    %4482 = vmatpush1.msra.mxu0 0.0
    %4483 = vmatprep.subr.mxu0 0.0
    %4484 = vmatpush1.msra.mxu0 0.0
    %4485 = vmatprep.subr.mxu0 0.0
    %4486 = vmatpush1.msra.mxu0 0.0
    %4487 = vmatprep.subr.mxu0 0.0
    %4488 = vmatpush1.msra.mxu0 0.0
    %4489 = vmatprep.subr.mxu0 0.0
    %4490 = vmatpush1.msra.mxu0 0.0
    %4491 = vmatprep.subr.mxu0 0.0
    %4492 = vmatpush1.msra.mxu0 0.0
    %4493 = vmatprep.subr.mxu0 0.0
    %4494 = vmatpush1.msra.mxu0 0.0
    %4495 = vmatprep.subr.mxu0 0.0
    %4496 = vmatpush1.msra.mxu0 0.0
    %4497 = vmatprep.subr.mxu0 0.0
    %4498 = vmatpush1.msra.mxu0 0.0
    %4499 = vmatprep.subr.mxu0 0.0
    %4500 = vmatpush1.msra.mxu0 %v4469
    %4501 = vmatprep.subr.mxu0 0.0
    %4502 = vmatpush1.msra.mxu0 %v4468
    %4503 = vmatprep.subr.mxu0 0.0
    %4504 = vmatpush1.msra.mxu0 %v4467
    %4505 = vmatprep.subr.mxu0 0.0
    %4506 = vmatpush1.msra.mxu0 %v4466
    %4507 = vmatprep.subr.mxu0 0.0
    %4508 = vmatpush2.msra.mxu0 0.0
    %4509 = vmatprep.subr.mxu0 0.0
    %4510 = vmatpush2.msra.mxu0 0.0
    %4511 = vmatprep.subr.mxu0 0.0
    %4512 = vmatpush2.msra.mxu0 0.0
    %4513 = vmatprep.subr.mxu0 0.0
    %4514 = vmatpush2.msra.mxu0 0.0
    %4515 = vmatprep.subr.mxu0 0.0
    %4516 = vmatpush2.msra.mxu0 0.0
    %4517 = vmatprep.subr.mxu0 0.0
    %4518 = vmatpush2.msra.mxu0 0.0
    %4519 = vmatprep.subr.mxu0 0.0
    %4520 = vmatpush2.msra.mxu0 0.0
    %4521 = vmatprep.subr.mxu0 0.0
    %4522 = vmatpush2.msra.mxu0 0.0
    %4523 = vmatprep.subr.mxu0 0.0
    %4524 = vmatpush2.msra.mxu0 0.0
    %4525 = vmatprep.subr.mxu0 0.0
    %4526 = vmatpush2.msra.mxu0 0.0
    %4527 = vmatprep.subr.mxu0 0.0
    %4528 = vmatpush2.msra.mxu0 0.0
    %4529 = vmatprep.subr.mxu0 0.0
    %4530 = vmatpush2.msra.mxu0 0.0
    %4531 = vmatprep.subr.mxu0 0.0
    %4532 = vmatpush2.msra.mxu0 0.0
    %4533 = vmatprep.subr.mxu0 0.0
    %4534 = vmatpush2.msra.mxu0 0.0
    %4535 = vmatprep.subr.mxu0 0.0
    %4536 = vmatpush2.msra.mxu0 0.0
    %4537 = vmatprep.subr.mxu0 0.0
    %4538 = vmatpush2.msra.mxu0 0.0
    %4539 = vmatprep.mubr.f32.mxu0 0.0
    %4540 = vmatmul.mubr.f32.gmra.mxu0 %v4473
    %v4541 = vpop.f32.mrf.mxu0
    %v4542 = vadd.f32 %v240, %v4541
    %v4543 = vpop.f32.mrf.mxu0
    %4544 = vdwg.mxu0
    %v4545 = vld [vmem:[%s2014] sm:$0xff]
    %v4546 = vld [vmem:[%s2014 + $0x8] sm:$0xff]
    %v4547 = vld [vmem:[%s2014 + $0x10] sm:$0xff]
    %v4548 = vld [vmem:[%s2014 + $0x18] sm:$0xff]
    %4550 = vrot.lane.b32.xlu0 %v4193, 64
    %v4551 = vpop.permute.xlu0 %4550
    %v4552 = vsel %vm45, %v4551, 0
    %4554 = vmatprep.subr.mxu0 0.0
    %4555 = vmatpush1.msra.mxu0 0.0
    %4556 = vmatprep.subr.mxu0 0.0
    %4557 = vmatpush1.msra.mxu0 0.0
    %4558 = vmatprep.subr.mxu0 0.0
    %4559 = vmatpush1.msra.mxu0 0.0
    %4560 = vmatprep.subr.mxu0 0.0
    %4561 = vmatpush1.msra.mxu0 0.0
    %4562 = vmatprep.subr.mxu0 0.0
    %4563 = vmatpush1.msra.mxu0 0.0
    %4564 = vmatprep.subr.mxu0 0.0
    %4565 = vmatpush1.msra.mxu0 0.0
    %4566 = vmatprep.subr.mxu0 0.0
    %4567 = vmatpush1.msra.mxu0 0.0
    %4568 = vmatprep.subr.mxu0 0.0
    %4569 = vmatpush1.msra.mxu0 0.0
    %4570 = vmatprep.subr.mxu0 0.0
    %4571 = vmatpush1.msra.mxu0 0.0
    %4572 = vmatprep.subr.mxu0 0.0
    %4573 = vmatpush1.msra.mxu0 0.0
    %4574 = vmatprep.subr.mxu0 0.0
    %4575 = vmatpush1.msra.mxu0 0.0
    %4576 = vmatprep.subr.mxu0 0.0
    %4577 = vmatpush1.msra.mxu0 0.0
    %4578 = vmatprep.subr.mxu0 0.0
    %4579 = vmatpush1.msra.mxu0 %v4548
    %4580 = vmatprep.subr.mxu0 0.0
    %4581 = vmatpush1.msra.mxu0 %v4547
    %4582 = vmatprep.subr.mxu0 0.0
    %4583 = vmatpush1.msra.mxu0 %v4546
    %4584 = vmatprep.subr.mxu0 0.0
    %4585 = vmatpush1.msra.mxu0 %v4545
    %4586 = vmatprep.subr.mxu0 0.0
    %4587 = vmatpush2.msra.mxu0 0.0
    %4588 = vmatprep.subr.mxu0 0.0
    %4589 = vmatpush2.msra.mxu0 0.0
    %4590 = vmatprep.subr.mxu0 0.0
    %4591 = vmatpush2.msra.mxu0 0.0
    %4592 = vmatprep.subr.mxu0 0.0
    %4593 = vmatpush2.msra.mxu0 0.0
    %4594 = vmatprep.subr.mxu0 0.0
    %4595 = vmatpush2.msra.mxu0 0.0
    %4596 = vmatprep.subr.mxu0 0.0
    %4597 = vmatpush2.msra.mxu0 0.0
    %4598 = vmatprep.subr.mxu0 0.0
    %4599 = vmatpush2.msra.mxu0 0.0
    %4600 = vmatprep.subr.mxu0 0.0
    %4601 = vmatpush2.msra.mxu0 0.0
    %4602 = vmatprep.subr.mxu0 0.0
    %4603 = vmatpush2.msra.mxu0 0.0
    %4604 = vmatprep.subr.mxu0 0.0
    %4605 = vmatpush2.msra.mxu0 0.0
    %4606 = vmatprep.subr.mxu0 0.0
    %4607 = vmatpush2.msra.mxu0 0.0
    %4608 = vmatprep.subr.mxu0 0.0
    %4609 = vmatpush2.msra.mxu0 0.0
    %4610 = vmatprep.subr.mxu0 0.0
    %4611 = vmatpush2.msra.mxu0 0.0
    %4612 = vmatprep.subr.mxu0 0.0
    %4613 = vmatpush2.msra.mxu0 0.0
    %4614 = vmatprep.subr.mxu0 0.0
    %4615 = vmatpush2.msra.mxu0 0.0
    %4616 = vmatprep.subr.mxu0 0.0
    %4617 = vmatpush2.msra.mxu0 0.0
    %4618 = vmatprep.mubr.f32.mxu0 0.0
    %4619 = vmatmul.mubr.f32.gmra.mxu0 %v4552
    %v4620 = vpop.f32.mrf.mxu0
    %v4621 = vadd.f32 %v248, %v4620
    %v4622 = vpop.f32.mrf.mxu0
    %4623 = vdwg.mxu0
    %v4624 = vld [vmem:[%s3] sm:$0xff]
    %v4625 = vld [vmem:[%s3 + $0x8] sm:$0xff]
    %v4626 = vld [vmem:[%s3 + $0x10] sm:$0xff]
    %v4627 = vld [vmem:[%s3 + $0x18] sm:$0xff]
    %4628 = vmatprep.subr.mxu0 0.0
    %4629 = vmatpush1.msra.mxu0 0.0
    %4630 = vmatprep.subr.mxu0 0.0
    %4631 = vmatpush1.msra.mxu0 0.0
    %4632 = vmatprep.subr.mxu0 0.0
    %4633 = vmatpush1.msra.mxu0 0.0
    %4634 = vmatprep.subr.mxu0 0.0
    %4635 = vmatpush1.msra.mxu0 0.0
    %4636 = vmatprep.subr.mxu0 0.0
    %4637 = vmatpush1.msra.mxu0 0.0
    %4638 = vmatprep.subr.mxu0 0.0
    %4639 = vmatpush1.msra.mxu0 0.0
    %4640 = vmatprep.subr.mxu0 0.0
    %4641 = vmatpush1.msra.mxu0 0.0
    %4642 = vmatprep.subr.mxu0 0.0
    %4643 = vmatpush1.msra.mxu0 0.0
    %4644 = vmatprep.subr.mxu0 0.0
    %4645 = vmatpush1.msra.mxu0 0.0
    %4646 = vmatprep.subr.mxu0 0.0
    %4647 = vmatpush1.msra.mxu0 0.0
    %4648 = vmatprep.subr.mxu0 0.0
    %4649 = vmatpush1.msra.mxu0 0.0
    %4650 = vmatprep.subr.mxu0 0.0
    %4651 = vmatpush1.msra.mxu0 0.0
    %4652 = vmatprep.subr.mxu0 0.0
    %4653 = vmatpush1.msra.mxu0 %v4627
    %4654 = vmatprep.subr.mxu0 0.0
    %4655 = vmatpush1.msra.mxu0 %v4626
    %4656 = vmatprep.subr.mxu0 0.0
    %4657 = vmatpush1.msra.mxu0 %v4625
    %4658 = vmatprep.subr.mxu0 0.0
    %4659 = vmatpush1.msra.mxu0 %v4624
    %4660 = vmatprep.subr.mxu0 0.0
    %4661 = vmatpush2.msra.mxu0 0.0
    %4662 = vmatprep.subr.mxu0 0.0
    %4663 = vmatpush2.msra.mxu0 0.0
    %4664 = vmatprep.subr.mxu0 0.0
    %4665 = vmatpush2.msra.mxu0 0.0
    %4666 = vmatprep.subr.mxu0 0.0
    %4667 = vmatpush2.msra.mxu0 0.0
    %4668 = vmatprep.subr.mxu0 0.0
    %4669 = vmatpush2.msra.mxu0 0.0
    %4670 = vmatprep.subr.mxu0 0.0
    %4671 = vmatpush2.msra.mxu0 0.0
    %4672 = vmatprep.subr.mxu0 0.0
    %4673 = vmatpush2.msra.mxu0 0.0
    %4674 = vmatprep.subr.mxu0 0.0
    %4675 = vmatpush2.msra.mxu0 0.0
    %4676 = vmatprep.subr.mxu0 0.0
    %4677 = vmatpush2.msra.mxu0 0.0
    %4678 = vmatprep.subr.mxu0 0.0
    %4679 = vmatpush2.msra.mxu0 0.0
    %4680 = vmatprep.subr.mxu0 0.0
    %4681 = vmatpush2.msra.mxu0 0.0
    %4682 = vmatprep.subr.mxu0 0.0
    %4683 = vmatpush2.msra.mxu0 0.0
    %4684 = vmatprep.subr.mxu0 0.0
    %4685 = vmatpush2.msra.mxu0 0.0
    %4686 = vmatprep.subr.mxu0 0.0
    %4687 = vmatpush2.msra.mxu0 0.0
    %4688 = vmatprep.subr.mxu0 0.0
    %4689 = vmatpush2.msra.mxu0 0.0
    %4690 = vmatprep.subr.mxu0 0.0
    %4691 = vmatpush2.msra.mxu0 0.0
    %4692 = vmatprep.mubr.f32.mxu0 0.0
    %4693 = vmatmul.mubr.f32.gmra.mxu0 %v4315
    %v4694 = vpop.f32.mrf.mxu0
    %v4695 = vadd.f32 0.0, %v4694
    %v4696 = vpop.f32.mrf.mxu0
    %4697 = vdwg.mxu0
    %v4698 = vadd.f32 %v4307, %v4695
    %v4699 = vxor.u32 %v4698, 2147483648
    %v4700 = vmul.f32 %v4699, 1.442695
    %v4701 = vpow.pop %v4700
    %v4702 = vadd.f32 %v4701, 1.0
    %v4703 = vrcp.pop %v4702
    %v4704 = vmul.f32 1.0, %v4703
    %v4705 = vadd.f32 %v4695, %v345
    %4707 = vrot.lane.b32.xlu0 %v4705, 64
    %v4708 = vpop.permute.xlu0 %4707
    %v4710 = vmul.f32 %v4704, %v4708
    %4712 = vrot.lane.b32.xlu0 %v4710, 64
    %v4713 = vpop.permute.xlu0 %4712
    %v4715 = vadd.f32 %v4307, %v4713
    %v4716 = vtanh.pop %v4715
    %v4717 = vsub.f32 %v3881, %v4716
    %4719 = vrot.lane.b32.xlu0 %v4717, 96
    %v4720 = vpop.permute.xlu0 %4719
    %v4722 = vmul.f32 %v4704, %v4720
    %4724 = vrot.lane.b32.xlu0 %v4722, 32
    %v4725 = vpop.permute.xlu0 %4724
    %v4727 = vadd.f32 %v4716, %v4725
    %v4728 = vld [vmem:[%s555] sm:$0xff]
    %v4729 = vld [vmem:[%s555 + $0x8] sm:$0xff]
    %v4730 = vld [vmem:[%s555 + $0x10] sm:$0xff]
    %v4731 = vld [vmem:[%s555 + $0x18] sm:$0xff]
    %4732 = vmatprep.subr.mxu0 0.0
    %4733 = vmatpush1.msra.mxu0 0.0
    %4734 = vmatprep.subr.mxu0 0.0
    %4735 = vmatpush1.msra.mxu0 0.0
    %4736 = vmatprep.subr.mxu0 0.0
    %4737 = vmatpush1.msra.mxu0 0.0
    %4738 = vmatprep.subr.mxu0 0.0
    %4739 = vmatpush1.msra.mxu0 0.0
    %4740 = vmatprep.subr.mxu0 0.0
    %4741 = vmatpush1.msra.mxu0 0.0
    %4742 = vmatprep.subr.mxu0 0.0
    %4743 = vmatpush1.msra.mxu0 0.0
    %4744 = vmatprep.subr.mxu0 0.0
    %4745 = vmatpush1.msra.mxu0 0.0
    %4746 = vmatprep.subr.mxu0 0.0
    %4747 = vmatpush1.msra.mxu0 0.0
    %4748 = vmatprep.subr.mxu0 0.0
    %4749 = vmatpush1.msra.mxu0 0.0
    %4750 = vmatprep.subr.mxu0 0.0
    %4751 = vmatpush1.msra.mxu0 0.0
    %4752 = vmatprep.subr.mxu0 0.0
    %4753 = vmatpush1.msra.mxu0 0.0
    %4754 = vmatprep.subr.mxu0 0.0
    %4755 = vmatpush1.msra.mxu0 0.0
    %4756 = vmatprep.subr.mxu0 0.0
    %4757 = vmatpush1.msra.mxu0 %v4731
    %4758 = vmatprep.subr.mxu0 0.0
    %4759 = vmatpush1.msra.mxu0 %v4730
    %4760 = vmatprep.subr.mxu0 0.0
    %4761 = vmatpush1.msra.mxu0 %v4729
    %4762 = vmatprep.subr.mxu0 0.0
    %4763 = vmatpush1.msra.mxu0 %v4728
    %4764 = vmatprep.subr.mxu0 0.0
    %4765 = vmatpush2.msra.mxu0 0.0
    %4766 = vmatprep.subr.mxu0 0.0
    %4767 = vmatpush2.msra.mxu0 0.0
    %4768 = vmatprep.subr.mxu0 0.0
    %4769 = vmatpush2.msra.mxu0 0.0
    %4770 = vmatprep.subr.mxu0 0.0
    %4771 = vmatpush2.msra.mxu0 0.0
    %4772 = vmatprep.subr.mxu0 0.0
    %4773 = vmatpush2.msra.mxu0 0.0
    %4774 = vmatprep.subr.mxu0 0.0
    %4775 = vmatpush2.msra.mxu0 0.0
    %4776 = vmatprep.subr.mxu0 0.0
    %4777 = vmatpush2.msra.mxu0 0.0
    %4778 = vmatprep.subr.mxu0 0.0
    %4779 = vmatpush2.msra.mxu0 0.0
    %4780 = vmatprep.subr.mxu0 0.0
    %4781 = vmatpush2.msra.mxu0 0.0
    %4782 = vmatprep.subr.mxu0 0.0
    %4783 = vmatpush2.msra.mxu0 0.0
    %4784 = vmatprep.subr.mxu0 0.0
    %4785 = vmatpush2.msra.mxu0 0.0
    %4786 = vmatprep.subr.mxu0 0.0
    %4787 = vmatpush2.msra.mxu0 0.0
    %4788 = vmatprep.subr.mxu0 0.0
    %4789 = vmatpush2.msra.mxu0 0.0
    %4790 = vmatprep.subr.mxu0 0.0
    %4791 = vmatpush2.msra.mxu0 0.0
    %4792 = vmatprep.subr.mxu0 0.0
    %4793 = vmatpush2.msra.mxu0 0.0
    %4794 = vmatprep.subr.mxu0 0.0
    %4795 = vmatpush2.msra.mxu0 0.0
    %4796 = vmatprep.mubr.f32.mxu0 0.0
    %4797 = vmatmul.mubr.f32.gmra.mxu0 %v4394
    %v4798 = vpop.f32.mrf.mxu0
    %v4799 = vadd.f32 0.0, %v4798
    %v4800 = vpop.f32.mrf.mxu0
    %4801 = vdwg.mxu0
    %v4802 = vadd.f32 %v4384, %v4799
    %v4803 = vxor.u32 %v4802, 2147483648
    %v4804 = vmul.f32 %v4803, 1.442695
    %v4805 = vpow.pop %v4804
    %v4806 = vadd.f32 %v4805, 1.0
    %v4807 = vrcp.pop %v4806
    %v4808 = vmul.f32 1.0, %v4807
    %v4809 = vadd.f32 %v4799, %v641
    %4811 = vrot.lane.b32.xlu0 %v4809, 64
    %v4812 = vpop.permute.xlu0 %4811
    %v4814 = vmul.f32 %v4808, %v4812
    %4816 = vrot.lane.b32.xlu0 %v4814, 64
    %v4817 = vpop.permute.xlu0 %4816
    %v4819 = vadd.f32 %v4384, %v4817
    %v4820 = vtanh.pop %v4819
    %v4821 = vsub.f32 %v3985, %v4820
    %4823 = vrot.lane.b32.xlu0 %v4821, 96
    %v4824 = vpop.permute.xlu0 %4823
    %v4826 = vmul.f32 %v4808, %v4824
    %4828 = vrot.lane.b32.xlu0 %v4826, 32
    %v4829 = vpop.permute.xlu0 %4828
    %v4831 = vadd.f32 %v4820, %v4829
    %v4832 = vld [vmem:[%s1026] sm:$0xff]
    %v4833 = vld [vmem:[%s1026 + $0x8] sm:$0xff]
    %v4834 = vld [vmem:[%s1026 + $0x10] sm:$0xff]
    %v4835 = vld [vmem:[%s1026 + $0x18] sm:$0xff]
    %4836 = vmatprep.subr.mxu0 0.0
    %4837 = vmatpush1.msra.mxu0 0.0
    %4838 = vmatprep.subr.mxu0 0.0
    %4839 = vmatpush1.msra.mxu0 0.0
    %4840 = vmatprep.subr.mxu0 0.0
    %4841 = vmatpush1.msra.mxu0 0.0
    %4842 = vmatprep.subr.mxu0 0.0
    %4843 = vmatpush1.msra.mxu0 0.0
    %4844 = vmatprep.subr.mxu0 0.0
    %4845 = vmatpush1.msra.mxu0 0.0
    %4846 = vmatprep.subr.mxu0 0.0
    %4847 = vmatpush1.msra.mxu0 0.0
    %4848 = vmatprep.subr.mxu0 0.0
    %4849 = vmatpush1.msra.mxu0 0.0
    %4850 = vmatprep.subr.mxu0 0.0
    %4851 = vmatpush1.msra.mxu0 0.0
    %4852 = vmatprep.subr.mxu0 0.0
    %4853 = vmatpush1.msra.mxu0 0.0
    %4854 = vmatprep.subr.mxu0 0.0
    %4855 = vmatpush1.msra.mxu0 0.0
    %4856 = vmatprep.subr.mxu0 0.0
    %4857 = vmatpush1.msra.mxu0 0.0
    %4858 = vmatprep.subr.mxu0 0.0
    %4859 = vmatpush1.msra.mxu0 0.0
    %4860 = vmatprep.subr.mxu0 0.0
    %4861 = vmatpush1.msra.mxu0 %v4835
    %4862 = vmatprep.subr.mxu0 0.0
    %4863 = vmatpush1.msra.mxu0 %v4834
    %4864 = vmatprep.subr.mxu0 0.0
    %4865 = vmatpush1.msra.mxu0 %v4833
    %4866 = vmatprep.subr.mxu0 0.0
    %4867 = vmatpush1.msra.mxu0 %v4832
    %4868 = vmatprep.subr.mxu0 0.0
    %4869 = vmatpush2.msra.mxu0 0.0
    %4870 = vmatprep.subr.mxu0 0.0
    %4871 = vmatpush2.msra.mxu0 0.0
    %4872 = vmatprep.subr.mxu0 0.0
    %4873 = vmatpush2.msra.mxu0 0.0
    %4874 = vmatprep.subr.mxu0 0.0
    %4875 = vmatpush2.msra.mxu0 0.0
    %4876 = vmatprep.subr.mxu0 0.0
    %4877 = vmatpush2.msra.mxu0 0.0
    %4878 = vmatprep.subr.mxu0 0.0
    %4879 = vmatpush2.msra.mxu0 0.0
    %4880 = vmatprep.subr.mxu0 0.0
    %4881 = vmatpush2.msra.mxu0 0.0
    %4882 = vmatprep.subr.mxu0 0.0
    %4883 = vmatpush2.msra.mxu0 0.0
    %4884 = vmatprep.subr.mxu0 0.0
    %4885 = vmatpush2.msra.mxu0 0.0
    %4886 = vmatprep.subr.mxu0 0.0
    %4887 = vmatpush2.msra.mxu0 0.0
    %4888 = vmatprep.subr.mxu0 0.0
    %4889 = vmatpush2.msra.mxu0 0.0
    %4890 = vmatprep.subr.mxu0 0.0
    %4891 = vmatpush2.msra.mxu0 0.0
    %4892 = vmatprep.subr.mxu0 0.0
    %4893 = vmatpush2.msra.mxu0 0.0
    %4894 = vmatprep.subr.mxu0 0.0
    %4895 = vmatpush2.msra.mxu0 0.0
    %4896 = vmatprep.subr.mxu0 0.0
    %4897 = vmatpush2.msra.mxu0 0.0
    %4898 = vmatprep.subr.mxu0 0.0
    %4899 = vmatpush2.msra.mxu0 0.0
    %4900 = vmatprep.mubr.f32.mxu0 0.0
    %4901 = vmatmul.mubr.f32.gmra.mxu0 %v4473
    %v4902 = vpop.f32.mrf.mxu0
    %v4903 = vadd.f32 0.0, %v4902
    %v4904 = vpop.f32.mrf.mxu0
    %4905 = vdwg.mxu0
    %v4906 = vadd.f32 %v4463, %v4903
    %v4907 = vxor.u32 %v4906, 2147483648
    %v4908 = vmul.f32 %v4907, 1.442695
    %v4909 = vpow.pop %v4908
    %v4910 = vadd.f32 %v4909, 1.0
    %v4911 = vrcp.pop %v4910
    %v4912 = vmul.f32 1.0, %v4911
    %v4913 = vadd.f32 %v4903, %v1112
    %4915 = vrot.lane.b32.xlu0 %v4913, 64
    %v4916 = vpop.permute.xlu0 %4915
    %v4918 = vmul.f32 %v4912, %v4916
    %4920 = vrot.lane.b32.xlu0 %v4918, 64
    %v4921 = vpop.permute.xlu0 %4920
    %v4923 = vadd.f32 %v4463, %v4921
    %v4924 = vtanh.pop %v4923
    %v4925 = vsub.f32 %v4089, %v4924
    %4927 = vrot.lane.b32.xlu0 %v4925, 96
    %v4928 = vpop.permute.xlu0 %4927
    %v4930 = vmul.f32 %v4912, %v4928
    %4932 = vrot.lane.b32.xlu0 %v4930, 32
    %v4933 = vpop.permute.xlu0 %4932
    %v4935 = vadd.f32 %v4924, %v4933
    %v4936 = vld [vmem:[%s1672] sm:$0xff]
    %v4937 = vld [vmem:[%s1672 + $0x8] sm:$0xff]
    %v4938 = vld [vmem:[%s1672 + $0x10] sm:$0xff]
    %v4939 = vld [vmem:[%s1672 + $0x18] sm:$0xff]
    %4940 = vmatprep.subr.mxu0 0.0
    %4941 = vmatpush1.msra.mxu0 0.0
    %4942 = vmatprep.subr.mxu0 0.0
    %4943 = vmatpush1.msra.mxu0 0.0
    %4944 = vmatprep.subr.mxu0 0.0
    %4945 = vmatpush1.msra.mxu0 0.0
    %4946 = vmatprep.subr.mxu0 0.0
    %4947 = vmatpush1.msra.mxu0 0.0
    %4948 = vmatprep.subr.mxu0 0.0
    %4949 = vmatpush1.msra.mxu0 0.0
    %4950 = vmatprep.subr.mxu0 0.0
    %4951 = vmatpush1.msra.mxu0 0.0
    %4952 = vmatprep.subr.mxu0 0.0
    %4953 = vmatpush1.msra.mxu0 0.0
    %4954 = vmatprep.subr.mxu0 0.0
    %4955 = vmatpush1.msra.mxu0 0.0
    %4956 = vmatprep.subr.mxu0 0.0
    %4957 = vmatpush1.msra.mxu0 0.0
    %4958 = vmatprep.subr.mxu0 0.0
    %4959 = vmatpush1.msra.mxu0 0.0
    %4960 = vmatprep.subr.mxu0 0.0
    %4961 = vmatpush1.msra.mxu0 0.0
    %4962 = vmatprep.subr.mxu0 0.0
    %4963 = vmatpush1.msra.mxu0 0.0
    %4964 = vmatprep.subr.mxu0 0.0
    %4965 = vmatpush1.msra.mxu0 %v4939
    %4966 = vmatprep.subr.mxu0 0.0
    %4967 = vmatpush1.msra.mxu0 %v4938
    %4968 = vmatprep.subr.mxu0 0.0
    %4969 = vmatpush1.msra.mxu0 %v4937
    %4970 = vmatprep.subr.mxu0 0.0
    %4971 = vmatpush1.msra.mxu0 %v4936
    %4972 = vmatprep.subr.mxu0 0.0
    %4973 = vmatpush2.msra.mxu0 0.0
    %4974 = vmatprep.subr.mxu0 0.0
    %4975 = vmatpush2.msra.mxu0 0.0
    %4976 = vmatprep.subr.mxu0 0.0
    %4977 = vmatpush2.msra.mxu0 0.0
    %4978 = vmatprep.subr.mxu0 0.0
    %4979 = vmatpush2.msra.mxu0 0.0
    %4980 = vmatprep.subr.mxu0 0.0
    %4981 = vmatpush2.msra.mxu0 0.0
    %4982 = vmatprep.subr.mxu0 0.0
    %4983 = vmatpush2.msra.mxu0 0.0
    %4984 = vmatprep.subr.mxu0 0.0
    %4985 = vmatpush2.msra.mxu0 0.0
    %4986 = vmatprep.subr.mxu0 0.0
    %4987 = vmatpush2.msra.mxu0 0.0
    %4988 = vmatprep.subr.mxu0 0.0
    %4989 = vmatpush2.msra.mxu0 0.0
    %4990 = vmatprep.subr.mxu0 0.0
    %4991 = vmatpush2.msra.mxu0 0.0
    %4992 = vmatprep.subr.mxu0 0.0
    %4993 = vmatpush2.msra.mxu0 0.0
    %4994 = vmatprep.subr.mxu0 0.0
    %4995 = vmatpush2.msra.mxu0 0.0
    %4996 = vmatprep.subr.mxu0 0.0
    %4997 = vmatpush2.msra.mxu0 0.0
    %4998 = vmatprep.subr.mxu0 0.0
    %4999 = vmatpush2.msra.mxu0 0.0
    %5000 = vmatprep.subr.mxu0 0.0
    %5001 = vmatpush2.msra.mxu0 0.0
    %5002 = vmatprep.subr.mxu0 0.0
    %5003 = vmatpush2.msra.mxu0 0.0
    %5004 = vmatprep.mubr.f32.mxu0 0.0
    %5005 = vmatmul.mubr.f32.gmra.mxu0 %v4552
    %v5006 = vpop.f32.mrf.mxu0
    %v5007 = vadd.f32 0.0, %v5006
    %v5008 = vpop.f32.mrf.mxu0
    %5009 = vdwg.mxu0
    %v5010 = vadd.f32 %v4542, %v5007
    %v5011 = vxor.u32 %v5010, 2147483648
    %v5012 = vmul.f32 %v5011, 1.442695
    %v5013 = vpow.pop %v5012
    %v5014 = vadd.f32 %v5013, 1.0
    %v5015 = vrcp.pop %v5014
    %v5016 = vmul.f32 1.0, %v5015
    %v5017 = vadd.f32 %v5007, %v1758
    %5019 = vrot.lane.b32.xlu0 %v5017, 64
    %v5020 = vpop.permute.xlu0 %5019
    %v5022 = vmul.f32 %v5016, %v5020
    %5024 = vrot.lane.b32.xlu0 %v5022, 64
    %v5025 = vpop.permute.xlu0 %5024
    %v5027 = vadd.f32 %v4542, %v5025
    %v5028 = vtanh.pop %v5027
    %v5029 = vsub.f32 %v4193, %v5028
    %5031 = vrot.lane.b32.xlu0 %v5029, 96
    %v5032 = vpop.permute.xlu0 %5031
    %v5034 = vmul.f32 %v5016, %v5032
    %5036 = vrot.lane.b32.xlu0 %v5034, 32
    %v5037 = vpop.permute.xlu0 %5036
    %v5039 = vadd.f32 %v5028, %v5037
    %v5040 = vld [vmem:[%s2494] sm:$0xff]
    %v5041 = vld [vmem:[%s2494 + $0x8] sm:$0xff]
    %v5042 = vld [vmem:[%s2494 + $0x10] sm:$0xff]
    %v5043 = vld [vmem:[%s2494 + $0x18] sm:$0xff]
    %v5044 = vsel %vm45, %v4302, 0
    %5046 = vmatprep.subr.mxu0 0.0
    %5047 = vmatpush1.msra.mxu0 0.0
    %5048 = vmatprep.subr.mxu0 0.0
    %5049 = vmatpush1.msra.mxu0 0.0
    %5050 = vmatprep.subr.mxu0 0.0
    %5051 = vmatpush1.msra.mxu0 0.0
    %5052 = vmatprep.subr.mxu0 0.0
    %5053 = vmatpush1.msra.mxu0 0.0
    %5054 = vmatprep.subr.mxu0 0.0
    %5055 = vmatpush1.msra.mxu0 0.0
    %5056 = vmatprep.subr.mxu0 0.0
    %5057 = vmatpush1.msra.mxu0 0.0
    %5058 = vmatprep.subr.mxu0 0.0
    %5059 = vmatpush1.msra.mxu0 0.0
    %5060 = vmatprep.subr.mxu0 0.0
    %5061 = vmatpush1.msra.mxu0 0.0
    %5062 = vmatprep.subr.mxu0 0.0
    %5063 = vmatpush1.msra.mxu0 0.0
    %5064 = vmatprep.subr.mxu0 0.0
    %5065 = vmatpush1.msra.mxu0 0.0
    %5066 = vmatprep.subr.mxu0 0.0
    %5067 = vmatpush1.msra.mxu0 0.0
    %5068 = vmatprep.subr.mxu0 0.0
    %5069 = vmatpush1.msra.mxu0 0.0
    %5070 = vmatprep.subr.mxu0 0.0
    %5071 = vmatpush1.msra.mxu0 %v5043
    %5072 = vmatprep.subr.mxu0 0.0
    %5073 = vmatpush1.msra.mxu0 %v5042
    %5074 = vmatprep.subr.mxu0 0.0
    %5075 = vmatpush1.msra.mxu0 %v5041
    %5076 = vmatprep.subr.mxu0 0.0
    %5077 = vmatpush1.msra.mxu0 %v5040
    %5078 = vmatprep.subr.mxu0 0.0
    %5079 = vmatpush2.msra.mxu0 0.0
    %5080 = vmatprep.subr.mxu0 0.0
    %5081 = vmatpush2.msra.mxu0 0.0
    %5082 = vmatprep.subr.mxu0 0.0
    %5083 = vmatpush2.msra.mxu0 0.0
    %5084 = vmatprep.subr.mxu0 0.0
    %5085 = vmatpush2.msra.mxu0 0.0
    %5086 = vmatprep.subr.mxu0 0.0
    %5087 = vmatpush2.msra.mxu0 0.0
    %5088 = vmatprep.subr.mxu0 0.0
    %5089 = vmatpush2.msra.mxu0 0.0
    %5090 = vmatprep.subr.mxu0 0.0
    %5091 = vmatpush2.msra.mxu0 0.0
    %5092 = vmatprep.subr.mxu0 0.0
    %5093 = vmatpush2.msra.mxu0 0.0
    %5094 = vmatprep.subr.mxu0 0.0
    %5095 = vmatpush2.msra.mxu0 0.0
    %5096 = vmatprep.subr.mxu0 0.0
    %5097 = vmatpush2.msra.mxu0 0.0
    %5098 = vmatprep.subr.mxu0 0.0
    %5099 = vmatpush2.msra.mxu0 0.0
    %5100 = vmatprep.subr.mxu0 0.0
    %5101 = vmatpush2.msra.mxu0 0.0
    %5102 = vmatprep.subr.mxu0 0.0
    %5103 = vmatpush2.msra.mxu0 0.0
    %5104 = vmatprep.subr.mxu0 0.0
    %5105 = vmatpush2.msra.mxu0 0.0
    %5106 = vmatprep.subr.mxu0 0.0
    %5107 = vmatpush2.msra.mxu0 0.0
    %5108 = vmatprep.subr.mxu0 0.0
    %5109 = vmatpush2.msra.mxu0 0.0
    %5110 = vmatprep.mubr.f32.mxu0 0.0
    %5111 = vmatmul.mubr.f32.gmra.mxu0 %v5044
    %v5112 = vpop.f32.mrf.mxu0
    %v5113 = vadd.f32 0.0, %v5112
    %v5114 = vpop.f32.mrf.mxu0
    %5115 = vdwg.mxu0
    %v5116 = vadd.f32 %v4621, %v5113
    %v5117 = vxor.u32 %v5116, 2147483648
    %v5118 = vmul.f32 %v5117, 1.442695
    %v5119 = vpow.pop %v5118
    %v5120 = vadd.f32 %v5119, 1.0
    %v5121 = vrcp.pop %v5120
    %v5122 = vmul.f32 1.0, %v5121
    %v5123 = vadd.f32 %v5113, %v2580
    %5125 = vrot.lane.b32.xlu0 %v5123, 64
    %v5126 = vpop.permute.xlu0 %5125
    %v5128 = vmul.f32 %v5122, %v5126
    %5130 = vrot.lane.b32.xlu0 %v5128, 64
    %v5131 = vpop.permute.xlu0 %5130
    %v5133 = vadd.f32 %v4621, %v5131
    %v5134 = vtanh.pop %v5133
    %v5135 = vsub.f32 %v4299, %v5134
    %5137 = vrot.lane.b32.xlu0 %v5135, 96
    %v5138 = vpop.permute.xlu0 %5137
    %v5140 = vmul.f32 %v5122, %v5138
    %5142 = vrot.lane.b32.xlu0 %v5140, 32
    %v5143 = vpop.permute.xlu0 %5142
    %v5145 = vadd.f32 %v5134, %v5143
    %5147 = vrot.lane.b32.xlu0 %v5145, 64
    %v5148 = vpop.permute.xlu0 %5147
    %s5150 = scalar_lea.vmem %s6, 24
    %5151 = vst.msk [vmem:[%s5150] sm:$0xff] %vm45, %v5148
    %v5152 = vld [vmem:[%s375] sm:$0xff]
    %v5153 = vld [vmem:[%s375 + $0x8] sm:$0xff]
    %v5154 = vld [vmem:[%s375 + $0x10] sm:$0xff]
    %v5155 = vld [vmem:[%s375 + $0x18] sm:$0xff]
    %5157 = vrot.lane.b32.xlu0 %v4727, 64
    %v5158 = vpop.permute.xlu0 %5157
    %v5159 = vsel %vm45, %v5158, 0
    %5161 = vmatprep.subr.mxu0 0.0
    %5162 = vmatpush1.msra.mxu0 0.0
    %5163 = vmatprep.subr.mxu0 0.0
    %5164 = vmatpush1.msra.mxu0 0.0
    %5165 = vmatprep.subr.mxu0 0.0
    %5166 = vmatpush1.msra.mxu0 0.0
    %5167 = vmatprep.subr.mxu0 0.0
    %5168 = vmatpush1.msra.mxu0 0.0
    %5169 = vmatprep.subr.mxu0 0.0
    %5170 = vmatpush1.msra.mxu0 0.0
    %5171 = vmatprep.subr.mxu0 0.0
    %5172 = vmatpush1.msra.mxu0 0.0
    %5173 = vmatprep.subr.mxu0 0.0
    %5174 = vmatpush1.msra.mxu0 0.0
    %5175 = vmatprep.subr.mxu0 0.0
    %5176 = vmatpush1.msra.mxu0 0.0
    %5177 = vmatprep.subr.mxu0 0.0
    %5178 = vmatpush1.msra.mxu0 0.0
    %5179 = vmatprep.subr.mxu0 0.0
    %5180 = vmatpush1.msra.mxu0 0.0
    %5181 = vmatprep.subr.mxu0 0.0
    %5182 = vmatpush1.msra.mxu0 0.0
    %5183 = vmatprep.subr.mxu0 0.0
    %5184 = vmatpush1.msra.mxu0 0.0
    %5185 = vmatprep.subr.mxu0 0.0
    %5186 = vmatpush1.msra.mxu0 %v5155
    %5187 = vmatprep.subr.mxu0 0.0
    %5188 = vmatpush1.msra.mxu0 %v5154
    %5189 = vmatprep.subr.mxu0 0.0
    %5190 = vmatpush1.msra.mxu0 %v5153
    %5191 = vmatprep.subr.mxu0 0.0
    %5192 = vmatpush1.msra.mxu0 %v5152
    %5193 = vmatprep.subr.mxu0 0.0
    %5194 = vmatpush2.msra.mxu0 0.0
    %5195 = vmatprep.subr.mxu0 0.0
    %5196 = vmatpush2.msra.mxu0 0.0
    %5197 = vmatprep.subr.mxu0 0.0
    %5198 = vmatpush2.msra.mxu0 0.0
    %5199 = vmatprep.subr.mxu0 0.0
    %5200 = vmatpush2.msra.mxu0 0.0
    %5201 = vmatprep.subr.mxu0 0.0
    %5202 = vmatpush2.msra.mxu0 0.0
    %5203 = vmatprep.subr.mxu0 0.0
    %5204 = vmatpush2.msra.mxu0 0.0
    %5205 = vmatprep.subr.mxu0 0.0
    %5206 = vmatpush2.msra.mxu0 0.0
    %5207 = vmatprep.subr.mxu0 0.0
    %5208 = vmatpush2.msra.mxu0 0.0
    %5209 = vmatprep.subr.mxu0 0.0
    %5210 = vmatpush2.msra.mxu0 0.0
    %5211 = vmatprep.subr.mxu0 0.0
    %5212 = vmatpush2.msra.mxu0 0.0
    %5213 = vmatprep.subr.mxu0 0.0
    %5214 = vmatpush2.msra.mxu0 0.0
    %5215 = vmatprep.subr.mxu0 0.0
    %5216 = vmatpush2.msra.mxu0 0.0
    %5217 = vmatprep.subr.mxu0 0.0
    %5218 = vmatpush2.msra.mxu0 0.0
    %5219 = vmatprep.subr.mxu0 0.0
    %5220 = vmatpush2.msra.mxu0 0.0
    %5221 = vmatprep.subr.mxu0 0.0
    %5222 = vmatpush2.msra.mxu0 0.0
    %5223 = vmatprep.subr.mxu0 0.0
    %5224 = vmatpush2.msra.mxu0 0.0
    %5225 = vmatprep.mubr.f32.mxu0 0.0
    %5226 = vmatmul.mubr.f32.gmra.mxu0 %v5159
    %v5227 = vpop.f32.mrf.mxu0
    %v5228 = vadd.f32 %v224, %v5227
    %v5229 = vpop.f32.mrf.mxu0
    %5230 = vdwg.mxu0
    %v5231 = vld [vmem:[%s746] sm:$0xff]
    %v5232 = vld [vmem:[%s746 + $0x8] sm:$0xff]
    %v5233 = vld [vmem:[%s746 + $0x10] sm:$0xff]
    %v5234 = vld [vmem:[%s746 + $0x18] sm:$0xff]
    %5236 = vrot.lane.b32.xlu0 %v4831, 64
    %v5237 = vpop.permute.xlu0 %5236
    %v5238 = vsel %vm45, %v5237, 0
    %5240 = vmatprep.subr.mxu0 0.0
    %5241 = vmatpush1.msra.mxu0 0.0
    %5242 = vmatprep.subr.mxu0 0.0
    %5243 = vmatpush1.msra.mxu0 0.0
    %5244 = vmatprep.subr.mxu0 0.0
    %5245 = vmatpush1.msra.mxu0 0.0
    %5246 = vmatprep.subr.mxu0 0.0
    %5247 = vmatpush1.msra.mxu0 0.0
    %5248 = vmatprep.subr.mxu0 0.0
    %5249 = vmatpush1.msra.mxu0 0.0
    %5250 = vmatprep.subr.mxu0 0.0
    %5251 = vmatpush1.msra.mxu0 0.0
    %5252 = vmatprep.subr.mxu0 0.0
    %5253 = vmatpush1.msra.mxu0 0.0
    %5254 = vmatprep.subr.mxu0 0.0
    %5255 = vmatpush1.msra.mxu0 0.0
    %5256 = vmatprep.subr.mxu0 0.0
    %5257 = vmatpush1.msra.mxu0 0.0
    %5258 = vmatprep.subr.mxu0 0.0
    %5259 = vmatpush1.msra.mxu0 0.0
    %5260 = vmatprep.subr.mxu0 0.0
    %5261 = vmatpush1.msra.mxu0 0.0
    %5262 = vmatprep.subr.mxu0 0.0
    %5263 = vmatpush1.msra.mxu0 0.0
    %5264 = vmatprep.subr.mxu0 0.0
    %5265 = vmatpush1.msra.mxu0 %v5234
    %5266 = vmatprep.subr.mxu0 0.0
    %5267 = vmatpush1.msra.mxu0 %v5233
    %5268 = vmatprep.subr.mxu0 0.0
    %5269 = vmatpush1.msra.mxu0 %v5232
    %5270 = vmatprep.subr.mxu0 0.0
    %5271 = vmatpush1.msra.mxu0 %v5231
    %5272 = vmatprep.subr.mxu0 0.0
    %5273 = vmatpush2.msra.mxu0 0.0
    %5274 = vmatprep.subr.mxu0 0.0
    %5275 = vmatpush2.msra.mxu0 0.0
    %5276 = vmatprep.subr.mxu0 0.0
    %5277 = vmatpush2.msra.mxu0 0.0
    %5278 = vmatprep.subr.mxu0 0.0
    %5279 = vmatpush2.msra.mxu0 0.0
    %5280 = vmatprep.subr.mxu0 0.0
    %5281 = vmatpush2.msra.mxu0 0.0
    %5282 = vmatprep.subr.mxu0 0.0
    %5283 = vmatpush2.msra.mxu0 0.0
    %5284 = vmatprep.subr.mxu0 0.0
    %5285 = vmatpush2.msra.mxu0 0.0
    %5286 = vmatprep.subr.mxu0 0.0
    %5287 = vmatpush2.msra.mxu0 0.0
    %5288 = vmatprep.subr.mxu0 0.0
    %5289 = vmatpush2.msra.mxu0 0.0
    %5290 = vmatprep.subr.mxu0 0.0
    %5291 = vmatpush2.msra.mxu0 0.0
    %5292 = vmatprep.subr.mxu0 0.0
    %5293 = vmatpush2.msra.mxu0 0.0
    %5294 = vmatprep.subr.mxu0 0.0
    %5295 = vmatpush2.msra.mxu0 0.0
    %5296 = vmatprep.subr.mxu0 0.0
    %5297 = vmatpush2.msra.mxu0 0.0
    %5298 = vmatprep.subr.mxu0 0.0
    %5299 = vmatpush2.msra.mxu0 0.0
    %5300 = vmatprep.subr.mxu0 0.0
    %5301 = vmatpush2.msra.mxu0 0.0
    %5302 = vmatprep.subr.mxu0 0.0
    %5303 = vmatpush2.msra.mxu0 0.0
    %5304 = vmatprep.mubr.f32.mxu0 0.0
    %5305 = vmatmul.mubr.f32.gmra.mxu0 %v5238
    %v5306 = vpop.f32.mrf.mxu0
    %v5307 = vadd.f32 %v232, %v5306
    %v5308 = vpop.f32.mrf.mxu0
    %5309 = vdwg.mxu0
    %v5310 = vld [vmem:[%s1292] sm:$0xff]
    %v5311 = vld [vmem:[%s1292 + $0x8] sm:$0xff]
    %v5312 = vld [vmem:[%s1292 + $0x10] sm:$0xff]
    %v5313 = vld [vmem:[%s1292 + $0x18] sm:$0xff]
    %5315 = vrot.lane.b32.xlu0 %v4935, 64
    %v5316 = vpop.permute.xlu0 %5315
    %v5317 = vsel %vm45, %v5316, 0
    %5319 = vmatprep.subr.mxu0 0.0
    %5320 = vmatpush1.msra.mxu0 0.0
    %5321 = vmatprep.subr.mxu0 0.0
    %5322 = vmatpush1.msra.mxu0 0.0
    %5323 = vmatprep.subr.mxu0 0.0
    %5324 = vmatpush1.msra.mxu0 0.0
    %5325 = vmatprep.subr.mxu0 0.0
    %5326 = vmatpush1.msra.mxu0 0.0
    %5327 = vmatprep.subr.mxu0 0.0
    %5328 = vmatpush1.msra.mxu0 0.0
    %5329 = vmatprep.subr.mxu0 0.0
    %5330 = vmatpush1.msra.mxu0 0.0
    %5331 = vmatprep.subr.mxu0 0.0
    %5332 = vmatpush1.msra.mxu0 0.0
    %5333 = vmatprep.subr.mxu0 0.0
    %5334 = vmatpush1.msra.mxu0 0.0
    %5335 = vmatprep.subr.mxu0 0.0
    %5336 = vmatpush1.msra.mxu0 0.0
    %5337 = vmatprep.subr.mxu0 0.0
    %5338 = vmatpush1.msra.mxu0 0.0
    %5339 = vmatprep.subr.mxu0 0.0
    %5340 = vmatpush1.msra.mxu0 0.0
    %5341 = vmatprep.subr.mxu0 0.0
    %5342 = vmatpush1.msra.mxu0 0.0
    %5343 = vmatprep.subr.mxu0 0.0
    %5344 = vmatpush1.msra.mxu0 %v5313
    %5345 = vmatprep.subr.mxu0 0.0
    %5346 = vmatpush1.msra.mxu0 %v5312
    %5347 = vmatprep.subr.mxu0 0.0
    %5348 = vmatpush1.msra.mxu0 %v5311
    %5349 = vmatprep.subr.mxu0 0.0
    %5350 = vmatpush1.msra.mxu0 %v5310
    %5351 = vmatprep.subr.mxu0 0.0
    %5352 = vmatpush2.msra.mxu0 0.0
    %5353 = vmatprep.subr.mxu0 0.0
    %5354 = vmatpush2.msra.mxu0 0.0
    %5355 = vmatprep.subr.mxu0 0.0
    %5356 = vmatpush2.msra.mxu0 0.0
    %5357 = vmatprep.subr.mxu0 0.0
    %5358 = vmatpush2.msra.mxu0 0.0
    %5359 = vmatprep.subr.mxu0 0.0
    %5360 = vmatpush2.msra.mxu0 0.0
    %5361 = vmatprep.subr.mxu0 0.0
    %5362 = vmatpush2.msra.mxu0 0.0
    %5363 = vmatprep.subr.mxu0 0.0
    %5364 = vmatpush2.msra.mxu0 0.0
    %5365 = vmatprep.subr.mxu0 0.0
    %5366 = vmatpush2.msra.mxu0 0.0
    %5367 = vmatprep.subr.mxu0 0.0
    %5368 = vmatpush2.msra.mxu0 0.0
    %5369 = vmatprep.subr.mxu0 0.0
    %5370 = vmatpush2.msra.mxu0 0.0
    %5371 = vmatprep.subr.mxu0 0.0
    %5372 = vmatpush2.msra.mxu0 0.0
    %5373 = vmatprep.subr.mxu0 0.0
    %5374 = vmatpush2.msra.mxu0 0.0
    %5375 = vmatprep.subr.mxu0 0.0
    %5376 = vmatpush2.msra.mxu0 0.0
    %5377 = vmatprep.subr.mxu0 0.0
    %5378 = vmatpush2.msra.mxu0 0.0
    %5379 = vmatprep.subr.mxu0 0.0
    %5380 = vmatpush2.msra.mxu0 0.0
    %5381 = vmatprep.subr.mxu0 0.0
    %5382 = vmatpush2.msra.mxu0 0.0
    %5383 = vmatprep.mubr.f32.mxu0 0.0
    %5384 = vmatmul.mubr.f32.gmra.mxu0 %v5317
    %v5385 = vpop.f32.mrf.mxu0
    %v5386 = vadd.f32 %v240, %v5385
    %v5387 = vpop.f32.mrf.mxu0
    %5388 = vdwg.mxu0
    %v5389 = vld [vmem:[%s2014] sm:$0xff]
    %v5390 = vld [vmem:[%s2014 + $0x8] sm:$0xff]
    %v5391 = vld [vmem:[%s2014 + $0x10] sm:$0xff]
    %v5392 = vld [vmem:[%s2014 + $0x18] sm:$0xff]
    %5394 = vrot.lane.b32.xlu0 %v5039, 64
    %v5395 = vpop.permute.xlu0 %5394
    %v5396 = vsel %vm45, %v5395, 0
    %5398 = vmatprep.subr.mxu0 0.0
    %5399 = vmatpush1.msra.mxu0 0.0
    %5400 = vmatprep.subr.mxu0 0.0
    %5401 = vmatpush1.msra.mxu0 0.0
    %5402 = vmatprep.subr.mxu0 0.0
    %5403 = vmatpush1.msra.mxu0 0.0
    %5404 = vmatprep.subr.mxu0 0.0
    %5405 = vmatpush1.msra.mxu0 0.0
    %5406 = vmatprep.subr.mxu0 0.0
    %5407 = vmatpush1.msra.mxu0 0.0
    %5408 = vmatprep.subr.mxu0 0.0
    %5409 = vmatpush1.msra.mxu0 0.0
    %5410 = vmatprep.subr.mxu0 0.0
    %5411 = vmatpush1.msra.mxu0 0.0
    %5412 = vmatprep.subr.mxu0 0.0
    %5413 = vmatpush1.msra.mxu0 0.0
    %5414 = vmatprep.subr.mxu0 0.0
    %5415 = vmatpush1.msra.mxu0 0.0
    %5416 = vmatprep.subr.mxu0 0.0
    %5417 = vmatpush1.msra.mxu0 0.0
    %5418 = vmatprep.subr.mxu0 0.0
    %5419 = vmatpush1.msra.mxu0 0.0
    %5420 = vmatprep.subr.mxu0 0.0
    %5421 = vmatpush1.msra.mxu0 0.0
    %5422 = vmatprep.subr.mxu0 0.0
    %5423 = vmatpush1.msra.mxu0 %v5392
    %5424 = vmatprep.subr.mxu0 0.0
    %5425 = vmatpush1.msra.mxu0 %v5391
    %5426 = vmatprep.subr.mxu0 0.0
    %5427 = vmatpush1.msra.mxu0 %v5390
    %5428 = vmatprep.subr.mxu0 0.0
    %5429 = vmatpush1.msra.mxu0 %v5389
    %5430 = vmatprep.subr.mxu0 0.0
    %5431 = vmatpush2.msra.mxu0 0.0
    %5432 = vmatprep.subr.mxu0 0.0
    %5433 = vmatpush2.msra.mxu0 0.0
    %5434 = vmatprep.subr.mxu0 0.0
    %5435 = vmatpush2.msra.mxu0 0.0
    %5436 = vmatprep.subr.mxu0 0.0
    %5437 = vmatpush2.msra.mxu0 0.0
    %5438 = vmatprep.subr.mxu0 0.0
    %5439 = vmatpush2.msra.mxu0 0.0
    %5440 = vmatprep.subr.mxu0 0.0
    %5441 = vmatpush2.msra.mxu0 0.0
    %5442 = vmatprep.subr.mxu0 0.0
    %5443 = vmatpush2.msra.mxu0 0.0
    %5444 = vmatprep.subr.mxu0 0.0
    %5445 = vmatpush2.msra.mxu0 0.0
    %5446 = vmatprep.subr.mxu0 0.0
    %5447 = vmatpush2.msra.mxu0 0.0
    %5448 = vmatprep.subr.mxu0 0.0
    %5449 = vmatpush2.msra.mxu0 0.0
    %5450 = vmatprep.subr.mxu0 0.0
    %5451 = vmatpush2.msra.mxu0 0.0
    %5452 = vmatprep.subr.mxu0 0.0
    %5453 = vmatpush2.msra.mxu0 0.0
    %5454 = vmatprep.subr.mxu0 0.0
    %5455 = vmatpush2.msra.mxu0 0.0
    %5456 = vmatprep.subr.mxu0 0.0
    %5457 = vmatpush2.msra.mxu0 0.0
    %5458 = vmatprep.subr.mxu0 0.0
    %5459 = vmatpush2.msra.mxu0 0.0
    %5460 = vmatprep.subr.mxu0 0.0
    %5461 = vmatpush2.msra.mxu0 0.0
    %5462 = vmatprep.mubr.f32.mxu0 0.0
    %5463 = vmatmul.mubr.f32.gmra.mxu0 %v5396
    %v5464 = vpop.f32.mrf.mxu0
    %v5465 = vadd.f32 %v248, %v5464
    %v5466 = vpop.f32.mrf.mxu0
    %5467 = vdwg.mxu0
    %v5468 = vld [vmem:[%s555] sm:$0xff]
    %v5469 = vld [vmem:[%s555 + $0x8] sm:$0xff]
    %v5470 = vld [vmem:[%s555 + $0x10] sm:$0xff]
    %v5471 = vld [vmem:[%s555 + $0x18] sm:$0xff]
    %5472 = vmatprep.subr.mxu0 0.0
    %5473 = vmatpush1.msra.mxu0 0.0
    %5474 = vmatprep.subr.mxu0 0.0
    %5475 = vmatpush1.msra.mxu0 0.0
    %5476 = vmatprep.subr.mxu0 0.0
    %5477 = vmatpush1.msra.mxu0 0.0
    %5478 = vmatprep.subr.mxu0 0.0
    %5479 = vmatpush1.msra.mxu0 0.0
    %5480 = vmatprep.subr.mxu0 0.0
    %5481 = vmatpush1.msra.mxu0 0.0
    %5482 = vmatprep.subr.mxu0 0.0
    %5483 = vmatpush1.msra.mxu0 0.0
    %5484 = vmatprep.subr.mxu0 0.0
    %5485 = vmatpush1.msra.mxu0 0.0
    %5486 = vmatprep.subr.mxu0 0.0
    %5487 = vmatpush1.msra.mxu0 0.0
    %5488 = vmatprep.subr.mxu0 0.0
    %5489 = vmatpush1.msra.mxu0 0.0
    %5490 = vmatprep.subr.mxu0 0.0
    %5491 = vmatpush1.msra.mxu0 0.0
    %5492 = vmatprep.subr.mxu0 0.0
    %5493 = vmatpush1.msra.mxu0 0.0
    %5494 = vmatprep.subr.mxu0 0.0
    %5495 = vmatpush1.msra.mxu0 0.0
    %5496 = vmatprep.subr.mxu0 0.0
    %5497 = vmatpush1.msra.mxu0 %v5471
    %5498 = vmatprep.subr.mxu0 0.0
    %5499 = vmatpush1.msra.mxu0 %v5470
    %5500 = vmatprep.subr.mxu0 0.0
    %5501 = vmatpush1.msra.mxu0 %v5469
    %5502 = vmatprep.subr.mxu0 0.0
    %5503 = vmatpush1.msra.mxu0 %v5468
    %5504 = vmatprep.subr.mxu0 0.0
    %5505 = vmatpush2.msra.mxu0 0.0
    %5506 = vmatprep.subr.mxu0 0.0
    %5507 = vmatpush2.msra.mxu0 0.0
    %5508 = vmatprep.subr.mxu0 0.0
    %5509 = vmatpush2.msra.mxu0 0.0
    %5510 = vmatprep.subr.mxu0 0.0
    %5511 = vmatpush2.msra.mxu0 0.0
    %5512 = vmatprep.subr.mxu0 0.0
    %5513 = vmatpush2.msra.mxu0 0.0
    %5514 = vmatprep.subr.mxu0 0.0
    %5515 = vmatpush2.msra.mxu0 0.0
    %5516 = vmatprep.subr.mxu0 0.0
    %5517 = vmatpush2.msra.mxu0 0.0
    %5518 = vmatprep.subr.mxu0 0.0
    %5519 = vmatpush2.msra.mxu0 0.0
    %5520 = vmatprep.subr.mxu0 0.0
    %5521 = vmatpush2.msra.mxu0 0.0
    %5522 = vmatprep.subr.mxu0 0.0
    %5523 = vmatpush2.msra.mxu0 0.0
    %5524 = vmatprep.subr.mxu0 0.0
    %5525 = vmatpush2.msra.mxu0 0.0
    %5526 = vmatprep.subr.mxu0 0.0
    %5527 = vmatpush2.msra.mxu0 0.0
    %5528 = vmatprep.subr.mxu0 0.0
    %5529 = vmatpush2.msra.mxu0 0.0
    %5530 = vmatprep.subr.mxu0 0.0
    %5531 = vmatpush2.msra.mxu0 0.0
    %5532 = vmatprep.subr.mxu0 0.0
    %5533 = vmatpush2.msra.mxu0 0.0
    %5534 = vmatprep.subr.mxu0 0.0
    %5535 = vmatpush2.msra.mxu0 0.0
    %5536 = vmatprep.mubr.f32.mxu0 0.0
    %5537 = vmatmul.mubr.f32.gmra.mxu0 %v5238
    %v5538 = vpop.f32.mrf.mxu0
    %v5539 = vadd.f32 0.0, %v5538
    %v5540 = vpop.f32.mrf.mxu0
    %5541 = vdwg.mxu0
    %v5542 = vadd.f32 %v5228, %v5539
    %v5543 = vxor.u32 %v5542, 2147483648
    %v5544 = vmul.f32 %v5543, 1.442695
    %v5545 = vpow.pop %v5544
    %v5546 = vadd.f32 %v5545, 1.0
    %v5547 = vrcp.pop %v5546
    %v5548 = vmul.f32 1.0, %v5547
    %v5549 = vadd.f32 %v5539, %v641
    %5551 = vrot.lane.b32.xlu0 %v5549, 64
    %v5552 = vpop.permute.xlu0 %5551
    %v5554 = vmul.f32 %v5548, %v5552
    %5556 = vrot.lane.b32.xlu0 %v5554, 64
    %v5557 = vpop.permute.xlu0 %5556
    %v5559 = vadd.f32 %v5228, %v5557
    %v5560 = vtanh.pop %v5559
    %v5561 = vsub.f32 %v4831, %v5560
    %5563 = vrot.lane.b32.xlu0 %v5561, 96
    %v5564 = vpop.permute.xlu0 %5563
    %v5566 = vmul.f32 %v5548, %v5564
    %5568 = vrot.lane.b32.xlu0 %v5566, 32
    %v5569 = vpop.permute.xlu0 %5568
    %v5571 = vadd.f32 %v5560, %v5569
    %v5572 = vld [vmem:[%s1026] sm:$0xff]
    %v5573 = vld [vmem:[%s1026 + $0x8] sm:$0xff]
    %v5574 = vld [vmem:[%s1026 + $0x10] sm:$0xff]
    %v5575 = vld [vmem:[%s1026 + $0x18] sm:$0xff]
    %5576 = vmatprep.subr.mxu0 0.0
    %5577 = vmatpush1.msra.mxu0 0.0
    %5578 = vmatprep.subr.mxu0 0.0
    %5579 = vmatpush1.msra.mxu0 0.0
    %5580 = vmatprep.subr.mxu0 0.0
    %5581 = vmatpush1.msra.mxu0 0.0
    %5582 = vmatprep.subr.mxu0 0.0
    %5583 = vmatpush1.msra.mxu0 0.0
    %5584 = vmatprep.subr.mxu0 0.0
    %5585 = vmatpush1.msra.mxu0 0.0
    %5586 = vmatprep.subr.mxu0 0.0
    %5587 = vmatpush1.msra.mxu0 0.0
    %5588 = vmatprep.subr.mxu0 0.0
    %5589 = vmatpush1.msra.mxu0 0.0
    %5590 = vmatprep.subr.mxu0 0.0
    %5591 = vmatpush1.msra.mxu0 0.0
    %5592 = vmatprep.subr.mxu0 0.0
    %5593 = vmatpush1.msra.mxu0 0.0
    %5594 = vmatprep.subr.mxu0 0.0
    %5595 = vmatpush1.msra.mxu0 0.0
    %5596 = vmatprep.subr.mxu0 0.0
    %5597 = vmatpush1.msra.mxu0 0.0
    %5598 = vmatprep.subr.mxu0 0.0
    %5599 = vmatpush1.msra.mxu0 0.0
    %5600 = vmatprep.subr.mxu0 0.0
    %5601 = vmatpush1.msra.mxu0 %v5575
    %5602 = vmatprep.subr.mxu0 0.0
    %5603 = vmatpush1.msra.mxu0 %v5574
    %5604 = vmatprep.subr.mxu0 0.0
    %5605 = vmatpush1.msra.mxu0 %v5573
    %5606 = vmatprep.subr.mxu0 0.0
    %5607 = vmatpush1.msra.mxu0 %v5572
    %5608 = vmatprep.subr.mxu0 0.0
    %5609 = vmatpush2.msra.mxu0 0.0
    %5610 = vmatprep.subr.mxu0 0.0
    %5611 = vmatpush2.msra.mxu0 0.0
    %5612 = vmatprep.subr.mxu0 0.0
    %5613 = vmatpush2.msra.mxu0 0.0
    %5614 = vmatprep.subr.mxu0 0.0
    %5615 = vmatpush2.msra.mxu0 0.0
    %5616 = vmatprep.subr.mxu0 0.0
    %5617 = vmatpush2.msra.mxu0 0.0
    %5618 = vmatprep.subr.mxu0 0.0
    %5619 = vmatpush2.msra.mxu0 0.0
    %5620 = vmatprep.subr.mxu0 0.0
    %5621 = vmatpush2.msra.mxu0 0.0
    %5622 = vmatprep.subr.mxu0 0.0
    %5623 = vmatpush2.msra.mxu0 0.0
    %5624 = vmatprep.subr.mxu0 0.0
    %5625 = vmatpush2.msra.mxu0 0.0
    %5626 = vmatprep.subr.mxu0 0.0
    %5627 = vmatpush2.msra.mxu0 0.0
    %5628 = vmatprep.subr.mxu0 0.0
    %5629 = vmatpush2.msra.mxu0 0.0
    %5630 = vmatprep.subr.mxu0 0.0
    %5631 = vmatpush2.msra.mxu0 0.0
    %5632 = vmatprep.subr.mxu0 0.0
    %5633 = vmatpush2.msra.mxu0 0.0
    %5634 = vmatprep.subr.mxu0 0.0
    %5635 = vmatpush2.msra.mxu0 0.0
    %5636 = vmatprep.subr.mxu0 0.0
    %5637 = vmatpush2.msra.mxu0 0.0
    %5638 = vmatprep.subr.mxu0 0.0
    %5639 = vmatpush2.msra.mxu0 0.0
    %5640 = vmatprep.mubr.f32.mxu0 0.0
    %5641 = vmatmul.mubr.f32.gmra.mxu0 %v5317
    %v5642 = vpop.f32.mrf.mxu0
    %v5643 = vadd.f32 0.0, %v5642
    %v5644 = vpop.f32.mrf.mxu0
    %5645 = vdwg.mxu0
    %v5646 = vadd.f32 %v5307, %v5643
    %v5647 = vxor.u32 %v5646, 2147483648
    %v5648 = vmul.f32 %v5647, 1.442695
    %v5649 = vpow.pop %v5648
    %v5650 = vadd.f32 %v5649, 1.0
    %v5651 = vrcp.pop %v5650
    %v5652 = vmul.f32 1.0, %v5651
    %v5653 = vadd.f32 %v5643, %v1112
    %5655 = vrot.lane.b32.xlu0 %v5653, 64
    %v5656 = vpop.permute.xlu0 %5655
    %v5658 = vmul.f32 %v5652, %v5656
    %5660 = vrot.lane.b32.xlu0 %v5658, 64
    %v5661 = vpop.permute.xlu0 %5660
    %v5663 = vadd.f32 %v5307, %v5661
    %v5664 = vtanh.pop %v5663
    %v5665 = vsub.f32 %v4935, %v5664
    %5667 = vrot.lane.b32.xlu0 %v5665, 96
    %v5668 = vpop.permute.xlu0 %5667
    %v5670 = vmul.f32 %v5652, %v5668
    %5672 = vrot.lane.b32.xlu0 %v5670, 32
    %v5673 = vpop.permute.xlu0 %5672
    %v5675 = vadd.f32 %v5664, %v5673
    %v5676 = vld [vmem:[%s1672] sm:$0xff]
    %v5677 = vld [vmem:[%s1672 + $0x8] sm:$0xff]
    %v5678 = vld [vmem:[%s1672 + $0x10] sm:$0xff]
    %v5679 = vld [vmem:[%s1672 + $0x18] sm:$0xff]
    %5680 = vmatprep.subr.mxu0 0.0
    %5681 = vmatpush1.msra.mxu0 0.0
    %5682 = vmatprep.subr.mxu0 0.0
    %5683 = vmatpush1.msra.mxu0 0.0
    %5684 = vmatprep.subr.mxu0 0.0
    %5685 = vmatpush1.msra.mxu0 0.0
    %5686 = vmatprep.subr.mxu0 0.0
    %5687 = vmatpush1.msra.mxu0 0.0
    %5688 = vmatprep.subr.mxu0 0.0
    %5689 = vmatpush1.msra.mxu0 0.0
    %5690 = vmatprep.subr.mxu0 0.0
    %5691 = vmatpush1.msra.mxu0 0.0
    %5692 = vmatprep.subr.mxu0 0.0
    %5693 = vmatpush1.msra.mxu0 0.0
    %5694 = vmatprep.subr.mxu0 0.0
    %5695 = vmatpush1.msra.mxu0 0.0
    %5696 = vmatprep.subr.mxu0 0.0
    %5697 = vmatpush1.msra.mxu0 0.0
    %5698 = vmatprep.subr.mxu0 0.0
    %5699 = vmatpush1.msra.mxu0 0.0
    %5700 = vmatprep.subr.mxu0 0.0
    %5701 = vmatpush1.msra.mxu0 0.0
    %5702 = vmatprep.subr.mxu0 0.0
    %5703 = vmatpush1.msra.mxu0 0.0
    %5704 = vmatprep.subr.mxu0 0.0
    %5705 = vmatpush1.msra.mxu0 %v5679
    %5706 = vmatprep.subr.mxu0 0.0
    %5707 = vmatpush1.msra.mxu0 %v5678
    %5708 = vmatprep.subr.mxu0 0.0
    %5709 = vmatpush1.msra.mxu0 %v5677
    %5710 = vmatprep.subr.mxu0 0.0
    %5711 = vmatpush1.msra.mxu0 %v5676
    %5712 = vmatprep.subr.mxu0 0.0
    %5713 = vmatpush2.msra.mxu0 0.0
    %5714 = vmatprep.subr.mxu0 0.0
    %5715 = vmatpush2.msra.mxu0 0.0
    %5716 = vmatprep.subr.mxu0 0.0
    %5717 = vmatpush2.msra.mxu0 0.0
    %5718 = vmatprep.subr.mxu0 0.0
    %5719 = vmatpush2.msra.mxu0 0.0
    %5720 = vmatprep.subr.mxu0 0.0
    %5721 = vmatpush2.msra.mxu0 0.0
    %5722 = vmatprep.subr.mxu0 0.0
    %5723 = vmatpush2.msra.mxu0 0.0
    %5724 = vmatprep.subr.mxu0 0.0
    %5725 = vmatpush2.msra.mxu0 0.0
    %5726 = vmatprep.subr.mxu0 0.0
    %5727 = vmatpush2.msra.mxu0 0.0
    %5728 = vmatprep.subr.mxu0 0.0
    %5729 = vmatpush2.msra.mxu0 0.0
    %5730 = vmatprep.subr.mxu0 0.0
    %5731 = vmatpush2.msra.mxu0 0.0
    %5732 = vmatprep.subr.mxu0 0.0
    %5733 = vmatpush2.msra.mxu0 0.0
    %5734 = vmatprep.subr.mxu0 0.0
    %5735 = vmatpush2.msra.mxu0 0.0
    %5736 = vmatprep.subr.mxu0 0.0
    %5737 = vmatpush2.msra.mxu0 0.0
    %5738 = vmatprep.subr.mxu0 0.0
    %5739 = vmatpush2.msra.mxu0 0.0
    %5740 = vmatprep.subr.mxu0 0.0
    %5741 = vmatpush2.msra.mxu0 0.0
    %5742 = vmatprep.subr.mxu0 0.0
    %5743 = vmatpush2.msra.mxu0 0.0
    %5744 = vmatprep.mubr.f32.mxu0 0.0
    %5745 = vmatmul.mubr.f32.gmra.mxu0 %v5396
    %v5746 = vpop.f32.mrf.mxu0
    %v5747 = vadd.f32 0.0, %v5746
    %v5748 = vpop.f32.mrf.mxu0
    %5749 = vdwg.mxu0
    %v5750 = vadd.f32 %v5386, %v5747
    %v5751 = vxor.u32 %v5750, 2147483648
    %v5752 = vmul.f32 %v5751, 1.442695
    %v5753 = vpow.pop %v5752
    %v5754 = vadd.f32 %v5753, 1.0
    %v5755 = vrcp.pop %v5754
    %v5756 = vmul.f32 1.0, %v5755
    %v5757 = vadd.f32 %v5747, %v1758
    %5759 = vrot.lane.b32.xlu0 %v5757, 64
    %v5760 = vpop.permute.xlu0 %5759
    %v5762 = vmul.f32 %v5756, %v5760
    %5764 = vrot.lane.b32.xlu0 %v5762, 64
    %v5765 = vpop.permute.xlu0 %5764
    %v5767 = vadd.f32 %v5386, %v5765
    %v5768 = vtanh.pop %v5767
    %v5769 = vsub.f32 %v5039, %v5768
    %5771 = vrot.lane.b32.xlu0 %v5769, 96
    %v5772 = vpop.permute.xlu0 %5771
    %v5774 = vmul.f32 %v5756, %v5772
    %5776 = vrot.lane.b32.xlu0 %v5774, 32
    %v5777 = vpop.permute.xlu0 %5776
    %v5779 = vadd.f32 %v5768, %v5777
    %v5780 = vld [vmem:[%s2494] sm:$0xff]
    %v5781 = vld [vmem:[%s2494 + $0x8] sm:$0xff]
    %v5782 = vld [vmem:[%s2494 + $0x10] sm:$0xff]
    %v5783 = vld [vmem:[%s2494 + $0x18] sm:$0xff]
    %v5784 = vsel %vm45, %v5148, 0
    %5786 = vmatprep.subr.mxu0 0.0
    %5787 = vmatpush1.msra.mxu0 0.0
    %5788 = vmatprep.subr.mxu0 0.0
    %5789 = vmatpush1.msra.mxu0 0.0
    %5790 = vmatprep.subr.mxu0 0.0
    %5791 = vmatpush1.msra.mxu0 0.0
    %5792 = vmatprep.subr.mxu0 0.0
    %5793 = vmatpush1.msra.mxu0 0.0
    %5794 = vmatprep.subr.mxu0 0.0
    %5795 = vmatpush1.msra.mxu0 0.0
    %5796 = vmatprep.subr.mxu0 0.0
    %5797 = vmatpush1.msra.mxu0 0.0
    %5798 = vmatprep.subr.mxu0 0.0
    %5799 = vmatpush1.msra.mxu0 0.0
    %5800 = vmatprep.subr.mxu0 0.0
    %5801 = vmatpush1.msra.mxu0 0.0
    %5802 = vmatprep.subr.mxu0 0.0
    %5803 = vmatpush1.msra.mxu0 0.0
    %5804 = vmatprep.subr.mxu0 0.0
    %5805 = vmatpush1.msra.mxu0 0.0
    %5806 = vmatprep.subr.mxu0 0.0
    %5807 = vmatpush1.msra.mxu0 0.0
    %5808 = vmatprep.subr.mxu0 0.0
    %5809 = vmatpush1.msra.mxu0 0.0
    %5810 = vmatprep.subr.mxu0 0.0
    %5811 = vmatpush1.msra.mxu0 %v5783
    %5812 = vmatprep.subr.mxu0 0.0
    %5813 = vmatpush1.msra.mxu0 %v5782
    %5814 = vmatprep.subr.mxu0 0.0
    %5815 = vmatpush1.msra.mxu0 %v5781
    %5816 = vmatprep.subr.mxu0 0.0
    %5817 = vmatpush1.msra.mxu0 %v5780
    %5818 = vmatprep.subr.mxu0 0.0
    %5819 = vmatpush2.msra.mxu0 0.0
    %5820 = vmatprep.subr.mxu0 0.0
    %5821 = vmatpush2.msra.mxu0 0.0
    %5822 = vmatprep.subr.mxu0 0.0
    %5823 = vmatpush2.msra.mxu0 0.0
    %5824 = vmatprep.subr.mxu0 0.0
    %5825 = vmatpush2.msra.mxu0 0.0
    %5826 = vmatprep.subr.mxu0 0.0
    %5827 = vmatpush2.msra.mxu0 0.0
    %5828 = vmatprep.subr.mxu0 0.0
    %5829 = vmatpush2.msra.mxu0 0.0
    %5830 = vmatprep.subr.mxu0 0.0
    %5831 = vmatpush2.msra.mxu0 0.0
    %5832 = vmatprep.subr.mxu0 0.0
    %5833 = vmatpush2.msra.mxu0 0.0
    %5834 = vmatprep.subr.mxu0 0.0
    %5835 = vmatpush2.msra.mxu0 0.0
    %5836 = vmatprep.subr.mxu0 0.0
    %5837 = vmatpush2.msra.mxu0 0.0
    %5838 = vmatprep.subr.mxu0 0.0
    %5839 = vmatpush2.msra.mxu0 0.0
    %5840 = vmatprep.subr.mxu0 0.0
    %5841 = vmatpush2.msra.mxu0 0.0
    %5842 = vmatprep.subr.mxu0 0.0
    %5843 = vmatpush2.msra.mxu0 0.0
    %5844 = vmatprep.subr.mxu0 0.0
    %5845 = vmatpush2.msra.mxu0 0.0
    %5846 = vmatprep.subr.mxu0 0.0
    %5847 = vmatpush2.msra.mxu0 0.0
    %5848 = vmatprep.subr.mxu0 0.0
    %5849 = vmatpush2.msra.mxu0 0.0
    %5850 = vmatprep.mubr.f32.mxu0 0.0
    %5851 = vmatmul.mubr.f32.gmra.mxu0 %v5784
    %v5852 = vpop.f32.mrf.mxu0
    %v5853 = vadd.f32 0.0, %v5852
    %v5854 = vpop.f32.mrf.mxu0
    %5855 = vdwg.mxu0
    %v5856 = vadd.f32 %v5465, %v5853
    %v5857 = vxor.u32 %v5856, 2147483648
    %v5858 = vmul.f32 %v5857, 1.442695
    %v5859 = vpow.pop %v5858
    %v5860 = vadd.f32 %v5859, 1.0
    %v5861 = vrcp.pop %v5860
    %v5862 = vmul.f32 1.0, %v5861
    %v5863 = vadd.f32 %v5853, %v2580
    %5865 = vrot.lane.b32.xlu0 %v5863, 64
    %v5866 = vpop.permute.xlu0 %5865
    %v5868 = vmul.f32 %v5862, %v5866
    %5870 = vrot.lane.b32.xlu0 %v5868, 64
    %v5871 = vpop.permute.xlu0 %5870
    %v5873 = vadd.f32 %v5465, %v5871
    %v5874 = vtanh.pop %v5873
    %v5875 = vsub.f32 %v5145, %v5874
    %5877 = vrot.lane.b32.xlu0 %v5875, 96
    %v5878 = vpop.permute.xlu0 %5877
    %v5880 = vmul.f32 %v5862, %v5878
    %5882 = vrot.lane.b32.xlu0 %v5880, 32
    %v5883 = vpop.permute.xlu0 %5882
    %v5885 = vadd.f32 %v5874, %v5883
    %5887 = vrot.lane.b32.xlu0 %v5885, 64
    %v5888 = vpop.permute.xlu0 %5887
    %5890 = vst.msk [vmem:[%s6 + $0x20] sm:$0xff] %vm45, %v5888
    %v5891 = vld [vmem:[%s746] sm:$0xff]
    %v5892 = vld [vmem:[%s746 + $0x8] sm:$0xff]
    %v5893 = vld [vmem:[%s746 + $0x10] sm:$0xff]
    %v5894 = vld [vmem:[%s746 + $0x18] sm:$0xff]
    %5896 = vrot.lane.b32.xlu0 %v5571, 64
    %v5897 = vpop.permute.xlu0 %5896
    %v5898 = vsel %vm45, %v5897, 0
    %5900 = vmatprep.subr.mxu0 0.0
    %5901 = vmatpush1.msra.mxu0 0.0
    %5902 = vmatprep.subr.mxu0 0.0
    %5903 = vmatpush1.msra.mxu0 0.0
    %5904 = vmatprep.subr.mxu0 0.0
    %5905 = vmatpush1.msra.mxu0 0.0
    %5906 = vmatprep.subr.mxu0 0.0
    %5907 = vmatpush1.msra.mxu0 0.0
    %5908 = vmatprep.subr.mxu0 0.0
    %5909 = vmatpush1.msra.mxu0 0.0
    %5910 = vmatprep.subr.mxu0 0.0
    %5911 = vmatpush1.msra.mxu0 0.0
    %5912 = vmatprep.subr.mxu0 0.0
    %5913 = vmatpush1.msra.mxu0 0.0
    %5914 = vmatprep.subr.mxu0 0.0
    %5915 = vmatpush1.msra.mxu0 0.0
    %5916 = vmatprep.subr.mxu0 0.0
    %5917 = vmatpush1.msra.mxu0 0.0
    %5918 = vmatprep.subr.mxu0 0.0
    %5919 = vmatpush1.msra.mxu0 0.0
    %5920 = vmatprep.subr.mxu0 0.0
    %5921 = vmatpush1.msra.mxu0 0.0
    %5922 = vmatprep.subr.mxu0 0.0
    %5923 = vmatpush1.msra.mxu0 0.0
    %5924 = vmatprep.subr.mxu0 0.0
    %5925 = vmatpush1.msra.mxu0 %v5894
    %5926 = vmatprep.subr.mxu0 0.0
    %5927 = vmatpush1.msra.mxu0 %v5893
    %5928 = vmatprep.subr.mxu0 0.0
    %5929 = vmatpush1.msra.mxu0 %v5892
    %5930 = vmatprep.subr.mxu0 0.0
    %5931 = vmatpush1.msra.mxu0 %v5891
    %5932 = vmatprep.subr.mxu0 0.0
    %5933 = vmatpush2.msra.mxu0 0.0
    %5934 = vmatprep.subr.mxu0 0.0
    %5935 = vmatpush2.msra.mxu0 0.0
    %5936 = vmatprep.subr.mxu0 0.0
    %5937 = vmatpush2.msra.mxu0 0.0
    %5938 = vmatprep.subr.mxu0 0.0
    %5939 = vmatpush2.msra.mxu0 0.0
    %5940 = vmatprep.subr.mxu0 0.0
    %5941 = vmatpush2.msra.mxu0 0.0
    %5942 = vmatprep.subr.mxu0 0.0
    %5943 = vmatpush2.msra.mxu0 0.0
    %5944 = vmatprep.subr.mxu0 0.0
    %5945 = vmatpush2.msra.mxu0 0.0
    %5946 = vmatprep.subr.mxu0 0.0
    %5947 = vmatpush2.msra.mxu0 0.0
    %5948 = vmatprep.subr.mxu0 0.0
    %5949 = vmatpush2.msra.mxu0 0.0
    %5950 = vmatprep.subr.mxu0 0.0
    %5951 = vmatpush2.msra.mxu0 0.0
    %5952 = vmatprep.subr.mxu0 0.0
    %5953 = vmatpush2.msra.mxu0 0.0
    %5954 = vmatprep.subr.mxu0 0.0
    %5955 = vmatpush2.msra.mxu0 0.0
    %5956 = vmatprep.subr.mxu0 0.0
    %5957 = vmatpush2.msra.mxu0 0.0
    %5958 = vmatprep.subr.mxu0 0.0
    %5959 = vmatpush2.msra.mxu0 0.0
    %5960 = vmatprep.subr.mxu0 0.0
    %5961 = vmatpush2.msra.mxu0 0.0
    %5962 = vmatprep.subr.mxu0 0.0
    %5963 = vmatpush2.msra.mxu0 0.0
    %5964 = vmatprep.mubr.f32.mxu0 0.0
    %5965 = vmatmul.mubr.f32.gmra.mxu0 %v5898
    %v5966 = vpop.f32.mrf.mxu0
    %v5967 = vadd.f32 %v232, %v5966
    %v5968 = vpop.f32.mrf.mxu0
    %5969 = vdwg.mxu0
    %v5970 = vld [vmem:[%s1292] sm:$0xff]
    %v5971 = vld [vmem:[%s1292 + $0x8] sm:$0xff]
    %v5972 = vld [vmem:[%s1292 + $0x10] sm:$0xff]
    %v5973 = vld [vmem:[%s1292 + $0x18] sm:$0xff]
    %5975 = vrot.lane.b32.xlu0 %v5675, 64
    %v5976 = vpop.permute.xlu0 %5975
    %v5977 = vsel %vm45, %v5976, 0
    %5979 = vmatprep.subr.mxu0 0.0
    %5980 = vmatpush1.msra.mxu0 0.0
    %5981 = vmatprep.subr.mxu0 0.0
    %5982 = vmatpush1.msra.mxu0 0.0
    %5983 = vmatprep.subr.mxu0 0.0
    %5984 = vmatpush1.msra.mxu0 0.0
    %5985 = vmatprep.subr.mxu0 0.0
    %5986 = vmatpush1.msra.mxu0 0.0
    %5987 = vmatprep.subr.mxu0 0.0
    %5988 = vmatpush1.msra.mxu0 0.0
    %5989 = vmatprep.subr.mxu0 0.0
    %5990 = vmatpush1.msra.mxu0 0.0
    %5991 = vmatprep.subr.mxu0 0.0
    %5992 = vmatpush1.msra.mxu0 0.0
    %5993 = vmatprep.subr.mxu0 0.0
    %5994 = vmatpush1.msra.mxu0 0.0
    %5995 = vmatprep.subr.mxu0 0.0
    %5996 = vmatpush1.msra.mxu0 0.0
    %5997 = vmatprep.subr.mxu0 0.0
    %5998 = vmatpush1.msra.mxu0 0.0
    %5999 = vmatprep.subr.mxu0 0.0
    %6000 = vmatpush1.msra.mxu0 0.0
    %6001 = vmatprep.subr.mxu0 0.0
    %6002 = vmatpush1.msra.mxu0 0.0
    %6003 = vmatprep.subr.mxu0 0.0
    %6004 = vmatpush1.msra.mxu0 %v5973
    %6005 = vmatprep.subr.mxu0 0.0
    %6006 = vmatpush1.msra.mxu0 %v5972
    %6007 = vmatprep.subr.mxu0 0.0
    %6008 = vmatpush1.msra.mxu0 %v5971
    %6009 = vmatprep.subr.mxu0 0.0
    %6010 = vmatpush1.msra.mxu0 %v5970
    %6011 = vmatprep.subr.mxu0 0.0
    %6012 = vmatpush2.msra.mxu0 0.0
    %6013 = vmatprep.subr.mxu0 0.0
    %6014 = vmatpush2.msra.mxu0 0.0
    %6015 = vmatprep.subr.mxu0 0.0
    %6016 = vmatpush2.msra.mxu0 0.0
    %6017 = vmatprep.subr.mxu0 0.0
    %6018 = vmatpush2.msra.mxu0 0.0
    %6019 = vmatprep.subr.mxu0 0.0
    %6020 = vmatpush2.msra.mxu0 0.0
    %6021 = vmatprep.subr.mxu0 0.0
    %6022 = vmatpush2.msra.mxu0 0.0
    %6023 = vmatprep.subr.mxu0 0.0
    %6024 = vmatpush2.msra.mxu0 0.0
    %6025 = vmatprep.subr.mxu0 0.0
    %6026 = vmatpush2.msra.mxu0 0.0
    %6027 = vmatprep.subr.mxu0 0.0
    %6028 = vmatpush2.msra.mxu0 0.0
    %6029 = vmatprep.subr.mxu0 0.0
    %6030 = vmatpush2.msra.mxu0 0.0
    %6031 = vmatprep.subr.mxu0 0.0
    %6032 = vmatpush2.msra.mxu0 0.0
    %6033 = vmatprep.subr.mxu0 0.0
    %6034 = vmatpush2.msra.mxu0 0.0
    %6035 = vmatprep.subr.mxu0 0.0
    %6036 = vmatpush2.msra.mxu0 0.0
    %6037 = vmatprep.subr.mxu0 0.0
    %6038 = vmatpush2.msra.mxu0 0.0
    %6039 = vmatprep.subr.mxu0 0.0
    %6040 = vmatpush2.msra.mxu0 0.0
    %6041 = vmatprep.subr.mxu0 0.0
    %6042 = vmatpush2.msra.mxu0 0.0
    %6043 = vmatprep.mubr.f32.mxu0 0.0
    %6044 = vmatmul.mubr.f32.gmra.mxu0 %v5977
    %v6045 = vpop.f32.mrf.mxu0
    %v6046 = vadd.f32 %v240, %v6045
    %v6047 = vpop.f32.mrf.mxu0
    %6048 = vdwg.mxu0
    %v6049 = vld [vmem:[%s2014] sm:$0xff]
    %v6050 = vld [vmem:[%s2014 + $0x8] sm:$0xff]
    %v6051 = vld [vmem:[%s2014 + $0x10] sm:$0xff]
    %v6052 = vld [vmem:[%s2014 + $0x18] sm:$0xff]
    %6054 = vrot.lane.b32.xlu0 %v5779, 64
    %v6055 = vpop.permute.xlu0 %6054
    %v6056 = vsel %vm45, %v6055, 0
    %6058 = vmatprep.subr.mxu0 0.0
    %6059 = vmatpush1.msra.mxu0 0.0
    %6060 = vmatprep.subr.mxu0 0.0
    %6061 = vmatpush1.msra.mxu0 0.0
    %6062 = vmatprep.subr.mxu0 0.0
    %6063 = vmatpush1.msra.mxu0 0.0
    %6064 = vmatprep.subr.mxu0 0.0
    %6065 = vmatpush1.msra.mxu0 0.0
    %6066 = vmatprep.subr.mxu0 0.0
    %6067 = vmatpush1.msra.mxu0 0.0
    %6068 = vmatprep.subr.mxu0 0.0
    %6069 = vmatpush1.msra.mxu0 0.0
    %6070 = vmatprep.subr.mxu0 0.0
    %6071 = vmatpush1.msra.mxu0 0.0
    %6072 = vmatprep.subr.mxu0 0.0
    %6073 = vmatpush1.msra.mxu0 0.0
    %6074 = vmatprep.subr.mxu0 0.0
    %6075 = vmatpush1.msra.mxu0 0.0
    %6076 = vmatprep.subr.mxu0 0.0
    %6077 = vmatpush1.msra.mxu0 0.0
    %6078 = vmatprep.subr.mxu0 0.0
    %6079 = vmatpush1.msra.mxu0 0.0
    %6080 = vmatprep.subr.mxu0 0.0
    %6081 = vmatpush1.msra.mxu0 0.0
    %6082 = vmatprep.subr.mxu0 0.0
    %6083 = vmatpush1.msra.mxu0 %v6052
    %6084 = vmatprep.subr.mxu0 0.0
    %6085 = vmatpush1.msra.mxu0 %v6051
    %6086 = vmatprep.subr.mxu0 0.0
    %6087 = vmatpush1.msra.mxu0 %v6050
    %6088 = vmatprep.subr.mxu0 0.0
    %6089 = vmatpush1.msra.mxu0 %v6049
    %6090 = vmatprep.subr.mxu0 0.0
    %6091 = vmatpush2.msra.mxu0 0.0
    %6092 = vmatprep.subr.mxu0 0.0
    %6093 = vmatpush2.msra.mxu0 0.0
    %6094 = vmatprep.subr.mxu0 0.0
    %6095 = vmatpush2.msra.mxu0 0.0
    %6096 = vmatprep.subr.mxu0 0.0
    %6097 = vmatpush2.msra.mxu0 0.0
    %6098 = vmatprep.subr.mxu0 0.0
    %6099 = vmatpush2.msra.mxu0 0.0
    %6100 = vmatprep.subr.mxu0 0.0
    %6101 = vmatpush2.msra.mxu0 0.0
    %6102 = vmatprep.subr.mxu0 0.0
    %6103 = vmatpush2.msra.mxu0 0.0
    %6104 = vmatprep.subr.mxu0 0.0
    %6105 = vmatpush2.msra.mxu0 0.0
    %6106 = vmatprep.subr.mxu0 0.0
    %6107 = vmatpush2.msra.mxu0 0.0
    %6108 = vmatprep.subr.mxu0 0.0
    %6109 = vmatpush2.msra.mxu0 0.0
    %6110 = vmatprep.subr.mxu0 0.0
    %6111 = vmatpush2.msra.mxu0 0.0
    %6112 = vmatprep.subr.mxu0 0.0
    %6113 = vmatpush2.msra.mxu0 0.0
    %6114 = vmatprep.subr.mxu0 0.0
    %6115 = vmatpush2.msra.mxu0 0.0
    %6116 = vmatprep.subr.mxu0 0.0
    %6117 = vmatpush2.msra.mxu0 0.0
    %6118 = vmatprep.subr.mxu0 0.0
    %6119 = vmatpush2.msra.mxu0 0.0
    %6120 = vmatprep.subr.mxu0 0.0
    %6121 = vmatpush2.msra.mxu0 0.0
    %6122 = vmatprep.mubr.f32.mxu0 0.0
    %6123 = vmatmul.mubr.f32.gmra.mxu0 %v6056
    %v6124 = vpop.f32.mrf.mxu0
    %v6125 = vadd.f32 %v248, %v6124
    %v6126 = vpop.f32.mrf.mxu0
    %6127 = vdwg.mxu0
    %v6128 = vld [vmem:[%s1026] sm:$0xff]
    %v6129 = vld [vmem:[%s1026 + $0x8] sm:$0xff]
    %v6130 = vld [vmem:[%s1026 + $0x10] sm:$0xff]
    %v6131 = vld [vmem:[%s1026 + $0x18] sm:$0xff]
    %6132 = vmatprep.subr.mxu0 0.0
    %6133 = vmatpush1.msra.mxu0 0.0
    %6134 = vmatprep.subr.mxu0 0.0
    %6135 = vmatpush1.msra.mxu0 0.0
    %6136 = vmatprep.subr.mxu0 0.0
    %6137 = vmatpush1.msra.mxu0 0.0
    %6138 = vmatprep.subr.mxu0 0.0
    %6139 = vmatpush1.msra.mxu0 0.0
    %6140 = vmatprep.subr.mxu0 0.0
    %6141 = vmatpush1.msra.mxu0 0.0
    %6142 = vmatprep.subr.mxu0 0.0
    %6143 = vmatpush1.msra.mxu0 0.0
    %6144 = vmatprep.subr.mxu0 0.0
    %6145 = vmatpush1.msra.mxu0 0.0
    %6146 = vmatprep.subr.mxu0 0.0
    %6147 = vmatpush1.msra.mxu0 0.0
    %6148 = vmatprep.subr.mxu0 0.0
    %6149 = vmatpush1.msra.mxu0 0.0
    %6150 = vmatprep.subr.mxu0 0.0
    %6151 = vmatpush1.msra.mxu0 0.0
    %6152 = vmatprep.subr.mxu0 0.0
    %6153 = vmatpush1.msra.mxu0 0.0
    %6154 = vmatprep.subr.mxu0 0.0
    %6155 = vmatpush1.msra.mxu0 0.0
    %6156 = vmatprep.subr.mxu0 0.0
    %6157 = vmatpush1.msra.mxu0 %v6131
    %6158 = vmatprep.subr.mxu0 0.0
    %6159 = vmatpush1.msra.mxu0 %v6130
    %6160 = vmatprep.subr.mxu0 0.0
    %6161 = vmatpush1.msra.mxu0 %v6129
    %6162 = vmatprep.subr.mxu0 0.0
    %6163 = vmatpush1.msra.mxu0 %v6128
    %6164 = vmatprep.subr.mxu0 0.0
    %6165 = vmatpush2.msra.mxu0 0.0
    %6166 = vmatprep.subr.mxu0 0.0
    %6167 = vmatpush2.msra.mxu0 0.0
    %6168 = vmatprep.subr.mxu0 0.0
    %6169 = vmatpush2.msra.mxu0 0.0
    %6170 = vmatprep.subr.mxu0 0.0
    %6171 = vmatpush2.msra.mxu0 0.0
    %6172 = vmatprep.subr.mxu0 0.0
    %6173 = vmatpush2.msra.mxu0 0.0
    %6174 = vmatprep.subr.mxu0 0.0
    %6175 = vmatpush2.msra.mxu0 0.0
    %6176 = vmatprep.subr.mxu0 0.0
    %6177 = vmatpush2.msra.mxu0 0.0
    %6178 = vmatprep.subr.mxu0 0.0
    %6179 = vmatpush2.msra.mxu0 0.0
    %6180 = vmatprep.subr.mxu0 0.0
    %6181 = vmatpush2.msra.mxu0 0.0
    %6182 = vmatprep.subr.mxu0 0.0
    %6183 = vmatpush2.msra.mxu0 0.0
    %6184 = vmatprep.subr.mxu0 0.0
    %6185 = vmatpush2.msra.mxu0 0.0
    %6186 = vmatprep.subr.mxu0 0.0
    %6187 = vmatpush2.msra.mxu0 0.0
    %6188 = vmatprep.subr.mxu0 0.0
    %6189 = vmatpush2.msra.mxu0 0.0
    %6190 = vmatprep.subr.mxu0 0.0
    %6191 = vmatpush2.msra.mxu0 0.0
    %6192 = vmatprep.subr.mxu0 0.0
    %6193 = vmatpush2.msra.mxu0 0.0
    %6194 = vmatprep.subr.mxu0 0.0
    %6195 = vmatpush2.msra.mxu0 0.0
    %6196 = vmatprep.mubr.f32.mxu0 0.0
    %6197 = vmatmul.mubr.f32.gmra.mxu0 %v5977
    %v6198 = vpop.f32.mrf.mxu0
    %v6199 = vadd.f32 0.0, %v6198
    %v6200 = vpop.f32.mrf.mxu0
    %6201 = vdwg.mxu0
    %v6202 = vadd.f32 %v5967, %v6199
    %v6203 = vxor.u32 %v6202, 2147483648
    %v6204 = vmul.f32 %v6203, 1.442695
    %v6205 = vpow.pop %v6204
    %v6206 = vadd.f32 %v6205, 1.0
    %v6207 = vrcp.pop %v6206
    %v6208 = vmul.f32 1.0, %v6207
    %v6209 = vadd.f32 %v6199, %v1112
    %6211 = vrot.lane.b32.xlu0 %v6209, 64
    %v6212 = vpop.permute.xlu0 %6211
    %v6214 = vmul.f32 %v6208, %v6212
    %6216 = vrot.lane.b32.xlu0 %v6214, 64
    %v6217 = vpop.permute.xlu0 %6216
    %v6219 = vadd.f32 %v5967, %v6217
    %v6220 = vtanh.pop %v6219
    %v6221 = vsub.f32 %v5675, %v6220
    %6223 = vrot.lane.b32.xlu0 %v6221, 96
    %v6224 = vpop.permute.xlu0 %6223
    %v6226 = vmul.f32 %v6208, %v6224
    %6228 = vrot.lane.b32.xlu0 %v6226, 32
    %v6229 = vpop.permute.xlu0 %6228
    %v6231 = vadd.f32 %v6220, %v6229
    %v6232 = vld [vmem:[%s1672] sm:$0xff]
    %v6233 = vld [vmem:[%s1672 + $0x8] sm:$0xff]
    %v6234 = vld [vmem:[%s1672 + $0x10] sm:$0xff]
    %v6235 = vld [vmem:[%s1672 + $0x18] sm:$0xff]
    %6236 = vmatprep.subr.mxu0 0.0
    %6237 = vmatpush1.msra.mxu0 0.0
    %6238 = vmatprep.subr.mxu0 0.0
    %6239 = vmatpush1.msra.mxu0 0.0
    %6240 = vmatprep.subr.mxu0 0.0
    %6241 = vmatpush1.msra.mxu0 0.0
    %6242 = vmatprep.subr.mxu0 0.0
    %6243 = vmatpush1.msra.mxu0 0.0
    %6244 = vmatprep.subr.mxu0 0.0
    %6245 = vmatpush1.msra.mxu0 0.0
    %6246 = vmatprep.subr.mxu0 0.0
    %6247 = vmatpush1.msra.mxu0 0.0
    %6248 = vmatprep.subr.mxu0 0.0
    %6249 = vmatpush1.msra.mxu0 0.0
    %6250 = vmatprep.subr.mxu0 0.0
    %6251 = vmatpush1.msra.mxu0 0.0
    %6252 = vmatprep.subr.mxu0 0.0
    %6253 = vmatpush1.msra.mxu0 0.0
    %6254 = vmatprep.subr.mxu0 0.0
    %6255 = vmatpush1.msra.mxu0 0.0
    %6256 = vmatprep.subr.mxu0 0.0
    %6257 = vmatpush1.msra.mxu0 0.0
    %6258 = vmatprep.subr.mxu0 0.0
    %6259 = vmatpush1.msra.mxu0 0.0
    %6260 = vmatprep.subr.mxu0 0.0
    %6261 = vmatpush1.msra.mxu0 %v6235
    %6262 = vmatprep.subr.mxu0 0.0
    %6263 = vmatpush1.msra.mxu0 %v6234
    %6264 = vmatprep.subr.mxu0 0.0
    %6265 = vmatpush1.msra.mxu0 %v6233
    %6266 = vmatprep.subr.mxu0 0.0
    %6267 = vmatpush1.msra.mxu0 %v6232
    %6268 = vmatprep.subr.mxu0 0.0
    %6269 = vmatpush2.msra.mxu0 0.0
    %6270 = vmatprep.subr.mxu0 0.0
    %6271 = vmatpush2.msra.mxu0 0.0
    %6272 = vmatprep.subr.mxu0 0.0
    %6273 = vmatpush2.msra.mxu0 0.0
    %6274 = vmatprep.subr.mxu0 0.0
    %6275 = vmatpush2.msra.mxu0 0.0
    %6276 = vmatprep.subr.mxu0 0.0
    %6277 = vmatpush2.msra.mxu0 0.0
    %6278 = vmatprep.subr.mxu0 0.0
    %6279 = vmatpush2.msra.mxu0 0.0
    %6280 = vmatprep.subr.mxu0 0.0
    %6281 = vmatpush2.msra.mxu0 0.0
    %6282 = vmatprep.subr.mxu0 0.0
    %6283 = vmatpush2.msra.mxu0 0.0
    %6284 = vmatprep.subr.mxu0 0.0
    %6285 = vmatpush2.msra.mxu0 0.0
    %6286 = vmatprep.subr.mxu0 0.0
    %6287 = vmatpush2.msra.mxu0 0.0
    %6288 = vmatprep.subr.mxu0 0.0
    %6289 = vmatpush2.msra.mxu0 0.0
    %6290 = vmatprep.subr.mxu0 0.0
    %6291 = vmatpush2.msra.mxu0 0.0
    %6292 = vmatprep.subr.mxu0 0.0
    %6293 = vmatpush2.msra.mxu0 0.0
    %6294 = vmatprep.subr.mxu0 0.0
    %6295 = vmatpush2.msra.mxu0 0.0
    %6296 = vmatprep.subr.mxu0 0.0
    %6297 = vmatpush2.msra.mxu0 0.0
    %6298 = vmatprep.subr.mxu0 0.0
    %6299 = vmatpush2.msra.mxu0 0.0
    %6300 = vmatprep.mubr.f32.mxu0 0.0
    %6301 = vmatmul.mubr.f32.gmra.mxu0 %v6056
    %v6302 = vpop.f32.mrf.mxu0
    %v6303 = vadd.f32 0.0, %v6302
    %v6304 = vpop.f32.mrf.mxu0
    %6305 = vdwg.mxu0
    %v6306 = vadd.f32 %v6046, %v6303
    %v6307 = vxor.u32 %v6306, 2147483648
    %v6308 = vmul.f32 %v6307, 1.442695
    %v6309 = vpow.pop %v6308
    %v6310 = vadd.f32 %v6309, 1.0
    %v6311 = vrcp.pop %v6310
    %v6312 = vmul.f32 1.0, %v6311
    %v6313 = vadd.f32 %v6303, %v1758
    %6315 = vrot.lane.b32.xlu0 %v6313, 64
    %v6316 = vpop.permute.xlu0 %6315
    %v6318 = vmul.f32 %v6312, %v6316
    %6320 = vrot.lane.b32.xlu0 %v6318, 64
    %v6321 = vpop.permute.xlu0 %6320
    %v6323 = vadd.f32 %v6046, %v6321
    %v6324 = vtanh.pop %v6323
    %v6325 = vsub.f32 %v5779, %v6324
    %6327 = vrot.lane.b32.xlu0 %v6325, 96
    %v6328 = vpop.permute.xlu0 %6327
    %v6330 = vmul.f32 %v6312, %v6328
    %6332 = vrot.lane.b32.xlu0 %v6330, 32
    %v6333 = vpop.permute.xlu0 %6332
    %v6335 = vadd.f32 %v6324, %v6333
    %v6336 = vld [vmem:[%s2494] sm:$0xff]
    %v6337 = vld [vmem:[%s2494 + $0x8] sm:$0xff]
    %v6338 = vld [vmem:[%s2494 + $0x10] sm:$0xff]
    %v6339 = vld [vmem:[%s2494 + $0x18] sm:$0xff]
    %v6340 = vsel %vm45, %v5888, 0
    %6342 = vmatprep.subr.mxu0 0.0
    %6343 = vmatpush1.msra.mxu0 0.0
    %6344 = vmatprep.subr.mxu0 0.0
    %6345 = vmatpush1.msra.mxu0 0.0
    %6346 = vmatprep.subr.mxu0 0.0
    %6347 = vmatpush1.msra.mxu0 0.0
    %6348 = vmatprep.subr.mxu0 0.0
    %6349 = vmatpush1.msra.mxu0 0.0
    %6350 = vmatprep.subr.mxu0 0.0
    %6351 = vmatpush1.msra.mxu0 0.0
    %6352 = vmatprep.subr.mxu0 0.0
    %6353 = vmatpush1.msra.mxu0 0.0
    %6354 = vmatprep.subr.mxu0 0.0
    %6355 = vmatpush1.msra.mxu0 0.0
    %6356 = vmatprep.subr.mxu0 0.0
    %6357 = vmatpush1.msra.mxu0 0.0
    %6358 = vmatprep.subr.mxu0 0.0
    %6359 = vmatpush1.msra.mxu0 0.0
    %6360 = vmatprep.subr.mxu0 0.0
    %6361 = vmatpush1.msra.mxu0 0.0
    %6362 = vmatprep.subr.mxu0 0.0
    %6363 = vmatpush1.msra.mxu0 0.0
    %6364 = vmatprep.subr.mxu0 0.0
    %6365 = vmatpush1.msra.mxu0 0.0
    %6366 = vmatprep.subr.mxu0 0.0
    %6367 = vmatpush1.msra.mxu0 %v6339
    %6368 = vmatprep.subr.mxu0 0.0
    %6369 = vmatpush1.msra.mxu0 %v6338
    %6370 = vmatprep.subr.mxu0 0.0
    %6371 = vmatpush1.msra.mxu0 %v6337
    %6372 = vmatprep.subr.mxu0 0.0
    %6373 = vmatpush1.msra.mxu0 %v6336
    %6374 = vmatprep.subr.mxu0 0.0
    %6375 = vmatpush2.msra.mxu0 0.0
    %6376 = vmatprep.subr.mxu0 0.0
    %6377 = vmatpush2.msra.mxu0 0.0
    %6378 = vmatprep.subr.mxu0 0.0
    %6379 = vmatpush2.msra.mxu0 0.0
    %6380 = vmatprep.subr.mxu0 0.0
    %6381 = vmatpush2.msra.mxu0 0.0
    %6382 = vmatprep.subr.mxu0 0.0
    %6383 = vmatpush2.msra.mxu0 0.0
    %6384 = vmatprep.subr.mxu0 0.0
    %6385 = vmatpush2.msra.mxu0 0.0
    %6386 = vmatprep.subr.mxu0 0.0
    %6387 = vmatpush2.msra.mxu0 0.0
    %6388 = vmatprep.subr.mxu0 0.0
    %6389 = vmatpush2.msra.mxu0 0.0
    %6390 = vmatprep.subr.mxu0 0.0
    %6391 = vmatpush2.msra.mxu0 0.0
    %6392 = vmatprep.subr.mxu0 0.0
    %6393 = vmatpush2.msra.mxu0 0.0
    %6394 = vmatprep.subr.mxu0 0.0
    %6395 = vmatpush2.msra.mxu0 0.0
    %6396 = vmatprep.subr.mxu0 0.0
    %6397 = vmatpush2.msra.mxu0 0.0
    %6398 = vmatprep.subr.mxu0 0.0
    %6399 = vmatpush2.msra.mxu0 0.0
    %6400 = vmatprep.subr.mxu0 0.0
    %6401 = vmatpush2.msra.mxu0 0.0
    %6402 = vmatprep.subr.mxu0 0.0
    %6403 = vmatpush2.msra.mxu0 0.0
    %6404 = vmatprep.subr.mxu0 0.0
    %6405 = vmatpush2.msra.mxu0 0.0
    %6406 = vmatprep.mubr.f32.mxu0 0.0
    %6407 = vmatmul.mubr.f32.gmra.mxu0 %v6340
    %v6408 = vpop.f32.mrf.mxu0
    %v6409 = vadd.f32 0.0, %v6408
    %v6410 = vpop.f32.mrf.mxu0
    %6411 = vdwg.mxu0
    %v6412 = vadd.f32 %v6125, %v6409
    %v6413 = vxor.u32 %v6412, 2147483648
    %v6414 = vmul.f32 %v6413, 1.442695
    %v6415 = vpow.pop %v6414
    %v6416 = vadd.f32 %v6415, 1.0
    %v6417 = vrcp.pop %v6416
    %v6418 = vmul.f32 1.0, %v6417
    %v6419 = vadd.f32 %v6409, %v2580
    %6421 = vrot.lane.b32.xlu0 %v6419, 64
    %v6422 = vpop.permute.xlu0 %6421
    %v6424 = vmul.f32 %v6418, %v6422
    %6426 = vrot.lane.b32.xlu0 %v6424, 64
    %v6427 = vpop.permute.xlu0 %6426
    %v6429 = vadd.f32 %v6125, %v6427
    %v6430 = vtanh.pop %v6429
    %v6431 = vsub.f32 %v5885, %v6430
    %6433 = vrot.lane.b32.xlu0 %v6431, 96
    %v6434 = vpop.permute.xlu0 %6433
    %v6436 = vmul.f32 %v6418, %v6434
    %6438 = vrot.lane.b32.xlu0 %v6436, 32
    %v6439 = vpop.permute.xlu0 %6438
    %v6441 = vadd.f32 %v6430, %v6439
    %6443 = vrot.lane.b32.xlu0 %v6441, 64
    %v6444 = vpop.permute.xlu0 %6443
    %6446 = vst.msk [vmem:[%s6 + $0x28] sm:$0xff] %vm45, %v6444
    %v6447 = vld [vmem:[%s1292] sm:$0xff]
    %v6448 = vld [vmem:[%s1292 + $0x8] sm:$0xff]
    %v6449 = vld [vmem:[%s1292 + $0x10] sm:$0xff]
    %v6450 = vld [vmem:[%s1292 + $0x18] sm:$0xff]
    %6452 = vrot.lane.b32.xlu0 %v6231, 64
    %v6453 = vpop.permute.xlu0 %6452
    %v6454 = vsel %vm45, %v6453, 0
    %6456 = vmatprep.subr.mxu0 0.0
    %6457 = vmatpush1.msra.mxu0 0.0
    %6458 = vmatprep.subr.mxu0 0.0
    %6459 = vmatpush1.msra.mxu0 0.0
    %6460 = vmatprep.subr.mxu0 0.0
    %6461 = vmatpush1.msra.mxu0 0.0
    %6462 = vmatprep.subr.mxu0 0.0
    %6463 = vmatpush1.msra.mxu0 0.0
    %6464 = vmatprep.subr.mxu0 0.0
    %6465 = vmatpush1.msra.mxu0 0.0
    %6466 = vmatprep.subr.mxu0 0.0
    %6467 = vmatpush1.msra.mxu0 0.0
    %6468 = vmatprep.subr.mxu0 0.0
    %6469 = vmatpush1.msra.mxu0 0.0
    %6470 = vmatprep.subr.mxu0 0.0
    %6471 = vmatpush1.msra.mxu0 0.0
    %6472 = vmatprep.subr.mxu0 0.0
    %6473 = vmatpush1.msra.mxu0 0.0
    %6474 = vmatprep.subr.mxu0 0.0
    %6475 = vmatpush1.msra.mxu0 0.0
    %6476 = vmatprep.subr.mxu0 0.0
    %6477 = vmatpush1.msra.mxu0 0.0
    %6478 = vmatprep.subr.mxu0 0.0
    %6479 = vmatpush1.msra.mxu0 0.0
    %6480 = vmatprep.subr.mxu0 0.0
    %6481 = vmatpush1.msra.mxu0 %v6450
    %6482 = vmatprep.subr.mxu0 0.0
    %6483 = vmatpush1.msra.mxu0 %v6449
    %6484 = vmatprep.subr.mxu0 0.0
    %6485 = vmatpush1.msra.mxu0 %v6448
    %6486 = vmatprep.subr.mxu0 0.0
    %6487 = vmatpush1.msra.mxu0 %v6447
    %6488 = vmatprep.subr.mxu0 0.0
    %6489 = vmatpush2.msra.mxu0 0.0
    %6490 = vmatprep.subr.mxu0 0.0
    %6491 = vmatpush2.msra.mxu0 0.0
    %6492 = vmatprep.subr.mxu0 0.0
    %6493 = vmatpush2.msra.mxu0 0.0
    %6494 = vmatprep.subr.mxu0 0.0
    %6495 = vmatpush2.msra.mxu0 0.0
    %6496 = vmatprep.subr.mxu0 0.0
    %6497 = vmatpush2.msra.mxu0 0.0
    %6498 = vmatprep.subr.mxu0 0.0
    %6499 = vmatpush2.msra.mxu0 0.0
    %6500 = vmatprep.subr.mxu0 0.0
    %6501 = vmatpush2.msra.mxu0 0.0
    %6502 = vmatprep.subr.mxu0 0.0
    %6503 = vmatpush2.msra.mxu0 0.0
    %6504 = vmatprep.subr.mxu0 0.0
    %6505 = vmatpush2.msra.mxu0 0.0
    %6506 = vmatprep.subr.mxu0 0.0
    %6507 = vmatpush2.msra.mxu0 0.0
    %6508 = vmatprep.subr.mxu0 0.0
    %6509 = vmatpush2.msra.mxu0 0.0
    %6510 = vmatprep.subr.mxu0 0.0
    %6511 = vmatpush2.msra.mxu0 0.0
    %6512 = vmatprep.subr.mxu0 0.0
    %6513 = vmatpush2.msra.mxu0 0.0
    %6514 = vmatprep.subr.mxu0 0.0
    %6515 = vmatpush2.msra.mxu0 0.0
    %6516 = vmatprep.subr.mxu0 0.0
    %6517 = vmatpush2.msra.mxu0 0.0
    %6518 = vmatprep.subr.mxu0 0.0
    %6519 = vmatpush2.msra.mxu0 0.0
    %6520 = vmatprep.mubr.f32.mxu0 0.0
    %6521 = vmatmul.mubr.f32.gmra.mxu0 %v6454
    %v6522 = vpop.f32.mrf.mxu0
    %v6523 = vadd.f32 %v240, %v6522
    %v6524 = vpop.f32.mrf.mxu0
    %6525 = vdwg.mxu0
    %v6526 = vld [vmem:[%s2014] sm:$0xff]
    %v6527 = vld [vmem:[%s2014 + $0x8] sm:$0xff]
    %v6528 = vld [vmem:[%s2014 + $0x10] sm:$0xff]
    %v6529 = vld [vmem:[%s2014 + $0x18] sm:$0xff]
    %6531 = vrot.lane.b32.xlu0 %v6335, 64
    %v6532 = vpop.permute.xlu0 %6531
    %v6533 = vsel %vm45, %v6532, 0
    %6535 = vmatprep.subr.mxu0 0.0
    %6536 = vmatpush1.msra.mxu0 0.0
    %6537 = vmatprep.subr.mxu0 0.0
    %6538 = vmatpush1.msra.mxu0 0.0
    %6539 = vmatprep.subr.mxu0 0.0
    %6540 = vmatpush1.msra.mxu0 0.0
    %6541 = vmatprep.subr.mxu0 0.0
    %6542 = vmatpush1.msra.mxu0 0.0
    %6543 = vmatprep.subr.mxu0 0.0
    %6544 = vmatpush1.msra.mxu0 0.0
    %6545 = vmatprep.subr.mxu0 0.0
    %6546 = vmatpush1.msra.mxu0 0.0
    %6547 = vmatprep.subr.mxu0 0.0
    %6548 = vmatpush1.msra.mxu0 0.0
    %6549 = vmatprep.subr.mxu0 0.0
    %6550 = vmatpush1.msra.mxu0 0.0
    %6551 = vmatprep.subr.mxu0 0.0
    %6552 = vmatpush1.msra.mxu0 0.0
    %6553 = vmatprep.subr.mxu0 0.0
    %6554 = vmatpush1.msra.mxu0 0.0
    %6555 = vmatprep.subr.mxu0 0.0
    %6556 = vmatpush1.msra.mxu0 0.0
    %6557 = vmatprep.subr.mxu0 0.0
    %6558 = vmatpush1.msra.mxu0 0.0
    %6559 = vmatprep.subr.mxu0 0.0
    %6560 = vmatpush1.msra.mxu0 %v6529
    %6561 = vmatprep.subr.mxu0 0.0
    %6562 = vmatpush1.msra.mxu0 %v6528
    %6563 = vmatprep.subr.mxu0 0.0
    %6564 = vmatpush1.msra.mxu0 %v6527
    %6565 = vmatprep.subr.mxu0 0.0
    %6566 = vmatpush1.msra.mxu0 %v6526
    %6567 = vmatprep.subr.mxu0 0.0
    %6568 = vmatpush2.msra.mxu0 0.0
    %6569 = vmatprep.subr.mxu0 0.0
    %6570 = vmatpush2.msra.mxu0 0.0
    %6571 = vmatprep.subr.mxu0 0.0
    %6572 = vmatpush2.msra.mxu0 0.0
    %6573 = vmatprep.subr.mxu0 0.0
    %6574 = vmatpush2.msra.mxu0 0.0
    %6575 = vmatprep.subr.mxu0 0.0
    %6576 = vmatpush2.msra.mxu0 0.0
    %6577 = vmatprep.subr.mxu0 0.0
    %6578 = vmatpush2.msra.mxu0 0.0
    %6579 = vmatprep.subr.mxu0 0.0
    %6580 = vmatpush2.msra.mxu0 0.0
    %6581 = vmatprep.subr.mxu0 0.0
    %6582 = vmatpush2.msra.mxu0 0.0
    %6583 = vmatprep.subr.mxu0 0.0
    %6584 = vmatpush2.msra.mxu0 0.0
    %6585 = vmatprep.subr.mxu0 0.0
    %6586 = vmatpush2.msra.mxu0 0.0
    %6587 = vmatprep.subr.mxu0 0.0
    %6588 = vmatpush2.msra.mxu0 0.0
    %6589 = vmatprep.subr.mxu0 0.0
    %6590 = vmatpush2.msra.mxu0 0.0
    %6591 = vmatprep.subr.mxu0 0.0
    %6592 = vmatpush2.msra.mxu0 0.0
    %6593 = vmatprep.subr.mxu0 0.0
    %6594 = vmatpush2.msra.mxu0 0.0
    %6595 = vmatprep.subr.mxu0 0.0
    %6596 = vmatpush2.msra.mxu0 0.0
    %6597 = vmatprep.subr.mxu0 0.0
    %6598 = vmatpush2.msra.mxu0 0.0
    %6599 = vmatprep.mubr.f32.mxu0 0.0
    %6600 = vmatmul.mubr.f32.gmra.mxu0 %v6533
    %v6601 = vpop.f32.mrf.mxu0
    %v6602 = vadd.f32 %v248, %v6601
    %v6603 = vpop.f32.mrf.mxu0
    %6604 = vdwg.mxu0
    %v6605 = vld [vmem:[%s1672] sm:$0xff]
    %v6606 = vld [vmem:[%s1672 + $0x8] sm:$0xff]
    %v6607 = vld [vmem:[%s1672 + $0x10] sm:$0xff]
    %v6608 = vld [vmem:[%s1672 + $0x18] sm:$0xff]
    %6609 = vmatprep.subr.mxu0 0.0
    %6610 = vmatpush1.msra.mxu0 0.0
    %6611 = vmatprep.subr.mxu0 0.0
    %6612 = vmatpush1.msra.mxu0 0.0
    %6613 = vmatprep.subr.mxu0 0.0
    %6614 = vmatpush1.msra.mxu0 0.0
    %6615 = vmatprep.subr.mxu0 0.0
    %6616 = vmatpush1.msra.mxu0 0.0
    %6617 = vmatprep.subr.mxu0 0.0
    %6618 = vmatpush1.msra.mxu0 0.0
    %6619 = vmatprep.subr.mxu0 0.0
    %6620 = vmatpush1.msra.mxu0 0.0
    %6621 = vmatprep.subr.mxu0 0.0
    %6622 = vmatpush1.msra.mxu0 0.0
    %6623 = vmatprep.subr.mxu0 0.0
    %6624 = vmatpush1.msra.mxu0 0.0
    %6625 = vmatprep.subr.mxu0 0.0
    %6626 = vmatpush1.msra.mxu0 0.0
    %6627 = vmatprep.subr.mxu0 0.0
    %6628 = vmatpush1.msra.mxu0 0.0
    %6629 = vmatprep.subr.mxu0 0.0
    %6630 = vmatpush1.msra.mxu0 0.0
    %6631 = vmatprep.subr.mxu0 0.0
    %6632 = vmatpush1.msra.mxu0 0.0
    %6633 = vmatprep.subr.mxu0 0.0
    %6634 = vmatpush1.msra.mxu0 %v6608
    %6635 = vmatprep.subr.mxu0 0.0
    %6636 = vmatpush1.msra.mxu0 %v6607
    %6637 = vmatprep.subr.mxu0 0.0
    %6638 = vmatpush1.msra.mxu0 %v6606
    %6639 = vmatprep.subr.mxu0 0.0
    %6640 = vmatpush1.msra.mxu0 %v6605
    %6641 = vmatprep.subr.mxu0 0.0
    %6642 = vmatpush2.msra.mxu0 0.0
    %6643 = vmatprep.subr.mxu0 0.0
    %6644 = vmatpush2.msra.mxu0 0.0
    %6645 = vmatprep.subr.mxu0 0.0
    %6646 = vmatpush2.msra.mxu0 0.0
    %6647 = vmatprep.subr.mxu0 0.0
    %6648 = vmatpush2.msra.mxu0 0.0
    %6649 = vmatprep.subr.mxu0 0.0
    %6650 = vmatpush2.msra.mxu0 0.0
    %6651 = vmatprep.subr.mxu0 0.0
    %6652 = vmatpush2.msra.mxu0 0.0
    %6653 = vmatprep.subr.mxu0 0.0
    %6654 = vmatpush2.msra.mxu0 0.0
    %6655 = vmatprep.subr.mxu0 0.0
    %6656 = vmatpush2.msra.mxu0 0.0
    %6657 = vmatprep.subr.mxu0 0.0
    %6658 = vmatpush2.msra.mxu0 0.0
    %6659 = vmatprep.subr.mxu0 0.0
    %6660 = vmatpush2.msra.mxu0 0.0
    %6661 = vmatprep.subr.mxu0 0.0
    %6662 = vmatpush2.msra.mxu0 0.0
    %6663 = vmatprep.subr.mxu0 0.0
    %6664 = vmatpush2.msra.mxu0 0.0
    %6665 = vmatprep.subr.mxu0 0.0
    %6666 = vmatpush2.msra.mxu0 0.0
    %6667 = vmatprep.subr.mxu0 0.0
    %6668 = vmatpush2.msra.mxu0 0.0
    %6669 = vmatprep.subr.mxu0 0.0
    %6670 = vmatpush2.msra.mxu0 0.0
    %6671 = vmatprep.subr.mxu0 0.0
    %6672 = vmatpush2.msra.mxu0 0.0
    %6673 = vmatprep.mubr.f32.mxu0 0.0
    %6674 = vmatmul.mubr.f32.gmra.mxu0 %v6533
    %v6675 = vpop.f32.mrf.mxu0
    %v6676 = vadd.f32 0.0, %v6675
    %v6677 = vpop.f32.mrf.mxu0
    %6678 = vdwg.mxu0
    %v6679 = vadd.f32 %v6523, %v6676
    %v6680 = vxor.u32 %v6679, 2147483648
    %v6681 = vmul.f32 %v6680, 1.442695
    %v6682 = vpow.pop %v6681
    %v6683 = vadd.f32 %v6682, 1.0
    %v6684 = vrcp.pop %v6683
    %v6685 = vmul.f32 1.0, %v6684
    %v6686 = vadd.f32 %v6676, %v1758
    %6688 = vrot.lane.b32.xlu0 %v6686, 64
    %v6689 = vpop.permute.xlu0 %6688
    %v6691 = vmul.f32 %v6685, %v6689
    %6693 = vrot.lane.b32.xlu0 %v6691, 64
    %v6694 = vpop.permute.xlu0 %6693
    %v6696 = vadd.f32 %v6523, %v6694
    %v6697 = vtanh.pop %v6696
    %v6698 = vsub.f32 %v6335, %v6697
    %6700 = vrot.lane.b32.xlu0 %v6698, 96
    %v6701 = vpop.permute.xlu0 %6700
    %v6703 = vmul.f32 %v6685, %v6701
    %6705 = vrot.lane.b32.xlu0 %v6703, 32
    %v6706 = vpop.permute.xlu0 %6705
    %v6708 = vadd.f32 %v6697, %v6706
    %v6709 = vld [vmem:[%s2494] sm:$0xff]
    %v6710 = vld [vmem:[%s2494 + $0x8] sm:$0xff]
    %v6711 = vld [vmem:[%s2494 + $0x10] sm:$0xff]
    %v6712 = vld [vmem:[%s2494 + $0x18] sm:$0xff]
    %v6713 = vsel %vm45, %v6444, 0
    %6715 = vmatprep.subr.mxu0 0.0
    %6716 = vmatpush1.msra.mxu0 0.0
    %6717 = vmatprep.subr.mxu0 0.0
    %6718 = vmatpush1.msra.mxu0 0.0
    %6719 = vmatprep.subr.mxu0 0.0
    %6720 = vmatpush1.msra.mxu0 0.0
    %6721 = vmatprep.subr.mxu0 0.0
    %6722 = vmatpush1.msra.mxu0 0.0
    %6723 = vmatprep.subr.mxu0 0.0
    %6724 = vmatpush1.msra.mxu0 0.0
    %6725 = vmatprep.subr.mxu0 0.0
    %6726 = vmatpush1.msra.mxu0 0.0
    %6727 = vmatprep.subr.mxu0 0.0
    %6728 = vmatpush1.msra.mxu0 0.0
    %6729 = vmatprep.subr.mxu0 0.0
    %6730 = vmatpush1.msra.mxu0 0.0
    %6731 = vmatprep.subr.mxu0 0.0
    %6732 = vmatpush1.msra.mxu0 0.0
    %6733 = vmatprep.subr.mxu0 0.0
    %6734 = vmatpush1.msra.mxu0 0.0
    %6735 = vmatprep.subr.mxu0 0.0
    %6736 = vmatpush1.msra.mxu0 0.0
    %6737 = vmatprep.subr.mxu0 0.0
    %6738 = vmatpush1.msra.mxu0 0.0
    %6739 = vmatprep.subr.mxu0 0.0
    %6740 = vmatpush1.msra.mxu0 %v6712
    %6741 = vmatprep.subr.mxu0 0.0
    %6742 = vmatpush1.msra.mxu0 %v6711
    %6743 = vmatprep.subr.mxu0 0.0
    %6744 = vmatpush1.msra.mxu0 %v6710
    %6745 = vmatprep.subr.mxu0 0.0
    %6746 = vmatpush1.msra.mxu0 %v6709
    %6747 = vmatprep.subr.mxu0 0.0
    %6748 = vmatpush2.msra.mxu0 0.0
    %6749 = vmatprep.subr.mxu0 0.0
    %6750 = vmatpush2.msra.mxu0 0.0
    %6751 = vmatprep.subr.mxu0 0.0
    %6752 = vmatpush2.msra.mxu0 0.0
    %6753 = vmatprep.subr.mxu0 0.0
    %6754 = vmatpush2.msra.mxu0 0.0
    %6755 = vmatprep.subr.mxu0 0.0
    %6756 = vmatpush2.msra.mxu0 0.0
    %6757 = vmatprep.subr.mxu0 0.0
    %6758 = vmatpush2.msra.mxu0 0.0
    %6759 = vmatprep.subr.mxu0 0.0
    %6760 = vmatpush2.msra.mxu0 0.0
    %6761 = vmatprep.subr.mxu0 0.0
    %6762 = vmatpush2.msra.mxu0 0.0
    %6763 = vmatprep.subr.mxu0 0.0
    %6764 = vmatpush2.msra.mxu0 0.0
    %6765 = vmatprep.subr.mxu0 0.0
    %6766 = vmatpush2.msra.mxu0 0.0
    %6767 = vmatprep.subr.mxu0 0.0
    %6768 = vmatpush2.msra.mxu0 0.0
    %6769 = vmatprep.subr.mxu0 0.0
    %6770 = vmatpush2.msra.mxu0 0.0
    %6771 = vmatprep.subr.mxu0 0.0
    %6772 = vmatpush2.msra.mxu0 0.0
    %6773 = vmatprep.subr.mxu0 0.0
    %6774 = vmatpush2.msra.mxu0 0.0
    %6775 = vmatprep.subr.mxu0 0.0
    %6776 = vmatpush2.msra.mxu0 0.0
    %6777 = vmatprep.subr.mxu0 0.0
    %6778 = vmatpush2.msra.mxu0 0.0
    %6779 = vmatprep.mubr.f32.mxu0 0.0
    %6780 = vmatmul.mubr.f32.gmra.mxu0 %v6713
    %v6781 = vpop.f32.mrf.mxu0
    %v6782 = vadd.f32 0.0, %v6781
    %v6783 = vpop.f32.mrf.mxu0
    %6784 = vdwg.mxu0
    %v6785 = vadd.f32 %v6602, %v6782
    %v6786 = vxor.u32 %v6785, 2147483648
    %v6787 = vmul.f32 %v6786, 1.442695
    %v6788 = vpow.pop %v6787
    %v6789 = vadd.f32 %v6788, 1.0
    %v6790 = vrcp.pop %v6789
    %v6791 = vmul.f32 1.0, %v6790
    %v6792 = vadd.f32 %v6782, %v2580
    %6794 = vrot.lane.b32.xlu0 %v6792, 64
    %v6795 = vpop.permute.xlu0 %6794
    %v6797 = vmul.f32 %v6791, %v6795
    %6799 = vrot.lane.b32.xlu0 %v6797, 64
    %v6800 = vpop.permute.xlu0 %6799
    %v6802 = vadd.f32 %v6602, %v6800
    %v6803 = vtanh.pop %v6802
    %v6804 = vsub.f32 %v6441, %v6803
    %6806 = vrot.lane.b32.xlu0 %v6804, 96
    %v6807 = vpop.permute.xlu0 %6806
    %v6809 = vmul.f32 %v6791, %v6807
    %6811 = vrot.lane.b32.xlu0 %v6809, 32
    %v6812 = vpop.permute.xlu0 %6811
    %v6814 = vadd.f32 %v6803, %v6812
    %6816 = vrot.lane.b32.xlu0 %v6814, 64
    %v6817 = vpop.permute.xlu0 %6816
    %6819 = vst.msk [vmem:[%s6 + $0x30] sm:$0xff] %vm45, %v6817
    %v6820 = vld [vmem:[%s2014] sm:$0xff]
    %v6821 = vld [vmem:[%s2014 + $0x8] sm:$0xff]
    %v6822 = vld [vmem:[%s2014 + $0x10] sm:$0xff]
    %v6823 = vld [vmem:[%s2014 + $0x18] sm:$0xff]
    %6825 = vrot.lane.b32.xlu0 %v6708, 64
    %v6826 = vpop.permute.xlu0 %6825
    %v6827 = vsel %vm45, %v6826, 0
    %6829 = vmatprep.subr.mxu0 0.0
    %6830 = vmatpush1.msra.mxu0 0.0
    %6831 = vmatprep.subr.mxu0 0.0
    %6832 = vmatpush1.msra.mxu0 0.0
    %6833 = vmatprep.subr.mxu0 0.0
    %6834 = vmatpush1.msra.mxu0 0.0
    %6835 = vmatprep.subr.mxu0 0.0
    %6836 = vmatpush1.msra.mxu0 0.0
    %6837 = vmatprep.subr.mxu0 0.0
    %6838 = vmatpush1.msra.mxu0 0.0
    %6839 = vmatprep.subr.mxu0 0.0
    %6840 = vmatpush1.msra.mxu0 0.0
    %6841 = vmatprep.subr.mxu0 0.0
    %6842 = vmatpush1.msra.mxu0 0.0
    %6843 = vmatprep.subr.mxu0 0.0
    %6844 = vmatpush1.msra.mxu0 0.0
    %6845 = vmatprep.subr.mxu0 0.0
    %6846 = vmatpush1.msra.mxu0 0.0
    %6847 = vmatprep.subr.mxu0 0.0
    %6848 = vmatpush1.msra.mxu0 0.0
    %6849 = vmatprep.subr.mxu0 0.0
    %6850 = vmatpush1.msra.mxu0 0.0
    %6851 = vmatprep.subr.mxu0 0.0
    %6852 = vmatpush1.msra.mxu0 0.0
    %6853 = vmatprep.subr.mxu0 0.0
    %6854 = vmatpush1.msra.mxu0 %v6823
    %6855 = vmatprep.subr.mxu0 0.0
    %6856 = vmatpush1.msra.mxu0 %v6822
    %6857 = vmatprep.subr.mxu0 0.0
    %6858 = vmatpush1.msra.mxu0 %v6821
    %6859 = vmatprep.subr.mxu0 0.0
    %6860 = vmatpush1.msra.mxu0 %v6820
    %6861 = vmatprep.subr.mxu0 0.0
    %6862 = vmatpush2.msra.mxu0 0.0
    %6863 = vmatprep.subr.mxu0 0.0
    %6864 = vmatpush2.msra.mxu0 0.0
    %6865 = vmatprep.subr.mxu0 0.0
    %6866 = vmatpush2.msra.mxu0 0.0
    %6867 = vmatprep.subr.mxu0 0.0
    %6868 = vmatpush2.msra.mxu0 0.0
    %6869 = vmatprep.subr.mxu0 0.0
    %6870 = vmatpush2.msra.mxu0 0.0
    %6871 = vmatprep.subr.mxu0 0.0
    %6872 = vmatpush2.msra.mxu0 0.0
    %6873 = vmatprep.subr.mxu0 0.0
    %6874 = vmatpush2.msra.mxu0 0.0
    %6875 = vmatprep.subr.mxu0 0.0
    %6876 = vmatpush2.msra.mxu0 0.0
    %6877 = vmatprep.subr.mxu0 0.0
    %6878 = vmatpush2.msra.mxu0 0.0
    %6879 = vmatprep.subr.mxu0 0.0
    %6880 = vmatpush2.msra.mxu0 0.0
    %6881 = vmatprep.subr.mxu0 0.0
    %6882 = vmatpush2.msra.mxu0 0.0
    %6883 = vmatprep.subr.mxu0 0.0
    %6884 = vmatpush2.msra.mxu0 0.0
    %6885 = vmatprep.subr.mxu0 0.0
    %6886 = vmatpush2.msra.mxu0 0.0
    %6887 = vmatprep.subr.mxu0 0.0
    %6888 = vmatpush2.msra.mxu0 0.0
    %6889 = vmatprep.subr.mxu0 0.0
    %6890 = vmatpush2.msra.mxu0 0.0
    %6891 = vmatprep.subr.mxu0 0.0
    %6892 = vmatpush2.msra.mxu0 0.0
    %6893 = vmatprep.mubr.f32.mxu0 0.0
    %6894 = vmatmul.mubr.f32.gmra.mxu0 %v6827
    %v6895 = vpop.f32.mrf.mxu0
    %v6896 = vadd.f32 %v248, %v6895
    %v6897 = vpop.f32.mrf.mxu0
    %6898 = vdwg.mxu0
    %v6899 = vld [vmem:[%s2494] sm:$0xff]
    %v6900 = vld [vmem:[%s2494 + $0x8] sm:$0xff]
    %v6901 = vld [vmem:[%s2494 + $0x10] sm:$0xff]
    %v6902 = vld [vmem:[%s2494 + $0x18] sm:$0xff]
    %v6903 = vsel %vm45, %v6817, 0
    %6905 = vmatprep.subr.mxu0 0.0
    %6906 = vmatpush1.msra.mxu0 0.0
    %6907 = vmatprep.subr.mxu0 0.0
    %6908 = vmatpush1.msra.mxu0 0.0
    %6909 = vmatprep.subr.mxu0 0.0
    %6910 = vmatpush1.msra.mxu0 0.0
    %6911 = vmatprep.subr.mxu0 0.0
    %6912 = vmatpush1.msra.mxu0 0.0
    %6913 = vmatprep.subr.mxu0 0.0
    %6914 = vmatpush1.msra.mxu0 0.0
    %6915 = vmatprep.subr.mxu0 0.0
    %6916 = vmatpush1.msra.mxu0 0.0
    %6917 = vmatprep.subr.mxu0 0.0
    %6918 = vmatpush1.msra.mxu0 0.0
    %6919 = vmatprep.subr.mxu0 0.0
    %6920 = vmatpush1.msra.mxu0 0.0
    %6921 = vmatprep.subr.mxu0 0.0
    %6922 = vmatpush1.msra.mxu0 0.0
    %6923 = vmatprep.subr.mxu0 0.0
    %6924 = vmatpush1.msra.mxu0 0.0
    %6925 = vmatprep.subr.mxu0 0.0
    %6926 = vmatpush1.msra.mxu0 0.0
    %6927 = vmatprep.subr.mxu0 0.0
    %6928 = vmatpush1.msra.mxu0 0.0
    %6929 = vmatprep.subr.mxu0 0.0
    %6930 = vmatpush1.msra.mxu0 %v6902
    %6931 = vmatprep.subr.mxu0 0.0
    %6932 = vmatpush1.msra.mxu0 %v6901
    %6933 = vmatprep.subr.mxu0 0.0
    %6934 = vmatpush1.msra.mxu0 %v6900
    %6935 = vmatprep.subr.mxu0 0.0
    %6936 = vmatpush1.msra.mxu0 %v6899
    %6937 = vmatprep.subr.mxu0 0.0
    %6938 = vmatpush2.msra.mxu0 0.0
    %6939 = vmatprep.subr.mxu0 0.0
    %6940 = vmatpush2.msra.mxu0 0.0
    %6941 = vmatprep.subr.mxu0 0.0
    %6942 = vmatpush2.msra.mxu0 0.0
    %6943 = vmatprep.subr.mxu0 0.0
    %6944 = vmatpush2.msra.mxu0 0.0
    %6945 = vmatprep.subr.mxu0 0.0
    %6946 = vmatpush2.msra.mxu0 0.0
    %6947 = vmatprep.subr.mxu0 0.0
    %6948 = vmatpush2.msra.mxu0 0.0
    %6949 = vmatprep.subr.mxu0 0.0
    %6950 = vmatpush2.msra.mxu0 0.0
    %6951 = vmatprep.subr.mxu0 0.0
    %6952 = vmatpush2.msra.mxu0 0.0
    %6953 = vmatprep.subr.mxu0 0.0
    %6954 = vmatpush2.msra.mxu0 0.0
    %6955 = vmatprep.subr.mxu0 0.0
    %6956 = vmatpush2.msra.mxu0 0.0
    %6957 = vmatprep.subr.mxu0 0.0
    %6958 = vmatpush2.msra.mxu0 0.0
    %6959 = vmatprep.subr.mxu0 0.0
    %6960 = vmatpush2.msra.mxu0 0.0
    %6961 = vmatprep.subr.mxu0 0.0
    %6962 = vmatpush2.msra.mxu0 0.0
    %6963 = vmatprep.subr.mxu0 0.0
    %6964 = vmatpush2.msra.mxu0 0.0
    %6965 = vmatprep.subr.mxu0 0.0
    %6966 = vmatpush2.msra.mxu0 0.0
    %6967 = vmatprep.subr.mxu0 0.0
    %6968 = vmatpush2.msra.mxu0 0.0
    %6969 = vmatprep.mubr.f32.mxu0 0.0
    %6970 = vmatmul.mubr.f32.gmra.mxu0 %v6903
    %v6971 = vpop.f32.mrf.mxu0
    %v6972 = vadd.f32 0.0, %v6971
    %v6973 = vpop.f32.mrf.mxu0
    %6974 = vdwg.mxu0
    %v6975 = vadd.f32 %v6896, %v6972
    %v6976 = vxor.u32 %v6975, 2147483648
    %v6977 = vmul.f32 %v6976, 1.442695
    %v6978 = vpow.pop %v6977
    %v6979 = vadd.f32 %v6978, 1.0
    %v6980 = vrcp.pop %v6979
    %v6981 = vmul.f32 1.0, %v6980
    %v6982 = vadd.f32 %v6972, %v2580
    %6984 = vrot.lane.b32.xlu0 %v6982, 64
    %v6985 = vpop.permute.xlu0 %6984
    %v6987 = vmul.f32 %v6981, %v6985
    %6989 = vrot.lane.b32.xlu0 %v6987, 64
    %v6990 = vpop.permute.xlu0 %6989
    %v6992 = vadd.f32 %v6896, %v6990
    %v6993 = vtanh.pop %v6992
    %v6994 = vsub.f32 %v6814, %v6993
    %6996 = vrot.lane.b32.xlu0 %v6994, 96
    %v6997 = vpop.permute.xlu0 %6996
    %v6999 = vmul.f32 %v6981, %v6997
    %7001 = vrot.lane.b32.xlu0 %v6999, 32
    %v7002 = vpop.permute.xlu0 %7001
    %v7004 = vadd.f32 %v6993, %v7002
    %7006 = vrot.lane.b32.xlu0 %v7004, 64
    %v7007 = vpop.permute.xlu0 %7006
    %7009 = vst.msk [vmem:[%s6 + $0x38] sm:$0xff] %vm45, %v7007
    %7011 = vst.msk [vmem:[#allocation3] sm:$0xff] %vm45, %v5158
    %s7013 = scalar_lea.vmem [#allocation3], 8
    %7014 = vst.msk [vmem:[%s7013] sm:$0xff] %vm45, %v5897
    %s7016 = scalar_lea.vmem [#allocation3], 16
    %7017 = vst.msk [vmem:[%s7016] sm:$0xff] %vm45, %v6453
    %s7019 = scalar_lea.vmem [#allocation3], 24
    %7020 = vst.msk [vmem:[%s7019] sm:$0xff] %vm45, %v6826
    %s7021 = scalar_lea.vmem [#allocation3], 32
    %7022 = vst.msk [vmem:[%s7021] sm:$0xff] %vm45, %v7007
    // Predicated region
    $region26: #{encoder_rnn_forward.1} parent=1 // pred_check
      _
    $region27: #{encoder_rnn_forward.1} parent=1 // pred_check_branch
      %7024 = sbr.rel (0) target = $region29
    $region28: #{encoder_rnn_forward.1} parent=1 // pred_region
      _
    $region29: #{encoder_rnn_forward.1} parent=1 // pred_fallthru
      _
    // Predicated region
    $region30: #{encoder_rnn_forward.1} parent=1 // pred_check
      _
    $region31: #{encoder_rnn_forward.1} parent=1 // pred_check_branch
      %7026 = sbr.rel (0) target = $region33
    $region32: #{encoder_rnn_forward.1} parent=1 // pred_region
      %s7028 = ssub.s32 640, 640
      %7029 = vsyncadd [#allocation4], %s7028
      %s7030 = sshll.u32 [#allocation3], 4
      %s7031 = int_to_ptr.vmem [resolvable:$true] %s7030
      %7036 = dma.vmem_to_hbm [thread:$0]  %s7031, 640, %s7, [#allocation4], 128, 128, 8
    $region33: #{encoder_rnn_forward.1} parent=1 // pred_fallthru
      _
    // Predicated region
    $region34: #{encoder_rnn_forward.1} parent=1 // pred_check
      _
    $region35: #{encoder_rnn_forward.1} parent=1 // pred_check_branch
      %7038 = sbr.rel (0) target = $region37
    $region36: #{encoder_rnn_forward.1} parent=1 // pred_region
      _
    $region37: #{encoder_rnn_forward.1} parent=1 // pred_fallthru
      _
    // Predicated region
    $region38: #{encoder_rnn_forward.1} parent=1 // pred_check
      _
    $region39: #{encoder_rnn_forward.1} parent=1 // pred_check_branch
      %7040 = sbr.rel (0) target = $region41
    $region40: #{encoder_rnn_forward.1} parent=1 // pred_region
      %7041 = dma.done [#allocation4], 640
    $region41: #{encoder_rnn_forward.1} parent=1 // pred_fallthru
      _
    %7042 = vsyncpa [#allocation4], 1

</llo_original>
